<compile_context>
chip_gen: v6e
topology: v6e:2x2x1
jax: 0.10.0
libtpu: 0.0.40
codegen_flags: <defaults>
</compile_context>

<pallas_src>
import jax
import jax.numpy as jnp
import numpy as np
from jax.experimental import pallas as pl
from jax.experimental.pallas import tpu as pltpu


def _round_up(x, m):
    return (x + m - 1) // m * m


# ----------------------------------------------------------------------------
# Fused residual-block kernel
# ----------------------------------------------------------------------------
def _make_resblock_kernel(H, W, Cpi, Cpo, has_projection):
    taps = [(t // 3, t % 3) for t in range(9)]

    def body(x_ref, w1_ref, s1_ref, b1_ref, w2_ref, s2_ref, b2_ref,
             wsc_ref, ssc_ref, bsc_ref, o_ref, pad1, pad2, col):
        cdt = pad1.dtype                                     # bf16

        # Zero only the 1-px border actually read by the taps; the interior
        # [1:H+1, 1:W+1] is fully overwritten every step.
        def zero_border(pad, C):
            pad[0:1, 0:W + 2, :] = jnp.zeros((1, W + 2, C), cdt)
            pad[H + 1:H + 2, 0:W + 2, :] = jnp.zeros((1, W + 2, C), cdt)
            pad[1:H + 1, 0:1, :] = jnp.zeros((H, 1, C), cdt)
            pad[1:H + 1, W + 1:W + 2, :] = jnp.zeros((H, 1, C), cdt)

        zero_border(pad1, Cpi)
        zero_border(pad2, Cpo)

        x = x_ref[...]                                       # (H, W, Cpi) bf16

        # ---- conv1 (3x3, pad=1, no bias) + folded BN1 + ReLU ----------------
        pad1[1:H + 1, 1:W + 1, :] = x
        for t, (dy, dx) in enumerate(taps):                  # im2col build
            col[:, t * Cpi:(t + 1) * Cpi] = (
                pad1[dy:dy + H, dx:dx + W, :].reshape(H * W, Cpi))
        acc1 = jnp.dot(col[:, :9 * Cpi], w1_ref[...],
                       preferred_element_type=jnp.float32)   # one MXU matmul
        h1 = jnp.maximum(acc1 * s1_ref[...] + b1_ref[...], 0.0)   # f32 epilogue

        # ---- conv2 (3x3, pad=1, no bias) + folded BN2 -----------------------
        pad2[1:H + 1, 1:W + 1, :] = h1.reshape(H, W, Cpo).astype(cdt)
        for t, (dy, dx) in enumerate(taps):
            col[:, t * Cpo:(t + 1) * Cpo] = (
                pad2[dy:dy + H, dx:dx + W, :].reshape(H * W, Cpo))
        acc2 = jnp.dot(col[:, :9 * Cpo], w2_ref[...],
                       preferred_element_type=jnp.float32)
        out = acc2 * s2_ref[...] + b2_ref[...]

        # ---- shortcut -------------------------------------------------------
        if has_projection:                                   # 1x1 conv + BN
            sc = jnp.dot(x.reshape(H * W, Cpi), wsc_ref[...],
                         preferred_element_type=jnp.float32)
            sc = sc * ssc_ref[...] + bsc_ref[...]
        else:                                                # identity (Cpi==Cpo)
            sc = x.reshape(H * W, Cpi).astype(jnp.float32)

        o_ref[...] = jnp.maximum(out + sc, 0.0).reshape(H, W, Cpo)

    if has_projection:
        def kernel(x_ref, w1_ref, s1_ref, b1_ref, w2_ref, s2_ref, b2_ref,
                   wsc_ref, ssc_ref, bsc_ref, o_ref, pad1, pad2, col):
            body(x_ref, w1_ref, s1_ref, b1_ref, w2_ref, s2_ref, b2_ref,
                 wsc_ref, ssc_ref, bsc_ref, o_ref, pad1, pad2, col)
    else:
        def kernel(x_ref, w1_ref, s1_ref, b1_ref, w2_ref, s2_ref, b2_ref,
                   o_ref, pad1, pad2, col):
            body(x_ref, w1_ref, s1_ref, b1_ref, w2_ref, s2_ref, b2_ref,
                 None, None, None, o_ref, pad1, pad2, col)
    return kernel


# ----------------------------------------------------------------------------
# Wrappers
# ----------------------------------------------------------------------------
def residual_block_nhwc(x_pad, kp):
    """Fused block on channel-padded NHWC activations.

    x_pad: (N, H, W, Cpi) bf16, Cpi a multiple of 128 (extra channels zero).
    Returns (N, H, W, Cpo) f32, channel-padded (extra channels are zero).
    Use this entry point when chaining blocks so activations never leave the
    lane-dense NHWC layout between layers.
    """
    N, H, W, Cpi = x_pad.shape
    Cpo = kp["w1"].shape[1]
    has_projection = "wsc" in kp
    Wp = _round_up(W + 2, 8)                  # sublane-aligned padded scratch
    Cpmax = max(Cpi, Cpo)

    def full(shape):
        return pl.BlockSpec(shape, lambda n: (0,) * len(shape))

    in_specs = [
        pl.BlockSpec((None, H, W, Cpi), lambda n: (n, 0, 0, 0)),
        full((9 * Cpi, Cpo)), full((1, Cpo)), full((1, Cpo)),
        full((9 * Cpo, Cpo)), full((1, Cpo)), full((1, Cpo)),
    ]
    args = [x_pad, kp["w1"], kp["s1"], kp["b1"], kp["w2"], kp["s2"], kp["b2"]]
    if has_projection:
        in_specs += [full((Cpi, Cpo)), full((1, Cpo)), full((1, Cpo))]
        args += [kp["wsc"], kp["ssc"], kp["bsc"]]

    return pl.pallas_call(
        _make_resblock_kernel(H, W, Cpi, Cpo, has_projection),
        out_shape=jax.ShapeDtypeStruct((N, H, W, Cpo), jnp.float32),
        grid=(N,),
        in_specs=in_specs,
        out_specs=pl.BlockSpec((None, H, W, Cpo), lambda n: (n, 0, 0, 0)),
        scratch_shapes=[
            pltpu.VMEM((H + 2, Wp, Cpi), jnp.bfloat16),      # padded conv1 input
            pltpu.VMEM((H + 2, Wp, Cpo), jnp.bfloat16),      # padded conv2 input
            pltpu.VMEM((H * W, 9 * Cpmax), jnp.bfloat16),    # shared im2col slab
        ],
        compiler_params=pltpu.CompilerParams(
            dimension_semantics=("parallel",)),
    )(*args)


def residual_block_forward(x_nchw, kp):
    """PyTorch-layout entry point: (N, Cin, H, W) f32 -> (N, Cout, H, W) f32.

    The NCHW<->NHWC transpose and channel pad happen only at this boundary;
    chained blocks should use residual_block_nhwc directly on padded NHWC.
    """
    N, Cin, H, W = x_nchw.shape
    Cpi = kp["w1"].shape[0] // 9
    Cout = kp["out_channels"]
    x = jnp.transpose(x_nchw, (0, 2, 3, 1))
    x = jnp.pad(x, ((0, 0), (0, 0), (0, 0), (0, Cpi - Cin))).astype(jnp.bfloat16)
    out = residual_block_nhwc(x, kp)
    return jnp.transpose(out[..., :Cout], (0, 3, 1, 2))


# ----------------------------------------------------------------------------
# Parameters (torch layout) + conversion to kernel layout
# ----------------------------------------------------------------------------
def init_torch_params(key, in_channels, out_channels, stride=1):
    assert stride == 1  # TODO(synk): stride > 1 unimplemented in the fused kernel
    ks = jax.random.split(key, 6)

    def conv_w(k, cout, cin, kh, kw):
        bound = 1.0 / np.sqrt(cin * kh * kw)
        return jax.random.uniform(k, (cout, cin, kh, kw), jnp.float32, -bound, bound)

    def bn(k):
        k1, k2, k3, k4 = jax.random.split(k, 4)
        return dict(
            gamma=jax.random.uniform(k1, (out_channels,), jnp.float32, 0.5, 1.5),
            beta=jax.random.normal(k2, (out_channels,), jnp.float32) * 0.1,
            mean=jax.random.normal(k3, (out_channels,), jnp.float32) * 0.1,
            var=jax.random.uniform(k4, (out_channels,), jnp.float32, 0.5, 1.5),
        )

    p = {"w1": conv_w(ks[0], out_channels, in_channels, 3, 3), "bn1": bn(ks[1]),
         "w2": conv_w(ks[2], out_channels, out_channels, 3, 3), "bn2": bn(ks[3])}
    if stride != 1 or in_channels != out_channels:
        p["wsc"] = conv_w(ks[4], out_channels, in_channels, 1, 1)
        p["bnsc"] = bn(ks[5])
    return p


def to_kernel_params(p, eps=1e-5):
    """Torch weights -> lane-dense bf16 im2col slabs + folded (f32) BN."""
    Cout, Cin = p["w1"].shape[0], p["w1"].shape[1]
    Cpi, Cpo = _round_up(Cin, 128), _round_up(Cout, 128)

    def w3x3_slab(w, cpi, cpo):        # (Cout, Cin, 3, 3) -> (9*cpi, cpo) bf16
        cout, cin = w.shape[0], w.shape[1]
        w9 = jnp.transpose(w, (2, 3, 1, 0)).reshape(9, cin, cout)
        w9 = jnp.pad(w9, ((0, 0), (0, cpi - cin), (0, cpo - cout)))
        return w9.reshape(9 * cpi, cpo).astype(jnp.bfloat16)

    def fold(bn):                      # inference BN -> per-channel scale/shift
        scale = bn["gamma"] / jnp.sqrt(bn["var"] + eps)
        shift = bn["beta"] - bn["mean"] * scale
        scale = jnp.pad(scale, (0, Cpo - Cout), constant_values=1.0)
        shift = jnp.pad(shift, (0, Cpo - Cout))
        return (scale.reshape(1, -1).astype(jnp.float32),
                shift.reshape(1, -1).astype(jnp.float32))

    kp = {"out_channels": Cout,
          "w1": w3x3_slab(p["w1"], Cpi, Cpo),
          "w2": w3x3_slab(p["w2"], Cpo, Cpo)}
    kp["s1"], kp["b1"] = fold(p["bn1"])
    kp["s2"], kp["b2"] = fold(p["bn2"])
    if "wsc" in p:
        wsc = jnp.transpose(p["wsc"][:, :, 0, 0], (1, 0))    # (Cin, Cout)
        kp["wsc"] = jnp.pad(wsc, ((0, Cpi - Cin), (0, Cpo - Cout))).astype(jnp.bfloat16)
        kp["ssc"], kp["bsc"] = fold(p["bnsc"])
    return kp


# ----------------------------------------------------------------------------
# Pure-JAX reference (NCHW, inference-mode BN, all f32)
# ----------------------------------------------------------------------------
def reference_forward(x, p, eps=1e-5):
    def conv(x, w, pad):
        return jax.lax.conv_general_dilated(
            x, w, (1, 1), [(pad, pad), (pad, pad)],
            dimension_numbers=("NCHW", "OIHW", "NCHW"))

    def bn(x, b):
        scale = (b["gamma"] / jnp.sqrt(b["var"] + eps)).reshape(1, -1, 1, 1)
        shift = b["beta"].reshape(1, -1, 1, 1) - b["mean"].reshape(1, -1, 1, 1) * scale
        return x * scale + shift

    out = jnp.maximum(bn(conv(x, p["w1"], 1), p["bn1"]), 0.0)
    out = bn(conv(out, p["w2"], 1), p["bn2"])
    sc = bn(conv(x, p["wsc"], 0), p["bnsc"]) if "wsc" in p else x
    return jnp.maximum(out + sc, 0.0)


# ----------------------------------------------------------------------------
if __name__ == "__main__":
    key = jax.random.PRNGKey(0)
    k_param, k_x = jax.random.split(key)

    N, Cin, H, W = 2, 4, 16, 16
    Cout = 32                      # Cin != Cout -> projection shortcut exercised
    x = jax.random.normal(k_x, (N, Cin, H, W), jnp.float32)

    torch_p = init_torch_params(k_param, Cin, Cout, stride=1)
    kernel_p = to_kernel_params(torch_p)

    # Close over kernel_p so its Python-int metadata stays static under jit.
    fwd = jax.jit(lambda xx: residual_block_forward(xx, kernel_p))
    out = jax.block_until_ready(fwd(x))
    assert out.shape == (N, Cout, H, W), out.shape

    ref = jax.block_until_ready(reference_forward(x, torch_p))
    # Tolerance sized for bf16 MXU inputs with f32 accumulation/epilogue.
    np.testing.assert_allclose(np.asarray(out), np.asarray(ref),
                               rtol=2e-2, atol=2e-2)

    print("KERNEL_OK")
</pallas_src>

<mosaic_0001>
module attributes {stable_mosaic.version = 11 : i64} {
  func.func @kernel(%arg0: i32, %arg1: memref<1x16x16x128xbf16, #tpu.memory_space<vmem>>, %arg2: memref<1152x128xbf16, #tpu.memory_space<vmem>>, %arg3: memref<1x128xf32, #tpu.memory_space<vmem>>, %arg4: memref<1x128xf32, #tpu.memory_space<vmem>>, %arg5: memref<1152x128xbf16, #tpu.memory_space<vmem>>, %arg6: memref<1x128xf32, #tpu.memory_space<vmem>>, %arg7: memref<1x128xf32, #tpu.memory_space<vmem>>, %arg8: memref<128x128xbf16, #tpu.memory_space<vmem>>, %arg9: memref<1x128xf32, #tpu.memory_space<vmem>>, %arg10: memref<1x128xf32, #tpu.memory_space<vmem>>, %arg11: memref<1x16x16x128xf32, #tpu.memory_space<vmem>>, %arg12: memref<18x24x128xbf16, #tpu.memory_space<vmem>>, %arg13: memref<18x24x128xbf16, #tpu.memory_space<vmem>>, %arg14: memref<256x1152xbf16, #tpu.memory_space<vmem>>) attributes {dimension_semantics = [#tpu.dimension_semantics<parallel>], iteration_bounds = array<i64: 2>, scalar_prefetch = 0 : i64, scratch_operands = 3 : i64, tpu.core_type = #tpu.core_type<tc>, window_params = [{transform_indices = @transform_0, window_bounds = array<i64: 1, 16, 16, 128>}, {pipeline_mode = #tpu.pipeline_mode<synchronous>, transform_indices = @transform_1, window_bounds = array<i64: 1152, 128>}, {pipeline_mode = #tpu.pipeline_mode<synchronous>, transform_indices = @transform_2, window_bounds = array<i64: 1, 128>}, {pipeline_mode = #tpu.pipeline_mode<synchronous>, transform_indices = @transform_3, window_bounds = array<i64: 1, 128>}, {pipeline_mode = #tpu.pipeline_mode<synchronous>, transform_indices = @transform_4, window_bounds = array<i64: 1152, 128>}, {pipeline_mode = #tpu.pipeline_mode<synchronous>, transform_indices = @transform_5, window_bounds = array<i64: 1, 128>}, {pipeline_mode = #tpu.pipeline_mode<synchronous>, transform_indices = @transform_6, window_bounds = array<i64: 1, 128>}, {pipeline_mode = #tpu.pipeline_mode<synchronous>, transform_indices = @transform_7, window_bounds = array<i64: 128, 128>}, {pipeline_mode = #tpu.pipeline_mode<synchronous>, transform_indices = @transform_8, window_bounds = array<i64: 1, 128>}, {pipeline_mode = #tpu.pipeline_mode<synchronous>, transform_indices = @transform_9, window_bounds = array<i64: 1, 128>}, {transform_indices = @transform_10, window_bounds = array<i64: 1, 16, 16, 128>}]} {
    %cst = arith.constant 0.000000e+00 : bf16
    %0 = vector.broadcast %cst : bf16 to vector<1x18x128xbf16>
    %c0 = arith.constant 0 : index
    %c0_0 = arith.constant 0 : index
    %c0_1 = arith.constant 0 : index
    %1 = vector.load %arg12[%c0, %c0_0, %c0_1] : memref<18x24x128xbf16, #tpu.memory_space<vmem>>, vector<1x18x128xbf16>
    tpu.vector_store %arg12[%c0, %c0_0, %c0_1], %0 {strides = array<i32>} : memref<18x24x128xbf16, #tpu.memory_space<vmem>>, vector<1x18x128xbf16>,
    %cst_2 = arith.constant 0.000000e+00 : bf16
    %2 = vector.broadcast %cst_2 : bf16 to vector<1x18x128xbf16>
    %c17 = arith.constant 17 : index
    %c0_3 = arith.constant 0 : index
    %c0_4 = arith.constant 0 : index
    %3 = vector.load %arg12[%c17, %c0_3, %c0_4] : memref<18x24x128xbf16, #tpu.memory_space<vmem>>, vector<1x18x128xbf16>
    tpu.vector_store %arg12[%c17, %c0_3, %c0_4], %2 {strides = array<i32>} : memref<18x24x128xbf16, #tpu.memory_space<vmem>>, vector<1x18x128xbf16>,
    %cst_5 = arith.constant 0.000000e+00 : bf16
    %4 = vector.broadcast %cst_5 : bf16 to vector<16x1x128xbf16>
    %c1 = arith.constant 1 : index
    %c0_6 = arith.constant 0 : index
    %c0_7 = arith.constant 0 : index
    %5 = vector.load %arg12[%c1, %c0_6, %c0_7] : memref<18x24x128xbf16, #tpu.memory_space<vmem>>, vector<16x1x128xbf16>
    tpu.vector_store %arg12[%c1, %c0_6, %c0_7], %4 {strides = array<i32>} : memref<18x24x128xbf16, #tpu.memory_space<vmem>>, vector<16x1x128xbf16>,
    %cst_8 = arith.constant 0.000000e+00 : bf16
    %6 = vector.broadcast %cst_8 : bf16 to vector<16x1x128xbf16>
    %c1_9 = arith.constant 1 : index
    %c17_10 = arith.constant 17 : index
    %c0_11 = arith.constant 0 : index
    %7 = vector.load %arg12[%c1_9, %c17_10, %c0_11] : memref<18x24x128xbf16, #tpu.memory_space<vmem>>, vector<16x1x128xbf16>
    tpu.vector_store %arg12[%c1_9, %c17_10, %c0_11], %6 {strides = array<i32>} : memref<18x24x128xbf16, #tpu.memory_space<vmem>>, vector<16x1x128xbf16>,
    %cst_12 = arith.constant 0.000000e+00 : bf16
    %8 = vector.broadcast %cst_12 : bf16 to vector<1x18x128xbf16>
    %c0_13 = arith.constant 0 : index
    %c0_14 = arith.constant 0 : index
    %c0_15 = arith.constant 0 : index
    %9 = vector.load %arg13[%c0_13, %c0_14, %c0_15] : memref<18x24x128xbf16, #tpu.memory_space<vmem>>, vector<1x18x128xbf16>
    tpu.vector_store %arg13[%c0_13, %c0_14, %c0_15], %8 {strides = array<i32>} : memref<18x24x128xbf16, #tpu.memory_space<vmem>>, vector<1x18x128xbf16>,
    %cst_16 = arith.constant 0.000000e+00 : bf16
    %10 = vector.broadcast %cst_16 : bf16 to vector<1x18x128xbf16>
    %c17_17 = arith.constant 17 : index
    %c0_18 = arith.constant 0 : index
    %c0_19 = arith.constant 0 : index
    %11 = vector.load %arg13[%c17_17, %c0_18, %c0_19] : memref<18x24x128xbf16, #tpu.memory_space<vmem>>, vector<1x18x128xbf16>
    tpu.vector_store %arg13[%c17_17, %c0_18, %c0_19], %10 {strides = array<i32>} : memref<18x24x128xbf16, #tpu.memory_space<vmem>>, vector<1x18x128xbf16>,
    %cst_20 = arith.constant 0.000000e+00 : bf16
    %12 = vector.broadcast %cst_20 : bf16 to vector<16x1x128xbf16>
    %c1_21 = arith.constant 1 : index
    %c0_22 = arith.constant 0 : index
    %c0_23 = arith.constant 0 : index
    %13 = vector.load %arg13[%c1_21, %c0_22, %c0_23] : memref<18x24x128xbf16, #tpu.memory_space<vmem>>, vector<16x1x128xbf16>
    tpu.vector_store %arg13[%c1_21, %c0_22, %c0_23], %12 {strides = array<i32>} : memref<18x24x128xbf16, #tpu.memory_space<vmem>>, vector<16x1x128xbf16>,
    %cst_24 = arith.constant 0.000000e+00 : bf16
    %14 = vector.broadcast %cst_24 : bf16 to vector<16x1x128xbf16>
    %c1_25 = arith.constant 1 : index
    %c17_26 = arith.constant 17 : index
    %c0_27 = arith.constant 0 : index
    %15 = vector.load %arg13[%c1_25, %c17_26, %c0_27] : memref<18x24x128xbf16, #tpu.memory_space<vmem>>, vector<16x1x128xbf16>
    tpu.vector_store %arg13[%c1_25, %c17_26, %c0_27], %14 {strides = array<i32>} : memref<18x24x128xbf16, #tpu.memory_space<vmem>>, vector<16x1x128xbf16>,
    %c0_28 = arith.constant 0 : index
    %c0_29 = arith.constant 0 : index
    %c0_30 = arith.constant 0 : index
    %c0_31 = arith.constant 0 : index
    %16 = vector.load %arg1[%c0_28, %c0_29, %c0_30, %c0_31] : memref<1x16x16x128xbf16, #tpu.memory_space<vmem>>, vector<1x16x16x128xbf16>
    %17 = vector.shape_cast %16 : vector<1x16x16x128xbf16> to vector<16x16x128xbf16>
    %c1_32 = arith.constant 1 : index
    %c1_33 = arith.constant 1 : index
    %c0_34 = arith.constant 0 : index
    %18 = vector.load %arg12[%c1_32, %c1_33, %c0_34] : memref<18x24x128xbf16, #tpu.memory_space<vmem>>, vector<16x16x128xbf16>
    tpu.vector_store %arg12[%c1_32, %c1_33, %c0_34], %17 {strides = array<i32>} : memref<18x24x128xbf16, #tpu.memory_space<vmem>>, vector<16x16x128xbf16>,
    %c0_35 = arith.constant 0 : index
    %c0_36 = arith.constant 0 : index
    %c0_37 = arith.constant 0 : index
    %19 = vector.load %arg12[%c0_35, %c0_36, %c0_37] : memref<18x24x128xbf16, #tpu.memory_space<vmem>>, vector<16x16x128xbf16>
    %20 = vector.shape_cast %19 : vector<16x16x128xbf16> to vector<256x128xbf16>
    %c0_38 = arith.constant 0 : index
    %c0_39 = arith.constant 0 : index
    %21 = vector.load %arg14[%c0_38, %c0_39] : memref<256x1152xbf16, #tpu.memory_space<vmem>>, vector<256x128xbf16>
    tpu.vector_store %arg14[%c0_38, %c0_39], %20 {strides = array<i32>} : memref<256x1152xbf16, #tpu.memory_space<vmem>>, vector<256x128xbf16>,
    %c0_40 = arith.constant 0 : index
    %c1_41 = arith.constant 1 : index
    %c0_42 = arith.constant 0 : index
    %22 = vector.load %arg12[%c0_40, %c1_41, %c0_42] : memref<18x24x128xbf16, #tpu.memory_space<vmem>>, vector<16x16x128xbf16>
    %23 = vector.shape_cast %22 : vector<16x16x128xbf16> to vector<256x128xbf16>
    %c0_43 = arith.constant 0 : index
    %c128 = arith.constant 128 : index
    %24 = vector.load %arg14[%c0_43, %c128] : memref<256x1152xbf16, #tpu.memory_space<vmem>>, vector<256x128xbf16>
    tpu.vector_store %arg14[%c0_43, %c128], %23 {strides = array<i32>} : memref<256x1152xbf16, #tpu.memory_space<vmem>>, vector<256x128xbf16>,
    %c0_44 = arith.constant 0 : index
    %c2 = arith.constant 2 : index
    %c0_45 = arith.constant 0 : index
    %25 = vector.load %arg12[%c0_44, %c2, %c0_45] : memref<18x24x128xbf16, #tpu.memory_space<vmem>>, vector<16x16x128xbf16>
    %26 = vector.shape_cast %25 : vector<16x16x128xbf16> to vector<256x128xbf16>
    %c0_46 = arith.constant 0 : index
    %c256 = arith.constant 256 : index
    %27 = vector.load %arg14[%c0_46, %c256] : memref<256x1152xbf16, #tpu.memory_space<vmem>>, vector<256x128xbf16>
    tpu.vector_store %arg14[%c0_46, %c256], %26 {strides = array<i32>} : memref<256x1152xbf16, #tpu.memory_space<vmem>>, vector<256x128xbf16>,
    %c1_47 = arith.constant 1 : index
    %c0_48 = arith.constant 0 : index
    %c0_49 = arith.constant 0 : index
    %28 = vector.load %arg12[%c1_47, %c0_48, %c0_49] : memref<18x24x128xbf16, #tpu.memory_space<vmem>>, vector<16x16x128xbf16>
    %29 = vector.shape_cast %28 : vector<16x16x128xbf16> to vector<256x128xbf16>
    %c0_50 = arith.constant 0 : index
    %c384 = arith.constant 384 : index
    %30 = vector.load %arg14[%c0_50, %c384] : memref<256x1152xbf16, #tpu.memory_space<vmem>>, vector<256x128xbf16>
    tpu.vector_store %arg14[%c0_50, %c384], %29 {strides = array<i32>} : memref<256x1152xbf16, #tpu.memory_space<vmem>>, vector<256x128xbf16>,
    %c1_51 = arith.constant 1 : index
    %c1_52 = arith.constant 1 : index
    %c0_53 = arith.constant 0 : index
    %31 = vector.load %arg12[%c1_51, %c1_52, %c0_53] : memref<18x24x128xbf16, #tpu.memory_space<vmem>>, vector<16x16x128xbf16>
    %32 = vector.shape_cast %31 : vector<16x16x128xbf16> to vector<256x128xbf16>
    %c0_54 = arith.constant 0 : index
    %c512 = arith.constant 512 : index
    %33 = vector.load %arg14[%c0_54, %c512] : memref<256x1152xbf16, #tpu.memory_space<vmem>>, vector<256x128xbf16>
    tpu.vector_store %arg14[%c0_54, %c512], %32 {strides = array<i32>} : memref<256x1152xbf16, #tpu.memory_space<vmem>>, vector<256x128xbf16>,
    %c1_55 = arith.constant 1 : index
    %c2_56 = arith.constant 2 : index
    %c0_57 = arith.constant 0 : index
    %34 = vector.load %arg12[%c1_55, %c2_56, %c0_57] : memref<18x24x128xbf16, #tpu.memory_space<vmem>>, vector<16x16x128xbf16>
    %35 = vector.shape_cast %34 : vector<16x16x128xbf16> to vector<256x128xbf16>
    %c0_58 = arith.constant 0 : index
    %c640 = arith.constant 640 : index
    %36 = vector.load %arg14[%c0_58, %c640] : memref<256x1152xbf16, #tpu.memory_space<vmem>>, vector<256x128xbf16>
    tpu.vector_store %arg14[%c0_58, %c640], %35 {strides = array<i32>} : memref<256x1152xbf16, #tpu.memory_space<vmem>>, vector<256x128xbf16>,
    %c2_59 = arith.constant 2 : index
    %c0_60 = arith.constant 0 : index
    %c0_61 = arith.constant 0 : index
    %37 = vector.load %arg12[%c2_59, %c0_60, %c0_61] : memref<18x24x128xbf16, #tpu.memory_space<vmem>>, vector<16x16x128xbf16>
    %38 = vector.shape_cast %37 : vector<16x16x128xbf16> to vector<256x128xbf16>
    %c0_62 = arith.constant 0 : index
    %c768 = arith.constant 768 : index
    %39 = vector.load %arg14[%c0_62, %c768] : memref<256x1152xbf16, #tpu.memory_space<vmem>>, vector<256x128xbf16>
    tpu.vector_store %arg14[%c0_62, %c768], %38 {strides = array<i32>} : memref<256x1152xbf16, #tpu.memory_space<vmem>>, vector<256x128xbf16>,
    %c2_63 = arith.constant 2 : index
    %c1_64 = arith.constant 1 : index
    %c0_65 = arith.constant 0 : index
    %40 = vector.load %arg12[%c2_63, %c1_64, %c0_65] : memref<18x24x128xbf16, #tpu.memory_space<vmem>>, vector<16x16x128xbf16>
    %41 = vector.shape_cast %40 : vector<16x16x128xbf16> to vector<256x128xbf16>
    %c0_66 = arith.constant 0 : index
    %c896 = arith.constant 896 : index
    %42 = vector.load %arg14[%c0_66, %c896] : memref<256x1152xbf16, #tpu.memory_space<vmem>>, vector<256x128xbf16>
    tpu.vector_store %arg14[%c0_66, %c896], %41 {strides = array<i32>} : memref<256x1152xbf16, #tpu.memory_space<vmem>>, vector<256x128xbf16>,
    %c2_67 = arith.constant 2 : index
    %c2_68 = arith.constant 2 : index
    %c0_69 = arith.constant 0 : index
    %43 = vector.load %arg12[%c2_67, %c2_68, %c0_69] : memref<18x24x128xbf16, #tpu.memory_space<vmem>>, vector<16x16x128xbf16>
    %44 = vector.shape_cast %43 : vector<16x16x128xbf16> to vector<256x128xbf16>
    %c0_70 = arith.constant 0 : index
    %c1024 = arith.constant 1024 : index
    %45 = vector.load %arg14[%c0_70, %c1024] : memref<256x1152xbf16, #tpu.memory_space<vmem>>, vector<256x128xbf16>
    tpu.vector_store %arg14[%c0_70, %c1024], %44 {strides = array<i32>} : memref<256x1152xbf16, #tpu.memory_space<vmem>>, vector<256x128xbf16>,
    %c0_71 = arith.constant 0 : index
    %c0_72 = arith.constant 0 : index
    %46 = vector.load %arg14[%c0_71, %c0_72] : memref<256x1152xbf16, #tpu.memory_space<vmem>>, vector<256x1152xbf16>
    %c0_73 = arith.constant 0 : index
    %c0_74 = arith.constant 0 : index
    %47 = vector.load %arg2[%c0_73, %c0_74] : memref<1152x128xbf16, #tpu.memory_space<vmem>>, vector<1152x128xbf16>
    %cst_75 = arith.constant dense<0.000000e+00> : vector<256x128xf32>
    %48 = tpu.matmul %46, %47, %cst_75 {dimension_numbers = #tpu.dot_dimension_numbers<[1], [0], [0], [1], [0, 0, 1, 1], [], []>} : vector<256x1152xbf16>, vector<1152x128xbf16>, vector<256x128xf32> -> vector<256x128xf32>
    %c0_76 = arith.constant 0 : index
    %c0_77 = arith.constant 0 : index
    %49 = vector.load %arg3[%c0_76, %c0_77] : memref<1x128xf32, #tpu.memory_space<vmem>>, vector<1x128xf32>
    %50 = vector.broadcast %49 : vector<1x128xf32> to vector<256x128xf32>
    %51 = arith.mulf %48, %50 : vector<256x128xf32>
    %c0_78 = arith.constant 0 : index
    %c0_79 = arith.constant 0 : index
    %52 = vector.load %arg4[%c0_78, %c0_79] : memref<1x128xf32, #tpu.memory_space<vmem>>, vector<1x128xf32>
    %53 = vector.broadcast %52 : vector<1x128xf32> to vector<256x128xf32>
    %54 = arith.addf %51, %53 : vector<256x128xf32>
    %cst_80 = arith.constant 0.000000e+00 : f32
    %55 = vector.broadcast %cst_80 : f32 to vector<256x128xf32>
    %56 = arith.maximumf %54, %55 : vector<256x128xf32>
    %57 = vector.shape_cast %56 : vector<256x128xf32> to vector<16x16x128xf32>
    %58 = arith.truncf %57 : vector<16x16x128xf32> to vector<16x16x128xbf16>
    %c1_81 = arith.constant 1 : index
    %c1_82 = arith.constant 1 : index
    %c0_83 = arith.constant 0 : index
    %59 = vector.load %arg13[%c1_81, %c1_82, %c0_83] : memref<18x24x128xbf16, #tpu.memory_space<vmem>>, vector<16x16x128xbf16>
    tpu.vector_store %arg13[%c1_81, %c1_82, %c0_83], %58 {strides = array<i32>} : memref<18x24x128xbf16, #tpu.memory_space<vmem>>, vector<16x16x128xbf16>,
    %c0_84 = arith.constant 0 : index
    %c0_85 = arith.constant 0 : index
    %c0_86 = arith.constant 0 : index
    %60 = vector.load %arg13[%c0_84, %c0_85, %c0_86] : memref<18x24x128xbf16, #tpu.memory_space<vmem>>, vector<16x16x128xbf16>
    %61 = vector.shape_cast %60 : vector<16x16x128xbf16> to vector<256x128xbf16>
    %c0_87 = arith.constant 0 : index
    %c0_88 = arith.constant 0 : index
    %62 = vector.load %arg14[%c0_87, %c0_88] : memref<256x1152xbf16, #tpu.memory_space<vmem>>, vector<256x128xbf16>
    tpu.vector_store %arg14[%c0_87, %c0_88], %61 {strides = array<i32>} : memref<256x1152xbf16, #tpu.memory_space<vmem>>, vector<256x128xbf16>,
    %c0_89 = arith.constant 0 : index
    %c1_90 = arith.constant 1 : index
    %c0_91 = arith.constant 0 : index
    %63 = vector.load %arg13[%c0_89, %c1_90, %c0_91] : memref<18x24x128xbf16, #tpu.memory_space<vmem>>, vector<16x16x128xbf16>
    %64 = vector.shape_cast %63 : vector<16x16x128xbf16> to vector<256x128xbf16>
    %c0_92 = arith.constant 0 : index
    %c128_93 = arith.constant 128 : index
    %65 = vector.load %arg14[%c0_92, %c128_93] : memref<256x1152xbf16, #tpu.memory_space<vmem>>, vector<256x128xbf16>
    tpu.vector_store %arg14[%c0_92, %c128_93], %64 {strides = array<i32>} : memref<256x1152xbf16, #tpu.memory_space<vmem>>, vector<256x128xbf16>,
    %c0_94 = arith.constant 0 : index
    %c2_95 = arith.constant 2 : index
    %c0_96 = arith.constant 0 : index
    %66 = vector.load %arg13[%c0_94, %c2_95, %c0_96] : memref<18x24x128xbf16, #tpu.memory_space<vmem>>, vector<16x16x128xbf16>
    %67 = vector.shape_cast %66 : vector<16x16x128xbf16> to vector<256x128xbf16>
    %c0_97 = arith.constant 0 : index
    %c256_98 = arith.constant 256 : index
    %68 = vector.load %arg14[%c0_97, %c256_98] : memref<256x1152xbf16, #tpu.memory_space<vmem>>, vector<256x128xbf16>
    tpu.vector_store %arg14[%c0_97, %c256_98], %67 {strides = array<i32>} : memref<256x1152xbf16, #tpu.memory_space<vmem>>, vector<256x128xbf16>,
    %c1_99 = arith.constant 1 : index
    %c0_100 = arith.constant 0 : index
    %c0_101 = arith.constant 0 : index
    %69 = vector.load %arg13[%c1_99, %c0_100, %c0_101] : memref<18x24x128xbf16, #tpu.memory_space<vmem>>, vector<16x16x128xbf16>
    %70 = vector.shape_cast %69 : vector<16x16x128xbf16> to vector<256x128xbf16>
    %c0_102 = arith.constant 0 : index
    %c384_103 = arith.constant 384 : index
    %71 = vector.load %arg14[%c0_102, %c384_103] : memref<256x1152xbf16, #tpu.memory_space<vmem>>, vector<256x128xbf16>
    tpu.vector_store %arg14[%c0_102, %c384_103], %70 {strides = array<i32>} : memref<256x1152xbf16, #tpu.memory_space<vmem>>, vector<256x128xbf16>,
    %c1_104 = arith.constant 1 : index
    %c1_105 = arith.constant 1 : index
    %c0_106 = arith.constant 0 : index
    %72 = vector.load %arg13[%c1_104, %c1_105, %c0_106] : memref<18x24x128xbf16, #tpu.memory_space<vmem>>, vector<16x16x128xbf16>
    %73 = vector.shape_cast %72 : vector<16x16x128xbf16> to vector<256x128xbf16>
    %c0_107 = arith.constant 0 : index
    %c512_108 = arith.constant 512 : index
    %74 = vector.load %arg14[%c0_107, %c512_108] : memref<256x1152xbf16, #tpu.memory_space<vmem>>, vector<256x128xbf16>
    tpu.vector_store %arg14[%c0_107, %c512_108], %73 {strides = array<i32>} : memref<256x1152xbf16, #tpu.memory_space<vmem>>, vector<256x128xbf16>,
    %c1_109 = arith.constant 1 : index
    %c2_110 = arith.constant 2 : index
    %c0_111 = arith.constant 0 : index
    %75 = vector.load %arg13[%c1_109, %c2_110, %c0_111] : memref<18x24x128xbf16, #tpu.memory_space<vmem>>, vector<16x16x128xbf16>
    %76 = vector.shape_cast %75 : vector<16x16x128xbf16> to vector<256x128xbf16>
    %c0_112 = arith.constant 0 : index
    %c640_113 = arith.constant 640 : index
    %77 = vector.load %arg14[%c0_112, %c640_113] : memref<256x1152xbf16, #tpu.memory_space<vmem>>, vector<256x128xbf16>
    tpu.vector_store %arg14[%c0_112, %c640_113], %76 {strides = array<i32>} : memref<256x1152xbf16, #tpu.memory_space<vmem>>, vector<256x128xbf16>,
    %c2_114 = arith.constant 2 : index
    %c0_115 = arith.constant 0 : index
    %c0_116 = arith.constant 0 : index
    %78 = vector.load %arg13[%c2_114, %c0_115, %c0_116] : memref<18x24x128xbf16, #tpu.memory_space<vmem>>, vector<16x16x128xbf16>
    %79 = vector.shape_cast %78 : vector<16x16x128xbf16> to vector<256x128xbf16>
    %c0_117 = arith.constant 0 : index
    %c768_118 = arith.constant 768 : index
    %80 = vector.load %arg14[%c0_117, %c768_118] : memref<256x1152xbf16, #tpu.memory_space<vmem>>, vector<256x128xbf16>
    tpu.vector_store %arg14[%c0_117, %c768_118], %79 {strides = array<i32>} : memref<256x1152xbf16, #tpu.memory_space<vmem>>, vector<256x128xbf16>,
    %c2_119 = arith.constant 2 : index
    %c1_120 = arith.constant 1 : index
    %c0_121 = arith.constant 0 : index
    %81 = vector.load %arg13[%c2_119, %c1_120, %c0_121] : memref<18x24x128xbf16, #tpu.memory_space<vmem>>, vector<16x16x128xbf16>
    %82 = vector.shape_cast %81 : vector<16x16x128xbf16> to vector<256x128xbf16>
    %c0_122 = arith.constant 0 : index
    %c896_123 = arith.constant 896 : index
    %83 = vector.load %arg14[%c0_122, %c896_123] : memref<256x1152xbf16, #tpu.memory_space<vmem>>, vector<256x128xbf16>
    tpu.vector_store %arg14[%c0_122, %c896_123], %82 {strides = array<i32>} : memref<256x1152xbf16, #tpu.memory_space<vmem>>, vector<256x128xbf16>,
    %c2_124 = arith.constant 2 : index
    %c2_125 = arith.constant 2 : index
    %c0_126 = arith.constant 0 : index
    %84 = vector.load %arg13[%c2_124, %c2_125, %c0_126] : memref<18x24x128xbf16, #tpu.memory_space<vmem>>, vector<16x16x128xbf16>
    %85 = vector.shape_cast %84 : vector<16x16x128xbf16> to vector<256x128xbf16>
    %c0_127 = arith.constant 0 : index
    %c1024_128 = arith.constant 1024 : index
    %86 = vector.load %arg14[%c0_127, %c1024_128] : memref<256x1152xbf16, #tpu.memory_space<vmem>>, vector<256x128xbf16>
    tpu.vector_store %arg14[%c0_127, %c1024_128], %85 {strides = array<i32>} : memref<256x1152xbf16, #tpu.memory_space<vmem>>, vector<256x128xbf16>,
    %c0_129 = arith.constant 0 : index
    %c0_130 = arith.constant 0 : index
    %87 = vector.load %arg14[%c0_129, %c0_130] : memref<256x1152xbf16, #tpu.memory_space<vmem>>, vector<256x1152xbf16>
    %c0_131 = arith.constant 0 : index
    %c0_132 = arith.constant 0 : index
    %88 = vector.load %arg5[%c0_131, %c0_132] : memref<1152x128xbf16, #tpu.memory_space<vmem>>, vector<1152x128xbf16>
    %cst_133 = arith.constant dense<0.000000e+00> : vector<256x128xf32>
    %89 = tpu.matmul %87, %88, %cst_133 {dimension_numbers = #tpu.dot_dimension_numbers<[1], [0], [0], [1], [0, 0, 1, 1], [], []>} : vector<256x1152xbf16>, vector<1152x128xbf16>, vector<256x128xf32> -> vector<256x128xf32>
    %c0_134 = arith.constant 0 : index
    %c0_135 = arith.constant 0 : index
    %90 = vector.load %arg6[%c0_134, %c0_135] : memref<1x128xf32, #tpu.memory_space<vmem>>, vector<1x128xf32>
    %91 = vector.broadcast %90 : vector<1x128xf32> to vector<256x128xf32>
    %92 = arith.mulf %89, %91 : vector<256x128xf32>
    %c0_136 = arith.constant 0 : index
    %c0_137 = arith.constant 0 : index
    %93 = vector.load %arg7[%c0_136, %c0_137] : memref<1x128xf32, #tpu.memory_space<vmem>>, vector<1x128xf32>
    %94 = vector.broadcast %93 : vector<1x128xf32> to vector<256x128xf32>
    %95 = arith.addf %92, %94 : vector<256x128xf32>
    %96 = vector.shape_cast %17 : vector<16x16x128xbf16> to vector<256x128xbf16>
    %c0_138 = arith.constant 0 : index
    %c0_139 = arith.constant 0 : index
    %97 = vector.load %arg8[%c0_138, %c0_139] : memref<128x128xbf16, #tpu.memory_space<vmem>>, vector<128x128xbf16>
    %cst_140 = arith.constant dense<0.000000e+00> : vector<256x128xf32>
    %98 = tpu.matmul %96, %97, %cst_140 {dimension_numbers = #tpu.dot_dimension_numbers<[1], [0], [0], [1], [0, 0, 1, 1], [], []>} : vector<256x128xbf16>, vector<128x128xbf16>, vector<256x128xf32> -> vector<256x128xf32>
    %c0_141 = arith.constant 0 : index
    %c0_142 = arith.constant 0 : index
    %99 = vector.load %arg9[%c0_141, %c0_142] : memref<1x128xf32, #tpu.memory_space<vmem>>, vector<1x128xf32>
    %100 = vector.broadcast %99 : vector<1x128xf32> to vector<256x128xf32>
    %101 = arith.mulf %98, %100 : vector<256x128xf32>
    %c0_143 = arith.constant 0 : index
    %c0_144 = arith.constant 0 : index
    %102 = vector.load %arg10[%c0_143, %c0_144] : memref<1x128xf32, #tpu.memory_space<vmem>>, vector<1x128xf32>
    %103 = vector.broadcast %102 : vector<1x128xf32> to vector<256x128xf32>
    %104 = arith.addf %101, %103 : vector<256x128xf32>
    %105 = arith.addf %95, %104 : vector<256x128xf32>
    %cst_145 = arith.constant 0.000000e+00 : f32
    %106 = vector.broadcast %cst_145 : f32 to vector<256x128xf32>
    %107 = arith.maximumf %105, %106 : vector<256x128xf32>
    %108 = vector.shape_cast %107 : vector<256x128xf32> to vector<16x16x128xf32>
    %c0_146 = arith.constant 0 : index
    %c0_147 = arith.constant 0 : index
    %c0_148 = arith.constant 0 : index
    %c0_149 = arith.constant 0 : index
    %109 = vector.load %arg11[%c0_146, %c0_147, %c0_148, %c0_149] : memref<1x16x16x128xf32, #tpu.memory_space<vmem>>, vector<1x16x16x128xf32>
    %110 = vector.shape_cast %109 : vector<1x16x16x128xf32> to vector<16x16x128xf32>
    %111 = vector.shape_cast %108 : vector<16x16x128xf32> to vector<1x16x16x128xf32>
    tpu.vector_store %arg11[%c0_146, %c0_147, %c0_148, %c0_149], %111 {strides = array<i32>} : memref<1x16x16x128xf32, #tpu.memory_space<vmem>>, vector<1x16x16x128xf32>,
    return
  }
  func.func @transform_0(%arg0: i32) -> (i32, i32, i32, i32) {
    %c0_i32 = arith.constant 0 : i32
    %c0_i32_0 = arith.constant 0 : i32
    %c0_i32_1 = arith.constant 0 : i32
    %c0_i32_2 = arith.constant 0 : i32
    return %arg0, %c0_i32, %c0_i32_0, %c0_i32_1 : i32, i32, i32, i32
  }
  func.func @transform_1(%arg0: i32) -> (i32, i32) {
    %c0_i32 = arith.constant 0 : i32
    %c0_i32_0 = arith.constant 0 : i32
    %c0_i32_1 = arith.constant 0 : i32
    return %c0_i32, %c0_i32_0 : i32, i32
  }
  func.func @transform_2(%arg0: i32) -> (i32, i32) {
    %c0_i32 = arith.constant 0 : i32
    %c0_i32_0 = arith.constant 0 : i32
    %c0_i32_1 = arith.constant 0 : i32
    return %c0_i32, %c0_i32_0 : i32, i32
  }
  func.func @transform_3(%arg0: i32) -> (i32, i32) {
    %c0_i32 = arith.constant 0 : i32
    %c0_i32_0 = arith.constant 0 : i32
    %c0_i32_1 = arith.constant 0 : i32
    return %c0_i32, %c0_i32_0 : i32, i32
  }
  func.func @transform_4(%arg0: i32) -> (i32, i32) {
    %c0_i32 = arith.constant 0 : i32
    %c0_i32_0 = arith.constant 0 : i32
    %c0_i32_1 = arith.constant 0 : i32
    return %c0_i32, %c0_i32_0 : i32, i32
  }
  func.func @transform_5(%arg0: i32) -> (i32, i32) {
    %c0_i32 = arith.constant 0 : i32
    %c0_i32_0 = arith.constant 0 : i32
    %c0_i32_1 = arith.constant 0 : i32
    return %c0_i32, %c0_i32_0 : i32, i32
  }
  func.func @transform_6(%arg0: i32) -> (i32, i32) {
    %c0_i32 = arith.constant 0 : i32
    %c0_i32_0 = arith.constant 0 : i32
    %c0_i32_1 = arith.constant 0 : i32
    return %c0_i32, %c0_i32_0 : i32, i32
  }
  func.func @transform_7(%arg0: i32) -> (i32, i32) {
    %c0_i32 = arith.constant 0 : i32
    %c0_i32_0 = arith.constant 0 : i32
    %c0_i32_1 = arith.constant 0 : i32
    return %c0_i32, %c0_i32_0 : i32, i32
  }
  func.func @transform_8(%arg0: i32) -> (i32, i32) {
    %c0_i32 = arith.constant 0 : i32
    %c0_i32_0 = arith.constant 0 : i32
    %c0_i32_1 = arith.constant 0 : i32
    return %c0_i32, %c0_i32_0 : i32, i32
  }
  func.func @transform_9(%arg0: i32) -> (i32, i32) {
    %c0_i32 = arith.constant 0 : i32
    %c0_i32_0 = arith.constant 0 : i32
    %c0_i32_1 = arith.constant 0 : i32
    return %c0_i32, %c0_i32_0 : i32, i32
  }
  func.func @transform_10(%arg0: i32) -> (i32, i32, i32, i32) {
    %c0_i32 = arith.constant 0 : i32
    %c0_i32_0 = arith.constant 0 : i32
    %c0_i32_1 = arith.constant 0 : i32
    %c0_i32_2 = arith.constant 0 : i32
    return %arg0, %c0_i32, %c0_i32_0, %c0_i32_1 : i32, i32, i32, i32
  }
}

</mosaic_0001>

<llo_original>
// kernel: _lambda_.1
$region0: #{_lambda_.1}
  #allocation0 [shape = 'u32[]', space=smem, size = 0x4, offset = 0x4, fixed_abs, tag = 'smem constant byte address 0x4 - core index']
  #allocation1 [shape = 'u32[144,128]{1,0:T(1,128)}', space=vmem, size = 0x12000, scoped, tag = 'internal scratch']
  #allocation2 [shape = 'bf16[18,24,128]{2,1,0:T(8,128)(2,1)}', space=vmem, size = 0x1b000, scoped, tag = 'scratch operand']
  #allocation3 [shape = 'bf16[18,24,128]{2,1,0:T(8,128)(2,1)}', space=vmem, size = 0x1b000, scoped, tag = 'scratch operand']
  #allocation4 [shape = 'bf16[256,1152]{1,0:T(8,128)(2,1)}', space=vmem, size = 0x90000, scoped, tag = 'scratch operand']
  %s0 = inlined_call_operand.vmem [shape: bf16[2,16,16,128], index: 0, kind: input, shape index: {}]
  %s1 = inlined_call_operand.hbm [shape: bf16[1152,128], index: 1, kind: input, shape index: {}]
  %s2 = inlined_call_operand.vmem [shape: f32[1,128], index: 2, kind: input, shape index: {}]
  %s3 = inlined_call_operand.vmem [shape: f32[1,128], index: 3, kind: input, shape index: {}]
  %s4 = inlined_call_operand.vmem [shape: bf16[1152,128], index: 4, kind: input, shape index: {}]
  %s5 = inlined_call_operand.vmem [shape: f32[1,128], index: 5, kind: input, shape index: {}]
  %s6 = inlined_call_operand.vmem [shape: f32[1,128], index: 6, kind: input, shape index: {}]
  %s7 = inlined_call_operand.vmem [shape: bf16[128,128], index: 7, kind: input, shape index: {}]
  %s8 = inlined_call_operand.vmem [shape: f32[1,128], index: 8, kind: input, shape index: {}]
  %s9 = inlined_call_operand.vmem [shape: f32[1,128], index: 9, kind: input, shape index: {}]
  %s10 = inlined_call_operand.vmem [shape: f32[2,16,16,128], index: 10, kind: output, shape index: {}]
  %s11 = sld [smem:[#allocation0]]
  $region77: #{_lambda_.1} parent=0
    _
  %s13 = ssub.s32 1, %s11
  %s14 = scalar_select 0, %s13, %s11
  $region1: #{_lambda_.1} parent=0
    #allocation5 [shape = 'u8[294912]{0}', space=vmem, size = 0x48000, scoped, tag = 'input window, operand 1, single buffered']
    #allocation6 [shape = 's32[2]{0}', space=sflag, size = 0x8, scoped, tag = 'scoped memory for _lambda_.1']
    %15 = vsyncpa [#allocation6], 0
    loop: start=0, step=1, limit=4
    $region2: #{_lambda_.1} parent=1 // loop_pre_header
      _
    $region3: #{_lambda_.1} parent=1 // loop_header
      %s17 = sphi 0, %s21
      %p18 = scmp.ge.s32.totalorder %s17, 4
      %s27 = sphi 0, %s29
      %s30 = sphi 0, %s27
      %s31 = sphi 0, %s30
      %s47 = sphi 0, %s31
      %s51 = sphi 0, %s51
      %s53 = sphi 0, %s51
      %s54 = sphi 0, %s53
      %s68 = sphi 0, %s54
      %s72 = sphi 0, %s72
      %s74 = sphi 0, %s72
      %s75 = sphi 0, %s74
      %s89 = sphi 0, %s75
      %s93 = sphi 0, %s93
      %s95 = sphi 0, %s93
      %s96 = sphi 0, %s95
      %s110 = sphi 0, %s96
      %s114 = sphi 0, %s114
      %s116 = sphi 0, %s114
      %s117 = sphi 0, %s116
      %s131 = sphi 0, %s117
      %s135 = sphi 0, %s135
      %s137 = sphi 0, %s135
      %s138 = sphi 0, %s137
      %s152 = sphi 0, %s138
      %s156 = sphi 0, %s156
      %s158 = sphi 0, %s156
      %s159 = sphi 0, %s158
      %s173 = sphi 0, %s159
      %s177 = sphi 0, %s177
      %s179 = sphi 0, %s177
      %s180 = sphi 0, %s179
      %s194 = sphi 0, %s180
      %s198 = sphi 0, %s198
      %s200 = sphi 0, %s198
      %s201 = sphi 0, %s200
      %s215 = sphi 0, %s201
      %s219 = sphi 0, %s219
      %s221 = sphi 0, %s219
      %s222 = sphi 0, %s221
      %s236 = sphi 0, %s222
      %s242 = sphi 0, %s244
      %s245 = sphi 0, %s242
      %s246 = sphi 0, %s245
      %s262 = sphi 0, %s246
    $region4: #{_lambda_.1} parent=1 // loop_header_branch
      %20 = sbr.rel (%p18) target = $region8
    $region5: #{_lambda_.1} parent=1 // loop_body
      %s22 = ssub.s32 %s17, 1
      %s23 = ssub.s32 %s17, 2
      %s24 = sadd.s32 %s17, 1
      %s25 = ssub.s32 %s17, %s24
      %p26 = scmp.eq.s32.totalorder %s25, 0
      %s28 = sadd.s32 %s27, 1
      %s29 = scalar_select %p26, %s27, %s28
      %p32 = pneg %p26
      %p33 = scmp.eq.s32.totalorder %s17, 1
      %p34 = por %p32, %p33
      %p35 = scmp.ne.s32.totalorder %s27, %s30
      %p36 = scmp.eq.s32.totalorder %s17, 0
      %p37 = por %p35, %p36
      %p38 = scmp.ne.s32.totalorder %s27, %s30
      %p39 = scmp.eq.s32.totalorder %s22, 1
      %p40 = por %p38, %p39
      %p41 = scmp.ne.s32.totalorder %s30, %s31
      %p42 = scmp.eq.s32.totalorder %s22, 0
      %p43 = por %p41, %p42
      %p44 = scmp.ne.s32.totalorder %s30, %s31
      %p45 = scmp.eq.s32.totalorder %s23, 1
      %p46 = por %p44, %p45
      %p48 = scmp.ne.s32.totalorder %s31, %s47
      %p49 = scmp.eq.s32.totalorder %s23, 0
      %p50 = por %p48, %p49
      %s52 = sadd.s32 %s51, 1
      %p55 = scmp.eq.s32.totalorder %s17, 1
      %p56 = scmp.ne.s32.totalorder %s51, %s53
      %p57 = scmp.eq.s32.totalorder %s17, 0
      %p58 = por %p56, %p57
      %p59 = scmp.ne.s32.totalorder %s51, %s53
      %p60 = scmp.eq.s32.totalorder %s22, 1
      %p61 = por %p59, %p60
      %p62 = scmp.ne.s32.totalorder %s53, %s54
      %p63 = scmp.eq.s32.totalorder %s22, 0
      %p64 = por %p62, %p63
      %p65 = scmp.ne.s32.totalorder %s53, %s54
      %p66 = scmp.eq.s32.totalorder %s23, 1
      %p67 = por %p65, %p66
      %p69 = scmp.ne.s32.totalorder %s54, %s68
      %p70 = scmp.eq.s32.totalorder %s23, 0
      %p71 = por %p69, %p70
      %s73 = sadd.s32 %s72, 1
      %p76 = scmp.eq.s32.totalorder %s17, 1
      %p77 = scmp.ne.s32.totalorder %s72, %s74
      %p78 = scmp.eq.s32.totalorder %s17, 0
      %p79 = por %p77, %p78
      %p80 = scmp.ne.s32.totalorder %s72, %s74
      %p81 = scmp.eq.s32.totalorder %s22, 1
      %p82 = por %p80, %p81
      %p83 = scmp.ne.s32.totalorder %s74, %s75
      %p84 = scmp.eq.s32.totalorder %s22, 0
      %p85 = por %p83, %p84
      %p86 = scmp.ne.s32.totalorder %s74, %s75
      %p87 = scmp.eq.s32.totalorder %s23, 1
      %p88 = por %p86, %p87
      %p90 = scmp.ne.s32.totalorder %s75, %s89
      %p91 = scmp.eq.s32.totalorder %s23, 0
      %p92 = por %p90, %p91
      %s94 = sadd.s32 %s93, 1
      %p97 = scmp.eq.s32.totalorder %s17, 1
      %p98 = scmp.ne.s32.totalorder %s93, %s95
      %p99 = scmp.eq.s32.totalorder %s17, 0
      %p100 = por %p98, %p99
      %p101 = scmp.ne.s32.totalorder %s93, %s95
      %p102 = scmp.eq.s32.totalorder %s22, 1
      %p103 = por %p101, %p102
      %p104 = scmp.ne.s32.totalorder %s95, %s96
      %p105 = scmp.eq.s32.totalorder %s22, 0
      %p106 = por %p104, %p105
      %p107 = scmp.ne.s32.totalorder %s95, %s96
      %p108 = scmp.eq.s32.totalorder %s23, 1
      %p109 = por %p107, %p108
      %p111 = scmp.ne.s32.totalorder %s96, %s110
      %p112 = scmp.eq.s32.totalorder %s23, 0
      %p113 = por %p111, %p112
      %s115 = sadd.s32 %s114, 1
      %p118 = scmp.eq.s32.totalorder %s17, 1
      %p119 = scmp.ne.s32.totalorder %s114, %s116
      %p120 = scmp.eq.s32.totalorder %s17, 0
      %p121 = por %p119, %p120
      %p122 = scmp.ne.s32.totalorder %s114, %s116
      %p123 = scmp.eq.s32.totalorder %s22, 1
      %p124 = por %p122, %p123
      %p125 = scmp.ne.s32.totalorder %s116, %s117
      %p126 = scmp.eq.s32.totalorder %s22, 0
      %p127 = por %p125, %p126
      %p128 = scmp.ne.s32.totalorder %s116, %s117
      %p129 = scmp.eq.s32.totalorder %s23, 1
      %p130 = por %p128, %p129
      %p132 = scmp.ne.s32.totalorder %s117, %s131
      %p133 = scmp.eq.s32.totalorder %s23, 0
      %p134 = por %p132, %p133
      %s136 = sadd.s32 %s135, 1
      %p139 = scmp.eq.s32.totalorder %s17, 1
      %p140 = scmp.ne.s32.totalorder %s135, %s137
      %p141 = scmp.eq.s32.totalorder %s17, 0
      %p142 = por %p140, %p141
      %p143 = scmp.ne.s32.totalorder %s135, %s137
      %p144 = scmp.eq.s32.totalorder %s22, 1
      %p145 = por %p143, %p144
      %p146 = scmp.ne.s32.totalorder %s137, %s138
      %p147 = scmp.eq.s32.totalorder %s22, 0
      %p148 = por %p146, %p147
      %p149 = scmp.ne.s32.totalorder %s137, %s138
      %p150 = scmp.eq.s32.totalorder %s23, 1
      %p151 = por %p149, %p150
      %p153 = scmp.ne.s32.totalorder %s138, %s152
      %p154 = scmp.eq.s32.totalorder %s23, 0
      %p155 = por %p153, %p154
      %s157 = sadd.s32 %s156, 1
      %p160 = scmp.eq.s32.totalorder %s17, 1
      %p161 = scmp.ne.s32.totalorder %s156, %s158
      %p162 = scmp.eq.s32.totalorder %s17, 0
      %p163 = por %p161, %p162
      %p164 = scmp.ne.s32.totalorder %s156, %s158
      %p165 = scmp.eq.s32.totalorder %s22, 1
      %p166 = por %p164, %p165
      %p167 = scmp.ne.s32.totalorder %s158, %s159
      %p168 = scmp.eq.s32.totalorder %s22, 0
      %p169 = por %p167, %p168
      %p170 = scmp.ne.s32.totalorder %s158, %s159
      %p171 = scmp.eq.s32.totalorder %s23, 1
      %p172 = por %p170, %p171
      %p174 = scmp.ne.s32.totalorder %s159, %s173
      %p175 = scmp.eq.s32.totalorder %s23, 0
      %p176 = por %p174, %p175
      %s178 = sadd.s32 %s177, 1
      %p181 = scmp.eq.s32.totalorder %s17, 1
      %p182 = scmp.ne.s32.totalorder %s177, %s179
      %p183 = scmp.eq.s32.totalorder %s17, 0
      %p184 = por %p182, %p183
      %p185 = scmp.ne.s32.totalorder %s177, %s179
      %p186 = scmp.eq.s32.totalorder %s22, 1
      %p187 = por %p185, %p186
      %p188 = scmp.ne.s32.totalorder %s179, %s180
      %p189 = scmp.eq.s32.totalorder %s22, 0
      %p190 = por %p188, %p189
      %p191 = scmp.ne.s32.totalorder %s179, %s180
      %p192 = scmp.eq.s32.totalorder %s23, 1
      %p193 = por %p191, %p192
      %p195 = scmp.ne.s32.totalorder %s180, %s194
      %p196 = scmp.eq.s32.totalorder %s23, 0
      %p197 = por %p195, %p196
      %s199 = sadd.s32 %s198, 1
      %p202 = scmp.eq.s32.totalorder %s17, 1
      %p203 = scmp.ne.s32.totalorder %s198, %s200
      %p204 = scmp.eq.s32.totalorder %s17, 0
      %p205 = por %p203, %p204
      %p206 = scmp.ne.s32.totalorder %s198, %s200
      %p207 = scmp.eq.s32.totalorder %s22, 1
      %p208 = por %p206, %p207
      %p209 = scmp.ne.s32.totalorder %s200, %s201
      %p210 = scmp.eq.s32.totalorder %s22, 0
      %p211 = por %p209, %p210
      %p212 = scmp.ne.s32.totalorder %s200, %s201
      %p213 = scmp.eq.s32.totalorder %s23, 1
      %p214 = por %p212, %p213
      %p216 = scmp.ne.s32.totalorder %s201, %s215
      %p217 = scmp.eq.s32.totalorder %s23, 0
      %p218 = por %p216, %p217
      %s220 = sadd.s32 %s219, 1
      %p223 = scmp.eq.s32.totalorder %s17, 1
      %p224 = scmp.ne.s32.totalorder %s219, %s221
      %p225 = scmp.eq.s32.totalorder %s17, 0
      %p226 = por %p224, %p225
      %p227 = scmp.ne.s32.totalorder %s219, %s221
      %p228 = scmp.eq.s32.totalorder %s22, 1
      %p229 = por %p227, %p228
      %p230 = scmp.ne.s32.totalorder %s221, %s222
      %p231 = scmp.eq.s32.totalorder %s22, 0
      %p232 = por %p230, %p231
      %p233 = scmp.ne.s32.totalorder %s221, %s222
      %p234 = scmp.eq.s32.totalorder %s23, 1
      %p235 = por %p233, %p234
      %p237 = scmp.ne.s32.totalorder %s222, %s236
      %p238 = scmp.eq.s32.totalorder %s23, 0
      %p239 = por %p237, %p238
      %s240 = ssub.s32 %s17, %s24
      %p241 = scmp.eq.s32.totalorder %s240, 0
      %s243 = sadd.s32 %s242, 1
      %s244 = scalar_select %p241, %s242, %s243
      %p247 = pneg %p241
      %p248 = scmp.eq.s32.totalorder %s17, 1
      %p249 = por %p247, %p248
      %p250 = scmp.ne.s32.totalorder %s242, %s245
      %p251 = scmp.eq.s32.totalorder %s17, 0
      %p252 = por %p250, %p251
      %p253 = scmp.ne.s32.totalorder %s242, %s245
      %p254 = scmp.eq.s32.totalorder %s22, 1
      %p255 = por %p253, %p254
      %p256 = scmp.ne.s32.totalorder %s245, %s246
      %p257 = scmp.eq.s32.totalorder %s22, 0
      %p258 = por %p256, %p257
      %p259 = scmp.ne.s32.totalorder %s245, %s246
      %p260 = scmp.eq.s32.totalorder %s23, 1
      %p261 = por %p259, %p260
      %p263 = scmp.ne.s32.totalorder %s246, %s262
      %p264 = scmp.eq.s32.totalorder %s23, 0
      %p265 = por %p263, %p264
      %p266 = scmp.le.s32.totalorder 1, %s17
      %p267 = scmp.lt.s32.totalorder %s17, 3
      %p268 = pnand %p266, %p267
      %p269 = pneg %p268
      // Predicated region
      $region9: #{_lambda_.1} parent=5 // pred_check
        _
      $region10: #{_lambda_.1} parent=5 // pred_check_branch
        %271 = sbr.rel (%p268) target = $region12
      $region11: #{_lambda_.1} parent=5 // pred_region
        %s272 = ssub.s32 %s17, 1
        // Predicated region
        $region13: #{_lambda_.1} parent=11 // pred_check
          %p273 = pneg %p64
        $region14: #{_lambda_.1} parent=11 // pred_check_branch
          %275 = sbr.rel (%p273) target = $region16
        $region15: #{_lambda_.1} parent=11 // pred_region
          %s277 = ssub.s32 9216, 9216
          %278 = vsyncadd [#allocation6], %s277
          %s279 = sshll.u32 [#allocation5], 4
          %s280 = int_to_ptr.vmem [resolvable:$true] %s279
          %285 = dma.hbm_to_vmem [thread:$0]  %s1, 9216, %s280, [#allocation6], 64, 64, 4
        $region16: #{_lambda_.1} parent=11 // pred_fallthru
          _
        // Predicated region
        $region17: #{_lambda_.1} parent=11 // pred_check
          %p286 = pneg %p85
        $region18: #{_lambda_.1} parent=11 // pred_check_branch
          %288 = sbr.rel (%p286) target = $region20
        $region19: #{_lambda_.1} parent=11 // pred_region
          _
        $region20: #{_lambda_.1} parent=11 // pred_fallthru
          _
        // Predicated region
        $region21: #{_lambda_.1} parent=11 // pred_check
          %p289 = pneg %p106
        $region22: #{_lambda_.1} parent=11 // pred_check_branch
          %291 = sbr.rel (%p289) target = $region24
        $region23: #{_lambda_.1} parent=11 // pred_region
          _
        $region24: #{_lambda_.1} parent=11 // pred_fallthru
          _
        // Predicated region
        $region25: #{_lambda_.1} parent=11 // pred_check
          %p292 = pneg %p127
        $region26: #{_lambda_.1} parent=11 // pred_check_branch
          %294 = sbr.rel (%p292) target = $region28
        $region27: #{_lambda_.1} parent=11 // pred_region
          _
        $region28: #{_lambda_.1} parent=11 // pred_fallthru
          _
        // Predicated region
        $region29: #{_lambda_.1} parent=11 // pred_check
          %p295 = pneg %p148
        $region30: #{_lambda_.1} parent=11 // pred_check_branch
          %297 = sbr.rel (%p295) target = $region32
        $region31: #{_lambda_.1} parent=11 // pred_region
          _
        $region32: #{_lambda_.1} parent=11 // pred_fallthru
          _
        // Predicated region
        $region33: #{_lambda_.1} parent=11 // pred_check
          %p298 = pneg %p169
        $region34: #{_lambda_.1} parent=11 // pred_check_branch
          %300 = sbr.rel (%p298) target = $region36
        $region35: #{_lambda_.1} parent=11 // pred_region
          _
        $region36: #{_lambda_.1} parent=11 // pred_fallthru
          _
        // Predicated region
        $region37: #{_lambda_.1} parent=11 // pred_check
          %p301 = pneg %p190
        $region38: #{_lambda_.1} parent=11 // pred_check_branch
          %303 = sbr.rel (%p301) target = $region40
        $region39: #{_lambda_.1} parent=11 // pred_region
          _
        $region40: #{_lambda_.1} parent=11 // pred_fallthru
          _
        // Predicated region
        $region41: #{_lambda_.1} parent=11 // pred_check
          %p304 = pneg %p211
        $region42: #{_lambda_.1} parent=11 // pred_check_branch
          %306 = sbr.rel (%p304) target = $region44
        $region43: #{_lambda_.1} parent=11 // pred_region
          _
        $region44: #{_lambda_.1} parent=11 // pred_fallthru
          _
        // Predicated region
        $region45: #{_lambda_.1} parent=11 // pred_check
          %p307 = pneg %p232
        $region46: #{_lambda_.1} parent=11 // pred_check_branch
          %309 = sbr.rel (%p307) target = $region48
        $region47: #{_lambda_.1} parent=11 // pred_region
          _
        $region48: #{_lambda_.1} parent=11 // pred_fallthru
          _
      $region12: #{_lambda_.1} parent=5 // pred_fallthru
        _
      %p310 = scmp.lt.s32.totalorder %s17, 2
      // Predicated region
      $region49: #{_lambda_.1} parent=5 // pred_check
        %p311 = pneg %p310
      $region50: #{_lambda_.1} parent=5 // pred_check_branch
        %313 = sbr.rel (%p311) target = $region52
      $region51: #{_lambda_.1} parent=5 // pred_region
        // Predicated region
        $region53: #{_lambda_.1} parent=51 // pred_check
          %p314 = pneg %p37
        $region54: #{_lambda_.1} parent=51 // pred_check_branch
          %316 = sbr.rel (%p314) target = $region56
        $region55: #{_lambda_.1} parent=51 // pred_region
          %p317 = scmp.lt.s32.totalorder %s17, 1
          %s318 = scalar_select %p317, %s17, 1
          %s319 = smul.addr %s318, 32
          %s320 = smul.addr %s319, 4
          %s321 = scalar_lea.vmem %s0, %s320
        $region56: #{_lambda_.1} parent=51 // pred_fallthru
          _
      $region52: #{_lambda_.1} parent=5 // pred_fallthru
        _
      %p322 = scmp.le.s32.totalorder 1, %s17
      %p323 = scmp.lt.s32.totalorder %s17, 3
      %p324 = pnand %p322, %p323
      %p325 = pneg %p324
      // Predicated region
      $region57: #{_lambda_.1} parent=5 // pred_check
        _
      $region58: #{_lambda_.1} parent=5 // pred_check_branch
        %327 = sbr.rel (%p324) target = $region60
      $region59: #{_lambda_.1} parent=5 // pred_region
        %s328 = ssub.s32 %s17, 1
        // Predicated region
        $region61: #{_lambda_.1} parent=59 // pred_check
          %p329 = pneg %p64
        $region62: #{_lambda_.1} parent=59 // pred_check_branch
          %331 = sbr.rel (%p329) target = $region64
        $region63: #{_lambda_.1} parent=59 // pred_region
          %332 = dma.done [#allocation6], 9216
        $region64: #{_lambda_.1} parent=59 // pred_fallthru
          _
        %p333 = scmp.lt.s32.totalorder %s22, 1
        %s334 = scalar_select %p333, %s22, 1
        %s335 = smul.addr %s334, 32
        %s336 = smul.addr %s335, 4
        %s337 = scalar_lea.vmem %s0, %s336
        %p338 = pneg %p43
        %p339 = pneg %p40
        %p340 = pneg %p64
        %p341 = pneg %p61
        %p342 = pneg %p85
        %p343 = pneg %p82
        %p344 = pneg %p106
        %p345 = pneg %p103
        %p346 = pneg %p127
        %p347 = pneg %p124
        %p348 = pneg %p148
        %p349 = pneg %p145
        %p350 = pneg %p169
        %p351 = pneg %p166
        %p352 = pneg %p190
        %p353 = pneg %p187
        %p354 = pneg %p211
        %p355 = pneg %p208
        %p356 = pneg %p232
        %p357 = pneg %p229
        %p358 = pneg %p258
        %p359 = pneg %p255
        %p360 = scmp.lt.s32.totalorder %s22, 1
        %s361 = scalar_select %p360, %s22, 1
        %s362 = smul.addr %s361, 32
        %s363 = smul.addr %s362, 8
        %s364 = scalar_lea.vmem %s10, %s363
        %p365 = scmp.lt.s32.totalorder %s22, 1
        %s366 = scalar_select %p365, %s22, 1
        %s367 = smul.addr %s366, 32
        %s368 = smul.addr %s367, 4
        %s369 = scalar_lea.vmem %s0, %s368
        %p370 = scmp.lt.s32.totalorder %s22, 1
        %s371 = scalar_select %p370, %s22, 1
        %s372 = smul.addr %s371, 32
        %s373 = smul.addr %s372, 8
        %s374 = scalar_lea.vmem %s10, %s373
        %376 = vst [vmem:[#allocation2] sm:$0xf] 0
        %377 = vst [vmem:[#allocation2 + $0x4] sm:$0xf] 0
        %378 = vst [vmem:[#allocation2 + $0x8] sm:$0x1] 0
        %s379 = scalar_lea.vmem [#allocation2], 204
        %380 = vst [vmem:[%s379] sm:$0xf] 0
        %381 = vst [vmem:[%s379 + $0x4] sm:$0xf] 0
        %382 = vst [vmem:[%s379 + $0x8] sm:$0x1] 0
        %s383 = scalar_lea.vmem [#allocation2], 12
        %vm384 = vcmask 1040384
        %vm385 = vsmask.f32 256
        %vm386 = vmand %vm384, %vm385
        %v387 = vld [vmem:[%s383] sm:$0x1]
        %v388 = vsel %vm386, 0, %v387
        %389 = vst [vmem:[%s383] sm:$0x1] %v388
        %v390 = vld [vmem:[%s383 + $0xc] sm:$0x1]
        %v391 = vsel %vm386, 0, %v390
        %392 = vst [vmem:[%s383 + $0xc] sm:$0x1] %v391
        %v393 = vld [vmem:[%s383 + $0x18] sm:$0x1]
        %v394 = vsel %vm386, 0, %v393
        %395 = vst [vmem:[%s383 + $0x18] sm:$0x1] %v394
        %v396 = vld [vmem:[%s383 + $0x24] sm:$0x1]
        %v397 = vsel %vm386, 0, %v396
        %398 = vst [vmem:[%s383 + $0x24] sm:$0x1] %v397
        %v399 = vld [vmem:[%s383 + $0x30] sm:$0x1]
        %v400 = vsel %vm386, 0, %v399
        %401 = vst [vmem:[%s383 + $0x30] sm:$0x1] %v400
        %v402 = vld [vmem:[%s383 + $0x3c] sm:$0x1]
        %v403 = vsel %vm386, 0, %v402
        %404 = vst [vmem:[%s383 + $0x3c] sm:$0x1] %v403
        %v405 = vld [vmem:[%s383 + $0x48] sm:$0x1]
        %v406 = vsel %vm386, 0, %v405
        %407 = vst [vmem:[%s383 + $0x48] sm:$0x1] %v406
        %v408 = vld [vmem:[%s383 + $0x54] sm:$0x1]
        %v409 = vsel %vm386, 0, %v408
        %410 = vst [vmem:[%s383 + $0x54] sm:$0x1] %v409
        %v411 = vld [vmem:[%s383 + $0x60] sm:$0x1]
        %v412 = vsel %vm386, 0, %v411
        %413 = vst [vmem:[%s383 + $0x60] sm:$0x1] %v412
        %v414 = vld [vmem:[%s383 + $0x6c] sm:$0x1]
        %v415 = vsel %vm386, 0, %v414
        %416 = vst [vmem:[%s383 + $0x6c] sm:$0x1] %v415
        %v417 = vld [vmem:[%s383 + $0x78] sm:$0x1]
        %v418 = vsel %vm386, 0, %v417
        %419 = vst [vmem:[%s383 + $0x78] sm:$0x1] %v418
        %v420 = vld [vmem:[%s383 + $0x84] sm:$0x1]
        %v421 = vsel %vm386, 0, %v420
        %422 = vst [vmem:[%s383 + $0x84] sm:$0x1] %v421
        %v423 = vld [vmem:[%s383 + $0x90] sm:$0x1]
        %v424 = vsel %vm386, 0, %v423
        %425 = vst [vmem:[%s383 + $0x90] sm:$0x1] %v424
        %v426 = vld [vmem:[%s383 + $0x9c] sm:$0x1]
        %v427 = vsel %vm386, 0, %v426
        %428 = vst [vmem:[%s383 + $0x9c] sm:$0x1] %v427
        %v429 = vld [vmem:[%s383 + $0xa8] sm:$0x1]
        %v430 = vsel %vm386, 0, %v429
        %431 = vst [vmem:[%s383 + $0xa8] sm:$0x1] %v430
        %v432 = vld [vmem:[%s383 + $0xb4] sm:$0x1]
        %v433 = vsel %vm386, 0, %v432
        %434 = vst [vmem:[%s383 + $0xb4] sm:$0x1] %v433
        %vm435 = vsmask.f32 7938
        %vm436 = vmand %vm384, %vm435
        %v437 = vld [vmem:[%s383 + $0x8] sm:$0x1]
        %v438 = vsel %vm436, 0, %v437
        %439 = vst [vmem:[%s383 + $0x8] sm:$0x1] %v438
        %v440 = vld [vmem:[%s383 + $0x14] sm:$0x1]
        %v441 = vsel %vm436, 0, %v440
        %442 = vst [vmem:[%s383 + $0x14] sm:$0x1] %v441
        %v443 = vld [vmem:[%s383 + $0x20] sm:$0x1]
        %v444 = vsel %vm436, 0, %v443
        %445 = vst [vmem:[%s383 + $0x20] sm:$0x1] %v444
        %v446 = vld [vmem:[%s383 + $0x2c] sm:$0x1]
        %v447 = vsel %vm436, 0, %v446
        %448 = vst [vmem:[%s383 + $0x2c] sm:$0x1] %v447
        %v449 = vld [vmem:[%s383 + $0x38] sm:$0x1]
        %v450 = vsel %vm436, 0, %v449
        %451 = vst [vmem:[%s383 + $0x38] sm:$0x1] %v450
        %v452 = vld [vmem:[%s383 + $0x44] sm:$0x1]
        %v453 = vsel %vm436, 0, %v452
        %454 = vst [vmem:[%s383 + $0x44] sm:$0x1] %v453
        %v455 = vld [vmem:[%s383 + $0x50] sm:$0x1]
        %v456 = vsel %vm436, 0, %v455
        %457 = vst [vmem:[%s383 + $0x50] sm:$0x1] %v456
        %v458 = vld [vmem:[%s383 + $0x5c] sm:$0x1]
        %v459 = vsel %vm436, 0, %v458
        %460 = vst [vmem:[%s383 + $0x5c] sm:$0x1] %v459
        %v461 = vld [vmem:[%s383 + $0x68] sm:$0x1]
        %v462 = vsel %vm436, 0, %v461
        %463 = vst [vmem:[%s383 + $0x68] sm:$0x1] %v462
        %v464 = vld [vmem:[%s383 + $0x74] sm:$0x1]
        %v465 = vsel %vm436, 0, %v464
        %466 = vst [vmem:[%s383 + $0x74] sm:$0x1] %v465
        %v467 = vld [vmem:[%s383 + $0x80] sm:$0x1]
        %v468 = vsel %vm436, 0, %v467
        %469 = vst [vmem:[%s383 + $0x80] sm:$0x1] %v468
        %v470 = vld [vmem:[%s383 + $0x8c] sm:$0x1]
        %v471 = vsel %vm436, 0, %v470
        %472 = vst [vmem:[%s383 + $0x8c] sm:$0x1] %v471
        %v473 = vld [vmem:[%s383 + $0x98] sm:$0x1]
        %v474 = vsel %vm436, 0, %v473
        %475 = vst [vmem:[%s383 + $0x98] sm:$0x1] %v474
        %v476 = vld [vmem:[%s383 + $0xa4] sm:$0x1]
        %v477 = vsel %vm436, 0, %v476
        %478 = vst [vmem:[%s383 + $0xa4] sm:$0x1] %v477
        %v479 = vld [vmem:[%s383 + $0xb0] sm:$0x1]
        %v480 = vsel %vm436, 0, %v479
        %481 = vst [vmem:[%s383 + $0xb0] sm:$0x1] %v480
        %v482 = vld [vmem:[%s383 + $0xbc] sm:$0x1]
        %v483 = vsel %vm436, 0, %v482
        %484 = vst [vmem:[%s383 + $0xbc] sm:$0x1] %v483
        %485 = vst [vmem:[#allocation3] sm:$0xf] 0
        %486 = vst [vmem:[#allocation3 + $0x4] sm:$0xf] 0
        %487 = vst [vmem:[#allocation3 + $0x8] sm:$0x1] 0
        %s488 = scalar_lea.vmem [#allocation3], 204
        %489 = vst [vmem:[%s488] sm:$0xf] 0
        %490 = vst [vmem:[%s488 + $0x4] sm:$0xf] 0
        %491 = vst [vmem:[%s488 + $0x8] sm:$0x1] 0
        %s492 = scalar_lea.vmem [#allocation3], 12
        %v493 = vld [vmem:[%s492] sm:$0x1]
        %v494 = vsel %vm386, 0, %v493
        %495 = vst [vmem:[%s492] sm:$0x1] %v494
        %v496 = vld [vmem:[%s492 + $0xc] sm:$0x1]
        %v497 = vsel %vm386, 0, %v496
        %498 = vst [vmem:[%s492 + $0xc] sm:$0x1] %v497
        %v499 = vld [vmem:[%s492 + $0x18] sm:$0x1]
        %v500 = vsel %vm386, 0, %v499
        %501 = vst [vmem:[%s492 + $0x18] sm:$0x1] %v500
        %v502 = vld [vmem:[%s492 + $0x24] sm:$0x1]
        %v503 = vsel %vm386, 0, %v502
        %504 = vst [vmem:[%s492 + $0x24] sm:$0x1] %v503
        %v505 = vld [vmem:[%s492 + $0x30] sm:$0x1]
        %v506 = vsel %vm386, 0, %v505
        %507 = vst [vmem:[%s492 + $0x30] sm:$0x1] %v506
        %v508 = vld [vmem:[%s492 + $0x3c] sm:$0x1]
        %v509 = vsel %vm386, 0, %v508
        %510 = vst [vmem:[%s492 + $0x3c] sm:$0x1] %v509
        %v511 = vld [vmem:[%s492 + $0x48] sm:$0x1]
        %v512 = vsel %vm386, 0, %v511
        %513 = vst [vmem:[%s492 + $0x48] sm:$0x1] %v512
        %v514 = vld [vmem:[%s492 + $0x54] sm:$0x1]
        %v515 = vsel %vm386, 0, %v514
        %516 = vst [vmem:[%s492 + $0x54] sm:$0x1] %v515
        %v517 = vld [vmem:[%s492 + $0x60] sm:$0x1]
        %v518 = vsel %vm386, 0, %v517
        %519 = vst [vmem:[%s492 + $0x60] sm:$0x1] %v518
        %v520 = vld [vmem:[%s492 + $0x6c] sm:$0x1]
        %v521 = vsel %vm386, 0, %v520
        %522 = vst [vmem:[%s492 + $0x6c] sm:$0x1] %v521
        %v523 = vld [vmem:[%s492 + $0x78] sm:$0x1]
        %v524 = vsel %vm386, 0, %v523
        %525 = vst [vmem:[%s492 + $0x78] sm:$0x1] %v524
        %v526 = vld [vmem:[%s492 + $0x84] sm:$0x1]
        %v527 = vsel %vm386, 0, %v526
        %528 = vst [vmem:[%s492 + $0x84] sm:$0x1] %v527
        %v529 = vld [vmem:[%s492 + $0x90] sm:$0x1]
        %v530 = vsel %vm386, 0, %v529
        %531 = vst [vmem:[%s492 + $0x90] sm:$0x1] %v530
        %v532 = vld [vmem:[%s492 + $0x9c] sm:$0x1]
        %v533 = vsel %vm386, 0, %v532
        %534 = vst [vmem:[%s492 + $0x9c] sm:$0x1] %v533
        %v535 = vld [vmem:[%s492 + $0xa8] sm:$0x1]
        %v536 = vsel %vm386, 0, %v535
        %537 = vst [vmem:[%s492 + $0xa8] sm:$0x1] %v536
        %v538 = vld [vmem:[%s492 + $0xb4] sm:$0x1]
        %v539 = vsel %vm386, 0, %v538
        %540 = vst [vmem:[%s492 + $0xb4] sm:$0x1] %v539
        %v541 = vld [vmem:[%s492 + $0x8] sm:$0x1]
        %v542 = vsel %vm436, 0, %v541
        %543 = vst [vmem:[%s492 + $0x8] sm:$0x1] %v542
        %v544 = vld [vmem:[%s492 + $0x14] sm:$0x1]
        %v545 = vsel %vm436, 0, %v544
        %546 = vst [vmem:[%s492 + $0x14] sm:$0x1] %v545
        %v547 = vld [vmem:[%s492 + $0x20] sm:$0x1]
        %v548 = vsel %vm436, 0, %v547
        %549 = vst [vmem:[%s492 + $0x20] sm:$0x1] %v548
        %v550 = vld [vmem:[%s492 + $0x2c] sm:$0x1]
        %v551 = vsel %vm436, 0, %v550
        %552 = vst [vmem:[%s492 + $0x2c] sm:$0x1] %v551
        %v553 = vld [vmem:[%s492 + $0x38] sm:$0x1]
        %v554 = vsel %vm436, 0, %v553
        %555 = vst [vmem:[%s492 + $0x38] sm:$0x1] %v554
        %v556 = vld [vmem:[%s492 + $0x44] sm:$0x1]
        %v557 = vsel %vm436, 0, %v556
        %558 = vst [vmem:[%s492 + $0x44] sm:$0x1] %v557
        %v559 = vld [vmem:[%s492 + $0x50] sm:$0x1]
        %v560 = vsel %vm436, 0, %v559
        %561 = vst [vmem:[%s492 + $0x50] sm:$0x1] %v560
        %v562 = vld [vmem:[%s492 + $0x5c] sm:$0x1]
        %v563 = vsel %vm436, 0, %v562
        %564 = vst [vmem:[%s492 + $0x5c] sm:$0x1] %v563
        %v565 = vld [vmem:[%s492 + $0x68] sm:$0x1]
        %v566 = vsel %vm436, 0, %v565
        %567 = vst [vmem:[%s492 + $0x68] sm:$0x1] %v566
        %v568 = vld [vmem:[%s492 + $0x74] sm:$0x1]
        %v569 = vsel %vm436, 0, %v568
        %570 = vst [vmem:[%s492 + $0x74] sm:$0x1] %v569
        %v571 = vld [vmem:[%s492 + $0x80] sm:$0x1]
        %v572 = vsel %vm436, 0, %v571
        %573 = vst [vmem:[%s492 + $0x80] sm:$0x1] %v572
        %v574 = vld [vmem:[%s492 + $0x8c] sm:$0x1]
        %v575 = vsel %vm436, 0, %v574
        %576 = vst [vmem:[%s492 + $0x8c] sm:$0x1] %v575
        %v577 = vld [vmem:[%s492 + $0x98] sm:$0x1]
        %v578 = vsel %vm436, 0, %v577
        %579 = vst [vmem:[%s492 + $0x98] sm:$0x1] %v578
        %v580 = vld [vmem:[%s492 + $0xa4] sm:$0x1]
        %v581 = vsel %vm436, 0, %v580
        %582 = vst [vmem:[%s492 + $0xa4] sm:$0x1] %v581
        %v583 = vld [vmem:[%s492 + $0xb0] sm:$0x1]
        %v584 = vsel %vm436, 0, %v583
        %585 = vst [vmem:[%s492 + $0xb0] sm:$0x1] %v584
        %v586 = vld [vmem:[%s492 + $0xbc] sm:$0x1]
        %v587 = vsel %vm436, 0, %v586
        %588 = vst [vmem:[%s492 + $0xbc] sm:$0x1] %v587
        %v589 = vld [vmem:[%s369] sm:$0xf]
        %v590 = vld [vmem:[%s369 + $0x4] sm:$0xf]
        %v591 = vld [vmem:[%s369 + $0x8] sm:$0xf]
        %v592 = vld [vmem:[%s369 + $0xc] sm:$0xf]
        %v593 = vld [vmem:[%s369 + $0x10] sm:$0xf]
        %v594 = vld [vmem:[%s369 + $0x14] sm:$0xf]
        %v595 = vld [vmem:[%s369 + $0x18] sm:$0xf]
        %v596 = vld [vmem:[%s369 + $0x1c] sm:$0xf]
        %v597 = vld [vmem:[%s369 + $0x20] sm:$0xf]
        %v598 = vld [vmem:[%s369 + $0x24] sm:$0xf]
        %v599 = vld [vmem:[%s369 + $0x28] sm:$0xf]
        %v600 = vld [vmem:[%s369 + $0x2c] sm:$0xf]
        %v601 = vld [vmem:[%s369 + $0x30] sm:$0xf]
        %v602 = vld [vmem:[%s369 + $0x34] sm:$0xf]
        %v603 = vld [vmem:[%s369 + $0x38] sm:$0xf]
        %v604 = vld [vmem:[%s369 + $0x3c] sm:$0xf]
        %v605 = vld [vmem:[%s369 + $0x40] sm:$0xf]
        %v606 = vld [vmem:[%s369 + $0x44] sm:$0xf]
        %v607 = vld [vmem:[%s369 + $0x48] sm:$0xf]
        %v608 = vld [vmem:[%s369 + $0x4c] sm:$0xf]
        %v609 = vld [vmem:[%s369 + $0x50] sm:$0xf]
        %v610 = vld [vmem:[%s369 + $0x54] sm:$0xf]
        %v611 = vld [vmem:[%s369 + $0x58] sm:$0xf]
        %v612 = vld [vmem:[%s369 + $0x5c] sm:$0xf]
        %v613 = vld [vmem:[%s369 + $0x60] sm:$0xf]
        %v614 = vld [vmem:[%s369 + $0x64] sm:$0xf]
        %v615 = vld [vmem:[%s369 + $0x68] sm:$0xf]
        %v616 = vld [vmem:[%s369 + $0x6c] sm:$0xf]
        %v617 = vld [vmem:[%s369 + $0x70] sm:$0xf]
        %v618 = vld [vmem:[%s369 + $0x74] sm:$0xf]
        %v619 = vld [vmem:[%s369 + $0x78] sm:$0xf]
        %v620 = vld [vmem:[%s369 + $0x7c] sm:$0xf]
        %vm621 = vsmask.f32 4368
        %vm622 = vmor %vm385, %vm621
        %v624 = vshrl.u32 %v589, 16
        %v626 = vrot.slane %v624, 7
        %v627 = vshll.u32 %v589, 16
        %v629 = vor.u32 %v626, %v627
        %v630 = vrot.slane %v626, 4
        %v632 = vshrl.u32 %v590, 16
        %v634 = vrot.slane %v632, 7
        %v635 = vshll.u32 %v590, 16
        %v637 = vor.u32 %v634, %v635
        %v638 = vsel %vm622, %v630, %v637
        %v639 = vrot.slane %v634, 4
        %v641 = vshrl.u32 %v591, 16
        %v643 = vrot.slane %v641, 7
        %v644 = vshll.u32 %v591, 16
        %v646 = vor.u32 %v643, %v644
        %v647 = vrot.slane %v643, 4
        %v649 = vshrl.u32 %v592, 16
        %v651 = vrot.slane %v649, 7
        %v652 = vshll.u32 %v592, 16
        %v654 = vor.u32 %v651, %v652
        %v655 = vsel %vm622, %v647, %v654
        %v656 = vrot.slane %v651, 4
        %v658 = vshrl.u32 %v593, 16
        %v660 = vrot.slane %v658, 7
        %v661 = vshll.u32 %v593, 16
        %v663 = vor.u32 %v660, %v661
        %v664 = vrot.slane %v660, 4
        %v666 = vshrl.u32 %v594, 16
        %v668 = vrot.slane %v666, 7
        %v669 = vshll.u32 %v594, 16
        %v671 = vor.u32 %v668, %v669
        %v672 = vsel %vm622, %v664, %v671
        %v673 = vrot.slane %v668, 4
        %v675 = vshrl.u32 %v595, 16
        %v677 = vrot.slane %v675, 7
        %v678 = vshll.u32 %v595, 16
        %v680 = vor.u32 %v677, %v678
        %v681 = vrot.slane %v677, 4
        %v683 = vshrl.u32 %v596, 16
        %v685 = vrot.slane %v683, 7
        %v686 = vshll.u32 %v596, 16
        %v688 = vor.u32 %v685, %v686
        %v689 = vsel %vm622, %v681, %v688
        %v690 = vrot.slane %v685, 4
        %v692 = vshrl.u32 %v597, 16
        %v694 = vrot.slane %v692, 7
        %v695 = vshll.u32 %v597, 16
        %v697 = vor.u32 %v694, %v695
        %v698 = vrot.slane %v694, 4
        %v700 = vshrl.u32 %v598, 16
        %v702 = vrot.slane %v700, 7
        %v703 = vshll.u32 %v598, 16
        %v705 = vor.u32 %v702, %v703
        %v706 = vsel %vm622, %v698, %v705
        %v707 = vrot.slane %v702, 4
        %v709 = vshrl.u32 %v599, 16
        %v711 = vrot.slane %v709, 7
        %v712 = vshll.u32 %v599, 16
        %v714 = vor.u32 %v711, %v712
        %v715 = vrot.slane %v711, 4
        %v717 = vshrl.u32 %v600, 16
        %v719 = vrot.slane %v717, 7
        %v720 = vshll.u32 %v600, 16
        %v722 = vor.u32 %v719, %v720
        %v723 = vsel %vm622, %v715, %v722
        %v724 = vrot.slane %v719, 4
        %v726 = vshrl.u32 %v601, 16
        %v728 = vrot.slane %v726, 7
        %v729 = vshll.u32 %v601, 16
        %v731 = vor.u32 %v728, %v729
        %v732 = vrot.slane %v728, 4
        %v734 = vshrl.u32 %v602, 16
        %v736 = vrot.slane %v734, 7
        %v737 = vshll.u32 %v602, 16
        %v739 = vor.u32 %v736, %v737
        %v740 = vsel %vm622, %v732, %v739
        %v741 = vrot.slane %v736, 4
        %v743 = vshrl.u32 %v603, 16
        %v745 = vrot.slane %v743, 7
        %v746 = vshll.u32 %v603, 16
        %v748 = vor.u32 %v745, %v746
        %v749 = vrot.slane %v745, 4
        %v751 = vshrl.u32 %v604, 16
        %v753 = vrot.slane %v751, 7
        %v754 = vshll.u32 %v604, 16
        %v756 = vor.u32 %v753, %v754
        %v757 = vsel %vm622, %v749, %v756
        %v758 = vrot.slane %v753, 4
        %v760 = vshrl.u32 %v605, 16
        %v762 = vrot.slane %v760, 7
        %v763 = vshll.u32 %v605, 16
        %v765 = vor.u32 %v762, %v763
        %v766 = vrot.slane %v762, 4
        %v768 = vshrl.u32 %v606, 16
        %v770 = vrot.slane %v768, 7
        %v771 = vshll.u32 %v606, 16
        %v773 = vor.u32 %v770, %v771
        %v774 = vsel %vm622, %v766, %v773
        %v775 = vrot.slane %v770, 4
        %v777 = vshrl.u32 %v607, 16
        %v779 = vrot.slane %v777, 7
        %v780 = vshll.u32 %v607, 16
        %v782 = vor.u32 %v779, %v780
        %v783 = vrot.slane %v779, 4
        %v785 = vshrl.u32 %v608, 16
        %v787 = vrot.slane %v785, 7
        %v788 = vshll.u32 %v608, 16
        %v790 = vor.u32 %v787, %v788
        %v791 = vsel %vm622, %v783, %v790
        %v792 = vrot.slane %v787, 4
        %v794 = vshrl.u32 %v609, 16
        %v796 = vrot.slane %v794, 7
        %v797 = vshll.u32 %v609, 16
        %v799 = vor.u32 %v796, %v797
        %v800 = vrot.slane %v796, 4
        %v802 = vshrl.u32 %v610, 16
        %v804 = vrot.slane %v802, 7
        %v805 = vshll.u32 %v610, 16
        %v807 = vor.u32 %v804, %v805
        %v808 = vsel %vm622, %v800, %v807
        %v809 = vrot.slane %v804, 4
        %v811 = vshrl.u32 %v611, 16
        %v813 = vrot.slane %v811, 7
        %v814 = vshll.u32 %v611, 16
        %v816 = vor.u32 %v813, %v814
        %v817 = vrot.slane %v813, 4
        %v819 = vshrl.u32 %v612, 16
        %v821 = vrot.slane %v819, 7
        %v822 = vshll.u32 %v612, 16
        %v824 = vor.u32 %v821, %v822
        %v825 = vsel %vm622, %v817, %v824
        %v826 = vrot.slane %v821, 4
        %v828 = vshrl.u32 %v613, 16
        %v830 = vrot.slane %v828, 7
        %v831 = vshll.u32 %v613, 16
        %v833 = vor.u32 %v830, %v831
        %v834 = vrot.slane %v830, 4
        %v836 = vshrl.u32 %v614, 16
        %v838 = vrot.slane %v836, 7
        %v839 = vshll.u32 %v614, 16
        %v841 = vor.u32 %v838, %v839
        %v842 = vsel %vm622, %v834, %v841
        %v843 = vrot.slane %v838, 4
        %v845 = vshrl.u32 %v615, 16
        %v847 = vrot.slane %v845, 7
        %v848 = vshll.u32 %v615, 16
        %v850 = vor.u32 %v847, %v848
        %v851 = vrot.slane %v847, 4
        %v853 = vshrl.u32 %v616, 16
        %v855 = vrot.slane %v853, 7
        %v856 = vshll.u32 %v616, 16
        %v858 = vor.u32 %v855, %v856
        %v859 = vsel %vm622, %v851, %v858
        %v860 = vrot.slane %v855, 4
        %v862 = vshrl.u32 %v617, 16
        %v864 = vrot.slane %v862, 7
        %v865 = vshll.u32 %v617, 16
        %v867 = vor.u32 %v864, %v865
        %v868 = vrot.slane %v864, 4
        %v870 = vshrl.u32 %v618, 16
        %v872 = vrot.slane %v870, 7
        %v873 = vshll.u32 %v618, 16
        %v875 = vor.u32 %v872, %v873
        %v876 = vsel %vm622, %v868, %v875
        %v877 = vrot.slane %v872, 4
        %v879 = vshrl.u32 %v619, 16
        %v881 = vrot.slane %v879, 7
        %v882 = vshll.u32 %v619, 16
        %v884 = vor.u32 %v881, %v882
        %v885 = vrot.slane %v881, 4
        %v887 = vshrl.u32 %v620, 16
        %v889 = vrot.slane %v887, 7
        %v890 = vshll.u32 %v620, 16
        %v892 = vor.u32 %v889, %v890
        %v893 = vsel %vm622, %v885, %v892
        %v894 = vrot.slane %v889, 4
        %vm943 = vcmask 1043456
        %vm944 = vmand %vm943, %vm435
        %v945 = vld [vmem:[%s383] sm:$0xf]
        %v946 = vsel %vm944, %v629, %v945
        %947 = vst [vmem:[%s383] sm:$0xf] %v946
        %948 = vst [vmem:[%s383 + $0x4] sm:$0xf] %v638
        %v949 = vld [vmem:[%s383 + $0x8] sm:$0x1]
        %v950 = vsel %vm386, %v639, %v949
        %951 = vst [vmem:[%s383 + $0x8] sm:$0x1] %v950
        %v952 = vld [vmem:[%s383 + $0xc] sm:$0xf]
        %v953 = vsel %vm944, %v646, %v952
        %954 = vst [vmem:[%s383 + $0xc] sm:$0xf] %v953
        %955 = vst [vmem:[%s383 + $0x10] sm:$0xf] %v655
        %v956 = vld [vmem:[%s383 + $0x14] sm:$0x1]
        %v957 = vsel %vm386, %v656, %v956
        %958 = vst [vmem:[%s383 + $0x14] sm:$0x1] %v957
        %v959 = vld [vmem:[%s383 + $0x18] sm:$0xf]
        %v960 = vsel %vm944, %v663, %v959
        %961 = vst [vmem:[%s383 + $0x18] sm:$0xf] %v960
        %962 = vst [vmem:[%s383 + $0x1c] sm:$0xf] %v672
        %v963 = vld [vmem:[%s383 + $0x20] sm:$0x1]
        %v964 = vsel %vm386, %v673, %v963
        %965 = vst [vmem:[%s383 + $0x20] sm:$0x1] %v964
        %v966 = vld [vmem:[%s383 + $0x24] sm:$0xf]
        %v967 = vsel %vm944, %v680, %v966
        %968 = vst [vmem:[%s383 + $0x24] sm:$0xf] %v967
        %969 = vst [vmem:[%s383 + $0x28] sm:$0xf] %v689
        %v970 = vld [vmem:[%s383 + $0x2c] sm:$0x1]
        %v971 = vsel %vm386, %v690, %v970
        %972 = vst [vmem:[%s383 + $0x2c] sm:$0x1] %v971
        %v973 = vld [vmem:[%s383 + $0x30] sm:$0xf]
        %v974 = vsel %vm944, %v697, %v973
        %975 = vst [vmem:[%s383 + $0x30] sm:$0xf] %v974
        %976 = vst [vmem:[%s383 + $0x34] sm:$0xf] %v706
        %v977 = vld [vmem:[%s383 + $0x38] sm:$0x1]
        %v978 = vsel %vm386, %v707, %v977
        %979 = vst [vmem:[%s383 + $0x38] sm:$0x1] %v978
        %v980 = vld [vmem:[%s383 + $0x3c] sm:$0xf]
        %v981 = vsel %vm944, %v714, %v980
        %982 = vst [vmem:[%s383 + $0x3c] sm:$0xf] %v981
        %983 = vst [vmem:[%s383 + $0x40] sm:$0xf] %v723
        %v984 = vld [vmem:[%s383 + $0x44] sm:$0x1]
        %v985 = vsel %vm386, %v724, %v984
        %986 = vst [vmem:[%s383 + $0x44] sm:$0x1] %v985
        %v987 = vld [vmem:[%s383 + $0x48] sm:$0xf]
        %v988 = vsel %vm944, %v731, %v987
        %989 = vst [vmem:[%s383 + $0x48] sm:$0xf] %v988
        %990 = vst [vmem:[%s383 + $0x4c] sm:$0xf] %v740
        %v991 = vld [vmem:[%s383 + $0x50] sm:$0x1]
        %v992 = vsel %vm386, %v741, %v991
        %993 = vst [vmem:[%s383 + $0x50] sm:$0x1] %v992
        %v994 = vld [vmem:[%s383 + $0x54] sm:$0xf]
        %v995 = vsel %vm944, %v748, %v994
        %996 = vst [vmem:[%s383 + $0x54] sm:$0xf] %v995
        %997 = vst [vmem:[%s383 + $0x58] sm:$0xf] %v757
        %v998 = vld [vmem:[%s383 + $0x5c] sm:$0x1]
        %v999 = vsel %vm386, %v758, %v998
        %1000 = vst [vmem:[%s383 + $0x5c] sm:$0x1] %v999
        %v1001 = vld [vmem:[%s383 + $0x60] sm:$0xf]
        %v1002 = vsel %vm944, %v765, %v1001
        %1003 = vst [vmem:[%s383 + $0x60] sm:$0xf] %v1002
        %1004 = vst [vmem:[%s383 + $0x64] sm:$0xf] %v774
        %v1005 = vld [vmem:[%s383 + $0x68] sm:$0x1]
        %v1006 = vsel %vm386, %v775, %v1005
        %1007 = vst [vmem:[%s383 + $0x68] sm:$0x1] %v1006
        %v1008 = vld [vmem:[%s383 + $0x6c] sm:$0xf]
        %v1009 = vsel %vm944, %v782, %v1008
        %1010 = vst [vmem:[%s383 + $0x6c] sm:$0xf] %v1009
        %1011 = vst [vmem:[%s383 + $0x70] sm:$0xf] %v791
        %v1012 = vld [vmem:[%s383 + $0x74] sm:$0x1]
        %v1013 = vsel %vm386, %v792, %v1012
        %1014 = vst [vmem:[%s383 + $0x74] sm:$0x1] %v1013
        %v1015 = vld [vmem:[%s383 + $0x78] sm:$0xf]
        %v1016 = vsel %vm944, %v799, %v1015
        %1017 = vst [vmem:[%s383 + $0x78] sm:$0xf] %v1016
        %1018 = vst [vmem:[%s383 + $0x7c] sm:$0xf] %v808
        %v1019 = vld [vmem:[%s383 + $0x80] sm:$0x1]
        %v1020 = vsel %vm386, %v809, %v1019
        %1021 = vst [vmem:[%s383 + $0x80] sm:$0x1] %v1020
        %v1022 = vld [vmem:[%s383 + $0x84] sm:$0xf]
        %v1023 = vsel %vm944, %v816, %v1022
        %1024 = vst [vmem:[%s383 + $0x84] sm:$0xf] %v1023
        %1025 = vst [vmem:[%s383 + $0x88] sm:$0xf] %v825
        %v1026 = vld [vmem:[%s383 + $0x8c] sm:$0x1]
        %v1027 = vsel %vm386, %v826, %v1026
        %1028 = vst [vmem:[%s383 + $0x8c] sm:$0x1] %v1027
        %v1029 = vld [vmem:[%s383 + $0x90] sm:$0xf]
        %v1030 = vsel %vm944, %v833, %v1029
        %1031 = vst [vmem:[%s383 + $0x90] sm:$0xf] %v1030
        %1032 = vst [vmem:[%s383 + $0x94] sm:$0xf] %v842
        %v1033 = vld [vmem:[%s383 + $0x98] sm:$0x1]
        %v1034 = vsel %vm386, %v843, %v1033
        %1035 = vst [vmem:[%s383 + $0x98] sm:$0x1] %v1034
        %v1036 = vld [vmem:[%s383 + $0x9c] sm:$0xf]
        %v1037 = vsel %vm944, %v850, %v1036
        %1038 = vst [vmem:[%s383 + $0x9c] sm:$0xf] %v1037
        %1039 = vst [vmem:[%s383 + $0xa0] sm:$0xf] %v859
        %v1040 = vld [vmem:[%s383 + $0xa4] sm:$0x1]
        %v1041 = vsel %vm386, %v860, %v1040
        %1042 = vst [vmem:[%s383 + $0xa4] sm:$0x1] %v1041
        %v1043 = vld [vmem:[%s383 + $0xa8] sm:$0xf]
        %v1044 = vsel %vm944, %v867, %v1043
        %1045 = vst [vmem:[%s383 + $0xa8] sm:$0xf] %v1044
        %1046 = vst [vmem:[%s383 + $0xac] sm:$0xf] %v876
        %v1047 = vld [vmem:[%s383 + $0xb0] sm:$0x1]
        %v1048 = vsel %vm386, %v877, %v1047
        %1049 = vst [vmem:[%s383 + $0xb0] sm:$0x1] %v1048
        %v1050 = vld [vmem:[%s383 + $0xb4] sm:$0xf]
        %v1051 = vsel %vm944, %v884, %v1050
        %1052 = vst [vmem:[%s383 + $0xb4] sm:$0xf] %v1051
        %1053 = vst [vmem:[%s383 + $0xb8] sm:$0xf] %v893
        %v1054 = vld [vmem:[%s383 + $0xbc] sm:$0x1]
        %v1055 = vsel %vm386, %v894, %v1054
        %1056 = vst [vmem:[%s383 + $0xbc] sm:$0x1] %v1055
        %v1057 = vld [vmem:[#allocation2] sm:$0xf]
        %v1058 = vld [vmem:[#allocation2 + $0x4] sm:$0xf]
        %v1059 = vld [vmem:[#allocation2 + $0xc] sm:$0xf]
        %v1060 = vld [vmem:[#allocation2 + $0x10] sm:$0xf]
        %v1061 = vld [vmem:[#allocation2 + $0x18] sm:$0xf]
        %v1062 = vld [vmem:[#allocation2 + $0x1c] sm:$0xf]
        %v1063 = vld [vmem:[#allocation2 + $0x24] sm:$0xf]
        %v1064 = vld [vmem:[#allocation2 + $0x28] sm:$0xf]
        %v1065 = vld [vmem:[#allocation2 + $0x30] sm:$0xf]
        %v1066 = vld [vmem:[#allocation2 + $0x34] sm:$0xf]
        %v1067 = vld [vmem:[#allocation2 + $0x3c] sm:$0xf]
        %v1068 = vld [vmem:[#allocation2 + $0x40] sm:$0xf]
        %v1069 = vld [vmem:[#allocation2 + $0x48] sm:$0xf]
        %v1070 = vld [vmem:[#allocation2 + $0x4c] sm:$0xf]
        %v1071 = vld [vmem:[#allocation2 + $0x54] sm:$0xf]
        %v1072 = vld [vmem:[#allocation2 + $0x58] sm:$0xf]
        %v1073 = vld [vmem:[#allocation2 + $0x60] sm:$0xf]
        %v1074 = vld [vmem:[#allocation2 + $0x64] sm:$0xf]
        %v1075 = vld [vmem:[#allocation2 + $0x6c] sm:$0xf]
        %v1076 = vld [vmem:[#allocation2 + $0x70] sm:$0xf]
        %v1077 = vld [vmem:[#allocation2 + $0x78] sm:$0xf]
        %v1078 = vld [vmem:[#allocation2 + $0x7c] sm:$0xf]
        %v1079 = vld [vmem:[#allocation2 + $0x84] sm:$0xf]
        %v1080 = vld [vmem:[#allocation2 + $0x88] sm:$0xf]
        %v1081 = vld [vmem:[#allocation2 + $0x90] sm:$0xf]
        %v1082 = vld [vmem:[#allocation2 + $0x94] sm:$0xf]
        %v1083 = vld [vmem:[#allocation2 + $0x9c] sm:$0xf]
        %v1084 = vld [vmem:[#allocation2 + $0xa0] sm:$0xf]
        %v1085 = vld [vmem:[#allocation2 + $0xa8] sm:$0xf]
        %v1086 = vld [vmem:[#allocation2 + $0xac] sm:$0xf]
        %v1087 = vld [vmem:[#allocation2 + $0xb4] sm:$0xf]
        %v1088 = vld [vmem:[#allocation2 + $0xb8] sm:$0xf]
        %1089 = vst [vmem:[#allocation4] sm:$0xf] %v1057
        %1090 = vst [vmem:[#allocation4 + $0x24] sm:$0xf] %v1058
        %1091 = vst [vmem:[#allocation4 + $0x48] sm:$0xf] %v1059
        %1092 = vst [vmem:[#allocation4 + $0x6c] sm:$0xf] %v1060
        %1093 = vst [vmem:[#allocation4 + $0x90] sm:$0xf] %v1061
        %1094 = vst [vmem:[#allocation4 + $0xb4] sm:$0xf] %v1062
        %1095 = vst [vmem:[#allocation4 + $0xd8] sm:$0xf] %v1063
        %1096 = vst [vmem:[#allocation4 + $0xfc] sm:$0xf] %v1064
        %1097 = vst [vmem:[#allocation4 + $0x120] sm:$0xf] %v1065
        %1098 = vst [vmem:[#allocation4 + $0x144] sm:$0xf] %v1066
        %1099 = vst [vmem:[#allocation4 + $0x168] sm:$0xf] %v1067
        %1100 = vst [vmem:[#allocation4 + $0x18c] sm:$0xf] %v1068
        %1101 = vst [vmem:[#allocation4 + $0x1b0] sm:$0xf] %v1069
        %1102 = vst [vmem:[#allocation4 + $0x1d4] sm:$0xf] %v1070
        %1103 = vst [vmem:[#allocation4 + $0x1f8] sm:$0xf] %v1071
        %1104 = vst [vmem:[#allocation4 + $0x21c] sm:$0xf] %v1072
        %1105 = vst [vmem:[#allocation4 + $0x240] sm:$0xf] %v1073
        %1106 = vst [vmem:[#allocation4 + $0x264] sm:$0xf] %v1074
        %1107 = vst [vmem:[#allocation4 + $0x288] sm:$0xf] %v1075
        %1108 = vst [vmem:[#allocation4 + $0x2ac] sm:$0xf] %v1076
        %1109 = vst [vmem:[#allocation4 + $0x2d0] sm:$0xf] %v1077
        %1110 = vst [vmem:[#allocation4 + $0x2f4] sm:$0xf] %v1078
        %1111 = vst [vmem:[#allocation4 + $0x318] sm:$0xf] %v1079
        %1112 = vst [vmem:[#allocation4 + $0x33c] sm:$0xf] %v1080
        %1113 = vst [vmem:[#allocation4 + $0x360] sm:$0xf] %v1081
        %1114 = vst [vmem:[#allocation4 + $0x384] sm:$0xf] %v1082
        %1115 = vst [vmem:[#allocation4 + $0x3a8] sm:$0xf] %v1083
        %1116 = vst [vmem:[#allocation4 + $0x3cc] sm:$0xf] %v1084
        %1117 = vst [vmem:[#allocation4 + $0x3f0] sm:$0xf] %v1085
        %1118 = vst [vmem:[#allocation4 + $0x414] sm:$0xf] %v1086
        %1119 = vst [vmem:[#allocation4 + $0x438] sm:$0xf] %v1087
        %1120 = vst [vmem:[#allocation4 + $0x45c] sm:$0xf] %v1088
        %v1121 = vld [vmem:[#allocation2] sm:$0xf]
        %v1122 = vld [vmem:[#allocation2 + $0x4] sm:$0xf]
        %v1123 = vld [vmem:[#allocation2 + $0x8] sm:$0x1]
        %v1124 = vld [vmem:[#allocation2 + $0xc] sm:$0xf]
        %v1125 = vld [vmem:[#allocation2 + $0x10] sm:$0xf]
        %v1126 = vld [vmem:[#allocation2 + $0x14] sm:$0x1]
        %v1127 = vld [vmem:[#allocation2 + $0x18] sm:$0xf]
        %v1128 = vld [vmem:[#allocation2 + $0x1c] sm:$0xf]
        %v1129 = vld [vmem:[#allocation2 + $0x20] sm:$0x1]
        %v1130 = vld [vmem:[#allocation2 + $0x24] sm:$0xf]
        %v1131 = vld [vmem:[#allocation2 + $0x28] sm:$0xf]
        %v1132 = vld [vmem:[#allocation2 + $0x2c] sm:$0x1]
        %v1133 = vld [vmem:[#allocation2 + $0x30] sm:$0xf]
        %v1134 = vld [vmem:[#allocation2 + $0x34] sm:$0xf]
        %v1135 = vld [vmem:[#allocation2 + $0x38] sm:$0x1]
        %v1136 = vld [vmem:[#allocation2 + $0x3c] sm:$0xf]
        %v1137 = vld [vmem:[#allocation2 + $0x40] sm:$0xf]
        %v1138 = vld [vmem:[#allocation2 + $0x44] sm:$0x1]
        %v1139 = vld [vmem:[#allocation2 + $0x48] sm:$0xf]
        %v1140 = vld [vmem:[#allocation2 + $0x4c] sm:$0xf]
        %v1141 = vld [vmem:[#allocation2 + $0x50] sm:$0x1]
        %v1142 = vld [vmem:[#allocation2 + $0x54] sm:$0xf]
        %v1143 = vld [vmem:[#allocation2 + $0x58] sm:$0xf]
        %v1144 = vld [vmem:[#allocation2 + $0x5c] sm:$0x1]
        %v1145 = vld [vmem:[#allocation2 + $0x60] sm:$0xf]
        %v1146 = vld [vmem:[#allocation2 + $0x64] sm:$0xf]
        %v1147 = vld [vmem:[#allocation2 + $0x68] sm:$0x1]
        %v1148 = vld [vmem:[#allocation2 + $0x6c] sm:$0xf]
        %v1149 = vld [vmem:[#allocation2 + $0x70] sm:$0xf]
        %v1150 = vld [vmem:[#allocation2 + $0x74] sm:$0x1]
        %v1151 = vld [vmem:[#allocation2 + $0x78] sm:$0xf]
        %v1152 = vld [vmem:[#allocation2 + $0x7c] sm:$0xf]
        %v1153 = vld [vmem:[#allocation2 + $0x80] sm:$0x1]
        %v1154 = vld [vmem:[#allocation2 + $0x84] sm:$0xf]
        %v1155 = vld [vmem:[#allocation2 + $0x88] sm:$0xf]
        %v1156 = vld [vmem:[#allocation2 + $0x8c] sm:$0x1]
        %v1157 = vld [vmem:[#allocation2 + $0x90] sm:$0xf]
        %v1158 = vld [vmem:[#allocation2 + $0x94] sm:$0xf]
        %v1159 = vld [vmem:[#allocation2 + $0x98] sm:$0x1]
        %v1160 = vld [vmem:[#allocation2 + $0x9c] sm:$0xf]
        %v1161 = vld [vmem:[#allocation2 + $0xa0] sm:$0xf]
        %v1162 = vld [vmem:[#allocation2 + $0xa4] sm:$0x1]
        %v1163 = vld [vmem:[#allocation2 + $0xa8] sm:$0xf]
        %v1164 = vld [vmem:[#allocation2 + $0xac] sm:$0xf]
        %v1165 = vld [vmem:[#allocation2 + $0xb0] sm:$0x1]
        %v1166 = vld [vmem:[#allocation2 + $0xb4] sm:$0xf]
        %v1167 = vld [vmem:[#allocation2 + $0xb8] sm:$0xf]
        %v1168 = vld [vmem:[#allocation2 + $0xbc] sm:$0x1]
        %vm1169 = vsmask.f32 3328
        %vm1170 = vsmask.f32 7440
        %vm1171 = vmor %vm1169, %vm1170
        %v1173 = vshrl.u32 %v1121, 16
        %v1175 = vrot.slane %v1173, 4
        %v1176 = vshll.u32 %v1121, 16
        %v1178 = vrot.slane %v1176, 5
        %v1179 = vor.u32 %v1175, %v1178
        %v1180 = vrot.slane %v1179, 4
        %v1182 = vshll.u32 %v1122, 16
        %v1184 = vrot.slane %v1182, 5
        %v1185 = vsel %vm1171, %v1180, %v1184
        %v1186 = vshrl.u32 %v1122, 16
        %v1188 = vrot.slane %v1186, 4
        %v1189 = vor.u32 %v1188, %v1184
        %v1190 = vrot.slane %v1189, 4
        %v1192 = vshll.u32 %v1123, 16
        %v1194 = vrot.slane %v1192, 5
        %v1195 = vsel %vm1171, %v1190, %v1194
        %v1197 = vshrl.u32 %v1124, 16
        %v1199 = vrot.slane %v1197, 4
        %v1200 = vshll.u32 %v1124, 16
        %v1202 = vrot.slane %v1200, 5
        %v1203 = vor.u32 %v1199, %v1202
        %v1204 = vrot.slane %v1203, 4
        %v1206 = vshll.u32 %v1125, 16
        %v1208 = vrot.slane %v1206, 5
        %v1209 = vsel %vm1171, %v1204, %v1208
        %v1210 = vshrl.u32 %v1125, 16
        %v1212 = vrot.slane %v1210, 4
        %v1213 = vor.u32 %v1212, %v1208
        %v1214 = vrot.slane %v1213, 4
        %v1216 = vshll.u32 %v1126, 16
        %v1218 = vrot.slane %v1216, 5
        %v1219 = vsel %vm1171, %v1214, %v1218
        %v1221 = vshrl.u32 %v1127, 16
        %v1223 = vrot.slane %v1221, 4
        %v1224 = vshll.u32 %v1127, 16
        %v1226 = vrot.slane %v1224, 5
        %v1227 = vor.u32 %v1223, %v1226
        %v1228 = vrot.slane %v1227, 4
        %v1230 = vshll.u32 %v1128, 16
        %v1232 = vrot.slane %v1230, 5
        %v1233 = vsel %vm1171, %v1228, %v1232
        %v1234 = vshrl.u32 %v1128, 16
        %v1236 = vrot.slane %v1234, 4
        %v1237 = vor.u32 %v1236, %v1232
        %v1238 = vrot.slane %v1237, 4
        %v1240 = vshll.u32 %v1129, 16
        %v1242 = vrot.slane %v1240, 5
        %v1243 = vsel %vm1171, %v1238, %v1242
        %v1245 = vshrl.u32 %v1130, 16
        %v1247 = vrot.slane %v1245, 4
        %v1248 = vshll.u32 %v1130, 16
        %v1250 = vrot.slane %v1248, 5
        %v1251 = vor.u32 %v1247, %v1250
        %v1252 = vrot.slane %v1251, 4
        %v1254 = vshll.u32 %v1131, 16
        %v1256 = vrot.slane %v1254, 5
        %v1257 = vsel %vm1171, %v1252, %v1256
        %v1258 = vshrl.u32 %v1131, 16
        %v1260 = vrot.slane %v1258, 4
        %v1261 = vor.u32 %v1260, %v1256
        %v1262 = vrot.slane %v1261, 4
        %v1264 = vshll.u32 %v1132, 16
        %v1266 = vrot.slane %v1264, 5
        %v1267 = vsel %vm1171, %v1262, %v1266
        %v1269 = vshrl.u32 %v1133, 16
        %v1271 = vrot.slane %v1269, 4
        %v1272 = vshll.u32 %v1133, 16
        %v1274 = vrot.slane %v1272, 5
        %v1275 = vor.u32 %v1271, %v1274
        %v1276 = vrot.slane %v1275, 4
        %v1278 = vshll.u32 %v1134, 16
        %v1280 = vrot.slane %v1278, 5
        %v1281 = vsel %vm1171, %v1276, %v1280
        %v1282 = vshrl.u32 %v1134, 16
        %v1284 = vrot.slane %v1282, 4
        %v1285 = vor.u32 %v1284, %v1280
        %v1286 = vrot.slane %v1285, 4
        %v1288 = vshll.u32 %v1135, 16
        %v1290 = vrot.slane %v1288, 5
        %v1291 = vsel %vm1171, %v1286, %v1290
        %v1293 = vshrl.u32 %v1136, 16
        %v1295 = vrot.slane %v1293, 4
        %v1296 = vshll.u32 %v1136, 16
        %v1298 = vrot.slane %v1296, 5
        %v1299 = vor.u32 %v1295, %v1298
        %v1300 = vrot.slane %v1299, 4
        %v1302 = vshll.u32 %v1137, 16
        %v1304 = vrot.slane %v1302, 5
        %v1305 = vsel %vm1171, %v1300, %v1304
        %v1306 = vshrl.u32 %v1137, 16
        %v1308 = vrot.slane %v1306, 4
        %v1309 = vor.u32 %v1308, %v1304
        %v1310 = vrot.slane %v1309, 4
        %v1312 = vshll.u32 %v1138, 16
        %v1314 = vrot.slane %v1312, 5
        %v1315 = vsel %vm1171, %v1310, %v1314
        %v1317 = vshrl.u32 %v1139, 16
        %v1319 = vrot.slane %v1317, 4
        %v1320 = vshll.u32 %v1139, 16
        %v1322 = vrot.slane %v1320, 5
        %v1323 = vor.u32 %v1319, %v1322
        %v1324 = vrot.slane %v1323, 4
        %v1326 = vshll.u32 %v1140, 16
        %v1328 = vrot.slane %v1326, 5
        %v1329 = vsel %vm1171, %v1324, %v1328
        %v1330 = vshrl.u32 %v1140, 16
        %v1332 = vrot.slane %v1330, 4
        %v1333 = vor.u32 %v1332, %v1328
        %v1334 = vrot.slane %v1333, 4
        %v1336 = vshll.u32 %v1141, 16
        %v1338 = vrot.slane %v1336, 5
        %v1339 = vsel %vm1171, %v1334, %v1338
        %v1341 = vshrl.u32 %v1142, 16
        %v1343 = vrot.slane %v1341, 4
        %v1344 = vshll.u32 %v1142, 16
        %v1346 = vrot.slane %v1344, 5
        %v1347 = vor.u32 %v1343, %v1346
        %v1348 = vrot.slane %v1347, 4
        %v1350 = vshll.u32 %v1143, 16
        %v1352 = vrot.slane %v1350, 5
        %v1353 = vsel %vm1171, %v1348, %v1352
        %v1354 = vshrl.u32 %v1143, 16
        %v1356 = vrot.slane %v1354, 4
        %v1357 = vor.u32 %v1356, %v1352
        %v1358 = vrot.slane %v1357, 4
        %v1360 = vshll.u32 %v1144, 16
        %v1362 = vrot.slane %v1360, 5
        %v1363 = vsel %vm1171, %v1358, %v1362
        %v1365 = vshrl.u32 %v1145, 16
        %v1367 = vrot.slane %v1365, 4
        %v1368 = vshll.u32 %v1145, 16
        %v1370 = vrot.slane %v1368, 5
        %v1371 = vor.u32 %v1367, %v1370
        %v1372 = vrot.slane %v1371, 4
        %v1374 = vshll.u32 %v1146, 16
        %v1376 = vrot.slane %v1374, 5
        %v1377 = vsel %vm1171, %v1372, %v1376
        %v1378 = vshrl.u32 %v1146, 16
        %v1380 = vrot.slane %v1378, 4
        %v1381 = vor.u32 %v1380, %v1376
        %v1382 = vrot.slane %v1381, 4
        %v1384 = vshll.u32 %v1147, 16
        %v1386 = vrot.slane %v1384, 5
        %v1387 = vsel %vm1171, %v1382, %v1386
        %v1389 = vshrl.u32 %v1148, 16
        %v1391 = vrot.slane %v1389, 4
        %v1392 = vshll.u32 %v1148, 16
        %v1394 = vrot.slane %v1392, 5
        %v1395 = vor.u32 %v1391, %v1394
        %v1396 = vrot.slane %v1395, 4
        %v1398 = vshll.u32 %v1149, 16
        %v1400 = vrot.slane %v1398, 5
        %v1401 = vsel %vm1171, %v1396, %v1400
        %v1402 = vshrl.u32 %v1149, 16
        %v1404 = vrot.slane %v1402, 4
        %v1405 = vor.u32 %v1404, %v1400
        %v1406 = vrot.slane %v1405, 4
        %v1408 = vshll.u32 %v1150, 16
        %v1410 = vrot.slane %v1408, 5
        %v1411 = vsel %vm1171, %v1406, %v1410
        %v1413 = vshrl.u32 %v1151, 16
        %v1415 = vrot.slane %v1413, 4
        %v1416 = vshll.u32 %v1151, 16
        %v1418 = vrot.slane %v1416, 5
        %v1419 = vor.u32 %v1415, %v1418
        %v1420 = vrot.slane %v1419, 4
        %v1422 = vshll.u32 %v1152, 16
        %v1424 = vrot.slane %v1422, 5
        %v1425 = vsel %vm1171, %v1420, %v1424
        %v1426 = vshrl.u32 %v1152, 16
        %v1428 = vrot.slane %v1426, 4
        %v1429 = vor.u32 %v1428, %v1424
        %v1430 = vrot.slane %v1429, 4
        %v1432 = vshll.u32 %v1153, 16
        %v1434 = vrot.slane %v1432, 5
        %v1435 = vsel %vm1171, %v1430, %v1434
        %v1437 = vshrl.u32 %v1154, 16
        %v1439 = vrot.slane %v1437, 4
        %v1440 = vshll.u32 %v1154, 16
        %v1442 = vrot.slane %v1440, 5
        %v1443 = vor.u32 %v1439, %v1442
        %v1444 = vrot.slane %v1443, 4
        %v1446 = vshll.u32 %v1155, 16
        %v1448 = vrot.slane %v1446, 5
        %v1449 = vsel %vm1171, %v1444, %v1448
        %v1450 = vshrl.u32 %v1155, 16
        %v1452 = vrot.slane %v1450, 4
        %v1453 = vor.u32 %v1452, %v1448
        %v1454 = vrot.slane %v1453, 4
        %v1456 = vshll.u32 %v1156, 16
        %v1458 = vrot.slane %v1456, 5
        %v1459 = vsel %vm1171, %v1454, %v1458
        %v1461 = vshrl.u32 %v1157, 16
        %v1463 = vrot.slane %v1461, 4
        %v1464 = vshll.u32 %v1157, 16
        %v1466 = vrot.slane %v1464, 5
        %v1467 = vor.u32 %v1463, %v1466
        %v1468 = vrot.slane %v1467, 4
        %v1470 = vshll.u32 %v1158, 16
        %v1472 = vrot.slane %v1470, 5
        %v1473 = vsel %vm1171, %v1468, %v1472
        %v1474 = vshrl.u32 %v1158, 16
        %v1476 = vrot.slane %v1474, 4
        %v1477 = vor.u32 %v1476, %v1472
        %v1478 = vrot.slane %v1477, 4
        %v1480 = vshll.u32 %v1159, 16
        %v1482 = vrot.slane %v1480, 5
        %v1483 = vsel %vm1171, %v1478, %v1482
        %v1485 = vshrl.u32 %v1160, 16
        %v1487 = vrot.slane %v1485, 4
        %v1488 = vshll.u32 %v1160, 16
        %v1490 = vrot.slane %v1488, 5
        %v1491 = vor.u32 %v1487, %v1490
        %v1492 = vrot.slane %v1491, 4
        %v1494 = vshll.u32 %v1161, 16
        %v1496 = vrot.slane %v1494, 5
        %v1497 = vsel %vm1171, %v1492, %v1496
        %v1498 = vshrl.u32 %v1161, 16
        %v1500 = vrot.slane %v1498, 4
        %v1501 = vor.u32 %v1500, %v1496
        %v1502 = vrot.slane %v1501, 4
        %v1504 = vshll.u32 %v1162, 16
        %v1506 = vrot.slane %v1504, 5
        %v1507 = vsel %vm1171, %v1502, %v1506
        %v1509 = vshrl.u32 %v1163, 16
        %v1511 = vrot.slane %v1509, 4
        %v1512 = vshll.u32 %v1163, 16
        %v1514 = vrot.slane %v1512, 5
        %v1515 = vor.u32 %v1511, %v1514
        %v1516 = vrot.slane %v1515, 4
        %v1518 = vshll.u32 %v1164, 16
        %v1520 = vrot.slane %v1518, 5
        %v1521 = vsel %vm1171, %v1516, %v1520
        %v1522 = vshrl.u32 %v1164, 16
        %v1524 = vrot.slane %v1522, 4
        %v1525 = vor.u32 %v1524, %v1520
        %v1526 = vrot.slane %v1525, 4
        %v1528 = vshll.u32 %v1165, 16
        %v1530 = vrot.slane %v1528, 5
        %v1531 = vsel %vm1171, %v1526, %v1530
        %v1533 = vshrl.u32 %v1166, 16
        %v1535 = vrot.slane %v1533, 4
        %v1536 = vshll.u32 %v1166, 16
        %v1538 = vrot.slane %v1536, 5
        %v1539 = vor.u32 %v1535, %v1538
        %v1540 = vrot.slane %v1539, 4
        %v1542 = vshll.u32 %v1167, 16
        %v1544 = vrot.slane %v1542, 5
        %v1545 = vsel %vm1171, %v1540, %v1544
        %v1546 = vshrl.u32 %v1167, 16
        %v1548 = vrot.slane %v1546, 4
        %v1549 = vor.u32 %v1548, %v1544
        %v1550 = vrot.slane %v1549, 4
        %v1552 = vshll.u32 %v1168, 16
        %v1554 = vrot.slane %v1552, 5
        %v1555 = vsel %vm1171, %v1550, %v1554
        %1588 = vst [vmem:[#allocation4 + $0x4] sm:$0xf] %v1185
        %1589 = vst [vmem:[#allocation4 + $0x28] sm:$0xf] %v1195
        %1590 = vst [vmem:[#allocation4 + $0x4c] sm:$0xf] %v1209
        %1591 = vst [vmem:[#allocation4 + $0x70] sm:$0xf] %v1219
        %1592 = vst [vmem:[#allocation4 + $0x94] sm:$0xf] %v1233
        %1593 = vst [vmem:[#allocation4 + $0xb8] sm:$0xf] %v1243
        %1594 = vst [vmem:[#allocation4 + $0xdc] sm:$0xf] %v1257
        %1595 = vst [vmem:[#allocation4 + $0x100] sm:$0xf] %v1267
        %1596 = vst [vmem:[#allocation4 + $0x124] sm:$0xf] %v1281
        %1597 = vst [vmem:[#allocation4 + $0x148] sm:$0xf] %v1291
        %1598 = vst [vmem:[#allocation4 + $0x16c] sm:$0xf] %v1305
        %1599 = vst [vmem:[#allocation4 + $0x190] sm:$0xf] %v1315
        %1600 = vst [vmem:[#allocation4 + $0x1b4] sm:$0xf] %v1329
        %1601 = vst [vmem:[#allocation4 + $0x1d8] sm:$0xf] %v1339
        %1602 = vst [vmem:[#allocation4 + $0x1fc] sm:$0xf] %v1353
        %1603 = vst [vmem:[#allocation4 + $0x220] sm:$0xf] %v1363
        %1604 = vst [vmem:[#allocation4 + $0x244] sm:$0xf] %v1377
        %1605 = vst [vmem:[#allocation4 + $0x268] sm:$0xf] %v1387
        %1606 = vst [vmem:[#allocation4 + $0x28c] sm:$0xf] %v1401
        %1607 = vst [vmem:[#allocation4 + $0x2b0] sm:$0xf] %v1411
        %1608 = vst [vmem:[#allocation4 + $0x2d4] sm:$0xf] %v1425
        %1609 = vst [vmem:[#allocation4 + $0x2f8] sm:$0xf] %v1435
        %1610 = vst [vmem:[#allocation4 + $0x31c] sm:$0xf] %v1449
        %1611 = vst [vmem:[#allocation4 + $0x340] sm:$0xf] %v1459
        %1612 = vst [vmem:[#allocation4 + $0x364] sm:$0xf] %v1473
        %1613 = vst [vmem:[#allocation4 + $0x388] sm:$0xf] %v1483
        %1614 = vst [vmem:[#allocation4 + $0x3ac] sm:$0xf] %v1497
        %1615 = vst [vmem:[#allocation4 + $0x3d0] sm:$0xf] %v1507
        %1616 = vst [vmem:[#allocation4 + $0x3f4] sm:$0xf] %v1521
        %1617 = vst [vmem:[#allocation4 + $0x418] sm:$0xf] %v1531
        %1618 = vst [vmem:[#allocation4 + $0x43c] sm:$0xf] %v1545
        %1619 = vst [vmem:[#allocation4 + $0x460] sm:$0xf] %v1555
        %v1620 = vld [vmem:[#allocation2] sm:$0xe]
        %v1621 = vld [vmem:[#allocation2 + $0x4] sm:$0xf]
        %v1622 = vld [vmem:[#allocation2 + $0x8] sm:$0x1]
        %v1623 = vld [vmem:[#allocation2 + $0xc] sm:$0xe]
        %v1624 = vld [vmem:[#allocation2 + $0x10] sm:$0xf]
        %v1625 = vld [vmem:[#allocation2 + $0x14] sm:$0x1]
        %v1626 = vld [vmem:[#allocation2 + $0x18] sm:$0xe]
        %v1627 = vld [vmem:[#allocation2 + $0x1c] sm:$0xf]
        %v1628 = vld [vmem:[#allocation2 + $0x20] sm:$0x1]
        %v1629 = vld [vmem:[#allocation2 + $0x24] sm:$0xe]
        %v1630 = vld [vmem:[#allocation2 + $0x28] sm:$0xf]
        %v1631 = vld [vmem:[#allocation2 + $0x2c] sm:$0x1]
        %v1632 = vld [vmem:[#allocation2 + $0x30] sm:$0xe]
        %v1633 = vld [vmem:[#allocation2 + $0x34] sm:$0xf]
        %v1634 = vld [vmem:[#allocation2 + $0x38] sm:$0x1]
        %v1635 = vld [vmem:[#allocation2 + $0x3c] sm:$0xe]
        %v1636 = vld [vmem:[#allocation2 + $0x40] sm:$0xf]
        %v1637 = vld [vmem:[#allocation2 + $0x44] sm:$0x1]
        %v1638 = vld [vmem:[#allocation2 + $0x48] sm:$0xe]
        %v1639 = vld [vmem:[#allocation2 + $0x4c] sm:$0xf]
        %v1640 = vld [vmem:[#allocation2 + $0x50] sm:$0x1]
        %v1641 = vld [vmem:[#allocation2 + $0x54] sm:$0xe]
        %v1642 = vld [vmem:[#allocation2 + $0x58] sm:$0xf]
        %v1643 = vld [vmem:[#allocation2 + $0x5c] sm:$0x1]
        %v1644 = vld [vmem:[#allocation2 + $0x60] sm:$0xe]
        %v1645 = vld [vmem:[#allocation2 + $0x64] sm:$0xf]
        %v1646 = vld [vmem:[#allocation2 + $0x68] sm:$0x1]
        %v1647 = vld [vmem:[#allocation2 + $0x6c] sm:$0xe]
        %v1648 = vld [vmem:[#allocation2 + $0x70] sm:$0xf]
        %v1649 = vld [vmem:[#allocation2 + $0x74] sm:$0x1]
        %v1650 = vld [vmem:[#allocation2 + $0x78] sm:$0xe]
        %v1651 = vld [vmem:[#allocation2 + $0x7c] sm:$0xf]
        %v1652 = vld [vmem:[#allocation2 + $0x80] sm:$0x1]
        %v1653 = vld [vmem:[#allocation2 + $0x84] sm:$0xe]
        %v1654 = vld [vmem:[#allocation2 + $0x88] sm:$0xf]
        %v1655 = vld [vmem:[#allocation2 + $0x8c] sm:$0x1]
        %v1656 = vld [vmem:[#allocation2 + $0x90] sm:$0xe]
        %v1657 = vld [vmem:[#allocation2 + $0x94] sm:$0xf]
        %v1658 = vld [vmem:[#allocation2 + $0x98] sm:$0x1]
        %v1659 = vld [vmem:[#allocation2 + $0x9c] sm:$0xe]
        %v1660 = vld [vmem:[#allocation2 + $0xa0] sm:$0xf]
        %v1661 = vld [vmem:[#allocation2 + $0xa4] sm:$0x1]
        %v1662 = vld [vmem:[#allocation2 + $0xa8] sm:$0xe]
        %v1663 = vld [vmem:[#allocation2 + $0xac] sm:$0xf]
        %v1664 = vld [vmem:[#allocation2 + $0xb0] sm:$0x1]
        %v1665 = vld [vmem:[#allocation2 + $0xb4] sm:$0xe]
        %v1666 = vld [vmem:[#allocation2 + $0xb8] sm:$0xf]
        %v1667 = vld [vmem:[#allocation2 + $0xbc] sm:$0x1]
        %vm1716 = vcmask 1042432
        %vm1717 = vcmask 1046532
        %vm1718 = vmor %vm1716, %vm1717
        %v1719 = vrot.slane %v1620, 5
        %v1720 = vrot.slane %v1719, 4
        %v1721 = vrot.slane %v1621, 5
        %v1722 = vsel %vm1718, %v1720, %v1721
        %v1723 = vrot.slane %v1721, 4
        %v1724 = vrot.slane %v1622, 5
        %v1725 = vsel %vm1718, %v1723, %v1724
        %v1726 = vrot.slane %v1623, 5
        %v1727 = vrot.slane %v1726, 4
        %v1728 = vrot.slane %v1624, 5
        %v1729 = vsel %vm1718, %v1727, %v1728
        %v1730 = vrot.slane %v1728, 4
        %v1731 = vrot.slane %v1625, 5
        %v1732 = vsel %vm1718, %v1730, %v1731
        %v1733 = vrot.slane %v1626, 5
        %v1734 = vrot.slane %v1733, 4
        %v1735 = vrot.slane %v1627, 5
        %v1736 = vsel %vm1718, %v1734, %v1735
        %v1737 = vrot.slane %v1735, 4
        %v1738 = vrot.slane %v1628, 5
        %v1739 = vsel %vm1718, %v1737, %v1738
        %v1740 = vrot.slane %v1629, 5
        %v1741 = vrot.slane %v1740, 4
        %v1742 = vrot.slane %v1630, 5
        %v1743 = vsel %vm1718, %v1741, %v1742
        %v1744 = vrot.slane %v1742, 4
        %v1745 = vrot.slane %v1631, 5
        %v1746 = vsel %vm1718, %v1744, %v1745
        %v1747 = vrot.slane %v1632, 5
        %v1748 = vrot.slane %v1747, 4
        %v1749 = vrot.slane %v1633, 5
        %v1750 = vsel %vm1718, %v1748, %v1749
        %v1751 = vrot.slane %v1749, 4
        %v1752 = vrot.slane %v1634, 5
        %v1753 = vsel %vm1718, %v1751, %v1752
        %v1754 = vrot.slane %v1635, 5
        %v1755 = vrot.slane %v1754, 4
        %v1756 = vrot.slane %v1636, 5
        %v1757 = vsel %vm1718, %v1755, %v1756
        %v1758 = vrot.slane %v1756, 4
        %v1759 = vrot.slane %v1637, 5
        %v1760 = vsel %vm1718, %v1758, %v1759
        %v1761 = vrot.slane %v1638, 5
        %v1762 = vrot.slane %v1761, 4
        %v1763 = vrot.slane %v1639, 5
        %v1764 = vsel %vm1718, %v1762, %v1763
        %v1765 = vrot.slane %v1763, 4
        %v1766 = vrot.slane %v1640, 5
        %v1767 = vsel %vm1718, %v1765, %v1766
        %v1768 = vrot.slane %v1641, 5
        %v1769 = vrot.slane %v1768, 4
        %v1770 = vrot.slane %v1642, 5
        %v1771 = vsel %vm1718, %v1769, %v1770
        %v1772 = vrot.slane %v1770, 4
        %v1773 = vrot.slane %v1643, 5
        %v1774 = vsel %vm1718, %v1772, %v1773
        %v1775 = vrot.slane %v1644, 5
        %v1776 = vrot.slane %v1775, 4
        %v1777 = vrot.slane %v1645, 5
        %v1778 = vsel %vm1718, %v1776, %v1777
        %v1779 = vrot.slane %v1777, 4
        %v1780 = vrot.slane %v1646, 5
        %v1781 = vsel %vm1718, %v1779, %v1780
        %v1782 = vrot.slane %v1647, 5
        %v1783 = vrot.slane %v1782, 4
        %v1784 = vrot.slane %v1648, 5
        %v1785 = vsel %vm1718, %v1783, %v1784
        %v1786 = vrot.slane %v1784, 4
        %v1787 = vrot.slane %v1649, 5
        %v1788 = vsel %vm1718, %v1786, %v1787
        %v1789 = vrot.slane %v1650, 5
        %v1790 = vrot.slane %v1789, 4
        %v1791 = vrot.slane %v1651, 5
        %v1792 = vsel %vm1718, %v1790, %v1791
        %v1793 = vrot.slane %v1791, 4
        %v1794 = vrot.slane %v1652, 5
        %v1795 = vsel %vm1718, %v1793, %v1794
        %v1796 = vrot.slane %v1653, 5
        %v1797 = vrot.slane %v1796, 4
        %v1798 = vrot.slane %v1654, 5
        %v1799 = vsel %vm1718, %v1797, %v1798
        %v1800 = vrot.slane %v1798, 4
        %v1801 = vrot.slane %v1655, 5
        %v1802 = vsel %vm1718, %v1800, %v1801
        %v1803 = vrot.slane %v1656, 5
        %v1804 = vrot.slane %v1803, 4
        %v1805 = vrot.slane %v1657, 5
        %v1806 = vsel %vm1718, %v1804, %v1805
        %v1807 = vrot.slane %v1805, 4
        %v1808 = vrot.slane %v1658, 5
        %v1809 = vsel %vm1718, %v1807, %v1808
        %v1810 = vrot.slane %v1659, 5
        %v1811 = vrot.slane %v1810, 4
        %v1812 = vrot.slane %v1660, 5
        %v1813 = vsel %vm1718, %v1811, %v1812
        %v1814 = vrot.slane %v1812, 4
        %v1815 = vrot.slane %v1661, 5
        %v1816 = vsel %vm1718, %v1814, %v1815
        %v1817 = vrot.slane %v1662, 5
        %v1818 = vrot.slane %v1817, 4
        %v1819 = vrot.slane %v1663, 5
        %v1820 = vsel %vm1718, %v1818, %v1819
        %v1821 = vrot.slane %v1819, 4
        %v1822 = vrot.slane %v1664, 5
        %v1823 = vsel %vm1718, %v1821, %v1822
        %v1824 = vrot.slane %v1665, 5
        %v1825 = vrot.slane %v1824, 4
        %v1826 = vrot.slane %v1666, 5
        %v1827 = vsel %vm1718, %v1825, %v1826
        %v1828 = vrot.slane %v1826, 4
        %v1829 = vrot.slane %v1667, 5
        %v1830 = vsel %vm1718, %v1828, %v1829
        %1863 = vst [vmem:[#allocation4 + $0x8] sm:$0xf] %v1722
        %1864 = vst [vmem:[#allocation4 + $0x2c] sm:$0xf] %v1725
        %1865 = vst [vmem:[#allocation4 + $0x50] sm:$0xf] %v1729
        %1866 = vst [vmem:[#allocation4 + $0x74] sm:$0xf] %v1732
        %1867 = vst [vmem:[#allocation4 + $0x98] sm:$0xf] %v1736
        %1868 = vst [vmem:[#allocation4 + $0xbc] sm:$0xf] %v1739
        %1869 = vst [vmem:[#allocation4 + $0xe0] sm:$0xf] %v1743
        %1870 = vst [vmem:[#allocation4 + $0x104] sm:$0xf] %v1746
        %1871 = vst [vmem:[#allocation4 + $0x128] sm:$0xf] %v1750
        %1872 = vst [vmem:[#allocation4 + $0x14c] sm:$0xf] %v1753
        %1873 = vst [vmem:[#allocation4 + $0x170] sm:$0xf] %v1757
        %1874 = vst [vmem:[#allocation4 + $0x194] sm:$0xf] %v1760
        %1875 = vst [vmem:[#allocation4 + $0x1b8] sm:$0xf] %v1764
        %1876 = vst [vmem:[#allocation4 + $0x1dc] sm:$0xf] %v1767
        %1877 = vst [vmem:[#allocation4 + $0x200] sm:$0xf] %v1771
        %1878 = vst [vmem:[#allocation4 + $0x224] sm:$0xf] %v1774
        %1879 = vst [vmem:[#allocation4 + $0x248] sm:$0xf] %v1778
        %1880 = vst [vmem:[#allocation4 + $0x26c] sm:$0xf] %v1781
        %1881 = vst [vmem:[#allocation4 + $0x290] sm:$0xf] %v1785
        %1882 = vst [vmem:[#allocation4 + $0x2b4] sm:$0xf] %v1788
        %1883 = vst [vmem:[#allocation4 + $0x2d8] sm:$0xf] %v1792
        %1884 = vst [vmem:[#allocation4 + $0x2fc] sm:$0xf] %v1795
        %1885 = vst [vmem:[#allocation4 + $0x320] sm:$0xf] %v1799
        %1886 = vst [vmem:[#allocation4 + $0x344] sm:$0xf] %v1802
        %1887 = vst [vmem:[#allocation4 + $0x368] sm:$0xf] %v1806
        %1888 = vst [vmem:[#allocation4 + $0x38c] sm:$0xf] %v1809
        %1889 = vst [vmem:[#allocation4 + $0x3b0] sm:$0xf] %v1813
        %1890 = vst [vmem:[#allocation4 + $0x3d4] sm:$0xf] %v1816
        %1891 = vst [vmem:[#allocation4 + $0x3f8] sm:$0xf] %v1820
        %1892 = vst [vmem:[#allocation4 + $0x41c] sm:$0xf] %v1823
        %1893 = vst [vmem:[#allocation4 + $0x440] sm:$0xf] %v1827
        %1894 = vst [vmem:[#allocation4 + $0x464] sm:$0xf] %v1830
        %v1895 = vld [vmem:[%s383] sm:$0xf]
        %v1896 = vld [vmem:[%s383 + $0x4] sm:$0xf]
        %v1897 = vld [vmem:[%s383 + $0xc] sm:$0xf]
        %v1898 = vld [vmem:[%s383 + $0x10] sm:$0xf]
        %v1899 = vld [vmem:[%s383 + $0x18] sm:$0xf]
        %v1900 = vld [vmem:[%s383 + $0x1c] sm:$0xf]
        %v1901 = vld [vmem:[%s383 + $0x24] sm:$0xf]
        %v1902 = vld [vmem:[%s383 + $0x28] sm:$0xf]
        %v1903 = vld [vmem:[%s383 + $0x30] sm:$0xf]
        %v1904 = vld [vmem:[%s383 + $0x34] sm:$0xf]
        %v1905 = vld [vmem:[%s383 + $0x3c] sm:$0xf]
        %v1906 = vld [vmem:[%s383 + $0x40] sm:$0xf]
        %v1907 = vld [vmem:[%s383 + $0x48] sm:$0xf]
        %v1908 = vld [vmem:[%s383 + $0x4c] sm:$0xf]
        %v1909 = vld [vmem:[%s383 + $0x54] sm:$0xf]
        %v1910 = vld [vmem:[%s383 + $0x58] sm:$0xf]
        %v1911 = vld [vmem:[%s383 + $0x60] sm:$0xf]
        %v1912 = vld [vmem:[%s383 + $0x64] sm:$0xf]
        %v1913 = vld [vmem:[%s383 + $0x6c] sm:$0xf]
        %v1914 = vld [vmem:[%s383 + $0x70] sm:$0xf]
        %v1915 = vld [vmem:[%s383 + $0x78] sm:$0xf]
        %v1916 = vld [vmem:[%s383 + $0x7c] sm:$0xf]
        %v1917 = vld [vmem:[%s383 + $0x84] sm:$0xf]
        %v1918 = vld [vmem:[%s383 + $0x88] sm:$0xf]
        %v1919 = vld [vmem:[%s383 + $0x90] sm:$0xf]
        %v1920 = vld [vmem:[%s383 + $0x94] sm:$0xf]
        %v1921 = vld [vmem:[%s383 + $0x9c] sm:$0xf]
        %v1922 = vld [vmem:[%s383 + $0xa0] sm:$0xf]
        %v1923 = vld [vmem:[%s383 + $0xa8] sm:$0xf]
        %v1924 = vld [vmem:[%s383 + $0xac] sm:$0xf]
        %v1925 = vld [vmem:[%s383 + $0xb4] sm:$0xf]
        %v1926 = vld [vmem:[%s383 + $0xb8] sm:$0xf]
        %1927 = vst [vmem:[#allocation4 + $0xc] sm:$0xf] %v1895
        %1928 = vst [vmem:[#allocation4 + $0x30] sm:$0xf] %v1896
        %1929 = vst [vmem:[#allocation4 + $0x54] sm:$0xf] %v1897
        %1930 = vst [vmem:[#allocation4 + $0x78] sm:$0xf] %v1898
        %1931 = vst [vmem:[#allocation4 + $0x9c] sm:$0xf] %v1899
        %1932 = vst [vmem:[#allocation4 + $0xc0] sm:$0xf] %v1900
        %1933 = vst [vmem:[#allocation4 + $0xe4] sm:$0xf] %v1901
        %1934 = vst [vmem:[#allocation4 + $0x108] sm:$0xf] %v1902
        %1935 = vst [vmem:[#allocation4 + $0x12c] sm:$0xf] %v1903
        %1936 = vst [vmem:[#allocation4 + $0x150] sm:$0xf] %v1904
        %1937 = vst [vmem:[#allocation4 + $0x174] sm:$0xf] %v1905
        %1938 = vst [vmem:[#allocation4 + $0x198] sm:$0xf] %v1906
        %1939 = vst [vmem:[#allocation4 + $0x1bc] sm:$0xf] %v1907
        %1940 = vst [vmem:[#allocation4 + $0x1e0] sm:$0xf] %v1908
        %1941 = vst [vmem:[#allocation4 + $0x204] sm:$0xf] %v1909
        %1942 = vst [vmem:[#allocation4 + $0x228] sm:$0xf] %v1910
        %1943 = vst [vmem:[#allocation4 + $0x24c] sm:$0xf] %v1911
        %1944 = vst [vmem:[#allocation4 + $0x270] sm:$0xf] %v1912
        %1945 = vst [vmem:[#allocation4 + $0x294] sm:$0xf] %v1913
        %1946 = vst [vmem:[#allocation4 + $0x2b8] sm:$0xf] %v1914
        %1947 = vst [vmem:[#allocation4 + $0x2dc] sm:$0xf] %v1915
        %1948 = vst [vmem:[#allocation4 + $0x300] sm:$0xf] %v1916
        %1949 = vst [vmem:[#allocation4 + $0x324] sm:$0xf] %v1917
        %1950 = vst [vmem:[#allocation4 + $0x348] sm:$0xf] %v1918
        %1951 = vst [vmem:[#allocation4 + $0x36c] sm:$0xf] %v1919
        %1952 = vst [vmem:[#allocation4 + $0x390] sm:$0xf] %v1920
        %1953 = vst [vmem:[#allocation4 + $0x3b4] sm:$0xf] %v1921
        %1954 = vst [vmem:[#allocation4 + $0x3d8] sm:$0xf] %v1922
        %1955 = vst [vmem:[#allocation4 + $0x3fc] sm:$0xf] %v1923
        %1956 = vst [vmem:[#allocation4 + $0x420] sm:$0xf] %v1924
        %1957 = vst [vmem:[#allocation4 + $0x444] sm:$0xf] %v1925
        %1958 = vst [vmem:[#allocation4 + $0x468] sm:$0xf] %v1926
        %v1959 = vld [vmem:[%s383] sm:$0xf]
        %v1960 = vld [vmem:[%s383 + $0x4] sm:$0xf]
        %v1961 = vld [vmem:[%s383 + $0x8] sm:$0x1]
        %v1962 = vld [vmem:[%s383 + $0xc] sm:$0xf]
        %v1963 = vld [vmem:[%s383 + $0x10] sm:$0xf]
        %v1964 = vld [vmem:[%s383 + $0x14] sm:$0x1]
        %v1965 = vld [vmem:[%s383 + $0x18] sm:$0xf]
        %v1966 = vld [vmem:[%s383 + $0x1c] sm:$0xf]
        %v1967 = vld [vmem:[%s383 + $0x20] sm:$0x1]
        %v1968 = vld [vmem:[%s383 + $0x24] sm:$0xf]
        %v1969 = vld [vmem:[%s383 + $0x28] sm:$0xf]
        %v1970 = vld [vmem:[%s383 + $0x2c] sm:$0x1]
        %v1971 = vld [vmem:[%s383 + $0x30] sm:$0xf]
        %v1972 = vld [vmem:[%s383 + $0x34] sm:$0xf]
        %v1973 = vld [vmem:[%s383 + $0x38] sm:$0x1]
        %v1974 = vld [vmem:[%s383 + $0x3c] sm:$0xf]
        %v1975 = vld [vmem:[%s383 + $0x40] sm:$0xf]
        %v1976 = vld [vmem:[%s383 + $0x44] sm:$0x1]
        %v1977 = vld [vmem:[%s383 + $0x48] sm:$0xf]
        %v1978 = vld [vmem:[%s383 + $0x4c] sm:$0xf]
        %v1979 = vld [vmem:[%s383 + $0x50] sm:$0x1]
        %v1980 = vld [vmem:[%s383 + $0x54] sm:$0xf]
        %v1981 = vld [vmem:[%s383 + $0x58] sm:$0xf]
        %v1982 = vld [vmem:[%s383 + $0x5c] sm:$0x1]
        %v1983 = vld [vmem:[%s383 + $0x60] sm:$0xf]
        %v1984 = vld [vmem:[%s383 + $0x64] sm:$0xf]
        %v1985 = vld [vmem:[%s383 + $0x68] sm:$0x1]
        %v1986 = vld [vmem:[%s383 + $0x6c] sm:$0xf]
        %v1987 = vld [vmem:[%s383 + $0x70] sm:$0xf]
        %v1988 = vld [vmem:[%s383 + $0x74] sm:$0x1]
        %v1989 = vld [vmem:[%s383 + $0x78] sm:$0xf]
        %v1990 = vld [vmem:[%s383 + $0x7c] sm:$0xf]
        %v1991 = vld [vmem:[%s383 + $0x80] sm:$0x1]
        %v1992 = vld [vmem:[%s383 + $0x84] sm:$0xf]
        %v1993 = vld [vmem:[%s383 + $0x88] sm:$0xf]
        %v1994 = vld [vmem:[%s383 + $0x8c] sm:$0x1]
        %v1995 = vld [vmem:[%s383 + $0x90] sm:$0xf]
        %v1996 = vld [vmem:[%s383 + $0x94] sm:$0xf]
        %v1997 = vld [vmem:[%s383 + $0x98] sm:$0x1]
        %v1998 = vld [vmem:[%s383 + $0x9c] sm:$0xf]
        %v1999 = vld [vmem:[%s383 + $0xa0] sm:$0xf]
        %v2000 = vld [vmem:[%s383 + $0xa4] sm:$0x1]
        %v2001 = vld [vmem:[%s383 + $0xa8] sm:$0xf]
        %v2002 = vld [vmem:[%s383 + $0xac] sm:$0xf]
        %v2003 = vld [vmem:[%s383 + $0xb0] sm:$0x1]
        %v2004 = vld [vmem:[%s383 + $0xb4] sm:$0xf]
        %v2005 = vld [vmem:[%s383 + $0xb8] sm:$0xf]
        %v2006 = vld [vmem:[%s383 + $0xbc] sm:$0x1]
        %v2008 = vshrl.u32 %v1959, 16
        %v2010 = vrot.slane %v2008, 4
        %v2011 = vshll.u32 %v1959, 16
        %v2013 = vrot.slane %v2011, 5
        %v2014 = vor.u32 %v2010, %v2013
        %v2015 = vrot.slane %v2014, 4
        %v2017 = vshll.u32 %v1960, 16
        %v2019 = vrot.slane %v2017, 5
        %v2020 = vsel %vm1171, %v2015, %v2019
        %v2021 = vshrl.u32 %v1960, 16
        %v2023 = vrot.slane %v2021, 4
        %v2024 = vor.u32 %v2023, %v2019
        %v2025 = vrot.slane %v2024, 4
        %v2027 = vshll.u32 %v1961, 16
        %v2029 = vrot.slane %v2027, 5
        %v2030 = vsel %vm1171, %v2025, %v2029
        %v2032 = vshrl.u32 %v1962, 16
        %v2034 = vrot.slane %v2032, 4
        %v2035 = vshll.u32 %v1962, 16
        %v2037 = vrot.slane %v2035, 5
        %v2038 = vor.u32 %v2034, %v2037
        %v2039 = vrot.slane %v2038, 4
        %v2041 = vshll.u32 %v1963, 16
        %v2043 = vrot.slane %v2041, 5
        %v2044 = vsel %vm1171, %v2039, %v2043
        %v2045 = vshrl.u32 %v1963, 16
        %v2047 = vrot.slane %v2045, 4
        %v2048 = vor.u32 %v2047, %v2043
        %v2049 = vrot.slane %v2048, 4
        %v2051 = vshll.u32 %v1964, 16
        %v2053 = vrot.slane %v2051, 5
        %v2054 = vsel %vm1171, %v2049, %v2053
        %v2056 = vshrl.u32 %v1965, 16
        %v2058 = vrot.slane %v2056, 4
        %v2059 = vshll.u32 %v1965, 16
        %v2061 = vrot.slane %v2059, 5
        %v2062 = vor.u32 %v2058, %v2061
        %v2063 = vrot.slane %v2062, 4
        %v2065 = vshll.u32 %v1966, 16
        %v2067 = vrot.slane %v2065, 5
        %v2068 = vsel %vm1171, %v2063, %v2067
        %v2069 = vshrl.u32 %v1966, 16
        %v2071 = vrot.slane %v2069, 4
        %v2072 = vor.u32 %v2071, %v2067
        %v2073 = vrot.slane %v2072, 4
        %v2075 = vshll.u32 %v1967, 16
        %v2077 = vrot.slane %v2075, 5
        %v2078 = vsel %vm1171, %v2073, %v2077
        %v2080 = vshrl.u32 %v1968, 16
        %v2082 = vrot.slane %v2080, 4
        %v2083 = vshll.u32 %v1968, 16
        %v2085 = vrot.slane %v2083, 5
        %v2086 = vor.u32 %v2082, %v2085
        %v2087 = vrot.slane %v2086, 4
        %v2089 = vshll.u32 %v1969, 16
        %v2091 = vrot.slane %v2089, 5
        %v2092 = vsel %vm1171, %v2087, %v2091
        %v2093 = vshrl.u32 %v1969, 16
        %v2095 = vrot.slane %v2093, 4
        %v2096 = vor.u32 %v2095, %v2091
        %v2097 = vrot.slane %v2096, 4
        %v2099 = vshll.u32 %v1970, 16
        %v2101 = vrot.slane %v2099, 5
        %v2102 = vsel %vm1171, %v2097, %v2101
        %v2104 = vshrl.u32 %v1971, 16
        %v2106 = vrot.slane %v2104, 4
        %v2107 = vshll.u32 %v1971, 16
        %v2109 = vrot.slane %v2107, 5
        %v2110 = vor.u32 %v2106, %v2109
        %v2111 = vrot.slane %v2110, 4
        %v2113 = vshll.u32 %v1972, 16
        %v2115 = vrot.slane %v2113, 5
        %v2116 = vsel %vm1171, %v2111, %v2115
        %v2117 = vshrl.u32 %v1972, 16
        %v2119 = vrot.slane %v2117, 4
        %v2120 = vor.u32 %v2119, %v2115
        %v2121 = vrot.slane %v2120, 4
        %v2123 = vshll.u32 %v1973, 16
        %v2125 = vrot.slane %v2123, 5
        %v2126 = vsel %vm1171, %v2121, %v2125
        %v2128 = vshrl.u32 %v1974, 16
        %v2130 = vrot.slane %v2128, 4
        %v2131 = vshll.u32 %v1974, 16
        %v2133 = vrot.slane %v2131, 5
        %v2134 = vor.u32 %v2130, %v2133
        %v2135 = vrot.slane %v2134, 4
        %v2137 = vshll.u32 %v1975, 16
        %v2139 = vrot.slane %v2137, 5
        %v2140 = vsel %vm1171, %v2135, %v2139
        %v2141 = vshrl.u32 %v1975, 16
        %v2143 = vrot.slane %v2141, 4
        %v2144 = vor.u32 %v2143, %v2139
        %v2145 = vrot.slane %v2144, 4
        %v2147 = vshll.u32 %v1976, 16
        %v2149 = vrot.slane %v2147, 5
        %v2150 = vsel %vm1171, %v2145, %v2149
        %v2152 = vshrl.u32 %v1977, 16
        %v2154 = vrot.slane %v2152, 4
        %v2155 = vshll.u32 %v1977, 16
        %v2157 = vrot.slane %v2155, 5
        %v2158 = vor.u32 %v2154, %v2157
        %v2159 = vrot.slane %v2158, 4
        %v2161 = vshll.u32 %v1978, 16
        %v2163 = vrot.slane %v2161, 5
        %v2164 = vsel %vm1171, %v2159, %v2163
        %v2165 = vshrl.u32 %v1978, 16
        %v2167 = vrot.slane %v2165, 4
        %v2168 = vor.u32 %v2167, %v2163
        %v2169 = vrot.slane %v2168, 4
        %v2171 = vshll.u32 %v1979, 16
        %v2173 = vrot.slane %v2171, 5
        %v2174 = vsel %vm1171, %v2169, %v2173
        %v2176 = vshrl.u32 %v1980, 16
        %v2178 = vrot.slane %v2176, 4
        %v2179 = vshll.u32 %v1980, 16
        %v2181 = vrot.slane %v2179, 5
        %v2182 = vor.u32 %v2178, %v2181
        %v2183 = vrot.slane %v2182, 4
        %v2185 = vshll.u32 %v1981, 16
        %v2187 = vrot.slane %v2185, 5
        %v2188 = vsel %vm1171, %v2183, %v2187
        %v2189 = vshrl.u32 %v1981, 16
        %v2191 = vrot.slane %v2189, 4
        %v2192 = vor.u32 %v2191, %v2187
        %v2193 = vrot.slane %v2192, 4
        %v2195 = vshll.u32 %v1982, 16
        %v2197 = vrot.slane %v2195, 5
        %v2198 = vsel %vm1171, %v2193, %v2197
        %v2200 = vshrl.u32 %v1983, 16
        %v2202 = vrot.slane %v2200, 4
        %v2203 = vshll.u32 %v1983, 16
        %v2205 = vrot.slane %v2203, 5
        %v2206 = vor.u32 %v2202, %v2205
        %v2207 = vrot.slane %v2206, 4
        %v2209 = vshll.u32 %v1984, 16
        %v2211 = vrot.slane %v2209, 5
        %v2212 = vsel %vm1171, %v2207, %v2211
        %v2213 = vshrl.u32 %v1984, 16
        %v2215 = vrot.slane %v2213, 4
        %v2216 = vor.u32 %v2215, %v2211
        %v2217 = vrot.slane %v2216, 4
        %v2219 = vshll.u32 %v1985, 16
        %v2221 = vrot.slane %v2219, 5
        %v2222 = vsel %vm1171, %v2217, %v2221
        %v2224 = vshrl.u32 %v1986, 16
        %v2226 = vrot.slane %v2224, 4
        %v2227 = vshll.u32 %v1986, 16
        %v2229 = vrot.slane %v2227, 5
        %v2230 = vor.u32 %v2226, %v2229
        %v2231 = vrot.slane %v2230, 4
        %v2233 = vshll.u32 %v1987, 16
        %v2235 = vrot.slane %v2233, 5
        %v2236 = vsel %vm1171, %v2231, %v2235
        %v2237 = vshrl.u32 %v1987, 16
        %v2239 = vrot.slane %v2237, 4
        %v2240 = vor.u32 %v2239, %v2235
        %v2241 = vrot.slane %v2240, 4
        %v2243 = vshll.u32 %v1988, 16
        %v2245 = vrot.slane %v2243, 5
        %v2246 = vsel %vm1171, %v2241, %v2245
        %v2248 = vshrl.u32 %v1989, 16
        %v2250 = vrot.slane %v2248, 4
        %v2251 = vshll.u32 %v1989, 16
        %v2253 = vrot.slane %v2251, 5
        %v2254 = vor.u32 %v2250, %v2253
        %v2255 = vrot.slane %v2254, 4
        %v2257 = vshll.u32 %v1990, 16
        %v2259 = vrot.slane %v2257, 5
        %v2260 = vsel %vm1171, %v2255, %v2259
        %v2261 = vshrl.u32 %v1990, 16
        %v2263 = vrot.slane %v2261, 4
        %v2264 = vor.u32 %v2263, %v2259
        %v2265 = vrot.slane %v2264, 4
        %v2267 = vshll.u32 %v1991, 16
        %v2269 = vrot.slane %v2267, 5
        %v2270 = vsel %vm1171, %v2265, %v2269
        %v2272 = vshrl.u32 %v1992, 16
        %v2274 = vrot.slane %v2272, 4
        %v2275 = vshll.u32 %v1992, 16
        %v2277 = vrot.slane %v2275, 5
        %v2278 = vor.u32 %v2274, %v2277
        %v2279 = vrot.slane %v2278, 4
        %v2281 = vshll.u32 %v1993, 16
        %v2283 = vrot.slane %v2281, 5
        %v2284 = vsel %vm1171, %v2279, %v2283
        %v2285 = vshrl.u32 %v1993, 16
        %v2287 = vrot.slane %v2285, 4
        %v2288 = vor.u32 %v2287, %v2283
        %v2289 = vrot.slane %v2288, 4
        %v2291 = vshll.u32 %v1994, 16
        %v2293 = vrot.slane %v2291, 5
        %v2294 = vsel %vm1171, %v2289, %v2293
        %v2296 = vshrl.u32 %v1995, 16
        %v2298 = vrot.slane %v2296, 4
        %v2299 = vshll.u32 %v1995, 16
        %v2301 = vrot.slane %v2299, 5
        %v2302 = vor.u32 %v2298, %v2301
        %v2303 = vrot.slane %v2302, 4
        %v2305 = vshll.u32 %v1996, 16
        %v2307 = vrot.slane %v2305, 5
        %v2308 = vsel %vm1171, %v2303, %v2307
        %v2309 = vshrl.u32 %v1996, 16
        %v2311 = vrot.slane %v2309, 4
        %v2312 = vor.u32 %v2311, %v2307
        %v2313 = vrot.slane %v2312, 4
        %v2315 = vshll.u32 %v1997, 16
        %v2317 = vrot.slane %v2315, 5
        %v2318 = vsel %vm1171, %v2313, %v2317
        %v2320 = vshrl.u32 %v1998, 16
        %v2322 = vrot.slane %v2320, 4
        %v2323 = vshll.u32 %v1998, 16
        %v2325 = vrot.slane %v2323, 5
        %v2326 = vor.u32 %v2322, %v2325
        %v2327 = vrot.slane %v2326, 4
        %v2329 = vshll.u32 %v1999, 16
        %v2331 = vrot.slane %v2329, 5
        %v2332 = vsel %vm1171, %v2327, %v2331
        %v2333 = vshrl.u32 %v1999, 16
        %v2335 = vrot.slane %v2333, 4
        %v2336 = vor.u32 %v2335, %v2331
        %v2337 = vrot.slane %v2336, 4
        %v2339 = vshll.u32 %v2000, 16
        %v2341 = vrot.slane %v2339, 5
        %v2342 = vsel %vm1171, %v2337, %v2341
        %v2344 = vshrl.u32 %v2001, 16
        %v2346 = vrot.slane %v2344, 4
        %v2347 = vshll.u32 %v2001, 16
        %v2349 = vrot.slane %v2347, 5
        %v2350 = vor.u32 %v2346, %v2349
        %v2351 = vrot.slane %v2350, 4
        %v2353 = vshll.u32 %v2002, 16
        %v2355 = vrot.slane %v2353, 5
        %v2356 = vsel %vm1171, %v2351, %v2355
        %v2357 = vshrl.u32 %v2002, 16
        %v2359 = vrot.slane %v2357, 4
        %v2360 = vor.u32 %v2359, %v2355
        %v2361 = vrot.slane %v2360, 4
        %v2363 = vshll.u32 %v2003, 16
        %v2365 = vrot.slane %v2363, 5
        %v2366 = vsel %vm1171, %v2361, %v2365
        %v2368 = vshrl.u32 %v2004, 16
        %v2370 = vrot.slane %v2368, 4
        %v2371 = vshll.u32 %v2004, 16
        %v2373 = vrot.slane %v2371, 5
        %v2374 = vor.u32 %v2370, %v2373
        %v2375 = vrot.slane %v2374, 4
        %v2377 = vshll.u32 %v2005, 16
        %v2379 = vrot.slane %v2377, 5
        %v2380 = vsel %vm1171, %v2375, %v2379
        %v2381 = vshrl.u32 %v2005, 16
        %v2383 = vrot.slane %v2381, 4
        %v2384 = vor.u32 %v2383, %v2379
        %v2385 = vrot.slane %v2384, 4
        %v2387 = vshll.u32 %v2006, 16
        %v2389 = vrot.slane %v2387, 5
        %v2390 = vsel %vm1171, %v2385, %v2389
        %2423 = vst [vmem:[#allocation4 + $0x10] sm:$0xf] %v2020
        %2424 = vst [vmem:[#allocation4 + $0x34] sm:$0xf] %v2030
        %2425 = vst [vmem:[#allocation4 + $0x58] sm:$0xf] %v2044
        %2426 = vst [vmem:[#allocation4 + $0x7c] sm:$0xf] %v2054
        %2427 = vst [vmem:[#allocation4 + $0xa0] sm:$0xf] %v2068
        %2428 = vst [vmem:[#allocation4 + $0xc4] sm:$0xf] %v2078
        %2429 = vst [vmem:[#allocation4 + $0xe8] sm:$0xf] %v2092
        %2430 = vst [vmem:[#allocation4 + $0x10c] sm:$0xf] %v2102
        %2431 = vst [vmem:[#allocation4 + $0x130] sm:$0xf] %v2116
        %2432 = vst [vmem:[#allocation4 + $0x154] sm:$0xf] %v2126
        %2433 = vst [vmem:[#allocation4 + $0x178] sm:$0xf] %v2140
        %2434 = vst [vmem:[#allocation4 + $0x19c] sm:$0xf] %v2150
        %2435 = vst [vmem:[#allocation4 + $0x1c0] sm:$0xf] %v2164
        %2436 = vst [vmem:[#allocation4 + $0x1e4] sm:$0xf] %v2174
        %2437 = vst [vmem:[#allocation4 + $0x208] sm:$0xf] %v2188
        %2438 = vst [vmem:[#allocation4 + $0x22c] sm:$0xf] %v2198
        %2439 = vst [vmem:[#allocation4 + $0x250] sm:$0xf] %v2212
        %2440 = vst [vmem:[#allocation4 + $0x274] sm:$0xf] %v2222
        %2441 = vst [vmem:[#allocation4 + $0x298] sm:$0xf] %v2236
        %2442 = vst [vmem:[#allocation4 + $0x2bc] sm:$0xf] %v2246
        %2443 = vst [vmem:[#allocation4 + $0x2e0] sm:$0xf] %v2260
        %2444 = vst [vmem:[#allocation4 + $0x304] sm:$0xf] %v2270
        %2445 = vst [vmem:[#allocation4 + $0x328] sm:$0xf] %v2284
        %2446 = vst [vmem:[#allocation4 + $0x34c] sm:$0xf] %v2294
        %2447 = vst [vmem:[#allocation4 + $0x370] sm:$0xf] %v2308
        %2448 = vst [vmem:[#allocation4 + $0x394] sm:$0xf] %v2318
        %2449 = vst [vmem:[#allocation4 + $0x3b8] sm:$0xf] %v2332
        %2450 = vst [vmem:[#allocation4 + $0x3dc] sm:$0xf] %v2342
        %2451 = vst [vmem:[#allocation4 + $0x400] sm:$0xf] %v2356
        %2452 = vst [vmem:[#allocation4 + $0x424] sm:$0xf] %v2366
        %2453 = vst [vmem:[#allocation4 + $0x448] sm:$0xf] %v2380
        %2454 = vst [vmem:[#allocation4 + $0x46c] sm:$0xf] %v2390
        %v2455 = vld [vmem:[%s383] sm:$0xe]
        %v2456 = vld [vmem:[%s383 + $0x4] sm:$0xf]
        %v2457 = vld [vmem:[%s383 + $0x8] sm:$0x1]
        %v2458 = vld [vmem:[%s383 + $0xc] sm:$0xe]
        %v2459 = vld [vmem:[%s383 + $0x10] sm:$0xf]
        %v2460 = vld [vmem:[%s383 + $0x14] sm:$0x1]
        %v2461 = vld [vmem:[%s383 + $0x18] sm:$0xe]
        %v2462 = vld [vmem:[%s383 + $0x1c] sm:$0xf]
        %v2463 = vld [vmem:[%s383 + $0x20] sm:$0x1]
        %v2464 = vld [vmem:[%s383 + $0x24] sm:$0xe]
        %v2465 = vld [vmem:[%s383 + $0x28] sm:$0xf]
        %v2466 = vld [vmem:[%s383 + $0x2c] sm:$0x1]
        %v2467 = vld [vmem:[%s383 + $0x30] sm:$0xe]
        %v2468 = vld [vmem:[%s383 + $0x34] sm:$0xf]
        %v2469 = vld [vmem:[%s383 + $0x38] sm:$0x1]
        %v2470 = vld [vmem:[%s383 + $0x3c] sm:$0xe]
        %v2471 = vld [vmem:[%s383 + $0x40] sm:$0xf]
        %v2472 = vld [vmem:[%s383 + $0x44] sm:$0x1]
        %v2473 = vld [vmem:[%s383 + $0x48] sm:$0xe]
        %v2474 = vld [vmem:[%s383 + $0x4c] sm:$0xf]
        %v2475 = vld [vmem:[%s383 + $0x50] sm:$0x1]
        %v2476 = vld [vmem:[%s383 + $0x54] sm:$0xe]
        %v2477 = vld [vmem:[%s383 + $0x58] sm:$0xf]
        %v2478 = vld [vmem:[%s383 + $0x5c] sm:$0x1]
        %v2479 = vld [vmem:[%s383 + $0x60] sm:$0xe]
        %v2480 = vld [vmem:[%s383 + $0x64] sm:$0xf]
        %v2481 = vld [vmem:[%s383 + $0x68] sm:$0x1]
        %v2482 = vld [vmem:[%s383 + $0x6c] sm:$0xe]
        %v2483 = vld [vmem:[%s383 + $0x70] sm:$0xf]
        %v2484 = vld [vmem:[%s383 + $0x74] sm:$0x1]
        %v2485 = vld [vmem:[%s383 + $0x78] sm:$0xe]
        %v2486 = vld [vmem:[%s383 + $0x7c] sm:$0xf]
        %v2487 = vld [vmem:[%s383 + $0x80] sm:$0x1]
        %v2488 = vld [vmem:[%s383 + $0x84] sm:$0xe]
        %v2489 = vld [vmem:[%s383 + $0x88] sm:$0xf]
        %v2490 = vld [vmem:[%s383 + $0x8c] sm:$0x1]
        %v2491 = vld [vmem:[%s383 + $0x90] sm:$0xe]
        %v2492 = vld [vmem:[%s383 + $0x94] sm:$0xf]
        %v2493 = vld [vmem:[%s383 + $0x98] sm:$0x1]
        %v2494 = vld [vmem:[%s383 + $0x9c] sm:$0xe]
        %v2495 = vld [vmem:[%s383 + $0xa0] sm:$0xf]
        %v2496 = vld [vmem:[%s383 + $0xa4] sm:$0x1]
        %v2497 = vld [vmem:[%s383 + $0xa8] sm:$0xe]
        %v2498 = vld [vmem:[%s383 + $0xac] sm:$0xf]
        %v2499 = vld [vmem:[%s383 + $0xb0] sm:$0x1]
        %v2500 = vld [vmem:[%s383 + $0xb4] sm:$0xe]
        %v2501 = vld [vmem:[%s383 + $0xb8] sm:$0xf]
        %v2502 = vld [vmem:[%s383 + $0xbc] sm:$0x1]
        %v2551 = vrot.slane %v2455, 5
        %v2552 = vrot.slane %v2551, 4
        %v2553 = vrot.slane %v2456, 5
        %v2554 = vsel %vm1718, %v2552, %v2553
        %v2555 = vrot.slane %v2553, 4
        %v2556 = vrot.slane %v2457, 5
        %v2557 = vsel %vm1718, %v2555, %v2556
        %v2558 = vrot.slane %v2458, 5
        %v2559 = vrot.slane %v2558, 4
        %v2560 = vrot.slane %v2459, 5
        %v2561 = vsel %vm1718, %v2559, %v2560
        %v2562 = vrot.slane %v2560, 4
        %v2563 = vrot.slane %v2460, 5
        %v2564 = vsel %vm1718, %v2562, %v2563
        %v2565 = vrot.slane %v2461, 5
        %v2566 = vrot.slane %v2565, 4
        %v2567 = vrot.slane %v2462, 5
        %v2568 = vsel %vm1718, %v2566, %v2567
        %v2569 = vrot.slane %v2567, 4
        %v2570 = vrot.slane %v2463, 5
        %v2571 = vsel %vm1718, %v2569, %v2570
        %v2572 = vrot.slane %v2464, 5
        %v2573 = vrot.slane %v2572, 4
        %v2574 = vrot.slane %v2465, 5
        %v2575 = vsel %vm1718, %v2573, %v2574
        %v2576 = vrot.slane %v2574, 4
        %v2577 = vrot.slane %v2466, 5
        %v2578 = vsel %vm1718, %v2576, %v2577
        %v2579 = vrot.slane %v2467, 5
        %v2580 = vrot.slane %v2579, 4
        %v2581 = vrot.slane %v2468, 5
        %v2582 = vsel %vm1718, %v2580, %v2581
        %v2583 = vrot.slane %v2581, 4
        %v2584 = vrot.slane %v2469, 5
        %v2585 = vsel %vm1718, %v2583, %v2584
        %v2586 = vrot.slane %v2470, 5
        %v2587 = vrot.slane %v2586, 4
        %v2588 = vrot.slane %v2471, 5
        %v2589 = vsel %vm1718, %v2587, %v2588
        %v2590 = vrot.slane %v2588, 4
        %v2591 = vrot.slane %v2472, 5
        %v2592 = vsel %vm1718, %v2590, %v2591
        %v2593 = vrot.slane %v2473, 5
        %v2594 = vrot.slane %v2593, 4
        %v2595 = vrot.slane %v2474, 5
        %v2596 = vsel %vm1718, %v2594, %v2595
        %v2597 = vrot.slane %v2595, 4
        %v2598 = vrot.slane %v2475, 5
        %v2599 = vsel %vm1718, %v2597, %v2598
        %v2600 = vrot.slane %v2476, 5
        %v2601 = vrot.slane %v2600, 4
        %v2602 = vrot.slane %v2477, 5
        %v2603 = vsel %vm1718, %v2601, %v2602
        %v2604 = vrot.slane %v2602, 4
        %v2605 = vrot.slane %v2478, 5
        %v2606 = vsel %vm1718, %v2604, %v2605
        %v2607 = vrot.slane %v2479, 5
        %v2608 = vrot.slane %v2607, 4
        %v2609 = vrot.slane %v2480, 5
        %v2610 = vsel %vm1718, %v2608, %v2609
        %v2611 = vrot.slane %v2609, 4
        %v2612 = vrot.slane %v2481, 5
        %v2613 = vsel %vm1718, %v2611, %v2612
        %v2614 = vrot.slane %v2482, 5
        %v2615 = vrot.slane %v2614, 4
        %v2616 = vrot.slane %v2483, 5
        %v2617 = vsel %vm1718, %v2615, %v2616
        %v2618 = vrot.slane %v2616, 4
        %v2619 = vrot.slane %v2484, 5
        %v2620 = vsel %vm1718, %v2618, %v2619
        %v2621 = vrot.slane %v2485, 5
        %v2622 = vrot.slane %v2621, 4
        %v2623 = vrot.slane %v2486, 5
        %v2624 = vsel %vm1718, %v2622, %v2623
        %v2625 = vrot.slane %v2623, 4
        %v2626 = vrot.slane %v2487, 5
        %v2627 = vsel %vm1718, %v2625, %v2626
        %v2628 = vrot.slane %v2488, 5
        %v2629 = vrot.slane %v2628, 4
        %v2630 = vrot.slane %v2489, 5
        %v2631 = vsel %vm1718, %v2629, %v2630
        %v2632 = vrot.slane %v2630, 4
        %v2633 = vrot.slane %v2490, 5
        %v2634 = vsel %vm1718, %v2632, %v2633
        %v2635 = vrot.slane %v2491, 5
        %v2636 = vrot.slane %v2635, 4
        %v2637 = vrot.slane %v2492, 5
        %v2638 = vsel %vm1718, %v2636, %v2637
        %v2639 = vrot.slane %v2637, 4
        %v2640 = vrot.slane %v2493, 5
        %v2641 = vsel %vm1718, %v2639, %v2640
        %v2642 = vrot.slane %v2494, 5
        %v2643 = vrot.slane %v2642, 4
        %v2644 = vrot.slane %v2495, 5
        %v2645 = vsel %vm1718, %v2643, %v2644
        %v2646 = vrot.slane %v2644, 4
        %v2647 = vrot.slane %v2496, 5
        %v2648 = vsel %vm1718, %v2646, %v2647
        %v2649 = vrot.slane %v2497, 5
        %v2650 = vrot.slane %v2649, 4
        %v2651 = vrot.slane %v2498, 5
        %v2652 = vsel %vm1718, %v2650, %v2651
        %v2653 = vrot.slane %v2651, 4
        %v2654 = vrot.slane %v2499, 5
        %v2655 = vsel %vm1718, %v2653, %v2654
        %v2656 = vrot.slane %v2500, 5
        %v2657 = vrot.slane %v2656, 4
        %v2658 = vrot.slane %v2501, 5
        %v2659 = vsel %vm1718, %v2657, %v2658
        %v2660 = vrot.slane %v2658, 4
        %v2661 = vrot.slane %v2502, 5
        %v2662 = vsel %vm1718, %v2660, %v2661
        %2695 = vst [vmem:[#allocation4 + $0x14] sm:$0xf] %v2554
        %2696 = vst [vmem:[#allocation4 + $0x38] sm:$0xf] %v2557
        %2697 = vst [vmem:[#allocation4 + $0x5c] sm:$0xf] %v2561
        %2698 = vst [vmem:[#allocation4 + $0x80] sm:$0xf] %v2564
        %2699 = vst [vmem:[#allocation4 + $0xa4] sm:$0xf] %v2568
        %2700 = vst [vmem:[#allocation4 + $0xc8] sm:$0xf] %v2571
        %2701 = vst [vmem:[#allocation4 + $0xec] sm:$0xf] %v2575
        %2702 = vst [vmem:[#allocation4 + $0x110] sm:$0xf] %v2578
        %2703 = vst [vmem:[#allocation4 + $0x134] sm:$0xf] %v2582
        %2704 = vst [vmem:[#allocation4 + $0x158] sm:$0xf] %v2585
        %2705 = vst [vmem:[#allocation4 + $0x17c] sm:$0xf] %v2589
        %2706 = vst [vmem:[#allocation4 + $0x1a0] sm:$0xf] %v2592
        %2707 = vst [vmem:[#allocation4 + $0x1c4] sm:$0xf] %v2596
        %2708 = vst [vmem:[#allocation4 + $0x1e8] sm:$0xf] %v2599
        %2709 = vst [vmem:[#allocation4 + $0x20c] sm:$0xf] %v2603
        %2710 = vst [vmem:[#allocation4 + $0x230] sm:$0xf] %v2606
        %2711 = vst [vmem:[#allocation4 + $0x254] sm:$0xf] %v2610
        %2712 = vst [vmem:[#allocation4 + $0x278] sm:$0xf] %v2613
        %2713 = vst [vmem:[#allocation4 + $0x29c] sm:$0xf] %v2617
        %2714 = vst [vmem:[#allocation4 + $0x2c0] sm:$0xf] %v2620
        %2715 = vst [vmem:[#allocation4 + $0x2e4] sm:$0xf] %v2624
        %2716 = vst [vmem:[#allocation4 + $0x308] sm:$0xf] %v2627
        %2717 = vst [vmem:[#allocation4 + $0x32c] sm:$0xf] %v2631
        %2718 = vst [vmem:[#allocation4 + $0x350] sm:$0xf] %v2634
        %2719 = vst [vmem:[#allocation4 + $0x374] sm:$0xf] %v2638
        %2720 = vst [vmem:[#allocation4 + $0x398] sm:$0xf] %v2641
        %2721 = vst [vmem:[#allocation4 + $0x3bc] sm:$0xf] %v2645
        %2722 = vst [vmem:[#allocation4 + $0x3e0] sm:$0xf] %v2648
        %2723 = vst [vmem:[#allocation4 + $0x404] sm:$0xf] %v2652
        %2724 = vst [vmem:[#allocation4 + $0x428] sm:$0xf] %v2655
        %2725 = vst [vmem:[#allocation4 + $0x44c] sm:$0xf] %v2659
        %2726 = vst [vmem:[#allocation4 + $0x470] sm:$0xf] %v2662
        %s2727 = scalar_lea.vmem [#allocation2], 24
        %v2728 = vld [vmem:[%s2727] sm:$0xf]
        %v2729 = vld [vmem:[%s2727 + $0x4] sm:$0xf]
        %v2730 = vld [vmem:[%s2727 + $0xc] sm:$0xf]
        %v2731 = vld [vmem:[%s2727 + $0x10] sm:$0xf]
        %v2732 = vld [vmem:[%s2727 + $0x18] sm:$0xf]
        %v2733 = vld [vmem:[%s2727 + $0x1c] sm:$0xf]
        %v2734 = vld [vmem:[%s2727 + $0x24] sm:$0xf]
        %v2735 = vld [vmem:[%s2727 + $0x28] sm:$0xf]
        %v2736 = vld [vmem:[%s2727 + $0x30] sm:$0xf]
        %v2737 = vld [vmem:[%s2727 + $0x34] sm:$0xf]
        %v2738 = vld [vmem:[%s2727 + $0x3c] sm:$0xf]
        %v2739 = vld [vmem:[%s2727 + $0x40] sm:$0xf]
        %v2740 = vld [vmem:[%s2727 + $0x48] sm:$0xf]
        %v2741 = vld [vmem:[%s2727 + $0x4c] sm:$0xf]
        %v2742 = vld [vmem:[%s2727 + $0x54] sm:$0xf]
        %v2743 = vld [vmem:[%s2727 + $0x58] sm:$0xf]
        %v2744 = vld [vmem:[%s2727 + $0x60] sm:$0xf]
        %v2745 = vld [vmem:[%s2727 + $0x64] sm:$0xf]
        %v2746 = vld [vmem:[%s2727 + $0x6c] sm:$0xf]
        %v2747 = vld [vmem:[%s2727 + $0x70] sm:$0xf]
        %v2748 = vld [vmem:[%s2727 + $0x78] sm:$0xf]
        %v2749 = vld [vmem:[%s2727 + $0x7c] sm:$0xf]
        %v2750 = vld [vmem:[%s2727 + $0x84] sm:$0xf]
        %v2751 = vld [vmem:[%s2727 + $0x88] sm:$0xf]
        %v2752 = vld [vmem:[%s2727 + $0x90] sm:$0xf]
        %v2753 = vld [vmem:[%s2727 + $0x94] sm:$0xf]
        %v2754 = vld [vmem:[%s2727 + $0x9c] sm:$0xf]
        %v2755 = vld [vmem:[%s2727 + $0xa0] sm:$0xf]
        %v2756 = vld [vmem:[%s2727 + $0xa8] sm:$0xf]
        %v2757 = vld [vmem:[%s2727 + $0xac] sm:$0xf]
        %v2758 = vld [vmem:[%s2727 + $0xb4] sm:$0xf]
        %v2759 = vld [vmem:[%s2727 + $0xb8] sm:$0xf]
        %2760 = vst [vmem:[#allocation4 + $0x18] sm:$0xf] %v2728
        %2761 = vst [vmem:[#allocation4 + $0x3c] sm:$0xf] %v2729
        %2762 = vst [vmem:[#allocation4 + $0x60] sm:$0xf] %v2730
        %2763 = vst [vmem:[#allocation4 + $0x84] sm:$0xf] %v2731
        %2764 = vst [vmem:[#allocation4 + $0xa8] sm:$0xf] %v2732
        %2765 = vst [vmem:[#allocation4 + $0xcc] sm:$0xf] %v2733
        %2766 = vst [vmem:[#allocation4 + $0xf0] sm:$0xf] %v2734
        %2767 = vst [vmem:[#allocation4 + $0x114] sm:$0xf] %v2735
        %2768 = vst [vmem:[#allocation4 + $0x138] sm:$0xf] %v2736
        %2769 = vst [vmem:[#allocation4 + $0x15c] sm:$0xf] %v2737
        %2770 = vst [vmem:[#allocation4 + $0x180] sm:$0xf] %v2738
        %2771 = vst [vmem:[#allocation4 + $0x1a4] sm:$0xf] %v2739
        %2772 = vst [vmem:[#allocation4 + $0x1c8] sm:$0xf] %v2740
        %2773 = vst [vmem:[#allocation4 + $0x1ec] sm:$0xf] %v2741
        %2774 = vst [vmem:[#allocation4 + $0x210] sm:$0xf] %v2742
        %2775 = vst [vmem:[#allocation4 + $0x234] sm:$0xf] %v2743
        %2776 = vst [vmem:[#allocation4 + $0x258] sm:$0xf] %v2744
        %2777 = vst [vmem:[#allocation4 + $0x27c] sm:$0xf] %v2745
        %2778 = vst [vmem:[#allocation4 + $0x2a0] sm:$0xf] %v2746
        %2779 = vst [vmem:[#allocation4 + $0x2c4] sm:$0xf] %v2747
        %2780 = vst [vmem:[#allocation4 + $0x2e8] sm:$0xf] %v2748
        %2781 = vst [vmem:[#allocation4 + $0x30c] sm:$0xf] %v2749
        %2782 = vst [vmem:[#allocation4 + $0x330] sm:$0xf] %v2750
        %2783 = vst [vmem:[#allocation4 + $0x354] sm:$0xf] %v2751
        %2784 = vst [vmem:[#allocation4 + $0x378] sm:$0xf] %v2752
        %2785 = vst [vmem:[#allocation4 + $0x39c] sm:$0xf] %v2753
        %2786 = vst [vmem:[#allocation4 + $0x3c0] sm:$0xf] %v2754
        %2787 = vst [vmem:[#allocation4 + $0x3e4] sm:$0xf] %v2755
        %2788 = vst [vmem:[#allocation4 + $0x408] sm:$0xf] %v2756
        %2789 = vst [vmem:[#allocation4 + $0x42c] sm:$0xf] %v2757
        %2790 = vst [vmem:[#allocation4 + $0x450] sm:$0xf] %v2758
        %2791 = vst [vmem:[#allocation4 + $0x474] sm:$0xf] %v2759
        %v2792 = vld [vmem:[%s2727] sm:$0xf]
        %v2793 = vld [vmem:[%s2727 + $0x4] sm:$0xf]
        %v2794 = vld [vmem:[%s2727 + $0x8] sm:$0x1]
        %v2795 = vld [vmem:[%s2727 + $0xc] sm:$0xf]
        %v2796 = vld [vmem:[%s2727 + $0x10] sm:$0xf]
        %v2797 = vld [vmem:[%s2727 + $0x14] sm:$0x1]
        %v2798 = vld [vmem:[%s2727 + $0x18] sm:$0xf]
        %v2799 = vld [vmem:[%s2727 + $0x1c] sm:$0xf]
        %v2800 = vld [vmem:[%s2727 + $0x20] sm:$0x1]
        %v2801 = vld [vmem:[%s2727 + $0x24] sm:$0xf]
        %v2802 = vld [vmem:[%s2727 + $0x28] sm:$0xf]
        %v2803 = vld [vmem:[%s2727 + $0x2c] sm:$0x1]
        %v2804 = vld [vmem:[%s2727 + $0x30] sm:$0xf]
        %v2805 = vld [vmem:[%s2727 + $0x34] sm:$0xf]
        %v2806 = vld [vmem:[%s2727 + $0x38] sm:$0x1]
        %v2807 = vld [vmem:[%s2727 + $0x3c] sm:$0xf]
        %v2808 = vld [vmem:[%s2727 + $0x40] sm:$0xf]
        %v2809 = vld [vmem:[%s2727 + $0x44] sm:$0x1]
        %v2810 = vld [vmem:[%s2727 + $0x48] sm:$0xf]
        %v2811 = vld [vmem:[%s2727 + $0x4c] sm:$0xf]
        %v2812 = vld [vmem:[%s2727 + $0x50] sm:$0x1]
        %v2813 = vld [vmem:[%s2727 + $0x54] sm:$0xf]
        %v2814 = vld [vmem:[%s2727 + $0x58] sm:$0xf]
        %v2815 = vld [vmem:[%s2727 + $0x5c] sm:$0x1]
        %v2816 = vld [vmem:[%s2727 + $0x60] sm:$0xf]
        %v2817 = vld [vmem:[%s2727 + $0x64] sm:$0xf]
        %v2818 = vld [vmem:[%s2727 + $0x68] sm:$0x1]
        %v2819 = vld [vmem:[%s2727 + $0x6c] sm:$0xf]
        %v2820 = vld [vmem:[%s2727 + $0x70] sm:$0xf]
        %v2821 = vld [vmem:[%s2727 + $0x74] sm:$0x1]
        %v2822 = vld [vmem:[%s2727 + $0x78] sm:$0xf]
        %v2823 = vld [vmem:[%s2727 + $0x7c] sm:$0xf]
        %v2824 = vld [vmem:[%s2727 + $0x80] sm:$0x1]
        %v2825 = vld [vmem:[%s2727 + $0x84] sm:$0xf]
        %v2826 = vld [vmem:[%s2727 + $0x88] sm:$0xf]
        %v2827 = vld [vmem:[%s2727 + $0x8c] sm:$0x1]
        %v2828 = vld [vmem:[%s2727 + $0x90] sm:$0xf]
        %v2829 = vld [vmem:[%s2727 + $0x94] sm:$0xf]
        %v2830 = vld [vmem:[%s2727 + $0x98] sm:$0x1]
        %v2831 = vld [vmem:[%s2727 + $0x9c] sm:$0xf]
        %v2832 = vld [vmem:[%s2727 + $0xa0] sm:$0xf]
        %v2833 = vld [vmem:[%s2727 + $0xa4] sm:$0x1]
        %v2834 = vld [vmem:[%s2727 + $0xa8] sm:$0xf]
        %v2835 = vld [vmem:[%s2727 + $0xac] sm:$0xf]
        %v2836 = vld [vmem:[%s2727 + $0xb0] sm:$0x1]
        %v2837 = vld [vmem:[%s2727 + $0xb4] sm:$0xf]
        %v2838 = vld [vmem:[%s2727 + $0xb8] sm:$0xf]
        %v2839 = vld [vmem:[%s2727 + $0xbc] sm:$0x1]
        %v2841 = vshrl.u32 %v2792, 16
        %v2843 = vrot.slane %v2841, 4
        %v2844 = vshll.u32 %v2792, 16
        %v2846 = vrot.slane %v2844, 5
        %v2847 = vor.u32 %v2843, %v2846
        %v2848 = vrot.slane %v2847, 4
        %v2850 = vshll.u32 %v2793, 16
        %v2852 = vrot.slane %v2850, 5
        %v2853 = vsel %vm1171, %v2848, %v2852
        %v2854 = vshrl.u32 %v2793, 16
        %v2856 = vrot.slane %v2854, 4
        %v2857 = vor.u32 %v2856, %v2852
        %v2858 = vrot.slane %v2857, 4
        %v2860 = vshll.u32 %v2794, 16
        %v2862 = vrot.slane %v2860, 5
        %v2863 = vsel %vm1171, %v2858, %v2862
        %v2865 = vshrl.u32 %v2795, 16
        %v2867 = vrot.slane %v2865, 4
        %v2868 = vshll.u32 %v2795, 16
        %v2870 = vrot.slane %v2868, 5
        %v2871 = vor.u32 %v2867, %v2870
        %v2872 = vrot.slane %v2871, 4
        %v2874 = vshll.u32 %v2796, 16
        %v2876 = vrot.slane %v2874, 5
        %v2877 = vsel %vm1171, %v2872, %v2876
        %v2878 = vshrl.u32 %v2796, 16
        %v2880 = vrot.slane %v2878, 4
        %v2881 = vor.u32 %v2880, %v2876
        %v2882 = vrot.slane %v2881, 4
        %v2884 = vshll.u32 %v2797, 16
        %v2886 = vrot.slane %v2884, 5
        %v2887 = vsel %vm1171, %v2882, %v2886
        %v2889 = vshrl.u32 %v2798, 16
        %v2891 = vrot.slane %v2889, 4
        %v2892 = vshll.u32 %v2798, 16
        %v2894 = vrot.slane %v2892, 5
        %v2895 = vor.u32 %v2891, %v2894
        %v2896 = vrot.slane %v2895, 4
        %v2898 = vshll.u32 %v2799, 16
        %v2900 = vrot.slane %v2898, 5
        %v2901 = vsel %vm1171, %v2896, %v2900
        %v2902 = vshrl.u32 %v2799, 16
        %v2904 = vrot.slane %v2902, 4
        %v2905 = vor.u32 %v2904, %v2900
        %v2906 = vrot.slane %v2905, 4
        %v2908 = vshll.u32 %v2800, 16
        %v2910 = vrot.slane %v2908, 5
        %v2911 = vsel %vm1171, %v2906, %v2910
        %v2913 = vshrl.u32 %v2801, 16
        %v2915 = vrot.slane %v2913, 4
        %v2916 = vshll.u32 %v2801, 16
        %v2918 = vrot.slane %v2916, 5
        %v2919 = vor.u32 %v2915, %v2918
        %v2920 = vrot.slane %v2919, 4
        %v2922 = vshll.u32 %v2802, 16
        %v2924 = vrot.slane %v2922, 5
        %v2925 = vsel %vm1171, %v2920, %v2924
        %v2926 = vshrl.u32 %v2802, 16
        %v2928 = vrot.slane %v2926, 4
        %v2929 = vor.u32 %v2928, %v2924
        %v2930 = vrot.slane %v2929, 4
        %v2932 = vshll.u32 %v2803, 16
        %v2934 = vrot.slane %v2932, 5
        %v2935 = vsel %vm1171, %v2930, %v2934
        %v2937 = vshrl.u32 %v2804, 16
        %v2939 = vrot.slane %v2937, 4
        %v2940 = vshll.u32 %v2804, 16
        %v2942 = vrot.slane %v2940, 5
        %v2943 = vor.u32 %v2939, %v2942
        %v2944 = vrot.slane %v2943, 4
        %v2946 = vshll.u32 %v2805, 16
        %v2948 = vrot.slane %v2946, 5
        %v2949 = vsel %vm1171, %v2944, %v2948
        %v2950 = vshrl.u32 %v2805, 16
        %v2952 = vrot.slane %v2950, 4
        %v2953 = vor.u32 %v2952, %v2948
        %v2954 = vrot.slane %v2953, 4
        %v2956 = vshll.u32 %v2806, 16
        %v2958 = vrot.slane %v2956, 5
        %v2959 = vsel %vm1171, %v2954, %v2958
        %v2961 = vshrl.u32 %v2807, 16
        %v2963 = vrot.slane %v2961, 4
        %v2964 = vshll.u32 %v2807, 16
        %v2966 = vrot.slane %v2964, 5
        %v2967 = vor.u32 %v2963, %v2966
        %v2968 = vrot.slane %v2967, 4
        %v2970 = vshll.u32 %v2808, 16
        %v2972 = vrot.slane %v2970, 5
        %v2973 = vsel %vm1171, %v2968, %v2972
        %v2974 = vshrl.u32 %v2808, 16
        %v2976 = vrot.slane %v2974, 4
        %v2977 = vor.u32 %v2976, %v2972
        %v2978 = vrot.slane %v2977, 4
        %v2980 = vshll.u32 %v2809, 16
        %v2982 = vrot.slane %v2980, 5
        %v2983 = vsel %vm1171, %v2978, %v2982
        %v2985 = vshrl.u32 %v2810, 16
        %v2987 = vrot.slane %v2985, 4
        %v2988 = vshll.u32 %v2810, 16
        %v2990 = vrot.slane %v2988, 5
        %v2991 = vor.u32 %v2987, %v2990
        %v2992 = vrot.slane %v2991, 4
        %v2994 = vshll.u32 %v2811, 16
        %v2996 = vrot.slane %v2994, 5
        %v2997 = vsel %vm1171, %v2992, %v2996
        %v2998 = vshrl.u32 %v2811, 16
        %v3000 = vrot.slane %v2998, 4
        %v3001 = vor.u32 %v3000, %v2996
        %v3002 = vrot.slane %v3001, 4
        %v3004 = vshll.u32 %v2812, 16
        %v3006 = vrot.slane %v3004, 5
        %v3007 = vsel %vm1171, %v3002, %v3006
        %v3009 = vshrl.u32 %v2813, 16
        %v3011 = vrot.slane %v3009, 4
        %v3012 = vshll.u32 %v2813, 16
        %v3014 = vrot.slane %v3012, 5
        %v3015 = vor.u32 %v3011, %v3014
        %v3016 = vrot.slane %v3015, 4
        %v3018 = vshll.u32 %v2814, 16
        %v3020 = vrot.slane %v3018, 5
        %v3021 = vsel %vm1171, %v3016, %v3020
        %v3022 = vshrl.u32 %v2814, 16
        %v3024 = vrot.slane %v3022, 4
        %v3025 = vor.u32 %v3024, %v3020
        %v3026 = vrot.slane %v3025, 4
        %v3028 = vshll.u32 %v2815, 16
        %v3030 = vrot.slane %v3028, 5
        %v3031 = vsel %vm1171, %v3026, %v3030
        %v3033 = vshrl.u32 %v2816, 16
        %v3035 = vrot.slane %v3033, 4
        %v3036 = vshll.u32 %v2816, 16
        %v3038 = vrot.slane %v3036, 5
        %v3039 = vor.u32 %v3035, %v3038
        %v3040 = vrot.slane %v3039, 4
        %v3042 = vshll.u32 %v2817, 16
        %v3044 = vrot.slane %v3042, 5
        %v3045 = vsel %vm1171, %v3040, %v3044
        %v3046 = vshrl.u32 %v2817, 16
        %v3048 = vrot.slane %v3046, 4
        %v3049 = vor.u32 %v3048, %v3044
        %v3050 = vrot.slane %v3049, 4
        %v3052 = vshll.u32 %v2818, 16
        %v3054 = vrot.slane %v3052, 5
        %v3055 = vsel %vm1171, %v3050, %v3054
        %v3057 = vshrl.u32 %v2819, 16
        %v3059 = vrot.slane %v3057, 4
        %v3060 = vshll.u32 %v2819, 16
        %v3062 = vrot.slane %v3060, 5
        %v3063 = vor.u32 %v3059, %v3062
        %v3064 = vrot.slane %v3063, 4
        %v3066 = vshll.u32 %v2820, 16
        %v3068 = vrot.slane %v3066, 5
        %v3069 = vsel %vm1171, %v3064, %v3068
        %v3070 = vshrl.u32 %v2820, 16
        %v3072 = vrot.slane %v3070, 4
        %v3073 = vor.u32 %v3072, %v3068
        %v3074 = vrot.slane %v3073, 4
        %v3076 = vshll.u32 %v2821, 16
        %v3078 = vrot.slane %v3076, 5
        %v3079 = vsel %vm1171, %v3074, %v3078
        %v3081 = vshrl.u32 %v2822, 16
        %v3083 = vrot.slane %v3081, 4
        %v3084 = vshll.u32 %v2822, 16
        %v3086 = vrot.slane %v3084, 5
        %v3087 = vor.u32 %v3083, %v3086
        %v3088 = vrot.slane %v3087, 4
        %v3090 = vshll.u32 %v2823, 16
        %v3092 = vrot.slane %v3090, 5
        %v3093 = vsel %vm1171, %v3088, %v3092
        %v3094 = vshrl.u32 %v2823, 16
        %v3096 = vrot.slane %v3094, 4
        %v3097 = vor.u32 %v3096, %v3092
        %v3098 = vrot.slane %v3097, 4
        %v3100 = vshll.u32 %v2824, 16
        %v3102 = vrot.slane %v3100, 5
        %v3103 = vsel %vm1171, %v3098, %v3102
        %v3105 = vshrl.u32 %v2825, 16
        %v3107 = vrot.slane %v3105, 4
        %v3108 = vshll.u32 %v2825, 16
        %v3110 = vrot.slane %v3108, 5
        %v3111 = vor.u32 %v3107, %v3110
        %v3112 = vrot.slane %v3111, 4
        %v3114 = vshll.u32 %v2826, 16
        %v3116 = vrot.slane %v3114, 5
        %v3117 = vsel %vm1171, %v3112, %v3116
        %v3118 = vshrl.u32 %v2826, 16
        %v3120 = vrot.slane %v3118, 4
        %v3121 = vor.u32 %v3120, %v3116
        %v3122 = vrot.slane %v3121, 4
        %v3124 = vshll.u32 %v2827, 16
        %v3126 = vrot.slane %v3124, 5
        %v3127 = vsel %vm1171, %v3122, %v3126
        %v3129 = vshrl.u32 %v2828, 16
        %v3131 = vrot.slane %v3129, 4
        %v3132 = vshll.u32 %v2828, 16
        %v3134 = vrot.slane %v3132, 5
        %v3135 = vor.u32 %v3131, %v3134
        %v3136 = vrot.slane %v3135, 4
        %v3138 = vshll.u32 %v2829, 16
        %v3140 = vrot.slane %v3138, 5
        %v3141 = vsel %vm1171, %v3136, %v3140
        %v3142 = vshrl.u32 %v2829, 16
        %v3144 = vrot.slane %v3142, 4
        %v3145 = vor.u32 %v3144, %v3140
        %v3146 = vrot.slane %v3145, 4
        %v3148 = vshll.u32 %v2830, 16
        %v3150 = vrot.slane %v3148, 5
        %v3151 = vsel %vm1171, %v3146, %v3150
        %v3153 = vshrl.u32 %v2831, 16
        %v3155 = vrot.slane %v3153, 4
        %v3156 = vshll.u32 %v2831, 16
        %v3158 = vrot.slane %v3156, 5
        %v3159 = vor.u32 %v3155, %v3158
        %v3160 = vrot.slane %v3159, 4
        %v3162 = vshll.u32 %v2832, 16
        %v3164 = vrot.slane %v3162, 5
        %v3165 = vsel %vm1171, %v3160, %v3164
        %v3166 = vshrl.u32 %v2832, 16
        %v3168 = vrot.slane %v3166, 4
        %v3169 = vor.u32 %v3168, %v3164
        %v3170 = vrot.slane %v3169, 4
        %v3172 = vshll.u32 %v2833, 16
        %v3174 = vrot.slane %v3172, 5
        %v3175 = vsel %vm1171, %v3170, %v3174
        %v3177 = vshrl.u32 %v2834, 16
        %v3179 = vrot.slane %v3177, 4
        %v3180 = vshll.u32 %v2834, 16
        %v3182 = vrot.slane %v3180, 5
        %v3183 = vor.u32 %v3179, %v3182
        %v3184 = vrot.slane %v3183, 4
        %v3186 = vshll.u32 %v2835, 16
        %v3188 = vrot.slane %v3186, 5
        %v3189 = vsel %vm1171, %v3184, %v3188
        %v3190 = vshrl.u32 %v2835, 16
        %v3192 = vrot.slane %v3190, 4
        %v3193 = vor.u32 %v3192, %v3188
        %v3194 = vrot.slane %v3193, 4
        %v3196 = vshll.u32 %v2836, 16
        %v3198 = vrot.slane %v3196, 5
        %v3199 = vsel %vm1171, %v3194, %v3198
        %v3201 = vshrl.u32 %v2837, 16
        %v3203 = vrot.slane %v3201, 4
        %v3204 = vshll.u32 %v2837, 16
        %v3206 = vrot.slane %v3204, 5
        %v3207 = vor.u32 %v3203, %v3206
        %v3208 = vrot.slane %v3207, 4
        %v3210 = vshll.u32 %v2838, 16
        %v3212 = vrot.slane %v3210, 5
        %v3213 = vsel %vm1171, %v3208, %v3212
        %v3214 = vshrl.u32 %v2838, 16
        %v3216 = vrot.slane %v3214, 4
        %v3217 = vor.u32 %v3216, %v3212
        %v3218 = vrot.slane %v3217, 4
        %v3220 = vshll.u32 %v2839, 16
        %v3222 = vrot.slane %v3220, 5
        %v3223 = vsel %vm1171, %v3218, %v3222
        %3256 = vst [vmem:[#allocation4 + $0x1c] sm:$0xf] %v2853
        %3257 = vst [vmem:[#allocation4 + $0x40] sm:$0xf] %v2863
        %3258 = vst [vmem:[#allocation4 + $0x64] sm:$0xf] %v2877
        %3259 = vst [vmem:[#allocation4 + $0x88] sm:$0xf] %v2887
        %3260 = vst [vmem:[#allocation4 + $0xac] sm:$0xf] %v2901
        %3261 = vst [vmem:[#allocation4 + $0xd0] sm:$0xf] %v2911
        %3262 = vst [vmem:[#allocation4 + $0xf4] sm:$0xf] %v2925
        %3263 = vst [vmem:[#allocation4 + $0x118] sm:$0xf] %v2935
        %3264 = vst [vmem:[#allocation4 + $0x13c] sm:$0xf] %v2949
        %3265 = vst [vmem:[#allocation4 + $0x160] sm:$0xf] %v2959
        %3266 = vst [vmem:[#allocation4 + $0x184] sm:$0xf] %v2973
        %3267 = vst [vmem:[#allocation4 + $0x1a8] sm:$0xf] %v2983
        %3268 = vst [vmem:[#allocation4 + $0x1cc] sm:$0xf] %v2997
        %3269 = vst [vmem:[#allocation4 + $0x1f0] sm:$0xf] %v3007
        %3270 = vst [vmem:[#allocation4 + $0x214] sm:$0xf] %v3021
        %3271 = vst [vmem:[#allocation4 + $0x238] sm:$0xf] %v3031
        %3272 = vst [vmem:[#allocation4 + $0x25c] sm:$0xf] %v3045
        %3273 = vst [vmem:[#allocation4 + $0x280] sm:$0xf] %v3055
        %3274 = vst [vmem:[#allocation4 + $0x2a4] sm:$0xf] %v3069
        %3275 = vst [vmem:[#allocation4 + $0x2c8] sm:$0xf] %v3079
        %3276 = vst [vmem:[#allocation4 + $0x2ec] sm:$0xf] %v3093
        %3277 = vst [vmem:[#allocation4 + $0x310] sm:$0xf] %v3103
        %3278 = vst [vmem:[#allocation4 + $0x334] sm:$0xf] %v3117
        %3279 = vst [vmem:[#allocation4 + $0x358] sm:$0xf] %v3127
        %3280 = vst [vmem:[#allocation4 + $0x37c] sm:$0xf] %v3141
        %3281 = vst [vmem:[#allocation4 + $0x3a0] sm:$0xf] %v3151
        %3282 = vst [vmem:[#allocation4 + $0x3c4] sm:$0xf] %v3165
        %3283 = vst [vmem:[#allocation4 + $0x3e8] sm:$0xf] %v3175
        %3284 = vst [vmem:[#allocation4 + $0x40c] sm:$0xf] %v3189
        %3285 = vst [vmem:[#allocation4 + $0x430] sm:$0xf] %v3199
        %3286 = vst [vmem:[#allocation4 + $0x454] sm:$0xf] %v3213
        %3287 = vst [vmem:[#allocation4 + $0x478] sm:$0xf] %v3223
        %v3288 = vld [vmem:[%s2727] sm:$0xe]
        %v3289 = vld [vmem:[%s2727 + $0x4] sm:$0xf]
        %v3290 = vld [vmem:[%s2727 + $0x8] sm:$0x1]
        %v3291 = vld [vmem:[%s2727 + $0xc] sm:$0xe]
        %v3292 = vld [vmem:[%s2727 + $0x10] sm:$0xf]
        %v3293 = vld [vmem:[%s2727 + $0x14] sm:$0x1]
        %v3294 = vld [vmem:[%s2727 + $0x18] sm:$0xe]
        %v3295 = vld [vmem:[%s2727 + $0x1c] sm:$0xf]
        %v3296 = vld [vmem:[%s2727 + $0x20] sm:$0x1]
        %v3297 = vld [vmem:[%s2727 + $0x24] sm:$0xe]
        %v3298 = vld [vmem:[%s2727 + $0x28] sm:$0xf]
        %v3299 = vld [vmem:[%s2727 + $0x2c] sm:$0x1]
        %v3300 = vld [vmem:[%s2727 + $0x30] sm:$0xe]
        %v3301 = vld [vmem:[%s2727 + $0x34] sm:$0xf]
        %v3302 = vld [vmem:[%s2727 + $0x38] sm:$0x1]
        %v3303 = vld [vmem:[%s2727 + $0x3c] sm:$0xe]
        %v3304 = vld [vmem:[%s2727 + $0x40] sm:$0xf]
        %v3305 = vld [vmem:[%s2727 + $0x44] sm:$0x1]
        %v3306 = vld [vmem:[%s2727 + $0x48] sm:$0xe]
        %v3307 = vld [vmem:[%s2727 + $0x4c] sm:$0xf]
        %v3308 = vld [vmem:[%s2727 + $0x50] sm:$0x1]
        %v3309 = vld [vmem:[%s2727 + $0x54] sm:$0xe]
        %v3310 = vld [vmem:[%s2727 + $0x58] sm:$0xf]
        %v3311 = vld [vmem:[%s2727 + $0x5c] sm:$0x1]
        %v3312 = vld [vmem:[%s2727 + $0x60] sm:$0xe]
        %v3313 = vld [vmem:[%s2727 + $0x64] sm:$0xf]
        %v3314 = vld [vmem:[%s2727 + $0x68] sm:$0x1]
        %v3315 = vld [vmem:[%s2727 + $0x6c] sm:$0xe]
        %v3316 = vld [vmem:[%s2727 + $0x70] sm:$0xf]
        %v3317 = vld [vmem:[%s2727 + $0x74] sm:$0x1]
        %v3318 = vld [vmem:[%s2727 + $0x78] sm:$0xe]
        %v3319 = vld [vmem:[%s2727 + $0x7c] sm:$0xf]
        %v3320 = vld [vmem:[%s2727 + $0x80] sm:$0x1]
        %v3321 = vld [vmem:[%s2727 + $0x84] sm:$0xe]
        %v3322 = vld [vmem:[%s2727 + $0x88] sm:$0xf]
        %v3323 = vld [vmem:[%s2727 + $0x8c] sm:$0x1]
        %v3324 = vld [vmem:[%s2727 + $0x90] sm:$0xe]
        %v3325 = vld [vmem:[%s2727 + $0x94] sm:$0xf]
        %v3326 = vld [vmem:[%s2727 + $0x98] sm:$0x1]
        %v3327 = vld [vmem:[%s2727 + $0x9c] sm:$0xe]
        %v3328 = vld [vmem:[%s2727 + $0xa0] sm:$0xf]
        %v3329 = vld [vmem:[%s2727 + $0xa4] sm:$0x1]
        %v3330 = vld [vmem:[%s2727 + $0xa8] sm:$0xe]
        %v3331 = vld [vmem:[%s2727 + $0xac] sm:$0xf]
        %v3332 = vld [vmem:[%s2727 + $0xb0] sm:$0x1]
        %v3333 = vld [vmem:[%s2727 + $0xb4] sm:$0xe]
        %v3334 = vld [vmem:[%s2727 + $0xb8] sm:$0xf]
        %v3335 = vld [vmem:[%s2727 + $0xbc] sm:$0x1]
        %v3384 = vrot.slane %v3288, 5
        %v3385 = vrot.slane %v3384, 4
        %v3386 = vrot.slane %v3289, 5
        %v3387 = vsel %vm1718, %v3385, %v3386
        %v3388 = vrot.slane %v3386, 4
        %v3389 = vrot.slane %v3290, 5
        %v3390 = vsel %vm1718, %v3388, %v3389
        %v3391 = vrot.slane %v3291, 5
        %v3392 = vrot.slane %v3391, 4
        %v3393 = vrot.slane %v3292, 5
        %v3394 = vsel %vm1718, %v3392, %v3393
        %v3395 = vrot.slane %v3393, 4
        %v3396 = vrot.slane %v3293, 5
        %v3397 = vsel %vm1718, %v3395, %v3396
        %v3398 = vrot.slane %v3294, 5
        %v3399 = vrot.slane %v3398, 4
        %v3400 = vrot.slane %v3295, 5
        %v3401 = vsel %vm1718, %v3399, %v3400
        %v3402 = vrot.slane %v3400, 4
        %v3403 = vrot.slane %v3296, 5
        %v3404 = vsel %vm1718, %v3402, %v3403
        %v3405 = vrot.slane %v3297, 5
        %v3406 = vrot.slane %v3405, 4
        %v3407 = vrot.slane %v3298, 5
        %v3408 = vsel %vm1718, %v3406, %v3407
        %v3409 = vrot.slane %v3407, 4
        %v3410 = vrot.slane %v3299, 5
        %v3411 = vsel %vm1718, %v3409, %v3410
        %v3412 = vrot.slane %v3300, 5
        %v3413 = vrot.slane %v3412, 4
        %v3414 = vrot.slane %v3301, 5
        %v3415 = vsel %vm1718, %v3413, %v3414
        %v3416 = vrot.slane %v3414, 4
        %v3417 = vrot.slane %v3302, 5
        %v3418 = vsel %vm1718, %v3416, %v3417
        %v3419 = vrot.slane %v3303, 5
        %v3420 = vrot.slane %v3419, 4
        %v3421 = vrot.slane %v3304, 5
        %v3422 = vsel %vm1718, %v3420, %v3421
        %v3423 = vrot.slane %v3421, 4
        %v3424 = vrot.slane %v3305, 5
        %v3425 = vsel %vm1718, %v3423, %v3424
        %v3426 = vrot.slane %v3306, 5
        %v3427 = vrot.slane %v3426, 4
        %v3428 = vrot.slane %v3307, 5
        %v3429 = vsel %vm1718, %v3427, %v3428
        %v3430 = vrot.slane %v3428, 4
        %v3431 = vrot.slane %v3308, 5
        %v3432 = vsel %vm1718, %v3430, %v3431
        %v3433 = vrot.slane %v3309, 5
        %v3434 = vrot.slane %v3433, 4
        %v3435 = vrot.slane %v3310, 5
        %v3436 = vsel %vm1718, %v3434, %v3435
        %v3437 = vrot.slane %v3435, 4
        %v3438 = vrot.slane %v3311, 5
        %v3439 = vsel %vm1718, %v3437, %v3438
        %v3440 = vrot.slane %v3312, 5
        %v3441 = vrot.slane %v3440, 4
        %v3442 = vrot.slane %v3313, 5
        %v3443 = vsel %vm1718, %v3441, %v3442
        %v3444 = vrot.slane %v3442, 4
        %v3445 = vrot.slane %v3314, 5
        %v3446 = vsel %vm1718, %v3444, %v3445
        %v3447 = vrot.slane %v3315, 5
        %v3448 = vrot.slane %v3447, 4
        %v3449 = vrot.slane %v3316, 5
        %v3450 = vsel %vm1718, %v3448, %v3449
        %v3451 = vrot.slane %v3449, 4
        %v3452 = vrot.slane %v3317, 5
        %v3453 = vsel %vm1718, %v3451, %v3452
        %v3454 = vrot.slane %v3318, 5
        %v3455 = vrot.slane %v3454, 4
        %v3456 = vrot.slane %v3319, 5
        %v3457 = vsel %vm1718, %v3455, %v3456
        %v3458 = vrot.slane %v3456, 4
        %v3459 = vrot.slane %v3320, 5
        %v3460 = vsel %vm1718, %v3458, %v3459
        %v3461 = vrot.slane %v3321, 5
        %v3462 = vrot.slane %v3461, 4
        %v3463 = vrot.slane %v3322, 5
        %v3464 = vsel %vm1718, %v3462, %v3463
        %v3465 = vrot.slane %v3463, 4
        %v3466 = vrot.slane %v3323, 5
        %v3467 = vsel %vm1718, %v3465, %v3466
        %v3468 = vrot.slane %v3324, 5
        %v3469 = vrot.slane %v3468, 4
        %v3470 = vrot.slane %v3325, 5
        %v3471 = vsel %vm1718, %v3469, %v3470
        %v3472 = vrot.slane %v3470, 4
        %v3473 = vrot.slane %v3326, 5
        %v3474 = vsel %vm1718, %v3472, %v3473
        %v3475 = vrot.slane %v3327, 5
        %v3476 = vrot.slane %v3475, 4
        %v3477 = vrot.slane %v3328, 5
        %v3478 = vsel %vm1718, %v3476, %v3477
        %v3479 = vrot.slane %v3477, 4
        %v3480 = vrot.slane %v3329, 5
        %v3481 = vsel %vm1718, %v3479, %v3480
        %v3482 = vrot.slane %v3330, 5
        %v3483 = vrot.slane %v3482, 4
        %v3484 = vrot.slane %v3331, 5
        %v3485 = vsel %vm1718, %v3483, %v3484
        %v3486 = vrot.slane %v3484, 4
        %v3487 = vrot.slane %v3332, 5
        %v3488 = vsel %vm1718, %v3486, %v3487
        %v3489 = vrot.slane %v3333, 5
        %v3490 = vrot.slane %v3489, 4
        %v3491 = vrot.slane %v3334, 5
        %v3492 = vsel %vm1718, %v3490, %v3491
        %v3493 = vrot.slane %v3491, 4
        %v3494 = vrot.slane %v3335, 5
        %v3495 = vsel %vm1718, %v3493, %v3494
        %3528 = vst [vmem:[#allocation4 + $0x20] sm:$0xf] %v3387
        %3529 = vst [vmem:[#allocation4 + $0x44] sm:$0xf] %v3390
        %3530 = vst [vmem:[#allocation4 + $0x68] sm:$0xf] %v3394
        %3531 = vst [vmem:[#allocation4 + $0x8c] sm:$0xf] %v3397
        %3532 = vst [vmem:[#allocation4 + $0xb0] sm:$0xf] %v3401
        %3533 = vst [vmem:[#allocation4 + $0xd4] sm:$0xf] %v3404
        %3534 = vst [vmem:[#allocation4 + $0xf8] sm:$0xf] %v3408
        %3535 = vst [vmem:[#allocation4 + $0x11c] sm:$0xf] %v3411
        %3536 = vst [vmem:[#allocation4 + $0x140] sm:$0xf] %v3415
        %3537 = vst [vmem:[#allocation4 + $0x164] sm:$0xf] %v3418
        %3538 = vst [vmem:[#allocation4 + $0x188] sm:$0xf] %v3422
        %3539 = vst [vmem:[#allocation4 + $0x1ac] sm:$0xf] %v3425
        %3540 = vst [vmem:[#allocation4 + $0x1d0] sm:$0xf] %v3429
        %3541 = vst [vmem:[#allocation4 + $0x1f4] sm:$0xf] %v3432
        %3542 = vst [vmem:[#allocation4 + $0x218] sm:$0xf] %v3436
        %3543 = vst [vmem:[#allocation4 + $0x23c] sm:$0xf] %v3439
        %3544 = vst [vmem:[#allocation4 + $0x260] sm:$0xf] %v3443
        %3545 = vst [vmem:[#allocation4 + $0x284] sm:$0xf] %v3446
        %3546 = vst [vmem:[#allocation4 + $0x2a8] sm:$0xf] %v3450
        %3547 = vst [vmem:[#allocation4 + $0x2cc] sm:$0xf] %v3453
        %3548 = vst [vmem:[#allocation4 + $0x2f0] sm:$0xf] %v3457
        %3549 = vst [vmem:[#allocation4 + $0x314] sm:$0xf] %v3460
        %3550 = vst [vmem:[#allocation4 + $0x338] sm:$0xf] %v3464
        %3551 = vst [vmem:[#allocation4 + $0x35c] sm:$0xf] %v3467
        %3552 = vst [vmem:[#allocation4 + $0x380] sm:$0xf] %v3471
        %3553 = vst [vmem:[#allocation4 + $0x3a4] sm:$0xf] %v3474
        %3554 = vst [vmem:[#allocation4 + $0x3c8] sm:$0xf] %v3478
        %3555 = vst [vmem:[#allocation4 + $0x3ec] sm:$0xf] %v3481
        %3556 = vst [vmem:[#allocation4 + $0x410] sm:$0xf] %v3485
        %3557 = vst [vmem:[#allocation4 + $0x434] sm:$0xf] %v3488
        %3558 = vst [vmem:[#allocation4 + $0x458] sm:$0xf] %v3492
        %3559 = vst [vmem:[#allocation4 + $0x47c] sm:$0xf] %v3495
        %v3560 = vld [vmem:[#allocation4] sm:$0xff]
        %v3561 = vld [vmem:[#allocation4 + $0x8] sm:$0xff]
        %v3562 = vld [vmem:[#allocation4 + $0x10] sm:$0xff]
        %v3563 = vld [vmem:[#allocation4 + $0x18] sm:$0xff]
        %v3564 = vld [vmem:[#allocation4 + $0x20] sm:$0xf]
        %v3565 = vld [vmem:[#allocation4 + $0x24] sm:$0xff]
        %v3566 = vld [vmem:[#allocation4 + $0x2c] sm:$0xff]
        %v3567 = vld [vmem:[#allocation4 + $0x34] sm:$0xff]
        %v3568 = vld [vmem:[#allocation4 + $0x3c] sm:$0xff]
        %v3569 = vld [vmem:[#allocation4 + $0x44] sm:$0xf]
        %v3570 = vld [vmem:[#allocation4 + $0x48] sm:$0xff]
        %v3571 = vld [vmem:[#allocation4 + $0x50] sm:$0xff]
        %v3572 = vld [vmem:[#allocation4 + $0x58] sm:$0xff]
        %v3573 = vld [vmem:[#allocation4 + $0x60] sm:$0xff]
        %v3574 = vld [vmem:[#allocation4 + $0x68] sm:$0xf]
        %v3575 = vld [vmem:[#allocation4 + $0x6c] sm:$0xff]
        %v3576 = vld [vmem:[#allocation4 + $0x74] sm:$0xff]
        %v3577 = vld [vmem:[#allocation4 + $0x7c] sm:$0xff]
        %v3578 = vld [vmem:[#allocation4 + $0x84] sm:$0xff]
        %v3579 = vld [vmem:[#allocation4 + $0x8c] sm:$0xf]
        %v3580 = vld [vmem:[#allocation4 + $0x90] sm:$0xff]
        %v3581 = vld [vmem:[#allocation4 + $0x98] sm:$0xff]
        %v3582 = vld [vmem:[#allocation4 + $0xa0] sm:$0xff]
        %v3583 = vld [vmem:[#allocation4 + $0xa8] sm:$0xff]
        %v3584 = vld [vmem:[#allocation4 + $0xb0] sm:$0xf]
        %v3585 = vld [vmem:[#allocation4 + $0xb4] sm:$0xff]
        %v3586 = vld [vmem:[#allocation4 + $0xbc] sm:$0xff]
        %v3587 = vld [vmem:[#allocation4 + $0xc4] sm:$0xff]
        %v3588 = vld [vmem:[#allocation4 + $0xcc] sm:$0xff]
        %v3589 = vld [vmem:[#allocation4 + $0xd4] sm:$0xf]
        %v3590 = vld [vmem:[#allocation4 + $0xd8] sm:$0xff]
        %v3591 = vld [vmem:[#allocation4 + $0xe0] sm:$0xff]
        %v3592 = vld [vmem:[#allocation4 + $0xe8] sm:$0xff]
        %v3593 = vld [vmem:[#allocation4 + $0xf0] sm:$0xff]
        %v3594 = vld [vmem:[#allocation4 + $0xf8] sm:$0xf]
        %v3595 = vld [vmem:[#allocation4 + $0xfc] sm:$0xff]
        %v3596 = vld [vmem:[#allocation4 + $0x104] sm:$0xff]
        %v3597 = vld [vmem:[#allocation4 + $0x10c] sm:$0xff]
        %v3598 = vld [vmem:[#allocation4 + $0x114] sm:$0xff]
        %v3599 = vld [vmem:[#allocation4 + $0x11c] sm:$0xf]
        %v3600 = vld [vmem:[#allocation4 + $0x120] sm:$0xff]
        %v3601 = vld [vmem:[#allocation4 + $0x128] sm:$0xff]
        %v3602 = vld [vmem:[#allocation4 + $0x130] sm:$0xff]
        %v3603 = vld [vmem:[#allocation4 + $0x138] sm:$0xff]
        %v3604 = vld [vmem:[#allocation4 + $0x140] sm:$0xf]
        %v3605 = vld [vmem:[#allocation4 + $0x144] sm:$0xff]
        %v3606 = vld [vmem:[#allocation4 + $0x14c] sm:$0xff]
        %v3607 = vld [vmem:[#allocation4 + $0x154] sm:$0xff]
        %v3608 = vld [vmem:[#allocation4 + $0x15c] sm:$0xff]
        %v3609 = vld [vmem:[#allocation4 + $0x164] sm:$0xf]
        %v3610 = vld [vmem:[#allocation4 + $0x168] sm:$0xff]
        %v3611 = vld [vmem:[#allocation4 + $0x170] sm:$0xff]
        %v3612 = vld [vmem:[#allocation4 + $0x178] sm:$0xff]
        %v3613 = vld [vmem:[#allocation4 + $0x180] sm:$0xff]
        %v3614 = vld [vmem:[#allocation4 + $0x188] sm:$0xf]
        %v3615 = vld [vmem:[#allocation4 + $0x18c] sm:$0xff]
        %v3616 = vld [vmem:[#allocation4 + $0x194] sm:$0xff]
        %v3617 = vld [vmem:[#allocation4 + $0x19c] sm:$0xff]
        %v3618 = vld [vmem:[#allocation4 + $0x1a4] sm:$0xff]
        %v3619 = vld [vmem:[#allocation4 + $0x1ac] sm:$0xf]
        %v3620 = vld [vmem:[#allocation4 + $0x1b0] sm:$0xff]
        %v3621 = vld [vmem:[#allocation4 + $0x1b8] sm:$0xff]
        %v3622 = vld [vmem:[#allocation4 + $0x1c0] sm:$0xff]
        %v3623 = vld [vmem:[#allocation4 + $0x1c8] sm:$0xff]
        %v3624 = vld [vmem:[#allocation4 + $0x1d0] sm:$0xf]
        %v3625 = vld [vmem:[#allocation4 + $0x1d4] sm:$0xff]
        %v3626 = vld [vmem:[#allocation4 + $0x1dc] sm:$0xff]
        %v3627 = vld [vmem:[#allocation4 + $0x1e4] sm:$0xff]
        %v3628 = vld [vmem:[#allocation4 + $0x1ec] sm:$0xff]
        %v3629 = vld [vmem:[#allocation4 + $0x1f4] sm:$0xf]
        %v3630 = vld [vmem:[#allocation4 + $0x1f8] sm:$0xff]
        %v3631 = vld [vmem:[#allocation4 + $0x200] sm:$0xff]
        %v3632 = vld [vmem:[#allocation4 + $0x208] sm:$0xff]
        %v3633 = vld [vmem:[#allocation4 + $0x210] sm:$0xff]
        %v3634 = vld [vmem:[#allocation4 + $0x218] sm:$0xf]
        %v3635 = vld [vmem:[#allocation4 + $0x21c] sm:$0xff]
        %v3636 = vld [vmem:[#allocation4 + $0x224] sm:$0xff]
        %v3637 = vld [vmem:[#allocation4 + $0x22c] sm:$0xff]
        %v3638 = vld [vmem:[#allocation4 + $0x234] sm:$0xff]
        %v3639 = vld [vmem:[#allocation4 + $0x23c] sm:$0xf]
        %v3640 = vld [vmem:[#allocation4 + $0x240] sm:$0xff]
        %v3641 = vld [vmem:[#allocation4 + $0x248] sm:$0xff]
        %v3642 = vld [vmem:[#allocation4 + $0x250] sm:$0xff]
        %v3643 = vld [vmem:[#allocation4 + $0x258] sm:$0xff]
        %v3644 = vld [vmem:[#allocation4 + $0x260] sm:$0xf]
        %v3645 = vld [vmem:[#allocation4 + $0x264] sm:$0xff]
        %v3646 = vld [vmem:[#allocation4 + $0x26c] sm:$0xff]
        %v3647 = vld [vmem:[#allocation4 + $0x274] sm:$0xff]
        %v3648 = vld [vmem:[#allocation4 + $0x27c] sm:$0xff]
        %v3649 = vld [vmem:[#allocation4 + $0x284] sm:$0xf]
        %v3650 = vld [vmem:[#allocation4 + $0x288] sm:$0xff]
        %v3651 = vld [vmem:[#allocation4 + $0x290] sm:$0xff]
        %v3652 = vld [vmem:[#allocation4 + $0x298] sm:$0xff]
        %v3653 = vld [vmem:[#allocation4 + $0x2a0] sm:$0xff]
        %v3654 = vld [vmem:[#allocation4 + $0x2a8] sm:$0xf]
        %v3655 = vld [vmem:[#allocation4 + $0x2ac] sm:$0xff]
        %v3656 = vld [vmem:[#allocation4 + $0x2b4] sm:$0xff]
        %v3657 = vld [vmem:[#allocation4 + $0x2bc] sm:$0xff]
        %v3658 = vld [vmem:[#allocation4 + $0x2c4] sm:$0xff]
        %v3659 = vld [vmem:[#allocation4 + $0x2cc] sm:$0xf]
        %v3660 = vld [vmem:[#allocation4 + $0x2d0] sm:$0xff]
        %v3661 = vld [vmem:[#allocation4 + $0x2d8] sm:$0xff]
        %v3662 = vld [vmem:[#allocation4 + $0x2e0] sm:$0xff]
        %v3663 = vld [vmem:[#allocation4 + $0x2e8] sm:$0xff]
        %v3664 = vld [vmem:[#allocation4 + $0x2f0] sm:$0xf]
        %v3665 = vld [vmem:[#allocation4 + $0x2f4] sm:$0xff]
        %v3666 = vld [vmem:[#allocation4 + $0x2fc] sm:$0xff]
        %v3667 = vld [vmem:[#allocation4 + $0x304] sm:$0xff]
        %v3668 = vld [vmem:[#allocation4 + $0x30c] sm:$0xff]
        %v3669 = vld [vmem:[#allocation4 + $0x314] sm:$0xf]
        %v3670 = vld [vmem:[#allocation4 + $0x318] sm:$0xff]
        %v3671 = vld [vmem:[#allocation4 + $0x320] sm:$0xff]
        %v3672 = vld [vmem:[#allocation4 + $0x328] sm:$0xff]
        %v3673 = vld [vmem:[#allocation4 + $0x330] sm:$0xff]
        %v3674 = vld [vmem:[#allocation4 + $0x338] sm:$0xf]
        %v3675 = vld [vmem:[#allocation4 + $0x33c] sm:$0xff]
        %v3676 = vld [vmem:[#allocation4 + $0x344] sm:$0xff]
        %v3677 = vld [vmem:[#allocation4 + $0x34c] sm:$0xff]
        %v3678 = vld [vmem:[#allocation4 + $0x354] sm:$0xff]
        %v3679 = vld [vmem:[#allocation4 + $0x35c] sm:$0xf]
        %v3680 = vld [vmem:[#allocation4 + $0x360] sm:$0xff]
        %v3681 = vld [vmem:[#allocation4 + $0x368] sm:$0xff]
        %v3682 = vld [vmem:[#allocation4 + $0x370] sm:$0xff]
        %v3683 = vld [vmem:[#allocation4 + $0x378] sm:$0xff]
        %v3684 = vld [vmem:[#allocation4 + $0x380] sm:$0xf]
        %v3685 = vld [vmem:[#allocation4 + $0x384] sm:$0xff]
        %v3686 = vld [vmem:[#allocation4 + $0x38c] sm:$0xff]
        %v3687 = vld [vmem:[#allocation4 + $0x394] sm:$0xff]
        %v3688 = vld [vmem:[#allocation4 + $0x39c] sm:$0xff]
        %v3689 = vld [vmem:[#allocation4 + $0x3a4] sm:$0xf]
        %v3690 = vld [vmem:[#allocation4 + $0x3a8] sm:$0xff]
        %v3691 = vld [vmem:[#allocation4 + $0x3b0] sm:$0xff]
        %v3692 = vld [vmem:[#allocation4 + $0x3b8] sm:$0xff]
        %v3693 = vld [vmem:[#allocation4 + $0x3c0] sm:$0xff]
        %v3694 = vld [vmem:[#allocation4 + $0x3c8] sm:$0xf]
        %v3695 = vld [vmem:[#allocation4 + $0x3cc] sm:$0xff]
        %v3696 = vld [vmem:[#allocation4 + $0x3d4] sm:$0xff]
        %v3697 = vld [vmem:[#allocation4 + $0x3dc] sm:$0xff]
        %v3698 = vld [vmem:[#allocation4 + $0x3e4] sm:$0xff]
        %v3699 = vld [vmem:[#allocation4 + $0x3ec] sm:$0xf]
        %v3700 = vld [vmem:[#allocation4 + $0x3f0] sm:$0xff]
        %v3701 = vld [vmem:[#allocation4 + $0x3f8] sm:$0xff]
        %v3702 = vld [vmem:[#allocation4 + $0x400] sm:$0xff]
        %v3703 = vld [vmem:[#allocation4 + $0x408] sm:$0xff]
        %v3704 = vld [vmem:[#allocation4 + $0x410] sm:$0xf]
        %v3705 = vld [vmem:[#allocation4 + $0x414] sm:$0xff]
        %v3706 = vld [vmem:[#allocation4 + $0x41c] sm:$0xff]
        %v3707 = vld [vmem:[#allocation4 + $0x424] sm:$0xff]
        %v3708 = vld [vmem:[#allocation4 + $0x42c] sm:$0xff]
        %v3709 = vld [vmem:[#allocation4 + $0x434] sm:$0xf]
        %v3710 = vld [vmem:[#allocation4 + $0x438] sm:$0xff]
        %v3711 = vld [vmem:[#allocation4 + $0x440] sm:$0xff]
        %v3712 = vld [vmem:[#allocation4 + $0x448] sm:$0xff]
        %v3713 = vld [vmem:[#allocation4 + $0x450] sm:$0xff]
        %v3714 = vld [vmem:[#allocation4 + $0x458] sm:$0xf]
        %v3715 = vld [vmem:[#allocation4 + $0x45c] sm:$0xff]
        %v3716 = vld [vmem:[#allocation4 + $0x464] sm:$0xff]
        %v3717 = vld [vmem:[#allocation4 + $0x46c] sm:$0xff]
        %v3718 = vld [vmem:[#allocation4 + $0x474] sm:$0xff]
        %v3719 = vld [vmem:[#allocation4 + $0x47c] sm:$0xf]
        %v3720 = vld [vmem:[#allocation5] sm:$0xf]
        %v3721 = vld [vmem:[#allocation5 + $0x4] sm:$0xf]
        %v3722 = vld [vmem:[#allocation5 + $0x8] sm:$0xf]
        %v3723 = vld [vmem:[#allocation5 + $0xc] sm:$0xf]
        %v3724 = vld [vmem:[#allocation5 + $0x10] sm:$0xf]
        %v3725 = vld [vmem:[#allocation5 + $0x14] sm:$0xf]
        %v3726 = vld [vmem:[#allocation5 + $0x18] sm:$0xf]
        %v3727 = vld [vmem:[#allocation5 + $0x1c] sm:$0xf]
        %v3728 = vld [vmem:[#allocation5 + $0x20] sm:$0xf]
        %v3729 = vld [vmem:[#allocation5 + $0x24] sm:$0xf]
        %v3730 = vld [vmem:[#allocation5 + $0x28] sm:$0xf]
        %v3731 = vld [vmem:[#allocation5 + $0x2c] sm:$0xf]
        %v3732 = vld [vmem:[#allocation5 + $0x30] sm:$0xf]
        %v3733 = vld [vmem:[#allocation5 + $0x34] sm:$0xf]
        %v3734 = vld [vmem:[#allocation5 + $0x38] sm:$0xf]
        %v3735 = vld [vmem:[#allocation5 + $0x3c] sm:$0xf]
        %v3736 = vld [vmem:[#allocation5 + $0x40] sm:$0xf]
        %v3737 = vld [vmem:[#allocation5 + $0x44] sm:$0xf]
        %v3738 = vld [vmem:[#allocation5 + $0x48] sm:$0xf]
        %v3739 = vld [vmem:[#allocation5 + $0x4c] sm:$0xf]
        %v3740 = vld [vmem:[#allocation5 + $0x50] sm:$0xf]
        %v3741 = vld [vmem:[#allocation5 + $0x54] sm:$0xf]
        %v3742 = vld [vmem:[#allocation5 + $0x58] sm:$0xf]
        %v3743 = vld [vmem:[#allocation5 + $0x5c] sm:$0xf]
        %v3744 = vld [vmem:[#allocation5 + $0x60] sm:$0xf]
        %v3745 = vld [vmem:[#allocation5 + $0x64] sm:$0xf]
        %v3746 = vld [vmem:[#allocation5 + $0x68] sm:$0xf]
        %v3747 = vld [vmem:[#allocation5 + $0x6c] sm:$0xf]
        %v3748 = vld [vmem:[#allocation5 + $0x70] sm:$0xf]
        %v3749 = vld [vmem:[#allocation5 + $0x74] sm:$0xf]
        %v3750 = vld [vmem:[#allocation5 + $0x78] sm:$0xf]
        %v3751 = vld [vmem:[#allocation5 + $0x7c] sm:$0xf]
        %v3752 = vld [vmem:[#allocation5 + $0x80] sm:$0xf]
        %v3753 = vld [vmem:[#allocation5 + $0x84] sm:$0xf]
        %v3754 = vld [vmem:[#allocation5 + $0x88] sm:$0xf]
        %v3755 = vld [vmem:[#allocation5 + $0x8c] sm:$0xf]
        %v3756 = vld [vmem:[#allocation5 + $0x90] sm:$0xf]
        %v3757 = vld [vmem:[#allocation5 + $0x94] sm:$0xf]
        %v3758 = vld [vmem:[#allocation5 + $0x98] sm:$0xf]
        %v3759 = vld [vmem:[#allocation5 + $0x9c] sm:$0xf]
        %v3760 = vld [vmem:[#allocation5 + $0xa0] sm:$0xf]
        %v3761 = vld [vmem:[#allocation5 + $0xa4] sm:$0xf]
        %v3762 = vld [vmem:[#allocation5 + $0xa8] sm:$0xf]
        %v3763 = vld [vmem:[#allocation5 + $0xac] sm:$0xf]
        %v3764 = vld [vmem:[#allocation5 + $0xb0] sm:$0xf]
        %v3765 = vld [vmem:[#allocation5 + $0xb4] sm:$0xf]
        %v3766 = vld [vmem:[#allocation5 + $0xb8] sm:$0xf]
        %v3767 = vld [vmem:[#allocation5 + $0xbc] sm:$0xf]
        %v3768 = vld [vmem:[#allocation5 + $0xc0] sm:$0xf]
        %v3769 = vld [vmem:[#allocation5 + $0xc4] sm:$0xf]
        %v3770 = vld [vmem:[#allocation5 + $0xc8] sm:$0xf]
        %v3771 = vld [vmem:[#allocation5 + $0xcc] sm:$0xf]
        %v3772 = vld [vmem:[#allocation5 + $0xd0] sm:$0xf]
        %v3773 = vld [vmem:[#allocation5 + $0xd4] sm:$0xf]
        %v3774 = vld [vmem:[#allocation5 + $0xd8] sm:$0xf]
        %v3775 = vld [vmem:[#allocation5 + $0xdc] sm:$0xf]
        %v3776 = vld [vmem:[#allocation5 + $0xe0] sm:$0xf]
        %v3777 = vld [vmem:[#allocation5 + $0xe4] sm:$0xf]
        %v3778 = vld [vmem:[#allocation5 + $0xe8] sm:$0xf]
        %v3779 = vld [vmem:[#allocation5 + $0xec] sm:$0xf]
        %v3780 = vld [vmem:[#allocation5 + $0xf0] sm:$0xf]
        %v3781 = vld [vmem:[#allocation5 + $0xf4] sm:$0xf]
        %v3782 = vld [vmem:[#allocation5 + $0xf8] sm:$0xf]
        %v3783 = vld [vmem:[#allocation5 + $0xfc] sm:$0xf]
        %v3784 = vld [vmem:[#allocation5 + $0x100] sm:$0xf]
        %v3785 = vld [vmem:[#allocation5 + $0x104] sm:$0xf]
        %v3786 = vld [vmem:[#allocation5 + $0x108] sm:$0xf]
        %v3787 = vld [vmem:[#allocation5 + $0x10c] sm:$0xf]
        %v3788 = vld [vmem:[#allocation5 + $0x110] sm:$0xf]
        %v3789 = vld [vmem:[#allocation5 + $0x114] sm:$0xf]
        %v3790 = vld [vmem:[#allocation5 + $0x118] sm:$0xf]
        %v3791 = vld [vmem:[#allocation5 + $0x11c] sm:$0xf]
        %v3792 = vld [vmem:[#allocation5 + $0x120] sm:$0xf]
        %v3793 = vld [vmem:[#allocation5 + $0x124] sm:$0xf]
        %v3794 = vld [vmem:[#allocation5 + $0x128] sm:$0xf]
        %v3795 = vld [vmem:[#allocation5 + $0x12c] sm:$0xf]
        %v3796 = vld [vmem:[#allocation5 + $0x130] sm:$0xf]
        %v3797 = vld [vmem:[#allocation5 + $0x134] sm:$0xf]
        %v3798 = vld [vmem:[#allocation5 + $0x138] sm:$0xf]
        %v3799 = vld [vmem:[#allocation5 + $0x13c] sm:$0xf]
        %v3800 = vld [vmem:[#allocation5 + $0x140] sm:$0xf]
        %v3801 = vld [vmem:[#allocation5 + $0x144] sm:$0xf]
        %v3802 = vld [vmem:[#allocation5 + $0x148] sm:$0xf]
        %v3803 = vld [vmem:[#allocation5 + $0x14c] sm:$0xf]
        %v3804 = vld [vmem:[#allocation5 + $0x150] sm:$0xf]
        %v3805 = vld [vmem:[#allocation5 + $0x154] sm:$0xf]
        %v3806 = vld [vmem:[#allocation5 + $0x158] sm:$0xf]
        %v3807 = vld [vmem:[#allocation5 + $0x15c] sm:$0xf]
        %v3808 = vld [vmem:[#allocation5 + $0x160] sm:$0xf]
        %v3809 = vld [vmem:[#allocation5 + $0x164] sm:$0xf]
        %v3810 = vld [vmem:[#allocation5 + $0x168] sm:$0xf]
        %v3811 = vld [vmem:[#allocation5 + $0x16c] sm:$0xf]
        %v3812 = vld [vmem:[#allocation5 + $0x170] sm:$0xf]
        %v3813 = vld [vmem:[#allocation5 + $0x174] sm:$0xf]
        %v3814 = vld [vmem:[#allocation5 + $0x178] sm:$0xf]
        %v3815 = vld [vmem:[#allocation5 + $0x17c] sm:$0xf]
        %v3816 = vld [vmem:[#allocation5 + $0x180] sm:$0xf]
        %v3817 = vld [vmem:[#allocation5 + $0x184] sm:$0xf]
        %v3818 = vld [vmem:[#allocation5 + $0x188] sm:$0xf]
        %v3819 = vld [vmem:[#allocation5 + $0x18c] sm:$0xf]
        %v3820 = vld [vmem:[#allocation5 + $0x190] sm:$0xf]
        %v3821 = vld [vmem:[#allocation5 + $0x194] sm:$0xf]
        %v3822 = vld [vmem:[#allocation5 + $0x198] sm:$0xf]
        %v3823 = vld [vmem:[#allocation5 + $0x19c] sm:$0xf]
        %v3824 = vld [vmem:[#allocation5 + $0x1a0] sm:$0xf]
        %v3825 = vld [vmem:[#allocation5 + $0x1a4] sm:$0xf]
        %v3826 = vld [vmem:[#allocation5 + $0x1a8] sm:$0xf]
        %v3827 = vld [vmem:[#allocation5 + $0x1ac] sm:$0xf]
        %v3828 = vld [vmem:[#allocation5 + $0x1b0] sm:$0xf]
        %v3829 = vld [vmem:[#allocation5 + $0x1b4] sm:$0xf]
        %v3830 = vld [vmem:[#allocation5 + $0x1b8] sm:$0xf]
        %v3831 = vld [vmem:[#allocation5 + $0x1bc] sm:$0xf]
        %v3832 = vld [vmem:[#allocation5 + $0x1c0] sm:$0xf]
        %v3833 = vld [vmem:[#allocation5 + $0x1c4] sm:$0xf]
        %v3834 = vld [vmem:[#allocation5 + $0x1c8] sm:$0xf]
        %v3835 = vld [vmem:[#allocation5 + $0x1cc] sm:$0xf]
        %v3836 = vld [vmem:[#allocation5 + $0x1d0] sm:$0xf]
        %v3837 = vld [vmem:[#allocation5 + $0x1d4] sm:$0xf]
        %v3838 = vld [vmem:[#allocation5 + $0x1d8] sm:$0xf]
        %v3839 = vld [vmem:[#allocation5 + $0x1dc] sm:$0xf]
        %v3840 = vld [vmem:[#allocation5 + $0x1e0] sm:$0xf]
        %v3841 = vld [vmem:[#allocation5 + $0x1e4] sm:$0xf]
        %v3842 = vld [vmem:[#allocation5 + $0x1e8] sm:$0xf]
        %v3843 = vld [vmem:[#allocation5 + $0x1ec] sm:$0xf]
        %v3844 = vld [vmem:[#allocation5 + $0x1f0] sm:$0xf]
        %v3845 = vld [vmem:[#allocation5 + $0x1f4] sm:$0xf]
        %v3846 = vld [vmem:[#allocation5 + $0x1f8] sm:$0xf]
        %v3847 = vld [vmem:[#allocation5 + $0x1fc] sm:$0xf]
        %v3848 = vld [vmem:[#allocation5 + $0x200] sm:$0xf]
        %v3849 = vld [vmem:[#allocation5 + $0x204] sm:$0xf]
        %v3850 = vld [vmem:[#allocation5 + $0x208] sm:$0xf]
        %v3851 = vld [vmem:[#allocation5 + $0x20c] sm:$0xf]
        %v3852 = vld [vmem:[#allocation5 + $0x210] sm:$0xf]
        %v3853 = vld [vmem:[#allocation5 + $0x214] sm:$0xf]
        %v3854 = vld [vmem:[#allocation5 + $0x218] sm:$0xf]
        %v3855 = vld [vmem:[#allocation5 + $0x21c] sm:$0xf]
        %v3856 = vld [vmem:[#allocation5 + $0x220] sm:$0xf]
        %v3857 = vld [vmem:[#allocation5 + $0x224] sm:$0xf]
        %v3858 = vld [vmem:[#allocation5 + $0x228] sm:$0xf]
        %v3859 = vld [vmem:[#allocation5 + $0x22c] sm:$0xf]
        %v3860 = vld [vmem:[#allocation5 + $0x230] sm:$0xf]
        %v3861 = vld [vmem:[#allocation5 + $0x234] sm:$0xf]
        %v3862 = vld [vmem:[#allocation5 + $0x238] sm:$0xf]
        %v3863 = vld [vmem:[#allocation5 + $0x23c] sm:$0xf]
        %v4024 = vunpack.c.l.b16 %v3560
        %v4025 = vunpack.c.h.b16 %v3560
        %v4026 = vunpack.c.l.b16 %v3561
        %v4027 = vunpack.c.h.b16 %v3561
        %v4028 = vunpack.c.l.b16 %v3562
        %v4029 = vunpack.c.h.b16 %v3562
        %v4030 = vunpack.c.l.b16 %v3563
        %v4031 = vunpack.c.h.b16 %v3563
        %v4032 = vunpack.c.l.b16 %v3564
        %v4033 = vunpack.c.l.b16 %v3565
        %v4034 = vunpack.c.h.b16 %v3565
        %v4035 = vunpack.c.l.b16 %v3566
        %v4036 = vunpack.c.h.b16 %v3566
        %v4037 = vunpack.c.l.b16 %v3567
        %v4038 = vunpack.c.h.b16 %v3567
        %v4039 = vunpack.c.l.b16 %v3568
        %v4040 = vunpack.c.h.b16 %v3568
        %v4041 = vunpack.c.l.b16 %v3569
        %v4042 = vunpack.c.l.b16 %v3570
        %v4043 = vunpack.c.h.b16 %v3570
        %v4044 = vunpack.c.l.b16 %v3571
        %v4045 = vunpack.c.h.b16 %v3571
        %v4046 = vunpack.c.l.b16 %v3572
        %v4047 = vunpack.c.h.b16 %v3572
        %v4048 = vunpack.c.l.b16 %v3573
        %v4049 = vunpack.c.h.b16 %v3573
        %v4050 = vunpack.c.l.b16 %v3574
        %v4051 = vunpack.c.l.b16 %v3575
        %v4052 = vunpack.c.h.b16 %v3575
        %v4053 = vunpack.c.l.b16 %v3576
        %v4054 = vunpack.c.h.b16 %v3576
        %v4055 = vunpack.c.l.b16 %v3577
        %v4056 = vunpack.c.h.b16 %v3577
        %v4057 = vunpack.c.l.b16 %v3578
        %v4058 = vunpack.c.h.b16 %v3578
        %v4059 = vunpack.c.l.b16 %v3579
        %v4060 = vunpack.c.l.b16 %v3580
        %v4061 = vunpack.c.h.b16 %v3580
        %v4062 = vunpack.c.l.b16 %v3581
        %v4063 = vunpack.c.h.b16 %v3581
        %v4064 = vunpack.c.l.b16 %v3582
        %v4065 = vunpack.c.h.b16 %v3582
        %v4066 = vunpack.c.l.b16 %v3583
        %v4067 = vunpack.c.h.b16 %v3583
        %v4068 = vunpack.c.l.b16 %v3584
        %v4069 = vunpack.c.l.b16 %v3585
        %v4070 = vunpack.c.h.b16 %v3585
        %v4071 = vunpack.c.l.b16 %v3586
        %v4072 = vunpack.c.h.b16 %v3586
        %v4073 = vunpack.c.l.b16 %v3587
        %v4074 = vunpack.c.h.b16 %v3587
        %v4075 = vunpack.c.l.b16 %v3588
        %v4076 = vunpack.c.h.b16 %v3588
        %v4077 = vunpack.c.l.b16 %v3589
        %v4078 = vunpack.c.l.b16 %v3590
        %v4079 = vunpack.c.h.b16 %v3590
        %v4080 = vunpack.c.l.b16 %v3591
        %v4081 = vunpack.c.h.b16 %v3591
        %v4082 = vunpack.c.l.b16 %v3592
        %v4083 = vunpack.c.h.b16 %v3592
        %v4084 = vunpack.c.l.b16 %v3593
        %v4085 = vunpack.c.h.b16 %v3593
        %v4086 = vunpack.c.l.b16 %v3594
        %v4087 = vunpack.c.l.b16 %v3595
        %v4088 = vunpack.c.h.b16 %v3595
        %v4089 = vunpack.c.l.b16 %v3596
        %v4090 = vunpack.c.h.b16 %v3596
        %v4091 = vunpack.c.l.b16 %v3597
        %v4092 = vunpack.c.h.b16 %v3597
        %v4093 = vunpack.c.l.b16 %v3598
        %v4094 = vunpack.c.h.b16 %v3598
        %v4095 = vunpack.c.l.b16 %v3599
        %v4096 = vunpack.c.l.b16 %v3600
        %v4097 = vunpack.c.h.b16 %v3600
        %v4098 = vunpack.c.l.b16 %v3601
        %v4099 = vunpack.c.h.b16 %v3601
        %v4100 = vunpack.c.l.b16 %v3602
        %v4101 = vunpack.c.h.b16 %v3602
        %v4102 = vunpack.c.l.b16 %v3603
        %v4103 = vunpack.c.h.b16 %v3603
        %v4104 = vunpack.c.l.b16 %v3604
        %v4105 = vunpack.c.l.b16 %v3605
        %v4106 = vunpack.c.h.b16 %v3605
        %v4107 = vunpack.c.l.b16 %v3606
        %v4108 = vunpack.c.h.b16 %v3606
        %v4109 = vunpack.c.l.b16 %v3607
        %v4110 = vunpack.c.h.b16 %v3607
        %v4111 = vunpack.c.l.b16 %v3608
        %v4112 = vunpack.c.h.b16 %v3608
        %v4113 = vunpack.c.l.b16 %v3609
        %v4114 = vunpack.c.l.b16 %v3610
        %v4115 = vunpack.c.h.b16 %v3610
        %v4116 = vunpack.c.l.b16 %v3611
        %v4117 = vunpack.c.h.b16 %v3611
        %v4118 = vunpack.c.l.b16 %v3612
        %v4119 = vunpack.c.h.b16 %v3612
        %v4120 = vunpack.c.l.b16 %v3613
        %v4121 = vunpack.c.h.b16 %v3613
        %v4122 = vunpack.c.l.b16 %v3614
        %v4123 = vunpack.c.l.b16 %v3615
        %v4124 = vunpack.c.h.b16 %v3615
        %v4125 = vunpack.c.l.b16 %v3616
        %v4126 = vunpack.c.h.b16 %v3616
        %v4127 = vunpack.c.l.b16 %v3617
        %v4128 = vunpack.c.h.b16 %v3617
        %v4129 = vunpack.c.l.b16 %v3618
        %v4130 = vunpack.c.h.b16 %v3618
        %v4131 = vunpack.c.l.b16 %v3619
        %v4132 = vunpack.c.l.b16 %v3620
        %v4133 = vunpack.c.h.b16 %v3620
        %v4134 = vunpack.c.l.b16 %v3621
        %v4135 = vunpack.c.h.b16 %v3621
        %v4136 = vunpack.c.l.b16 %v3622
        %v4137 = vunpack.c.h.b16 %v3622
        %v4138 = vunpack.c.l.b16 %v3623
        %v4139 = vunpack.c.h.b16 %v3623
        %v4140 = vunpack.c.l.b16 %v3624
        %v4141 = vunpack.c.l.b16 %v3625
        %v4142 = vunpack.c.h.b16 %v3625
        %v4143 = vunpack.c.l.b16 %v3626
        %v4144 = vunpack.c.h.b16 %v3626
        %v4145 = vunpack.c.l.b16 %v3627
        %v4146 = vunpack.c.h.b16 %v3627
        %v4147 = vunpack.c.l.b16 %v3628
        %v4148 = vunpack.c.h.b16 %v3628
        %v4149 = vunpack.c.l.b16 %v3629
        %v4150 = vunpack.c.l.b16 %v3630
        %v4151 = vunpack.c.h.b16 %v3630
        %v4152 = vunpack.c.l.b16 %v3631
        %v4153 = vunpack.c.h.b16 %v3631
        %v4154 = vunpack.c.l.b16 %v3632
        %v4155 = vunpack.c.h.b16 %v3632
        %v4156 = vunpack.c.l.b16 %v3633
        %v4157 = vunpack.c.h.b16 %v3633
        %v4158 = vunpack.c.l.b16 %v3634
        %v4159 = vunpack.c.l.b16 %v3635
        %v4160 = vunpack.c.h.b16 %v3635
        %v4161 = vunpack.c.l.b16 %v3636
        %v4162 = vunpack.c.h.b16 %v3636
        %v4163 = vunpack.c.l.b16 %v3637
        %v4164 = vunpack.c.h.b16 %v3637
        %v4165 = vunpack.c.l.b16 %v3638
        %v4166 = vunpack.c.h.b16 %v3638
        %v4167 = vunpack.c.l.b16 %v3639
        %v4168 = vunpack.c.l.b16 %v3640
        %v4169 = vunpack.c.h.b16 %v3640
        %v4170 = vunpack.c.l.b16 %v3641
        %v4171 = vunpack.c.h.b16 %v3641
        %v4172 = vunpack.c.l.b16 %v3642
        %v4173 = vunpack.c.h.b16 %v3642
        %v4174 = vunpack.c.l.b16 %v3643
        %v4175 = vunpack.c.h.b16 %v3643
        %v4176 = vunpack.c.l.b16 %v3644
        %v4177 = vunpack.c.l.b16 %v3645
        %v4178 = vunpack.c.h.b16 %v3645
        %v4179 = vunpack.c.l.b16 %v3646
        %v4180 = vunpack.c.h.b16 %v3646
        %v4181 = vunpack.c.l.b16 %v3647
        %v4182 = vunpack.c.h.b16 %v3647
        %v4183 = vunpack.c.l.b16 %v3648
        %v4184 = vunpack.c.h.b16 %v3648
        %v4185 = vunpack.c.l.b16 %v3649
        %v4186 = vunpack.c.l.b16 %v3650
        %v4187 = vunpack.c.h.b16 %v3650
        %v4188 = vunpack.c.l.b16 %v3651
        %v4189 = vunpack.c.h.b16 %v3651
        %v4190 = vunpack.c.l.b16 %v3652
        %v4191 = vunpack.c.h.b16 %v3652
        %v4192 = vunpack.c.l.b16 %v3653
        %v4193 = vunpack.c.h.b16 %v3653
        %v4194 = vunpack.c.l.b16 %v3654
        %v4195 = vunpack.c.l.b16 %v3655
        %v4196 = vunpack.c.h.b16 %v3655
        %v4197 = vunpack.c.l.b16 %v3656
        %v4198 = vunpack.c.h.b16 %v3656
        %v4199 = vunpack.c.l.b16 %v3657
        %v4200 = vunpack.c.h.b16 %v3657
        %v4201 = vunpack.c.l.b16 %v3658
        %v4202 = vunpack.c.h.b16 %v3658
        %v4203 = vunpack.c.l.b16 %v3659
        %v4204 = vunpack.c.l.b16 %v3660
        %v4205 = vunpack.c.h.b16 %v3660
        %v4206 = vunpack.c.l.b16 %v3661
        %v4207 = vunpack.c.h.b16 %v3661
        %v4208 = vunpack.c.l.b16 %v3662
        %v4209 = vunpack.c.h.b16 %v3662
        %v4210 = vunpack.c.l.b16 %v3663
        %v4211 = vunpack.c.h.b16 %v3663
        %v4212 = vunpack.c.l.b16 %v3664
        %v4213 = vunpack.c.l.b16 %v3665
        %v4214 = vunpack.c.h.b16 %v3665
        %v4215 = vunpack.c.l.b16 %v3666
        %v4216 = vunpack.c.h.b16 %v3666
        %v4217 = vunpack.c.l.b16 %v3667
        %v4218 = vunpack.c.h.b16 %v3667
        %v4219 = vunpack.c.l.b16 %v3668
        %v4220 = vunpack.c.h.b16 %v3668
        %v4221 = vunpack.c.l.b16 %v3669
        %v4222 = vunpack.c.l.b16 %v3670
        %v4223 = vunpack.c.h.b16 %v3670
        %v4224 = vunpack.c.l.b16 %v3671
        %v4225 = vunpack.c.h.b16 %v3671
        %v4226 = vunpack.c.l.b16 %v3672
        %v4227 = vunpack.c.h.b16 %v3672
        %v4228 = vunpack.c.l.b16 %v3673
        %v4229 = vunpack.c.h.b16 %v3673
        %v4230 = vunpack.c.l.b16 %v3674
        %v4231 = vunpack.c.l.b16 %v3675
        %v4232 = vunpack.c.h.b16 %v3675
        %v4233 = vunpack.c.l.b16 %v3676
        %v4234 = vunpack.c.h.b16 %v3676
        %v4235 = vunpack.c.l.b16 %v3677
        %v4236 = vunpack.c.h.b16 %v3677
        %v4237 = vunpack.c.l.b16 %v3678
        %v4238 = vunpack.c.h.b16 %v3678
        %v4239 = vunpack.c.l.b16 %v3679
        %v4240 = vunpack.c.l.b16 %v3680
        %v4241 = vunpack.c.h.b16 %v3680
        %v4242 = vunpack.c.l.b16 %v3681
        %v4243 = vunpack.c.h.b16 %v3681
        %v4244 = vunpack.c.l.b16 %v3682
        %v4245 = vunpack.c.h.b16 %v3682
        %v4246 = vunpack.c.l.b16 %v3683
        %v4247 = vunpack.c.h.b16 %v3683
        %v4248 = vunpack.c.l.b16 %v3684
        %v4249 = vunpack.c.l.b16 %v3685
        %v4250 = vunpack.c.h.b16 %v3685
        %v4251 = vunpack.c.l.b16 %v3686
        %v4252 = vunpack.c.h.b16 %v3686
        %v4253 = vunpack.c.l.b16 %v3687
        %v4254 = vunpack.c.h.b16 %v3687
        %v4255 = vunpack.c.l.b16 %v3688
        %v4256 = vunpack.c.h.b16 %v3688
        %v4257 = vunpack.c.l.b16 %v3689
        %v4258 = vunpack.c.l.b16 %v3690
        %v4259 = vunpack.c.h.b16 %v3690
        %v4260 = vunpack.c.l.b16 %v3691
        %v4261 = vunpack.c.h.b16 %v3691
        %v4262 = vunpack.c.l.b16 %v3692
        %v4263 = vunpack.c.h.b16 %v3692
        %v4264 = vunpack.c.l.b16 %v3693
        %v4265 = vunpack.c.h.b16 %v3693
        %v4266 = vunpack.c.l.b16 %v3694
        %v4267 = vunpack.c.l.b16 %v3695
        %v4268 = vunpack.c.h.b16 %v3695
        %v4269 = vunpack.c.l.b16 %v3696
        %v4270 = vunpack.c.h.b16 %v3696
        %v4271 = vunpack.c.l.b16 %v3697
        %v4272 = vunpack.c.h.b16 %v3697
        %v4273 = vunpack.c.l.b16 %v3698
        %v4274 = vunpack.c.h.b16 %v3698
        %v4275 = vunpack.c.l.b16 %v3699
        %v4276 = vunpack.c.l.b16 %v3700
        %v4277 = vunpack.c.h.b16 %v3700
        %v4278 = vunpack.c.l.b16 %v3701
        %v4279 = vunpack.c.h.b16 %v3701
        %v4280 = vunpack.c.l.b16 %v3702
        %v4281 = vunpack.c.h.b16 %v3702
        %v4282 = vunpack.c.l.b16 %v3703
        %v4283 = vunpack.c.h.b16 %v3703
        %v4284 = vunpack.c.l.b16 %v3704
        %v4285 = vunpack.c.l.b16 %v3705
        %v4286 = vunpack.c.h.b16 %v3705
        %v4287 = vunpack.c.l.b16 %v3706
        %v4288 = vunpack.c.h.b16 %v3706
        %v4289 = vunpack.c.l.b16 %v3707
        %v4290 = vunpack.c.h.b16 %v3707
        %v4291 = vunpack.c.l.b16 %v3708
        %v4292 = vunpack.c.h.b16 %v3708
        %v4293 = vunpack.c.l.b16 %v3709
        %v4294 = vunpack.c.l.b16 %v3710
        %v4295 = vunpack.c.h.b16 %v3710
        %v4296 = vunpack.c.l.b16 %v3711
        %v4297 = vunpack.c.h.b16 %v3711
        %v4298 = vunpack.c.l.b16 %v3712
        %v4299 = vunpack.c.h.b16 %v3712
        %v4300 = vunpack.c.l.b16 %v3713
        %v4301 = vunpack.c.h.b16 %v3713
        %v4302 = vunpack.c.l.b16 %v3714
        %v4303 = vunpack.c.l.b16 %v3715
        %v4304 = vunpack.c.h.b16 %v3715
        %v4305 = vunpack.c.l.b16 %v3716
        %v4306 = vunpack.c.h.b16 %v3716
        %v4307 = vunpack.c.l.b16 %v3717
        %v4308 = vunpack.c.h.b16 %v3717
        %v4309 = vunpack.c.l.b16 %v3718
        %v4310 = vunpack.c.h.b16 %v3718
        %v4311 = vunpack.c.l.b16 %v3719
        %v4312 = vpack.c.b16 %v4033, %v4024
        %v4313 = vpack.c.b16 %v4034, %v4025
        %v4314 = vpack.c.b16 %v4035, %v4026
        %v4315 = vpack.c.b16 %v4036, %v4027
        %v4316 = vpack.c.b16 %v4037, %v4028
        %v4317 = vpack.c.b16 %v4038, %v4029
        %v4318 = vpack.c.b16 %v4039, %v4030
        %v4319 = vpack.c.b16 %v4040, %v4031
        %v4320 = vpack.c.b16 %v4041, %v4032
        %v4321 = vpack.c.b16 %v4051, %v4042
        %v4322 = vpack.c.b16 %v4052, %v4043
        %v4323 = vpack.c.b16 %v4053, %v4044
        %v4324 = vpack.c.b16 %v4054, %v4045
        %v4325 = vpack.c.b16 %v4055, %v4046
        %v4326 = vpack.c.b16 %v4056, %v4047
        %v4327 = vpack.c.b16 %v4057, %v4048
        %v4328 = vpack.c.b16 %v4058, %v4049
        %v4329 = vpack.c.b16 %v4059, %v4050
        %v4330 = vpack.c.b16 %v4069, %v4060
        %v4331 = vpack.c.b16 %v4070, %v4061
        %v4332 = vpack.c.b16 %v4071, %v4062
        %v4333 = vpack.c.b16 %v4072, %v4063
        %v4334 = vpack.c.b16 %v4073, %v4064
        %v4335 = vpack.c.b16 %v4074, %v4065
        %v4336 = vpack.c.b16 %v4075, %v4066
        %v4337 = vpack.c.b16 %v4076, %v4067
        %v4338 = vpack.c.b16 %v4077, %v4068
        %v4339 = vpack.c.b16 %v4087, %v4078
        %v4340 = vpack.c.b16 %v4088, %v4079
        %v4341 = vpack.c.b16 %v4089, %v4080
        %v4342 = vpack.c.b16 %v4090, %v4081
        %v4343 = vpack.c.b16 %v4091, %v4082
        %v4344 = vpack.c.b16 %v4092, %v4083
        %v4345 = vpack.c.b16 %v4093, %v4084
        %v4346 = vpack.c.b16 %v4094, %v4085
        %v4347 = vpack.c.b16 %v4095, %v4086
        %v4348 = vpack.c.b16 %v4105, %v4096
        %v4349 = vpack.c.b16 %v4106, %v4097
        %v4350 = vpack.c.b16 %v4107, %v4098
        %v4351 = vpack.c.b16 %v4108, %v4099
        %v4352 = vpack.c.b16 %v4109, %v4100
        %v4353 = vpack.c.b16 %v4110, %v4101
        %v4354 = vpack.c.b16 %v4111, %v4102
        %v4355 = vpack.c.b16 %v4112, %v4103
        %v4356 = vpack.c.b16 %v4113, %v4104
        %v4357 = vpack.c.b16 %v4123, %v4114
        %v4358 = vpack.c.b16 %v4124, %v4115
        %v4359 = vpack.c.b16 %v4125, %v4116
        %v4360 = vpack.c.b16 %v4126, %v4117
        %v4361 = vpack.c.b16 %v4127, %v4118
        %v4362 = vpack.c.b16 %v4128, %v4119
        %v4363 = vpack.c.b16 %v4129, %v4120
        %v4364 = vpack.c.b16 %v4130, %v4121
        %v4365 = vpack.c.b16 %v4131, %v4122
        %v4366 = vpack.c.b16 %v4141, %v4132
        %v4367 = vpack.c.b16 %v4142, %v4133
        %v4368 = vpack.c.b16 %v4143, %v4134
        %v4369 = vpack.c.b16 %v4144, %v4135
        %v4370 = vpack.c.b16 %v4145, %v4136
        %v4371 = vpack.c.b16 %v4146, %v4137
        %v4372 = vpack.c.b16 %v4147, %v4138
        %v4373 = vpack.c.b16 %v4148, %v4139
        %v4374 = vpack.c.b16 %v4149, %v4140
        %v4375 = vpack.c.b16 %v4159, %v4150
        %v4376 = vpack.c.b16 %v4160, %v4151
        %v4377 = vpack.c.b16 %v4161, %v4152
        %v4378 = vpack.c.b16 %v4162, %v4153
        %v4379 = vpack.c.b16 %v4163, %v4154
        %v4380 = vpack.c.b16 %v4164, %v4155
        %v4381 = vpack.c.b16 %v4165, %v4156
        %v4382 = vpack.c.b16 %v4166, %v4157
        %v4383 = vpack.c.b16 %v4167, %v4158
        %v4384 = vpack.c.b16 %v4177, %v4168
        %v4385 = vpack.c.b16 %v4178, %v4169
        %v4386 = vpack.c.b16 %v4179, %v4170
        %v4387 = vpack.c.b16 %v4180, %v4171
        %v4388 = vpack.c.b16 %v4181, %v4172
        %v4389 = vpack.c.b16 %v4182, %v4173
        %v4390 = vpack.c.b16 %v4183, %v4174
        %v4391 = vpack.c.b16 %v4184, %v4175
        %v4392 = vpack.c.b16 %v4185, %v4176
        %v4393 = vpack.c.b16 %v4195, %v4186
        %v4394 = vpack.c.b16 %v4196, %v4187
        %v4395 = vpack.c.b16 %v4197, %v4188
        %v4396 = vpack.c.b16 %v4198, %v4189
        %v4397 = vpack.c.b16 %v4199, %v4190
        %v4398 = vpack.c.b16 %v4200, %v4191
        %v4399 = vpack.c.b16 %v4201, %v4192
        %v4400 = vpack.c.b16 %v4202, %v4193
        %v4401 = vpack.c.b16 %v4203, %v4194
        %v4402 = vpack.c.b16 %v4213, %v4204
        %v4403 = vpack.c.b16 %v4214, %v4205
        %v4404 = vpack.c.b16 %v4215, %v4206
        %v4405 = vpack.c.b16 %v4216, %v4207
        %v4406 = vpack.c.b16 %v4217, %v4208
        %v4407 = vpack.c.b16 %v4218, %v4209
        %v4408 = vpack.c.b16 %v4219, %v4210
        %v4409 = vpack.c.b16 %v4220, %v4211
        %v4410 = vpack.c.b16 %v4221, %v4212
        %v4411 = vpack.c.b16 %v4231, %v4222
        %v4412 = vpack.c.b16 %v4232, %v4223
        %v4413 = vpack.c.b16 %v4233, %v4224
        %v4414 = vpack.c.b16 %v4234, %v4225
        %v4415 = vpack.c.b16 %v4235, %v4226
        %v4416 = vpack.c.b16 %v4236, %v4227
        %v4417 = vpack.c.b16 %v4237, %v4228
        %v4418 = vpack.c.b16 %v4238, %v4229
        %v4419 = vpack.c.b16 %v4239, %v4230
        %v4420 = vpack.c.b16 %v4249, %v4240
        %v4421 = vpack.c.b16 %v4250, %v4241
        %v4422 = vpack.c.b16 %v4251, %v4242
        %v4423 = vpack.c.b16 %v4252, %v4243
        %v4424 = vpack.c.b16 %v4253, %v4244
        %v4425 = vpack.c.b16 %v4254, %v4245
        %v4426 = vpack.c.b16 %v4255, %v4246
        %v4427 = vpack.c.b16 %v4256, %v4247
        %v4428 = vpack.c.b16 %v4257, %v4248
        %v4429 = vpack.c.b16 %v4267, %v4258
        %v4430 = vpack.c.b16 %v4268, %v4259
        %v4431 = vpack.c.b16 %v4269, %v4260
        %v4432 = vpack.c.b16 %v4270, %v4261
        %v4433 = vpack.c.b16 %v4271, %v4262
        %v4434 = vpack.c.b16 %v4272, %v4263
        %v4435 = vpack.c.b16 %v4273, %v4264
        %v4436 = vpack.c.b16 %v4274, %v4265
        %v4437 = vpack.c.b16 %v4275, %v4266
        %v4438 = vpack.c.b16 %v4285, %v4276
        %v4439 = vpack.c.b16 %v4286, %v4277
        %v4440 = vpack.c.b16 %v4287, %v4278
        %v4441 = vpack.c.b16 %v4288, %v4279
        %v4442 = vpack.c.b16 %v4289, %v4280
        %v4443 = vpack.c.b16 %v4290, %v4281
        %v4444 = vpack.c.b16 %v4291, %v4282
        %v4445 = vpack.c.b16 %v4292, %v4283
        %v4446 = vpack.c.b16 %v4293, %v4284
        %v4447 = vpack.c.b16 %v4303, %v4294
        %v4448 = vpack.c.b16 %v4304, %v4295
        %v4449 = vpack.c.b16 %v4305, %v4296
        %v4450 = vpack.c.b16 %v4306, %v4297
        %v4451 = vpack.c.b16 %v4307, %v4298
        %v4452 = vpack.c.b16 %v4308, %v4299
        %v4453 = vpack.c.b16 %v4309, %v4300
        %v4454 = vpack.c.b16 %v4310, %v4301
        %v4455 = vpack.c.b16 %v4311, %v4302
        %v4744 = vunpack.c.l.b16 %v3720
        %v4745 = vunpack.c.l.b16 %v3721
        %v4746 = vunpack.c.l.b16 %v3722
        %v4747 = vunpack.c.l.b16 %v3723
        %v4748 = vunpack.c.l.b16 %v3724
        %v4749 = vunpack.c.l.b16 %v3725
        %v4750 = vunpack.c.l.b16 %v3726
        %v4751 = vunpack.c.l.b16 %v3727
        %v4752 = vunpack.c.l.b16 %v3728
        %v4753 = vunpack.c.l.b16 %v3729
        %v4754 = vunpack.c.l.b16 %v3730
        %v4755 = vunpack.c.l.b16 %v3731
        %v4756 = vunpack.c.l.b16 %v3732
        %v4757 = vunpack.c.l.b16 %v3733
        %v4758 = vunpack.c.l.b16 %v3734
        %v4759 = vunpack.c.l.b16 %v3735
        %v4760 = vunpack.c.l.b16 %v3736
        %v4761 = vunpack.c.l.b16 %v3737
        %v4762 = vunpack.c.l.b16 %v3738
        %v4763 = vunpack.c.l.b16 %v3739
        %v4764 = vunpack.c.l.b16 %v3740
        %v4765 = vunpack.c.l.b16 %v3741
        %v4766 = vunpack.c.l.b16 %v3742
        %v4767 = vunpack.c.l.b16 %v3743
        %v4768 = vunpack.c.l.b16 %v3744
        %v4769 = vunpack.c.l.b16 %v3745
        %v4770 = vunpack.c.l.b16 %v3746
        %v4771 = vunpack.c.l.b16 %v3747
        %v4772 = vunpack.c.l.b16 %v3748
        %v4773 = vunpack.c.l.b16 %v3749
        %v4774 = vunpack.c.l.b16 %v3750
        %v4775 = vunpack.c.l.b16 %v3751
        %v4776 = vunpack.c.l.b16 %v3752
        %v4777 = vunpack.c.l.b16 %v3753
        %v4778 = vunpack.c.l.b16 %v3754
        %v4779 = vunpack.c.l.b16 %v3755
        %v4780 = vunpack.c.l.b16 %v3756
        %v4781 = vunpack.c.l.b16 %v3757
        %v4782 = vunpack.c.l.b16 %v3758
        %v4783 = vunpack.c.l.b16 %v3759
        %v4784 = vunpack.c.l.b16 %v3760
        %v4785 = vunpack.c.l.b16 %v3761
        %v4786 = vunpack.c.l.b16 %v3762
        %v4787 = vunpack.c.l.b16 %v3763
        %v4788 = vunpack.c.l.b16 %v3764
        %v4789 = vunpack.c.l.b16 %v3765
        %v4790 = vunpack.c.l.b16 %v3766
        %v4791 = vunpack.c.l.b16 %v3767
        %v4792 = vunpack.c.l.b16 %v3768
        %v4793 = vunpack.c.l.b16 %v3769
        %v4794 = vunpack.c.l.b16 %v3770
        %v4795 = vunpack.c.l.b16 %v3771
        %v4796 = vunpack.c.l.b16 %v3772
        %v4797 = vunpack.c.l.b16 %v3773
        %v4798 = vunpack.c.l.b16 %v3774
        %v4799 = vunpack.c.l.b16 %v3775
        %v4800 = vunpack.c.l.b16 %v3776
        %v4801 = vunpack.c.l.b16 %v3777
        %v4802 = vunpack.c.l.b16 %v3778
        %v4803 = vunpack.c.l.b16 %v3779
        %v4804 = vunpack.c.l.b16 %v3780
        %v4805 = vunpack.c.l.b16 %v3781
        %v4806 = vunpack.c.l.b16 %v3782
        %v4807 = vunpack.c.l.b16 %v3783
        %v4808 = vunpack.c.l.b16 %v3784
        %v4809 = vunpack.c.l.b16 %v3785
        %v4810 = vunpack.c.l.b16 %v3786
        %v4811 = vunpack.c.l.b16 %v3787
        %v4812 = vunpack.c.l.b16 %v3788
        %v4813 = vunpack.c.l.b16 %v3789
        %v4814 = vunpack.c.l.b16 %v3790
        %v4815 = vunpack.c.l.b16 %v3791
        %v4816 = vunpack.c.l.b16 %v3792
        %v4817 = vunpack.c.l.b16 %v3793
        %v4818 = vunpack.c.l.b16 %v3794
        %v4819 = vunpack.c.l.b16 %v3795
        %v4820 = vunpack.c.l.b16 %v3796
        %v4821 = vunpack.c.l.b16 %v3797
        %v4822 = vunpack.c.l.b16 %v3798
        %v4823 = vunpack.c.l.b16 %v3799
        %v4824 = vunpack.c.l.b16 %v3800
        %v4825 = vunpack.c.l.b16 %v3801
        %v4826 = vunpack.c.l.b16 %v3802
        %v4827 = vunpack.c.l.b16 %v3803
        %v4828 = vunpack.c.l.b16 %v3804
        %v4829 = vunpack.c.l.b16 %v3805
        %v4830 = vunpack.c.l.b16 %v3806
        %v4831 = vunpack.c.l.b16 %v3807
        %v4832 = vunpack.c.l.b16 %v3808
        %v4833 = vunpack.c.l.b16 %v3809
        %v4834 = vunpack.c.l.b16 %v3810
        %v4835 = vunpack.c.l.b16 %v3811
        %v4836 = vunpack.c.l.b16 %v3812
        %v4837 = vunpack.c.l.b16 %v3813
        %v4838 = vunpack.c.l.b16 %v3814
        %v4839 = vunpack.c.l.b16 %v3815
        %v4840 = vunpack.c.l.b16 %v3816
        %v4841 = vunpack.c.l.b16 %v3817
        %v4842 = vunpack.c.l.b16 %v3818
        %v4843 = vunpack.c.l.b16 %v3819
        %v4844 = vunpack.c.l.b16 %v3820
        %v4845 = vunpack.c.l.b16 %v3821
        %v4846 = vunpack.c.l.b16 %v3822
        %v4847 = vunpack.c.l.b16 %v3823
        %v4848 = vunpack.c.l.b16 %v3824
        %v4849 = vunpack.c.l.b16 %v3825
        %v4850 = vunpack.c.l.b16 %v3826
        %v4851 = vunpack.c.l.b16 %v3827
        %v4852 = vunpack.c.l.b16 %v3828
        %v4853 = vunpack.c.l.b16 %v3829
        %v4854 = vunpack.c.l.b16 %v3830
        %v4855 = vunpack.c.l.b16 %v3831
        %v4856 = vunpack.c.l.b16 %v3832
        %v4857 = vunpack.c.l.b16 %v3833
        %v4858 = vunpack.c.l.b16 %v3834
        %v4859 = vunpack.c.l.b16 %v3835
        %v4860 = vunpack.c.l.b16 %v3836
        %v4861 = vunpack.c.l.b16 %v3837
        %v4862 = vunpack.c.l.b16 %v3838
        %v4863 = vunpack.c.l.b16 %v3839
        %v4864 = vunpack.c.l.b16 %v3840
        %v4865 = vunpack.c.l.b16 %v3841
        %v4866 = vunpack.c.l.b16 %v3842
        %v4867 = vunpack.c.l.b16 %v3843
        %v4868 = vunpack.c.l.b16 %v3844
        %v4869 = vunpack.c.l.b16 %v3845
        %v4870 = vunpack.c.l.b16 %v3846
        %v4871 = vunpack.c.l.b16 %v3847
        %v4872 = vunpack.c.l.b16 %v3848
        %v4873 = vunpack.c.l.b16 %v3849
        %v4874 = vunpack.c.l.b16 %v3850
        %v4875 = vunpack.c.l.b16 %v3851
        %v4876 = vunpack.c.l.b16 %v3852
        %v4877 = vunpack.c.l.b16 %v3853
        %v4878 = vunpack.c.l.b16 %v3854
        %v4879 = vunpack.c.l.b16 %v3855
        %v4880 = vunpack.c.l.b16 %v3856
        %v4881 = vunpack.c.l.b16 %v3857
        %v4882 = vunpack.c.l.b16 %v3858
        %v4883 = vunpack.c.l.b16 %v3859
        %v4884 = vunpack.c.l.b16 %v3860
        %v4885 = vunpack.c.l.b16 %v3861
        %v4886 = vunpack.c.l.b16 %v3862
        %v4887 = vunpack.c.l.b16 %v3863
        %v4888 = vpack.c.b16 %v4745, %v4744
        %v4889 = vpack.c.b16 %v4747, %v4746
        %v4890 = vpack.c.b16 %v4749, %v4748
        %v4891 = vpack.c.b16 %v4751, %v4750
        %v4892 = vpack.c.b16 %v4753, %v4752
        %v4893 = vpack.c.b16 %v4755, %v4754
        %v4894 = vpack.c.b16 %v4757, %v4756
        %v4895 = vpack.c.b16 %v4759, %v4758
        %v4896 = vpack.c.b16 %v4761, %v4760
        %v4897 = vpack.c.b16 %v4763, %v4762
        %v4898 = vpack.c.b16 %v4765, %v4764
        %v4899 = vpack.c.b16 %v4767, %v4766
        %v4900 = vpack.c.b16 %v4769, %v4768
        %v4901 = vpack.c.b16 %v4771, %v4770
        %v4902 = vpack.c.b16 %v4773, %v4772
        %v4903 = vpack.c.b16 %v4775, %v4774
        %v4904 = vpack.c.b16 %v4777, %v4776
        %v4905 = vpack.c.b16 %v4779, %v4778
        %v4906 = vpack.c.b16 %v4781, %v4780
        %v4907 = vpack.c.b16 %v4783, %v4782
        %v4908 = vpack.c.b16 %v4785, %v4784
        %v4909 = vpack.c.b16 %v4787, %v4786
        %v4910 = vpack.c.b16 %v4789, %v4788
        %v4911 = vpack.c.b16 %v4791, %v4790
        %v4912 = vpack.c.b16 %v4793, %v4792
        %v4913 = vpack.c.b16 %v4795, %v4794
        %v4914 = vpack.c.b16 %v4797, %v4796
        %v4915 = vpack.c.b16 %v4799, %v4798
        %v4916 = vpack.c.b16 %v4801, %v4800
        %v4917 = vpack.c.b16 %v4803, %v4802
        %v4918 = vpack.c.b16 %v4805, %v4804
        %v4919 = vpack.c.b16 %v4807, %v4806
        %v4920 = vpack.c.b16 %v4809, %v4808
        %v4921 = vpack.c.b16 %v4811, %v4810
        %v4922 = vpack.c.b16 %v4813, %v4812
        %v4923 = vpack.c.b16 %v4815, %v4814
        %v4924 = vpack.c.b16 %v4817, %v4816
        %v4925 = vpack.c.b16 %v4819, %v4818
        %v4926 = vpack.c.b16 %v4821, %v4820
        %v4927 = vpack.c.b16 %v4823, %v4822
        %v4928 = vpack.c.b16 %v4825, %v4824
        %v4929 = vpack.c.b16 %v4827, %v4826
        %v4930 = vpack.c.b16 %v4829, %v4828
        %v4931 = vpack.c.b16 %v4831, %v4830
        %v4932 = vpack.c.b16 %v4833, %v4832
        %v4933 = vpack.c.b16 %v4835, %v4834
        %v4934 = vpack.c.b16 %v4837, %v4836
        %v4935 = vpack.c.b16 %v4839, %v4838
        %v4936 = vpack.c.b16 %v4841, %v4840
        %v4937 = vpack.c.b16 %v4843, %v4842
        %v4938 = vpack.c.b16 %v4845, %v4844
        %v4939 = vpack.c.b16 %v4847, %v4846
        %v4940 = vpack.c.b16 %v4849, %v4848
        %v4941 = vpack.c.b16 %v4851, %v4850
        %v4942 = vpack.c.b16 %v4853, %v4852
        %v4943 = vpack.c.b16 %v4855, %v4854
        %v4944 = vpack.c.b16 %v4857, %v4856
        %v4945 = vpack.c.b16 %v4859, %v4858
        %v4946 = vpack.c.b16 %v4861, %v4860
        %v4947 = vpack.c.b16 %v4863, %v4862
        %v4948 = vpack.c.b16 %v4865, %v4864
        %v4949 = vpack.c.b16 %v4867, %v4866
        %v4950 = vpack.c.b16 %v4869, %v4868
        %v4951 = vpack.c.b16 %v4871, %v4870
        %v4952 = vpack.c.b16 %v4873, %v4872
        %v4953 = vpack.c.b16 %v4875, %v4874
        %v4954 = vpack.c.b16 %v4877, %v4876
        %v4955 = vpack.c.b16 %v4879, %v4878
        %v4956 = vpack.c.b16 %v4881, %v4880
        %v4957 = vpack.c.b16 %v4883, %v4882
        %v4958 = vpack.c.b16 %v4885, %v4884
        %v4959 = vpack.c.b16 %v4887, %v4886
        %5032 = vmatprep.subr.bf16.mxu0 0
        %5033 = vmatpush1.bf16.msra.mxu0 %v4895
        %5034 = vmatprep.subr.bf16.mxu0 0
        %5035 = vmatpush1.bf16.msra.mxu0 %v4894
        %5036 = vmatprep.subr.bf16.mxu0 0
        %5037 = vmatpush1.bf16.msra.mxu0 %v4893
        %5038 = vmatprep.subr.bf16.mxu0 0
        %5039 = vmatpush1.bf16.msra.mxu0 %v4892
        %5040 = vmatprep.subr.bf16.mxu0 0
        %5041 = vmatpush1.bf16.msra.mxu0 %v4891
        %5042 = vmatprep.subr.bf16.mxu0 0
        %5043 = vmatpush1.bf16.msra.mxu0 %v4890
        %5044 = vmatprep.subr.bf16.mxu0 0
        %5045 = vmatpush1.bf16.msra.mxu0 %v4889
        %5046 = vmatprep.subr.bf16.mxu0 0
        %5047 = vmatpush1.bf16.msra.mxu0 %v4888
        %5048 = vmatprep.subr.bf16.mxu0 0
        %5049 = vmatpush2.bf16.msra.mxu0 %v4903
        %5050 = vmatprep.subr.bf16.mxu0 0
        %5051 = vmatpush2.bf16.msra.mxu0 %v4902
        %5052 = vmatprep.subr.bf16.mxu0 0
        %5053 = vmatpush2.bf16.msra.mxu0 %v4901
        %5054 = vmatprep.subr.bf16.mxu0 0
        %5055 = vmatpush2.bf16.msra.mxu0 %v4900
        %5056 = vmatprep.subr.bf16.mxu0 0
        %5057 = vmatpush2.bf16.msra.mxu0 %v4899
        %5058 = vmatprep.subr.bf16.mxu0 0
        %5059 = vmatpush2.bf16.msra.mxu0 %v4898
        %5060 = vmatprep.subr.bf16.mxu0 0
        %5061 = vmatpush2.bf16.msra.mxu0 %v4897
        %5062 = vmatprep.subr.bf16.mxu0 0
        %5063 = vmatpush2.bf16.msra.mxu0 %v4896
        %5064 = vmatprep.mubr.bf16.mxu0 %v4313
        %5065 = vmatmul.mubr.bf16.gmra.mxu0 %v4312
        %v5066 = vpop.f32.mrf.mxu0
        %v5067 = vadd.f32 0.0, %v5066
        %v5068 = vpop.f32.mrf.mxu0
        %v5069 = vpop.f32.mrf.mxu0
        %v5070 = vadd.f32 0.0, %v5069
        %v5071 = vpop.f32.mrf.mxu0
        %5072 = vmatprep.mubr.bf16.mxu0 %v4322
        %5073 = vmatmul.mubr.bf16.gmra.mxu0 %v4321
        %v5074 = vpop.f32.mrf.mxu0
        %v5075 = vadd.f32 0.0, %v5074
        %v5076 = vpop.f32.mrf.mxu0
        %v5077 = vpop.f32.mrf.mxu0
        %v5078 = vadd.f32 0.0, %v5077
        %v5079 = vpop.f32.mrf.mxu0
        %5080 = vmatprep.mubr.bf16.mxu0 %v4331
        %5081 = vmatmul.mubr.bf16.gmra.mxu0 %v4330
        %v5082 = vpop.f32.mrf.mxu0
        %v5083 = vadd.f32 0.0, %v5082
        %v5084 = vpop.f32.mrf.mxu0
        %v5085 = vpop.f32.mrf.mxu0
        %v5086 = vadd.f32 0.0, %v5085
        %v5087 = vpop.f32.mrf.mxu0
        %5088 = vmatprep.mubr.bf16.mxu0 %v4340
        %5089 = vmatmul.mubr.bf16.gmra.mxu0 %v4339
        %v5090 = vpop.f32.mrf.mxu0
        %v5091 = vadd.f32 0.0, %v5090
        %v5092 = vpop.f32.mrf.mxu0
        %v5093 = vpop.f32.mrf.mxu0
        %v5094 = vadd.f32 0.0, %v5093
        %v5095 = vpop.f32.mrf.mxu0
        %5096 = vmatprep.mubr.bf16.mxu0 %v4349
        %5097 = vmatmul.mubr.bf16.gmra.mxu0 %v4348
        %v5098 = vpop.f32.mrf.mxu0
        %v5099 = vadd.f32 0.0, %v5098
        %v5100 = vpop.f32.mrf.mxu0
        %v5101 = vpop.f32.mrf.mxu0
        %v5102 = vadd.f32 0.0, %v5101
        %v5103 = vpop.f32.mrf.mxu0
        %5104 = vmatprep.mubr.bf16.mxu0 %v4358
        %5105 = vmatmul.mubr.bf16.gmra.mxu0 %v4357
        %v5106 = vpop.f32.mrf.mxu0
        %v5107 = vadd.f32 0.0, %v5106
        %v5108 = vpop.f32.mrf.mxu0
        %v5109 = vpop.f32.mrf.mxu0
        %v5110 = vadd.f32 0.0, %v5109
        %v5111 = vpop.f32.mrf.mxu0
        %5112 = vmatprep.mubr.bf16.mxu0 %v4367
        %5113 = vmatmul.mubr.bf16.gmra.mxu0 %v4366
        %v5114 = vpop.f32.mrf.mxu0
        %v5115 = vadd.f32 0.0, %v5114
        %v5116 = vpop.f32.mrf.mxu0
        %v5117 = vpop.f32.mrf.mxu0
        %v5118 = vadd.f32 0.0, %v5117
        %v5119 = vpop.f32.mrf.mxu0
        %5120 = vmatprep.mubr.bf16.mxu0 %v4376
        %5121 = vmatmul.mubr.bf16.gmra.mxu0 %v4375
        %v5122 = vpop.f32.mrf.mxu0
        %v5123 = vadd.f32 0.0, %v5122
        %v5124 = vpop.f32.mrf.mxu0
        %v5125 = vpop.f32.mrf.mxu0
        %v5126 = vadd.f32 0.0, %v5125
        %v5127 = vpop.f32.mrf.mxu0
        %5128 = vmatprep.mubr.bf16.mxu0 %v4385
        %5129 = vmatmul.mubr.bf16.gmra.mxu0 %v4384
        %v5130 = vpop.f32.mrf.mxu0
        %v5131 = vadd.f32 0.0, %v5130
        %v5132 = vpop.f32.mrf.mxu0
        %v5133 = vpop.f32.mrf.mxu0
        %v5134 = vadd.f32 0.0, %v5133
        %v5135 = vpop.f32.mrf.mxu0
        %5136 = vmatprep.mubr.bf16.mxu0 %v4394
        %5137 = vmatmul.mubr.bf16.gmra.mxu0 %v4393
        %v5138 = vpop.f32.mrf.mxu0
        %v5139 = vadd.f32 0.0, %v5138
        %v5140 = vpop.f32.mrf.mxu0
        %v5141 = vpop.f32.mrf.mxu0
        %v5142 = vadd.f32 0.0, %v5141
        %v5143 = vpop.f32.mrf.mxu0
        %5144 = vmatprep.mubr.bf16.mxu0 %v4403
        %5145 = vmatmul.mubr.bf16.gmra.mxu0 %v4402
        %v5146 = vpop.f32.mrf.mxu0
        %v5147 = vadd.f32 0.0, %v5146
        %v5148 = vpop.f32.mrf.mxu0
        %v5149 = vpop.f32.mrf.mxu0
        %v5150 = vadd.f32 0.0, %v5149
        %v5151 = vpop.f32.mrf.mxu0
        %5152 = vmatprep.mubr.bf16.mxu0 %v4412
        %5153 = vmatmul.mubr.bf16.gmra.mxu0 %v4411
        %v5154 = vpop.f32.mrf.mxu0
        %v5155 = vadd.f32 0.0, %v5154
        %v5156 = vpop.f32.mrf.mxu0
        %v5157 = vpop.f32.mrf.mxu0
        %v5158 = vadd.f32 0.0, %v5157
        %v5159 = vpop.f32.mrf.mxu0
        %5160 = vmatprep.mubr.bf16.mxu0 %v4421
        %5161 = vmatmul.mubr.bf16.gmra.mxu0 %v4420
        %v5162 = vpop.f32.mrf.mxu0
        %v5163 = vadd.f32 0.0, %v5162
        %v5164 = vpop.f32.mrf.mxu0
        %v5165 = vpop.f32.mrf.mxu0
        %v5166 = vadd.f32 0.0, %v5165
        %v5167 = vpop.f32.mrf.mxu0
        %5168 = vmatprep.mubr.bf16.mxu0 %v4430
        %5169 = vmatmul.mubr.bf16.gmra.mxu0 %v4429
        %v5170 = vpop.f32.mrf.mxu0
        %v5171 = vadd.f32 0.0, %v5170
        %v5172 = vpop.f32.mrf.mxu0
        %v5173 = vpop.f32.mrf.mxu0
        %v5174 = vadd.f32 0.0, %v5173
        %v5175 = vpop.f32.mrf.mxu0
        %5176 = vmatprep.mubr.bf16.mxu0 %v4439
        %5177 = vmatmul.mubr.bf16.gmra.mxu0 %v4438
        %v5178 = vpop.f32.mrf.mxu0
        %v5179 = vadd.f32 0.0, %v5178
        %v5180 = vpop.f32.mrf.mxu0
        %v5181 = vpop.f32.mrf.mxu0
        %v5182 = vadd.f32 0.0, %v5181
        %v5183 = vpop.f32.mrf.mxu0
        %5184 = vmatprep.mubr.bf16.mxu0 %v4448
        %5185 = vmatmul.mubr.bf16.gmra.mxu0 %v4447
        %v5186 = vpop.f32.mrf.mxu0
        %v5187 = vadd.f32 0.0, %v5186
        %v5188 = vpop.f32.mrf.mxu0
        %v5189 = vpop.f32.mrf.mxu0
        %v5190 = vadd.f32 0.0, %v5189
        %v5191 = vpop.f32.mrf.mxu0
        %5192 = vdwg.mxu0
        %5193 = vmatprep.subr.bf16.mxu0 0
        %5194 = vmatpush1.bf16.msra.mxu0 %v4911
        %5195 = vmatprep.subr.bf16.mxu0 0
        %5196 = vmatpush1.bf16.msra.mxu0 %v4910
        %5197 = vmatprep.subr.bf16.mxu0 0
        %5198 = vmatpush1.bf16.msra.mxu0 %v4909
        %5199 = vmatprep.subr.bf16.mxu0 0
        %5200 = vmatpush1.bf16.msra.mxu0 %v4908
        %5201 = vmatprep.subr.bf16.mxu0 0
        %5202 = vmatpush1.bf16.msra.mxu0 %v4907
        %5203 = vmatprep.subr.bf16.mxu0 0
        %5204 = vmatpush1.bf16.msra.mxu0 %v4906
        %5205 = vmatprep.subr.bf16.mxu0 0
        %5206 = vmatpush1.bf16.msra.mxu0 %v4905
        %5207 = vmatprep.subr.bf16.mxu0 0
        %5208 = vmatpush1.bf16.msra.mxu0 %v4904
        %5209 = vmatprep.subr.bf16.mxu0 0
        %5210 = vmatpush2.bf16.msra.mxu0 %v4919
        %5211 = vmatprep.subr.bf16.mxu0 0
        %5212 = vmatpush2.bf16.msra.mxu0 %v4918
        %5213 = vmatprep.subr.bf16.mxu0 0
        %5214 = vmatpush2.bf16.msra.mxu0 %v4917
        %5215 = vmatprep.subr.bf16.mxu0 0
        %5216 = vmatpush2.bf16.msra.mxu0 %v4916
        %5217 = vmatprep.subr.bf16.mxu0 0
        %5218 = vmatpush2.bf16.msra.mxu0 %v4915
        %5219 = vmatprep.subr.bf16.mxu0 0
        %5220 = vmatpush2.bf16.msra.mxu0 %v4914
        %5221 = vmatprep.subr.bf16.mxu0 0
        %5222 = vmatpush2.bf16.msra.mxu0 %v4913
        %5223 = vmatprep.subr.bf16.mxu0 0
        %5224 = vmatpush2.bf16.msra.mxu0 %v4912
        %5225 = vmatprep.mubr.bf16.mxu0 %v4315
        %5226 = vmatmul.mubr.bf16.gmra.mxu0 %v4314
        %v5227 = vpop.f32.mrf.mxu0
        %v5228 = vadd.f32 %v5067, %v5227
        %v5229 = vpop.f32.mrf.mxu0
        %v5230 = vpop.f32.mrf.mxu0
        %v5231 = vadd.f32 %v5070, %v5230
        %v5232 = vpop.f32.mrf.mxu0
        %5233 = vmatprep.mubr.bf16.mxu0 %v4324
        %5234 = vmatmul.mubr.bf16.gmra.mxu0 %v4323
        %v5235 = vpop.f32.mrf.mxu0
        %v5236 = vadd.f32 %v5075, %v5235
        %v5237 = vpop.f32.mrf.mxu0
        %v5238 = vpop.f32.mrf.mxu0
        %v5239 = vadd.f32 %v5078, %v5238
        %v5240 = vpop.f32.mrf.mxu0
        %5241 = vmatprep.mubr.bf16.mxu0 %v4333
        %5242 = vmatmul.mubr.bf16.gmra.mxu0 %v4332
        %v5243 = vpop.f32.mrf.mxu0
        %v5244 = vadd.f32 %v5083, %v5243
        %v5245 = vpop.f32.mrf.mxu0
        %v5246 = vpop.f32.mrf.mxu0
        %v5247 = vadd.f32 %v5086, %v5246
        %v5248 = vpop.f32.mrf.mxu0
        %5249 = vmatprep.mubr.bf16.mxu0 %v4342
        %5250 = vmatmul.mubr.bf16.gmra.mxu0 %v4341
        %v5251 = vpop.f32.mrf.mxu0
        %v5252 = vadd.f32 %v5091, %v5251
        %v5253 = vpop.f32.mrf.mxu0
        %v5254 = vpop.f32.mrf.mxu0
        %v5255 = vadd.f32 %v5094, %v5254
        %v5256 = vpop.f32.mrf.mxu0
        %5257 = vmatprep.mubr.bf16.mxu0 %v4351
        %5258 = vmatmul.mubr.bf16.gmra.mxu0 %v4350
        %v5259 = vpop.f32.mrf.mxu0
        %v5260 = vadd.f32 %v5099, %v5259
        %v5261 = vpop.f32.mrf.mxu0
        %v5262 = vpop.f32.mrf.mxu0
        %v5263 = vadd.f32 %v5102, %v5262
        %v5264 = vpop.f32.mrf.mxu0
        %5265 = vmatprep.mubr.bf16.mxu0 %v4360
        %5266 = vmatmul.mubr.bf16.gmra.mxu0 %v4359
        %v5267 = vpop.f32.mrf.mxu0
        %v5268 = vadd.f32 %v5107, %v5267
        %v5269 = vpop.f32.mrf.mxu0
        %v5270 = vpop.f32.mrf.mxu0
        %v5271 = vadd.f32 %v5110, %v5270
        %v5272 = vpop.f32.mrf.mxu0
        %5273 = vmatprep.mubr.bf16.mxu0 %v4369
        %5274 = vmatmul.mubr.bf16.gmra.mxu0 %v4368
        %v5275 = vpop.f32.mrf.mxu0
        %v5276 = vadd.f32 %v5115, %v5275
        %v5277 = vpop.f32.mrf.mxu0
        %v5278 = vpop.f32.mrf.mxu0
        %v5279 = vadd.f32 %v5118, %v5278
        %v5280 = vpop.f32.mrf.mxu0
        %5281 = vmatprep.mubr.bf16.mxu0 %v4378
        %5282 = vmatmul.mubr.bf16.gmra.mxu0 %v4377
        %v5283 = vpop.f32.mrf.mxu0
        %v5284 = vadd.f32 %v5123, %v5283
        %v5285 = vpop.f32.mrf.mxu0
        %v5286 = vpop.f32.mrf.mxu0
        %v5287 = vadd.f32 %v5126, %v5286
        %v5288 = vpop.f32.mrf.mxu0
        %5289 = vmatprep.mubr.bf16.mxu0 %v4387
        %5290 = vmatmul.mubr.bf16.gmra.mxu0 %v4386
        %v5291 = vpop.f32.mrf.mxu0
        %v5292 = vadd.f32 %v5131, %v5291
        %v5293 = vpop.f32.mrf.mxu0
        %v5294 = vpop.f32.mrf.mxu0
        %v5295 = vadd.f32 %v5134, %v5294
        %v5296 = vpop.f32.mrf.mxu0
        %5297 = vmatprep.mubr.bf16.mxu0 %v4396
        %5298 = vmatmul.mubr.bf16.gmra.mxu0 %v4395
        %v5299 = vpop.f32.mrf.mxu0
        %v5300 = vadd.f32 %v5139, %v5299
        %v5301 = vpop.f32.mrf.mxu0
        %v5302 = vpop.f32.mrf.mxu0
        %v5303 = vadd.f32 %v5142, %v5302
        %v5304 = vpop.f32.mrf.mxu0
        %5305 = vmatprep.mubr.bf16.mxu0 %v4405
        %5306 = vmatmul.mubr.bf16.gmra.mxu0 %v4404
        %v5307 = vpop.f32.mrf.mxu0
        %v5308 = vadd.f32 %v5147, %v5307
        %v5309 = vpop.f32.mrf.mxu0
        %v5310 = vpop.f32.mrf.mxu0
        %v5311 = vadd.f32 %v5150, %v5310
        %v5312 = vpop.f32.mrf.mxu0
        %5313 = vmatprep.mubr.bf16.mxu0 %v4414
        %5314 = vmatmul.mubr.bf16.gmra.mxu0 %v4413
        %v5315 = vpop.f32.mrf.mxu0
        %v5316 = vadd.f32 %v5155, %v5315
        %v5317 = vpop.f32.mrf.mxu0
        %v5318 = vpop.f32.mrf.mxu0
        %v5319 = vadd.f32 %v5158, %v5318
        %v5320 = vpop.f32.mrf.mxu0
        %5321 = vmatprep.mubr.bf16.mxu0 %v4423
        %5322 = vmatmul.mubr.bf16.gmra.mxu0 %v4422
        %v5323 = vpop.f32.mrf.mxu0
        %v5324 = vadd.f32 %v5163, %v5323
        %v5325 = vpop.f32.mrf.mxu0
        %v5326 = vpop.f32.mrf.mxu0
        %v5327 = vadd.f32 %v5166, %v5326
        %v5328 = vpop.f32.mrf.mxu0
        %5329 = vmatprep.mubr.bf16.mxu0 %v4432
        %5330 = vmatmul.mubr.bf16.gmra.mxu0 %v4431
        %v5331 = vpop.f32.mrf.mxu0
        %v5332 = vadd.f32 %v5171, %v5331
        %v5333 = vpop.f32.mrf.mxu0
        %v5334 = vpop.f32.mrf.mxu0
        %v5335 = vadd.f32 %v5174, %v5334
        %v5336 = vpop.f32.mrf.mxu0
        %5337 = vmatprep.mubr.bf16.mxu0 %v4441
        %5338 = vmatmul.mubr.bf16.gmra.mxu0 %v4440
        %v5339 = vpop.f32.mrf.mxu0
        %v5340 = vadd.f32 %v5179, %v5339
        %v5341 = vpop.f32.mrf.mxu0
        %v5342 = vpop.f32.mrf.mxu0
        %v5343 = vadd.f32 %v5182, %v5342
        %v5344 = vpop.f32.mrf.mxu0
        %5345 = vmatprep.mubr.bf16.mxu0 %v4450
        %5346 = vmatmul.mubr.bf16.gmra.mxu0 %v4449
        %v5347 = vpop.f32.mrf.mxu0
        %v5348 = vadd.f32 %v5187, %v5347
        %v5349 = vpop.f32.mrf.mxu0
        %v5350 = vpop.f32.mrf.mxu0
        %v5351 = vadd.f32 %v5190, %v5350
        %v5352 = vpop.f32.mrf.mxu0
        %5353 = vdwg.mxu0
        %5354 = vmatprep.subr.bf16.mxu0 0
        %5355 = vmatpush1.bf16.msra.mxu0 %v4927
        %5356 = vmatprep.subr.bf16.mxu0 0
        %5357 = vmatpush1.bf16.msra.mxu0 %v4926
        %5358 = vmatprep.subr.bf16.mxu0 0
        %5359 = vmatpush1.bf16.msra.mxu0 %v4925
        %5360 = vmatprep.subr.bf16.mxu0 0
        %5361 = vmatpush1.bf16.msra.mxu0 %v4924
        %5362 = vmatprep.subr.bf16.mxu0 0
        %5363 = vmatpush1.bf16.msra.mxu0 %v4923
        %5364 = vmatprep.subr.bf16.mxu0 0
        %5365 = vmatpush1.bf16.msra.mxu0 %v4922
        %5366 = vmatprep.subr.bf16.mxu0 0
        %5367 = vmatpush1.bf16.msra.mxu0 %v4921
        %5368 = vmatprep.subr.bf16.mxu0 0
        %5369 = vmatpush1.bf16.msra.mxu0 %v4920
        %5370 = vmatprep.subr.bf16.mxu0 0
        %5371 = vmatpush2.bf16.msra.mxu0 %v4935
        %5372 = vmatprep.subr.bf16.mxu0 0
        %5373 = vmatpush2.bf16.msra.mxu0 %v4934
        %5374 = vmatprep.subr.bf16.mxu0 0
        %5375 = vmatpush2.bf16.msra.mxu0 %v4933
        %5376 = vmatprep.subr.bf16.mxu0 0
        %5377 = vmatpush2.bf16.msra.mxu0 %v4932
        %5378 = vmatprep.subr.bf16.mxu0 0
        %5379 = vmatpush2.bf16.msra.mxu0 %v4931
        %5380 = vmatprep.subr.bf16.mxu0 0
        %5381 = vmatpush2.bf16.msra.mxu0 %v4930
        %5382 = vmatprep.subr.bf16.mxu0 0
        %5383 = vmatpush2.bf16.msra.mxu0 %v4929
        %5384 = vmatprep.subr.bf16.mxu0 0
        %5385 = vmatpush2.bf16.msra.mxu0 %v4928
        %5386 = vmatprep.mubr.bf16.mxu0 %v4317
        %5387 = vmatmul.mubr.bf16.gmra.mxu0 %v4316
        %v5388 = vpop.f32.mrf.mxu0
        %v5389 = vadd.f32 %v5228, %v5388
        %v5390 = vpop.f32.mrf.mxu0
        %v5391 = vpop.f32.mrf.mxu0
        %v5392 = vadd.f32 %v5231, %v5391
        %v5393 = vpop.f32.mrf.mxu0
        %5394 = vmatprep.mubr.bf16.mxu0 %v4326
        %5395 = vmatmul.mubr.bf16.gmra.mxu0 %v4325
        %v5396 = vpop.f32.mrf.mxu0
        %v5397 = vadd.f32 %v5236, %v5396
        %v5398 = vpop.f32.mrf.mxu0
        %v5399 = vpop.f32.mrf.mxu0
        %v5400 = vadd.f32 %v5239, %v5399
        %v5401 = vpop.f32.mrf.mxu0
        %5402 = vmatprep.mubr.bf16.mxu0 %v4335
        %5403 = vmatmul.mubr.bf16.gmra.mxu0 %v4334
        %v5404 = vpop.f32.mrf.mxu0
        %v5405 = vadd.f32 %v5244, %v5404
        %v5406 = vpop.f32.mrf.mxu0
        %v5407 = vpop.f32.mrf.mxu0
        %v5408 = vadd.f32 %v5247, %v5407
        %v5409 = vpop.f32.mrf.mxu0
        %5410 = vmatprep.mubr.bf16.mxu0 %v4344
        %5411 = vmatmul.mubr.bf16.gmra.mxu0 %v4343
        %v5412 = vpop.f32.mrf.mxu0
        %v5413 = vadd.f32 %v5252, %v5412
        %v5414 = vpop.f32.mrf.mxu0
        %v5415 = vpop.f32.mrf.mxu0
        %v5416 = vadd.f32 %v5255, %v5415
        %v5417 = vpop.f32.mrf.mxu0
        %5418 = vmatprep.mubr.bf16.mxu0 %v4353
        %5419 = vmatmul.mubr.bf16.gmra.mxu0 %v4352
        %v5420 = vpop.f32.mrf.mxu0
        %v5421 = vadd.f32 %v5260, %v5420
        %v5422 = vpop.f32.mrf.mxu0
        %v5423 = vpop.f32.mrf.mxu0
        %v5424 = vadd.f32 %v5263, %v5423
        %v5425 = vpop.f32.mrf.mxu0
        %5426 = vmatprep.mubr.bf16.mxu0 %v4362
        %5427 = vmatmul.mubr.bf16.gmra.mxu0 %v4361
        %v5428 = vpop.f32.mrf.mxu0
        %v5429 = vadd.f32 %v5268, %v5428
        %v5430 = vpop.f32.mrf.mxu0
        %v5431 = vpop.f32.mrf.mxu0
        %v5432 = vadd.f32 %v5271, %v5431
        %v5433 = vpop.f32.mrf.mxu0
        %5434 = vmatprep.mubr.bf16.mxu0 %v4371
        %5435 = vmatmul.mubr.bf16.gmra.mxu0 %v4370
        %v5436 = vpop.f32.mrf.mxu0
        %v5437 = vadd.f32 %v5276, %v5436
        %v5438 = vpop.f32.mrf.mxu0
        %v5439 = vpop.f32.mrf.mxu0
        %v5440 = vadd.f32 %v5279, %v5439
        %v5441 = vpop.f32.mrf.mxu0
        %5442 = vmatprep.mubr.bf16.mxu0 %v4380
        %5443 = vmatmul.mubr.bf16.gmra.mxu0 %v4379
        %v5444 = vpop.f32.mrf.mxu0
        %v5445 = vadd.f32 %v5284, %v5444
        %v5446 = vpop.f32.mrf.mxu0
        %v5447 = vpop.f32.mrf.mxu0
        %v5448 = vadd.f32 %v5287, %v5447
        %v5449 = vpop.f32.mrf.mxu0
        %5450 = vmatprep.mubr.bf16.mxu0 %v4389
        %5451 = vmatmul.mubr.bf16.gmra.mxu0 %v4388
        %v5452 = vpop.f32.mrf.mxu0
        %v5453 = vadd.f32 %v5292, %v5452
        %v5454 = vpop.f32.mrf.mxu0
        %v5455 = vpop.f32.mrf.mxu0
        %v5456 = vadd.f32 %v5295, %v5455
        %v5457 = vpop.f32.mrf.mxu0
        %5458 = vmatprep.mubr.bf16.mxu0 %v4398
        %5459 = vmatmul.mubr.bf16.gmra.mxu0 %v4397
        %v5460 = vpop.f32.mrf.mxu0
        %v5461 = vadd.f32 %v5300, %v5460
        %v5462 = vpop.f32.mrf.mxu0
        %v5463 = vpop.f32.mrf.mxu0
        %v5464 = vadd.f32 %v5303, %v5463
        %v5465 = vpop.f32.mrf.mxu0
        %5466 = vmatprep.mubr.bf16.mxu0 %v4407
        %5467 = vmatmul.mubr.bf16.gmra.mxu0 %v4406
        %v5468 = vpop.f32.mrf.mxu0
        %v5469 = vadd.f32 %v5308, %v5468
        %v5470 = vpop.f32.mrf.mxu0
        %v5471 = vpop.f32.mrf.mxu0
        %v5472 = vadd.f32 %v5311, %v5471
        %v5473 = vpop.f32.mrf.mxu0
        %5474 = vmatprep.mubr.bf16.mxu0 %v4416
        %5475 = vmatmul.mubr.bf16.gmra.mxu0 %v4415
        %v5476 = vpop.f32.mrf.mxu0
        %v5477 = vadd.f32 %v5316, %v5476
        %v5478 = vpop.f32.mrf.mxu0
        %v5479 = vpop.f32.mrf.mxu0
        %v5480 = vadd.f32 %v5319, %v5479
        %v5481 = vpop.f32.mrf.mxu0
        %5482 = vmatprep.mubr.bf16.mxu0 %v4425
        %5483 = vmatmul.mubr.bf16.gmra.mxu0 %v4424
        %v5484 = vpop.f32.mrf.mxu0
        %v5485 = vadd.f32 %v5324, %v5484
        %v5486 = vpop.f32.mrf.mxu0
        %v5487 = vpop.f32.mrf.mxu0
        %v5488 = vadd.f32 %v5327, %v5487
        %v5489 = vpop.f32.mrf.mxu0
        %5490 = vmatprep.mubr.bf16.mxu0 %v4434
        %5491 = vmatmul.mubr.bf16.gmra.mxu0 %v4433
        %v5492 = vpop.f32.mrf.mxu0
        %v5493 = vadd.f32 %v5332, %v5492
        %v5494 = vpop.f32.mrf.mxu0
        %v5495 = vpop.f32.mrf.mxu0
        %v5496 = vadd.f32 %v5335, %v5495
        %v5497 = vpop.f32.mrf.mxu0
        %5498 = vmatprep.mubr.bf16.mxu0 %v4443
        %5499 = vmatmul.mubr.bf16.gmra.mxu0 %v4442
        %v5500 = vpop.f32.mrf.mxu0
        %v5501 = vadd.f32 %v5340, %v5500
        %v5502 = vpop.f32.mrf.mxu0
        %v5503 = vpop.f32.mrf.mxu0
        %v5504 = vadd.f32 %v5343, %v5503
        %v5505 = vpop.f32.mrf.mxu0
        %5506 = vmatprep.mubr.bf16.mxu0 %v4452
        %5507 = vmatmul.mubr.bf16.gmra.mxu0 %v4451
        %v5508 = vpop.f32.mrf.mxu0
        %v5509 = vadd.f32 %v5348, %v5508
        %v5510 = vpop.f32.mrf.mxu0
        %v5511 = vpop.f32.mrf.mxu0
        %v5512 = vadd.f32 %v5351, %v5511
        %v5513 = vpop.f32.mrf.mxu0
        %5514 = vdwg.mxu0
        %5515 = vmatprep.subr.bf16.mxu0 0
        %5516 = vmatpush1.bf16.msra.mxu0 %v4943
        %5517 = vmatprep.subr.bf16.mxu0 0
        %5518 = vmatpush1.bf16.msra.mxu0 %v4942
        %5519 = vmatprep.subr.bf16.mxu0 0
        %5520 = vmatpush1.bf16.msra.mxu0 %v4941
        %5521 = vmatprep.subr.bf16.mxu0 0
        %5522 = vmatpush1.bf16.msra.mxu0 %v4940
        %5523 = vmatprep.subr.bf16.mxu0 0
        %5524 = vmatpush1.bf16.msra.mxu0 %v4939
        %5525 = vmatprep.subr.bf16.mxu0 0
        %5526 = vmatpush1.bf16.msra.mxu0 %v4938
        %5527 = vmatprep.subr.bf16.mxu0 0
        %5528 = vmatpush1.bf16.msra.mxu0 %v4937
        %5529 = vmatprep.subr.bf16.mxu0 0
        %5530 = vmatpush1.bf16.msra.mxu0 %v4936
        %5531 = vmatprep.subr.bf16.mxu0 0
        %5532 = vmatpush2.bf16.msra.mxu0 %v4951
        %5533 = vmatprep.subr.bf16.mxu0 0
        %5534 = vmatpush2.bf16.msra.mxu0 %v4950
        %5535 = vmatprep.subr.bf16.mxu0 0
        %5536 = vmatpush2.bf16.msra.mxu0 %v4949
        %5537 = vmatprep.subr.bf16.mxu0 0
        %5538 = vmatpush2.bf16.msra.mxu0 %v4948
        %5539 = vmatprep.subr.bf16.mxu0 0
        %5540 = vmatpush2.bf16.msra.mxu0 %v4947
        %5541 = vmatprep.subr.bf16.mxu0 0
        %5542 = vmatpush2.bf16.msra.mxu0 %v4946
        %5543 = vmatprep.subr.bf16.mxu0 0
        %5544 = vmatpush2.bf16.msra.mxu0 %v4945
        %5545 = vmatprep.subr.bf16.mxu0 0
        %5546 = vmatpush2.bf16.msra.mxu0 %v4944
        %5547 = vmatprep.mubr.bf16.mxu0 %v4319
        %5548 = vmatmul.mubr.bf16.gmra.mxu0 %v4318
        %v5549 = vpop.f32.mrf.mxu0
        %v5550 = vadd.f32 %v5389, %v5549
        %v5551 = vpop.f32.mrf.mxu0
        %v5552 = vpop.f32.mrf.mxu0
        %v5553 = vadd.f32 %v5392, %v5552
        %v5554 = vpop.f32.mrf.mxu0
        %5555 = vmatprep.mubr.bf16.mxu0 %v4328
        %5556 = vmatmul.mubr.bf16.gmra.mxu0 %v4327
        %v5557 = vpop.f32.mrf.mxu0
        %v5558 = vadd.f32 %v5397, %v5557
        %v5559 = vpop.f32.mrf.mxu0
        %v5560 = vpop.f32.mrf.mxu0
        %v5561 = vadd.f32 %v5400, %v5560
        %v5562 = vpop.f32.mrf.mxu0
        %5563 = vmatprep.mubr.bf16.mxu0 %v4337
        %5564 = vmatmul.mubr.bf16.gmra.mxu0 %v4336
        %v5565 = vpop.f32.mrf.mxu0
        %v5566 = vadd.f32 %v5405, %v5565
        %v5567 = vpop.f32.mrf.mxu0
        %v5568 = vpop.f32.mrf.mxu0
        %v5569 = vadd.f32 %v5408, %v5568
        %v5570 = vpop.f32.mrf.mxu0
        %5571 = vmatprep.mubr.bf16.mxu0 %v4346
        %5572 = vmatmul.mubr.bf16.gmra.mxu0 %v4345
        %v5573 = vpop.f32.mrf.mxu0
        %v5574 = vadd.f32 %v5413, %v5573
        %v5575 = vpop.f32.mrf.mxu0
        %v5576 = vpop.f32.mrf.mxu0
        %v5577 = vadd.f32 %v5416, %v5576
        %v5578 = vpop.f32.mrf.mxu0
        %5579 = vmatprep.mubr.bf16.mxu0 %v4355
        %5580 = vmatmul.mubr.bf16.gmra.mxu0 %v4354
        %v5581 = vpop.f32.mrf.mxu0
        %v5582 = vadd.f32 %v5421, %v5581
        %v5583 = vpop.f32.mrf.mxu0
        %v5584 = vpop.f32.mrf.mxu0
        %v5585 = vadd.f32 %v5424, %v5584
        %v5586 = vpop.f32.mrf.mxu0
        %5587 = vmatprep.mubr.bf16.mxu0 %v4364
        %5588 = vmatmul.mubr.bf16.gmra.mxu0 %v4363
        %v5589 = vpop.f32.mrf.mxu0
        %v5590 = vadd.f32 %v5429, %v5589
        %v5591 = vpop.f32.mrf.mxu0
        %v5592 = vpop.f32.mrf.mxu0
        %v5593 = vadd.f32 %v5432, %v5592
        %v5594 = vpop.f32.mrf.mxu0
        %5595 = vmatprep.mubr.bf16.mxu0 %v4373
        %5596 = vmatmul.mubr.bf16.gmra.mxu0 %v4372
        %v5597 = vpop.f32.mrf.mxu0
        %v5598 = vadd.f32 %v5437, %v5597
        %v5599 = vpop.f32.mrf.mxu0
        %v5600 = vpop.f32.mrf.mxu0
        %v5601 = vadd.f32 %v5440, %v5600
        %v5602 = vpop.f32.mrf.mxu0
        %5603 = vmatprep.mubr.bf16.mxu0 %v4382
        %5604 = vmatmul.mubr.bf16.gmra.mxu0 %v4381
        %v5605 = vpop.f32.mrf.mxu0
        %v5606 = vadd.f32 %v5445, %v5605
        %v5607 = vpop.f32.mrf.mxu0
        %v5608 = vpop.f32.mrf.mxu0
        %v5609 = vadd.f32 %v5448, %v5608
        %v5610 = vpop.f32.mrf.mxu0
        %5611 = vmatprep.mubr.bf16.mxu0 %v4391
        %5612 = vmatmul.mubr.bf16.gmra.mxu0 %v4390
        %v5613 = vpop.f32.mrf.mxu0
        %v5614 = vadd.f32 %v5453, %v5613
        %v5615 = vpop.f32.mrf.mxu0
        %v5616 = vpop.f32.mrf.mxu0
        %v5617 = vadd.f32 %v5456, %v5616
        %v5618 = vpop.f32.mrf.mxu0
        %5619 = vmatprep.mubr.bf16.mxu0 %v4400
        %5620 = vmatmul.mubr.bf16.gmra.mxu0 %v4399
        %v5621 = vpop.f32.mrf.mxu0
        %v5622 = vadd.f32 %v5461, %v5621
        %v5623 = vpop.f32.mrf.mxu0
        %v5624 = vpop.f32.mrf.mxu0
        %v5625 = vadd.f32 %v5464, %v5624
        %v5626 = vpop.f32.mrf.mxu0
        %5627 = vmatprep.mubr.bf16.mxu0 %v4409
        %5628 = vmatmul.mubr.bf16.gmra.mxu0 %v4408
        %v5629 = vpop.f32.mrf.mxu0
        %v5630 = vadd.f32 %v5469, %v5629
        %v5631 = vpop.f32.mrf.mxu0
        %v5632 = vpop.f32.mrf.mxu0
        %v5633 = vadd.f32 %v5472, %v5632
        %v5634 = vpop.f32.mrf.mxu0
        %5635 = vmatprep.mubr.bf16.mxu0 %v4418
        %5636 = vmatmul.mubr.bf16.gmra.mxu0 %v4417
        %v5637 = vpop.f32.mrf.mxu0
        %v5638 = vadd.f32 %v5477, %v5637
        %v5639 = vpop.f32.mrf.mxu0
        %v5640 = vpop.f32.mrf.mxu0
        %v5641 = vadd.f32 %v5480, %v5640
        %v5642 = vpop.f32.mrf.mxu0
        %5643 = vmatprep.mubr.bf16.mxu0 %v4427
        %5644 = vmatmul.mubr.bf16.gmra.mxu0 %v4426
        %v5645 = vpop.f32.mrf.mxu0
        %v5646 = vadd.f32 %v5485, %v5645
        %v5647 = vpop.f32.mrf.mxu0
        %v5648 = vpop.f32.mrf.mxu0
        %v5649 = vadd.f32 %v5488, %v5648
        %v5650 = vpop.f32.mrf.mxu0
        %5651 = vmatprep.mubr.bf16.mxu0 %v4436
        %5652 = vmatmul.mubr.bf16.gmra.mxu0 %v4435
        %v5653 = vpop.f32.mrf.mxu0
        %v5654 = vadd.f32 %v5493, %v5653
        %v5655 = vpop.f32.mrf.mxu0
        %v5656 = vpop.f32.mrf.mxu0
        %v5657 = vadd.f32 %v5496, %v5656
        %v5658 = vpop.f32.mrf.mxu0
        %5659 = vmatprep.mubr.bf16.mxu0 %v4445
        %5660 = vmatmul.mubr.bf16.gmra.mxu0 %v4444
        %v5661 = vpop.f32.mrf.mxu0
        %v5662 = vadd.f32 %v5501, %v5661
        %v5663 = vpop.f32.mrf.mxu0
        %v5664 = vpop.f32.mrf.mxu0
        %v5665 = vadd.f32 %v5504, %v5664
        %v5666 = vpop.f32.mrf.mxu0
        %5667 = vmatprep.mubr.bf16.mxu0 %v4454
        %5668 = vmatmul.mubr.bf16.gmra.mxu0 %v4453
        %v5669 = vpop.f32.mrf.mxu0
        %v5670 = vadd.f32 %v5509, %v5669
        %v5671 = vpop.f32.mrf.mxu0
        %v5672 = vpop.f32.mrf.mxu0
        %v5673 = vadd.f32 %v5512, %v5672
        %v5674 = vpop.f32.mrf.mxu0
        %5675 = vdwg.mxu0
        %5676 = vmatprep.subr.bf16.mxu0 0
        %5677 = vmatpush1.bf16.msra.mxu0 %v4959
        %5678 = vmatprep.subr.bf16.mxu0 0
        %5679 = vmatpush1.bf16.msra.mxu0 %v4958
        %5680 = vmatprep.subr.bf16.mxu0 0
        %5681 = vmatpush1.bf16.msra.mxu0 %v4957
        %5682 = vmatprep.subr.bf16.mxu0 0
        %5683 = vmatpush1.bf16.msra.mxu0 %v4956
        %5684 = vmatprep.subr.bf16.mxu0 0
        %5685 = vmatpush1.bf16.msra.mxu0 %v4955
        %5686 = vmatprep.subr.bf16.mxu0 0
        %5687 = vmatpush1.bf16.msra.mxu0 %v4954
        %5688 = vmatprep.subr.bf16.mxu0 0
        %5689 = vmatpush1.bf16.msra.mxu0 %v4953
        %5690 = vmatprep.subr.bf16.mxu0 0
        %5691 = vmatpush1.bf16.msra.mxu0 %v4952
        %5692 = vmatprep.subr.bf16.mxu0 0
        %5693 = vmatpush2.bf16.msra.mxu0 0
        %5694 = vmatprep.subr.bf16.mxu0 0
        %5695 = vmatpush2.bf16.msra.mxu0 0
        %5696 = vmatprep.subr.bf16.mxu0 0
        %5697 = vmatpush2.bf16.msra.mxu0 0
        %5698 = vmatprep.subr.bf16.mxu0 0
        %5699 = vmatpush2.bf16.msra.mxu0 0
        %5700 = vmatprep.subr.bf16.mxu0 0
        %5701 = vmatpush2.bf16.msra.mxu0 0
        %5702 = vmatprep.subr.bf16.mxu0 0
        %5703 = vmatpush2.bf16.msra.mxu0 0
        %5704 = vmatprep.subr.bf16.mxu0 0
        %5705 = vmatpush2.bf16.msra.mxu0 0
        %5706 = vmatprep.subr.bf16.mxu0 0
        %5707 = vmatpush2.bf16.msra.mxu0 0
        %5708 = vmatprep.mubr.bf16.mxu0 0
        %5709 = vmatmul.mubr.bf16.gmra.mxu0 %v4320
        %v5710 = vpop.f32.mrf.mxu0
        %v5711 = vadd.f32 %v5550, %v5710
        %v5712 = vpop.f32.mrf.mxu0
        %v5713 = vpop.f32.mrf.mxu0
        %v5714 = vadd.f32 %v5553, %v5713
        %v5715 = vpop.f32.mrf.mxu0
        %5716 = vmatprep.mubr.bf16.mxu0 0
        %5717 = vmatmul.mubr.bf16.gmra.mxu0 %v4329
        %v5718 = vpop.f32.mrf.mxu0
        %v5719 = vadd.f32 %v5558, %v5718
        %v5720 = vpop.f32.mrf.mxu0
        %v5721 = vpop.f32.mrf.mxu0
        %v5722 = vadd.f32 %v5561, %v5721
        %v5723 = vpop.f32.mrf.mxu0
        %5724 = vmatprep.mubr.bf16.mxu0 0
        %5725 = vmatmul.mubr.bf16.gmra.mxu0 %v4338
        %v5726 = vpop.f32.mrf.mxu0
        %v5727 = vadd.f32 %v5566, %v5726
        %v5728 = vpop.f32.mrf.mxu0
        %v5729 = vpop.f32.mrf.mxu0
        %v5730 = vadd.f32 %v5569, %v5729
        %v5731 = vpop.f32.mrf.mxu0
        %5732 = vmatprep.mubr.bf16.mxu0 0
        %5733 = vmatmul.mubr.bf16.gmra.mxu0 %v4347
        %v5734 = vpop.f32.mrf.mxu0
        %v5735 = vadd.f32 %v5574, %v5734
        %v5736 = vpop.f32.mrf.mxu0
        %v5737 = vpop.f32.mrf.mxu0
        %v5738 = vadd.f32 %v5577, %v5737
        %v5739 = vpop.f32.mrf.mxu0
        %5740 = vmatprep.mubr.bf16.mxu0 0
        %5741 = vmatmul.mubr.bf16.gmra.mxu0 %v4356
        %v5742 = vpop.f32.mrf.mxu0
        %v5743 = vadd.f32 %v5582, %v5742
        %v5744 = vpop.f32.mrf.mxu0
        %v5745 = vpop.f32.mrf.mxu0
        %v5746 = vadd.f32 %v5585, %v5745
        %v5747 = vpop.f32.mrf.mxu0
        %5748 = vmatprep.mubr.bf16.mxu0 0
        %5749 = vmatmul.mubr.bf16.gmra.mxu0 %v4365
        %v5750 = vpop.f32.mrf.mxu0
        %v5751 = vadd.f32 %v5590, %v5750
        %v5752 = vpop.f32.mrf.mxu0
        %v5753 = vpop.f32.mrf.mxu0
        %v5754 = vadd.f32 %v5593, %v5753
        %v5755 = vpop.f32.mrf.mxu0
        %5756 = vmatprep.mubr.bf16.mxu0 0
        %5757 = vmatmul.mubr.bf16.gmra.mxu0 %v4374
        %v5758 = vpop.f32.mrf.mxu0
        %v5759 = vadd.f32 %v5598, %v5758
        %v5760 = vpop.f32.mrf.mxu0
        %v5761 = vpop.f32.mrf.mxu0
        %v5762 = vadd.f32 %v5601, %v5761
        %v5763 = vpop.f32.mrf.mxu0
        %5764 = vmatprep.mubr.bf16.mxu0 0
        %5765 = vmatmul.mubr.bf16.gmra.mxu0 %v4383
        %v5766 = vpop.f32.mrf.mxu0
        %v5767 = vadd.f32 %v5606, %v5766
        %v5768 = vpop.f32.mrf.mxu0
        %v5769 = vpop.f32.mrf.mxu0
        %v5770 = vadd.f32 %v5609, %v5769
        %v5771 = vpop.f32.mrf.mxu0
        %5772 = vmatprep.mubr.bf16.mxu0 0
        %5773 = vmatmul.mubr.bf16.gmra.mxu0 %v4392
        %v5774 = vpop.f32.mrf.mxu0
        %v5775 = vadd.f32 %v5614, %v5774
        %v5776 = vpop.f32.mrf.mxu0
        %v5777 = vpop.f32.mrf.mxu0
        %v5778 = vadd.f32 %v5617, %v5777
        %v5779 = vpop.f32.mrf.mxu0
        %5780 = vmatprep.mubr.bf16.mxu0 0
        %5781 = vmatmul.mubr.bf16.gmra.mxu0 %v4401
        %v5782 = vpop.f32.mrf.mxu0
        %v5783 = vadd.f32 %v5622, %v5782
        %v5784 = vpop.f32.mrf.mxu0
        %v5785 = vpop.f32.mrf.mxu0
        %v5786 = vadd.f32 %v5625, %v5785
        %v5787 = vpop.f32.mrf.mxu0
        %5788 = vmatprep.mubr.bf16.mxu0 0
        %5789 = vmatmul.mubr.bf16.gmra.mxu0 %v4410
        %v5790 = vpop.f32.mrf.mxu0
        %v5791 = vadd.f32 %v5630, %v5790
        %v5792 = vpop.f32.mrf.mxu0
        %v5793 = vpop.f32.mrf.mxu0
        %v5794 = vadd.f32 %v5633, %v5793
        %v5795 = vpop.f32.mrf.mxu0
        %5796 = vmatprep.mubr.bf16.mxu0 0
        %5797 = vmatmul.mubr.bf16.gmra.mxu0 %v4419
        %v5798 = vpop.f32.mrf.mxu0
        %v5799 = vadd.f32 %v5638, %v5798
        %v5800 = vpop.f32.mrf.mxu0
        %v5801 = vpop.f32.mrf.mxu0
        %v5802 = vadd.f32 %v5641, %v5801
        %v5803 = vpop.f32.mrf.mxu0
        %5804 = vmatprep.mubr.bf16.mxu0 0
        %5805 = vmatmul.mubr.bf16.gmra.mxu0 %v4428
        %v5806 = vpop.f32.mrf.mxu0
        %v5807 = vadd.f32 %v5646, %v5806
        %v5808 = vpop.f32.mrf.mxu0
        %v5809 = vpop.f32.mrf.mxu0
        %v5810 = vadd.f32 %v5649, %v5809
        %v5811 = vpop.f32.mrf.mxu0
        %5812 = vmatprep.mubr.bf16.mxu0 0
        %5813 = vmatmul.mubr.bf16.gmra.mxu0 %v4437
        %v5814 = vpop.f32.mrf.mxu0
        %v5815 = vadd.f32 %v5654, %v5814
        %v5816 = vpop.f32.mrf.mxu0
        %v5817 = vpop.f32.mrf.mxu0
        %v5818 = vadd.f32 %v5657, %v5817
        %v5819 = vpop.f32.mrf.mxu0
        %5820 = vmatprep.mubr.bf16.mxu0 0
        %5821 = vmatmul.mubr.bf16.gmra.mxu0 %v4446
        %v5822 = vpop.f32.mrf.mxu0
        %v5823 = vadd.f32 %v5662, %v5822
        %v5824 = vpop.f32.mrf.mxu0
        %v5825 = vpop.f32.mrf.mxu0
        %v5826 = vadd.f32 %v5665, %v5825
        %v5827 = vpop.f32.mrf.mxu0
        %5828 = vmatprep.mubr.bf16.mxu0 0
        %5829 = vmatmul.mubr.bf16.gmra.mxu0 %v4455
        %v5830 = vpop.f32.mrf.mxu0
        %v5831 = vadd.f32 %v5670, %v5830
        %v5832 = vpop.f32.mrf.mxu0
        %v5833 = vpop.f32.mrf.mxu0
        %v5834 = vadd.f32 %v5673, %v5833
        %v5835 = vpop.f32.mrf.mxu0
        %5836 = vdwg.mxu0
        %v5837 = vld [vmem:[%s2] sm:$0x1]
        %v5839 = vlaneseq
        %v5840 = vshrl.u32 %v5839, 7
        %v5841 = vsub.s32 0, %v5840
        %v5842 = vrot.slane %v5837, %v5841
        %v5844 = vmul.f32 %v5711, %v5842
        %v5845 = vmul.f32 %v5714, %v5842
        %v5846 = vmul.f32 %v5719, %v5842
        %v5847 = vmul.f32 %v5722, %v5842
        %v5848 = vmul.f32 %v5727, %v5842
        %v5849 = vmul.f32 %v5730, %v5842
        %v5850 = vmul.f32 %v5735, %v5842
        %v5851 = vmul.f32 %v5738, %v5842
        %v5852 = vmul.f32 %v5743, %v5842
        %v5853 = vmul.f32 %v5746, %v5842
        %v5854 = vmul.f32 %v5751, %v5842
        %v5855 = vmul.f32 %v5754, %v5842
        %v5856 = vmul.f32 %v5759, %v5842
        %v5857 = vmul.f32 %v5762, %v5842
        %v5858 = vmul.f32 %v5767, %v5842
        %v5859 = vmul.f32 %v5770, %v5842
        %v5860 = vmul.f32 %v5775, %v5842
        %v5861 = vmul.f32 %v5778, %v5842
        %v5862 = vmul.f32 %v5783, %v5842
        %v5863 = vmul.f32 %v5786, %v5842
        %v5864 = vmul.f32 %v5791, %v5842
        %v5865 = vmul.f32 %v5794, %v5842
        %v5866 = vmul.f32 %v5799, %v5842
        %v5867 = vmul.f32 %v5802, %v5842
        %v5868 = vmul.f32 %v5807, %v5842
        %v5869 = vmul.f32 %v5810, %v5842
        %v5870 = vmul.f32 %v5815, %v5842
        %v5871 = vmul.f32 %v5818, %v5842
        %v5872 = vmul.f32 %v5823, %v5842
        %v5873 = vmul.f32 %v5826, %v5842
        %v5874 = vmul.f32 %v5831, %v5842
        %v5875 = vmul.f32 %v5834, %v5842
        %v5876 = vld [vmem:[%s3] sm:$0x1]
        %v5878 = vlaneseq
        %v5879 = vshrl.u32 %v5878, 7
        %v5880 = vsub.s32 0, %v5879
        %v5881 = vrot.slane %v5876, %v5880
        %v5883 = vadd.f32 %v5844, %v5881
        %v5884 = vadd.f32 %v5845, %v5881
        %v5885 = vadd.f32 %v5846, %v5881
        %v5886 = vadd.f32 %v5847, %v5881
        %v5887 = vadd.f32 %v5848, %v5881
        %v5888 = vadd.f32 %v5849, %v5881
        %v5889 = vadd.f32 %v5850, %v5881
        %v5890 = vadd.f32 %v5851, %v5881
        %v5891 = vadd.f32 %v5852, %v5881
        %v5892 = vadd.f32 %v5853, %v5881
        %v5893 = vadd.f32 %v5854, %v5881
        %v5894 = vadd.f32 %v5855, %v5881
        %v5895 = vadd.f32 %v5856, %v5881
        %v5896 = vadd.f32 %v5857, %v5881
        %v5897 = vadd.f32 %v5858, %v5881
        %v5898 = vadd.f32 %v5859, %v5881
        %v5899 = vadd.f32 %v5860, %v5881
        %v5900 = vadd.f32 %v5861, %v5881
        %v5901 = vadd.f32 %v5862, %v5881
        %v5902 = vadd.f32 %v5863, %v5881
        %v5903 = vadd.f32 %v5864, %v5881
        %v5904 = vadd.f32 %v5865, %v5881
        %v5905 = vadd.f32 %v5866, %v5881
        %v5906 = vadd.f32 %v5867, %v5881
        %v5907 = vadd.f32 %v5868, %v5881
        %v5908 = vadd.f32 %v5869, %v5881
        %v5909 = vadd.f32 %v5870, %v5881
        %v5910 = vadd.f32 %v5871, %v5881
        %v5911 = vadd.f32 %v5872, %v5881
        %v5912 = vadd.f32 %v5873, %v5881
        %v5913 = vadd.f32 %v5874, %v5881
        %v5914 = vadd.f32 %v5875, %v5881
        %v5915 = vmax.f32 %v5883, 0.0
        %v5916 = vmax.f32 %v5884, 0.0
        %v5917 = vmax.f32 %v5885, 0.0
        %v5918 = vmax.f32 %v5886, 0.0
        %v5919 = vmax.f32 %v5887, 0.0
        %v5920 = vmax.f32 %v5888, 0.0
        %v5921 = vmax.f32 %v5889, 0.0
        %v5922 = vmax.f32 %v5890, 0.0
        %v5923 = vmax.f32 %v5891, 0.0
        %v5924 = vmax.f32 %v5892, 0.0
        %v5925 = vmax.f32 %v5893, 0.0
        %v5926 = vmax.f32 %v5894, 0.0
        %v5927 = vmax.f32 %v5895, 0.0
        %v5928 = vmax.f32 %v5896, 0.0
        %v5929 = vmax.f32 %v5897, 0.0
        %v5930 = vmax.f32 %v5898, 0.0
        %v5931 = vmax.f32 %v5899, 0.0
        %v5932 = vmax.f32 %v5900, 0.0
        %v5933 = vmax.f32 %v5901, 0.0
        %v5934 = vmax.f32 %v5902, 0.0
        %v5935 = vmax.f32 %v5903, 0.0
        %v5936 = vmax.f32 %v5904, 0.0
        %v5937 = vmax.f32 %v5905, 0.0
        %v5938 = vmax.f32 %v5906, 0.0
        %v5939 = vmax.f32 %v5907, 0.0
        %v5940 = vmax.f32 %v5908, 0.0
        %v5941 = vmax.f32 %v5909, 0.0
        %v5942 = vmax.f32 %v5910, 0.0
        %v5943 = vmax.f32 %v5911, 0.0
        %v5944 = vmax.f32 %v5912, 0.0
        %v5945 = vmax.f32 %v5913, 0.0
        %v5946 = vmax.f32 %v5914, 0.0
        %v5947 = vpack.c.bf16 %v5916, %v5915
        %v5948 = vpack.c.bf16 %v5918, %v5917
        %v5949 = vpack.c.bf16 %v5920, %v5919
        %v5950 = vpack.c.bf16 %v5922, %v5921
        %v5951 = vpack.c.bf16 %v5924, %v5923
        %v5952 = vpack.c.bf16 %v5926, %v5925
        %v5953 = vpack.c.bf16 %v5928, %v5927
        %v5954 = vpack.c.bf16 %v5930, %v5929
        %v5955 = vpack.c.bf16 %v5932, %v5931
        %v5956 = vpack.c.bf16 %v5934, %v5933
        %v5957 = vpack.c.bf16 %v5936, %v5935
        %v5958 = vpack.c.bf16 %v5938, %v5937
        %v5959 = vpack.c.bf16 %v5940, %v5939
        %v5960 = vpack.c.bf16 %v5942, %v5941
        %v5961 = vpack.c.bf16 %v5944, %v5943
        %v5962 = vpack.c.bf16 %v5946, %v5945
        %v5979 = vunpack.c.l.b16 %v5947
        %v5980 = vunpack.c.h.b16 %v5947
        %v5981 = vunpack.c.l.b16 %v5948
        %v5982 = vunpack.c.h.b16 %v5948
        %v5983 = vunpack.c.l.b16 %v5949
        %v5984 = vunpack.c.h.b16 %v5949
        %v5985 = vunpack.c.l.b16 %v5950
        %v5986 = vunpack.c.h.b16 %v5950
        %v5987 = vunpack.c.l.b16 %v5951
        %v5988 = vunpack.c.h.b16 %v5951
        %v5989 = vunpack.c.l.b16 %v5952
        %v5990 = vunpack.c.h.b16 %v5952
        %v5991 = vunpack.c.l.b16 %v5953
        %v5992 = vunpack.c.h.b16 %v5953
        %v5993 = vunpack.c.l.b16 %v5954
        %v5994 = vunpack.c.h.b16 %v5954
        %v5995 = vunpack.c.l.b16 %v5955
        %v5996 = vunpack.c.h.b16 %v5955
        %v5997 = vunpack.c.l.b16 %v5956
        %v5998 = vunpack.c.h.b16 %v5956
        %v5999 = vunpack.c.l.b16 %v5957
        %v6000 = vunpack.c.h.b16 %v5957
        %v6001 = vunpack.c.l.b16 %v5958
        %v6002 = vunpack.c.h.b16 %v5958
        %v6003 = vunpack.c.l.b16 %v5959
        %v6004 = vunpack.c.h.b16 %v5959
        %v6005 = vunpack.c.l.b16 %v5960
        %v6006 = vunpack.c.h.b16 %v5960
        %v6007 = vunpack.c.l.b16 %v5961
        %v6008 = vunpack.c.h.b16 %v5961
        %v6009 = vunpack.c.l.b16 %v5962
        %v6010 = vunpack.c.h.b16 %v5962
        %v6011 = vpack.c.b16 %v5979, %v5979
        %v6012 = vpack.c.b16 %v5980, %v5980
        %v6013 = vpack.c.b16 %v5981, %v5981
        %v6014 = vpack.c.b16 %v5982, %v5982
        %v6015 = vpack.c.b16 %v5983, %v5983
        %v6016 = vpack.c.b16 %v5984, %v5984
        %v6017 = vpack.c.b16 %v5985, %v5985
        %v6018 = vpack.c.b16 %v5986, %v5986
        %v6019 = vpack.c.b16 %v5987, %v5987
        %v6020 = vpack.c.b16 %v5988, %v5988
        %v6021 = vpack.c.b16 %v5989, %v5989
        %v6022 = vpack.c.b16 %v5990, %v5990
        %v6023 = vpack.c.b16 %v5991, %v5991
        %v6024 = vpack.c.b16 %v5992, %v5992
        %v6025 = vpack.c.b16 %v5993, %v5993
        %v6026 = vpack.c.b16 %v5994, %v5994
        %v6027 = vpack.c.b16 %v5995, %v5995
        %v6028 = vpack.c.b16 %v5996, %v5996
        %v6029 = vpack.c.b16 %v5997, %v5997
        %v6030 = vpack.c.b16 %v5998, %v5998
        %v6031 = vpack.c.b16 %v5999, %v5999
        %v6032 = vpack.c.b16 %v6000, %v6000
        %v6033 = vpack.c.b16 %v6001, %v6001
        %v6034 = vpack.c.b16 %v6002, %v6002
        %v6035 = vpack.c.b16 %v6003, %v6003
        %v6036 = vpack.c.b16 %v6004, %v6004
        %v6037 = vpack.c.b16 %v6005, %v6005
        %v6038 = vpack.c.b16 %v6006, %v6006
        %v6039 = vpack.c.b16 %v6007, %v6007
        %v6040 = vpack.c.b16 %v6008, %v6008
        %v6041 = vpack.c.b16 %v6009, %v6009
        %v6042 = vpack.c.b16 %v6010, %v6010
        %v6044 = vshrl.u32 %v6011, 16
        %v6046 = vrot.slane %v6044, 7
        %v6047 = vshll.u32 %v6011, 16
        %v6049 = vor.u32 %v6046, %v6047
        %v6050 = vrot.slane %v6046, 4
        %v6052 = vshrl.u32 %v6012, 16
        %v6054 = vrot.slane %v6052, 7
        %v6055 = vshll.u32 %v6012, 16
        %v6057 = vor.u32 %v6054, %v6055
        %v6058 = vsel %vm622, %v6050, %v6057
        %v6059 = vrot.slane %v6054, 4
        %v6061 = vshrl.u32 %v6013, 16
        %v6063 = vrot.slane %v6061, 7
        %v6064 = vshll.u32 %v6013, 16
        %v6066 = vor.u32 %v6063, %v6064
        %v6067 = vrot.slane %v6063, 4
        %v6069 = vshrl.u32 %v6014, 16
        %v6071 = vrot.slane %v6069, 7
        %v6072 = vshll.u32 %v6014, 16
        %v6074 = vor.u32 %v6071, %v6072
        %v6075 = vsel %vm622, %v6067, %v6074
        %v6076 = vrot.slane %v6071, 4
        %v6078 = vshrl.u32 %v6015, 16
        %v6080 = vrot.slane %v6078, 7
        %v6081 = vshll.u32 %v6015, 16
        %v6083 = vor.u32 %v6080, %v6081
        %v6084 = vrot.slane %v6080, 4
        %v6086 = vshrl.u32 %v6016, 16
        %v6088 = vrot.slane %v6086, 7
        %v6089 = vshll.u32 %v6016, 16
        %v6091 = vor.u32 %v6088, %v6089
        %v6092 = vsel %vm622, %v6084, %v6091
        %v6093 = vrot.slane %v6088, 4
        %v6095 = vshrl.u32 %v6017, 16
        %v6097 = vrot.slane %v6095, 7
        %v6098 = vshll.u32 %v6017, 16
        %v6100 = vor.u32 %v6097, %v6098
        %v6101 = vrot.slane %v6097, 4
        %v6103 = vshrl.u32 %v6018, 16
        %v6105 = vrot.slane %v6103, 7
        %v6106 = vshll.u32 %v6018, 16
        %v6108 = vor.u32 %v6105, %v6106
        %v6109 = vsel %vm622, %v6101, %v6108
        %v6110 = vrot.slane %v6105, 4
        %v6112 = vshrl.u32 %v6019, 16
        %v6114 = vrot.slane %v6112, 7
        %v6115 = vshll.u32 %v6019, 16
        %v6117 = vor.u32 %v6114, %v6115
        %v6118 = vrot.slane %v6114, 4
        %v6120 = vshrl.u32 %v6020, 16
        %v6122 = vrot.slane %v6120, 7
        %v6123 = vshll.u32 %v6020, 16
        %v6125 = vor.u32 %v6122, %v6123
        %v6126 = vsel %vm622, %v6118, %v6125
        %v6127 = vrot.slane %v6122, 4
        %v6129 = vshrl.u32 %v6021, 16
        %v6131 = vrot.slane %v6129, 7
        %v6132 = vshll.u32 %v6021, 16
        %v6134 = vor.u32 %v6131, %v6132
        %v6135 = vrot.slane %v6131, 4
        %v6137 = vshrl.u32 %v6022, 16
        %v6139 = vrot.slane %v6137, 7
        %v6140 = vshll.u32 %v6022, 16
        %v6142 = vor.u32 %v6139, %v6140
        %v6143 = vsel %vm622, %v6135, %v6142
        %v6144 = vrot.slane %v6139, 4
        %v6146 = vshrl.u32 %v6023, 16
        %v6148 = vrot.slane %v6146, 7
        %v6149 = vshll.u32 %v6023, 16
        %v6151 = vor.u32 %v6148, %v6149
        %v6152 = vrot.slane %v6148, 4
        %v6154 = vshrl.u32 %v6024, 16
        %v6156 = vrot.slane %v6154, 7
        %v6157 = vshll.u32 %v6024, 16
        %v6159 = vor.u32 %v6156, %v6157
        %v6160 = vsel %vm622, %v6152, %v6159
        %v6161 = vrot.slane %v6156, 4
        %v6163 = vshrl.u32 %v6025, 16
        %v6165 = vrot.slane %v6163, 7
        %v6166 = vshll.u32 %v6025, 16
        %v6168 = vor.u32 %v6165, %v6166
        %v6169 = vrot.slane %v6165, 4
        %v6171 = vshrl.u32 %v6026, 16
        %v6173 = vrot.slane %v6171, 7
        %v6174 = vshll.u32 %v6026, 16
        %v6176 = vor.u32 %v6173, %v6174
        %v6177 = vsel %vm622, %v6169, %v6176
        %v6178 = vrot.slane %v6173, 4
        %v6180 = vshrl.u32 %v6027, 16
        %v6182 = vrot.slane %v6180, 7
        %v6183 = vshll.u32 %v6027, 16
        %v6185 = vor.u32 %v6182, %v6183
        %v6186 = vrot.slane %v6182, 4
        %v6188 = vshrl.u32 %v6028, 16
        %v6190 = vrot.slane %v6188, 7
        %v6191 = vshll.u32 %v6028, 16
        %v6193 = vor.u32 %v6190, %v6191
        %v6194 = vsel %vm622, %v6186, %v6193
        %v6195 = vrot.slane %v6190, 4
        %v6197 = vshrl.u32 %v6029, 16
        %v6199 = vrot.slane %v6197, 7
        %v6200 = vshll.u32 %v6029, 16
        %v6202 = vor.u32 %v6199, %v6200
        %v6203 = vrot.slane %v6199, 4
        %v6205 = vshrl.u32 %v6030, 16
        %v6207 = vrot.slane %v6205, 7
        %v6208 = vshll.u32 %v6030, 16
        %v6210 = vor.u32 %v6207, %v6208
        %v6211 = vsel %vm622, %v6203, %v6210
        %v6212 = vrot.slane %v6207, 4
        %v6214 = vshrl.u32 %v6031, 16
        %v6216 = vrot.slane %v6214, 7
        %v6217 = vshll.u32 %v6031, 16
        %v6219 = vor.u32 %v6216, %v6217
        %v6220 = vrot.slane %v6216, 4
        %v6222 = vshrl.u32 %v6032, 16
        %v6224 = vrot.slane %v6222, 7
        %v6225 = vshll.u32 %v6032, 16
        %v6227 = vor.u32 %v6224, %v6225
        %v6228 = vsel %vm622, %v6220, %v6227
        %v6229 = vrot.slane %v6224, 4
        %v6231 = vshrl.u32 %v6033, 16
        %v6233 = vrot.slane %v6231, 7
        %v6234 = vshll.u32 %v6033, 16
        %v6236 = vor.u32 %v6233, %v6234
        %v6237 = vrot.slane %v6233, 4
        %v6239 = vshrl.u32 %v6034, 16
        %v6241 = vrot.slane %v6239, 7
        %v6242 = vshll.u32 %v6034, 16
        %v6244 = vor.u32 %v6241, %v6242
        %v6245 = vsel %vm622, %v6237, %v6244
        %v6246 = vrot.slane %v6241, 4
        %v6248 = vshrl.u32 %v6035, 16
        %v6250 = vrot.slane %v6248, 7
        %v6251 = vshll.u32 %v6035, 16
        %v6253 = vor.u32 %v6250, %v6251
        %v6254 = vrot.slane %v6250, 4
        %v6256 = vshrl.u32 %v6036, 16
        %v6258 = vrot.slane %v6256, 7
        %v6259 = vshll.u32 %v6036, 16
        %v6261 = vor.u32 %v6258, %v6259
        %v6262 = vsel %vm622, %v6254, %v6261
        %v6263 = vrot.slane %v6258, 4
        %v6265 = vshrl.u32 %v6037, 16
        %v6267 = vrot.slane %v6265, 7
        %v6268 = vshll.u32 %v6037, 16
        %v6270 = vor.u32 %v6267, %v6268
        %v6271 = vrot.slane %v6267, 4
        %v6273 = vshrl.u32 %v6038, 16
        %v6275 = vrot.slane %v6273, 7
        %v6276 = vshll.u32 %v6038, 16
        %v6278 = vor.u32 %v6275, %v6276
        %v6279 = vsel %vm622, %v6271, %v6278
        %v6280 = vrot.slane %v6275, 4
        %v6282 = vshrl.u32 %v6039, 16
        %v6284 = vrot.slane %v6282, 7
        %v6285 = vshll.u32 %v6039, 16
        %v6287 = vor.u32 %v6284, %v6285
        %v6288 = vrot.slane %v6284, 4
        %v6290 = vshrl.u32 %v6040, 16
        %v6292 = vrot.slane %v6290, 7
        %v6293 = vshll.u32 %v6040, 16
        %v6295 = vor.u32 %v6292, %v6293
        %v6296 = vsel %vm622, %v6288, %v6295
        %v6297 = vrot.slane %v6292, 4
        %v6299 = vshrl.u32 %v6041, 16
        %v6301 = vrot.slane %v6299, 7
        %v6302 = vshll.u32 %v6041, 16
        %v6304 = vor.u32 %v6301, %v6302
        %v6305 = vrot.slane %v6301, 4
        %v6307 = vshrl.u32 %v6042, 16
        %v6309 = vrot.slane %v6307, 7
        %v6310 = vshll.u32 %v6042, 16
        %v6312 = vor.u32 %v6309, %v6310
        %v6313 = vsel %vm622, %v6305, %v6312
        %v6314 = vrot.slane %v6309, 4
        %v6363 = vld [vmem:[%s492] sm:$0xf]
        %v6364 = vsel %vm944, %v6049, %v6363
        %6365 = vst [vmem:[%s492] sm:$0xf] %v6364
        %6366 = vst [vmem:[%s492 + $0x4] sm:$0xf] %v6058
        %v6367 = vld [vmem:[%s492 + $0x8] sm:$0x1]
        %v6368 = vsel %vm386, %v6059, %v6367
        %6369 = vst [vmem:[%s492 + $0x8] sm:$0x1] %v6368
        %v6370 = vld [vmem:[%s492 + $0xc] sm:$0xf]
        %v6371 = vsel %vm944, %v6066, %v6370
        %6372 = vst [vmem:[%s492 + $0xc] sm:$0xf] %v6371
        %6373 = vst [vmem:[%s492 + $0x10] sm:$0xf] %v6075
        %v6374 = vld [vmem:[%s492 + $0x14] sm:$0x1]
        %v6375 = vsel %vm386, %v6076, %v6374
        %6376 = vst [vmem:[%s492 + $0x14] sm:$0x1] %v6375
        %v6377 = vld [vmem:[%s492 + $0x18] sm:$0xf]
        %v6378 = vsel %vm944, %v6083, %v6377
        %6379 = vst [vmem:[%s492 + $0x18] sm:$0xf] %v6378
        %6380 = vst [vmem:[%s492 + $0x1c] sm:$0xf] %v6092
        %v6381 = vld [vmem:[%s492 + $0x20] sm:$0x1]
        %v6382 = vsel %vm386, %v6093, %v6381
        %6383 = vst [vmem:[%s492 + $0x20] sm:$0x1] %v6382
        %v6384 = vld [vmem:[%s492 + $0x24] sm:$0xf]
        %v6385 = vsel %vm944, %v6100, %v6384
        %6386 = vst [vmem:[%s492 + $0x24] sm:$0xf] %v6385
        %6387 = vst [vmem:[%s492 + $0x28] sm:$0xf] %v6109
        %v6388 = vld [vmem:[%s492 + $0x2c] sm:$0x1]
        %v6389 = vsel %vm386, %v6110, %v6388
        %6390 = vst [vmem:[%s492 + $0x2c] sm:$0x1] %v6389
        %v6391 = vld [vmem:[%s492 + $0x30] sm:$0xf]
        %v6392 = vsel %vm944, %v6117, %v6391
        %6393 = vst [vmem:[%s492 + $0x30] sm:$0xf] %v6392
        %6394 = vst [vmem:[%s492 + $0x34] sm:$0xf] %v6126
        %v6395 = vld [vmem:[%s492 + $0x38] sm:$0x1]
        %v6396 = vsel %vm386, %v6127, %v6395
        %6397 = vst [vmem:[%s492 + $0x38] sm:$0x1] %v6396
        %v6398 = vld [vmem:[%s492 + $0x3c] sm:$0xf]
        %v6399 = vsel %vm944, %v6134, %v6398
        %6400 = vst [vmem:[%s492 + $0x3c] sm:$0xf] %v6399
        %6401 = vst [vmem:[%s492 + $0x40] sm:$0xf] %v6143
        %v6402 = vld [vmem:[%s492 + $0x44] sm:$0x1]
        %v6403 = vsel %vm386, %v6144, %v6402
        %6404 = vst [vmem:[%s492 + $0x44] sm:$0x1] %v6403
        %v6405 = vld [vmem:[%s492 + $0x48] sm:$0xf]
        %v6406 = vsel %vm944, %v6151, %v6405
        %6407 = vst [vmem:[%s492 + $0x48] sm:$0xf] %v6406
        %6408 = vst [vmem:[%s492 + $0x4c] sm:$0xf] %v6160
        %v6409 = vld [vmem:[%s492 + $0x50] sm:$0x1]
        %v6410 = vsel %vm386, %v6161, %v6409
        %6411 = vst [vmem:[%s492 + $0x50] sm:$0x1] %v6410
        %v6412 = vld [vmem:[%s492 + $0x54] sm:$0xf]
        %v6413 = vsel %vm944, %v6168, %v6412
        %6414 = vst [vmem:[%s492 + $0x54] sm:$0xf] %v6413
        %6415 = vst [vmem:[%s492 + $0x58] sm:$0xf] %v6177
        %v6416 = vld [vmem:[%s492 + $0x5c] sm:$0x1]
        %v6417 = vsel %vm386, %v6178, %v6416
        %6418 = vst [vmem:[%s492 + $0x5c] sm:$0x1] %v6417
        %v6419 = vld [vmem:[%s492 + $0x60] sm:$0xf]
        %v6420 = vsel %vm944, %v6185, %v6419
        %6421 = vst [vmem:[%s492 + $0x60] sm:$0xf] %v6420
        %6422 = vst [vmem:[%s492 + $0x64] sm:$0xf] %v6194
        %v6423 = vld [vmem:[%s492 + $0x68] sm:$0x1]
        %v6424 = vsel %vm386, %v6195, %v6423
        %6425 = vst [vmem:[%s492 + $0x68] sm:$0x1] %v6424
        %v6426 = vld [vmem:[%s492 + $0x6c] sm:$0xf]
        %v6427 = vsel %vm944, %v6202, %v6426
        %6428 = vst [vmem:[%s492 + $0x6c] sm:$0xf] %v6427
        %6429 = vst [vmem:[%s492 + $0x70] sm:$0xf] %v6211
        %v6430 = vld [vmem:[%s492 + $0x74] sm:$0x1]
        %v6431 = vsel %vm386, %v6212, %v6430
        %6432 = vst [vmem:[%s492 + $0x74] sm:$0x1] %v6431
        %v6433 = vld [vmem:[%s492 + $0x78] sm:$0xf]
        %v6434 = vsel %vm944, %v6219, %v6433
        %6435 = vst [vmem:[%s492 + $0x78] sm:$0xf] %v6434
        %6436 = vst [vmem:[%s492 + $0x7c] sm:$0xf] %v6228
        %v6437 = vld [vmem:[%s492 + $0x80] sm:$0x1]
        %v6438 = vsel %vm386, %v6229, %v6437
        %6439 = vst [vmem:[%s492 + $0x80] sm:$0x1] %v6438
        %v6440 = vld [vmem:[%s492 + $0x84] sm:$0xf]
        %v6441 = vsel %vm944, %v6236, %v6440
        %6442 = vst [vmem:[%s492 + $0x84] sm:$0xf] %v6441
        %6443 = vst [vmem:[%s492 + $0x88] sm:$0xf] %v6245
        %v6444 = vld [vmem:[%s492 + $0x8c] sm:$0x1]
        %v6445 = vsel %vm386, %v6246, %v6444
        %6446 = vst [vmem:[%s492 + $0x8c] sm:$0x1] %v6445
        %v6447 = vld [vmem:[%s492 + $0x90] sm:$0xf]
        %v6448 = vsel %vm944, %v6253, %v6447
        %6449 = vst [vmem:[%s492 + $0x90] sm:$0xf] %v6448
        %6450 = vst [vmem:[%s492 + $0x94] sm:$0xf] %v6262
        %v6451 = vld [vmem:[%s492 + $0x98] sm:$0x1]
        %v6452 = vsel %vm386, %v6263, %v6451
        %6453 = vst [vmem:[%s492 + $0x98] sm:$0x1] %v6452
        %v6454 = vld [vmem:[%s492 + $0x9c] sm:$0xf]
        %v6455 = vsel %vm944, %v6270, %v6454
        %6456 = vst [vmem:[%s492 + $0x9c] sm:$0xf] %v6455
        %6457 = vst [vmem:[%s492 + $0xa0] sm:$0xf] %v6279
        %v6458 = vld [vmem:[%s492 + $0xa4] sm:$0x1]
        %v6459 = vsel %vm386, %v6280, %v6458
        %6460 = vst [vmem:[%s492 + $0xa4] sm:$0x1] %v6459
        %v6461 = vld [vmem:[%s492 + $0xa8] sm:$0xf]
        %v6462 = vsel %vm944, %v6287, %v6461
        %6463 = vst [vmem:[%s492 + $0xa8] sm:$0xf] %v6462
        %6464 = vst [vmem:[%s492 + $0xac] sm:$0xf] %v6296
        %v6465 = vld [vmem:[%s492 + $0xb0] sm:$0x1]
        %v6466 = vsel %vm386, %v6297, %v6465
        %6467 = vst [vmem:[%s492 + $0xb0] sm:$0x1] %v6466
        %v6468 = vld [vmem:[%s492 + $0xb4] sm:$0xf]
        %v6469 = vsel %vm944, %v6304, %v6468
        %6470 = vst [vmem:[%s492 + $0xb4] sm:$0xf] %v6469
        %6471 = vst [vmem:[%s492 + $0xb8] sm:$0xf] %v6313
        %v6472 = vld [vmem:[%s492 + $0xbc] sm:$0x1]
        %v6473 = vsel %vm386, %v6314, %v6472
        %6474 = vst [vmem:[%s492 + $0xbc] sm:$0x1] %v6473
        %v6475 = vld [vmem:[#allocation3] sm:$0xf]
        %v6476 = vld [vmem:[#allocation3 + $0x4] sm:$0xf]
        %v6477 = vld [vmem:[#allocation3 + $0xc] sm:$0xf]
        %v6478 = vld [vmem:[#allocation3 + $0x10] sm:$0xf]
        %v6479 = vld [vmem:[#allocation3 + $0x18] sm:$0xf]
        %v6480 = vld [vmem:[#allocation3 + $0x1c] sm:$0xf]
        %v6481 = vld [vmem:[#allocation3 + $0x24] sm:$0xf]
        %v6482 = vld [vmem:[#allocation3 + $0x28] sm:$0xf]
        %v6483 = vld [vmem:[#allocation3 + $0x30] sm:$0xf]
        %v6484 = vld [vmem:[#allocation3 + $0x34] sm:$0xf]
        %v6485 = vld [vmem:[#allocation3 + $0x3c] sm:$0xf]
        %v6486 = vld [vmem:[#allocation3 + $0x40] sm:$0xf]
        %v6487 = vld [vmem:[#allocation3 + $0x48] sm:$0xf]
        %v6488 = vld [vmem:[#allocation3 + $0x4c] sm:$0xf]
        %v6489 = vld [vmem:[#allocation3 + $0x54] sm:$0xf]
        %v6490 = vld [vmem:[#allocation3 + $0x58] sm:$0xf]
        %v6491 = vld [vmem:[#allocation3 + $0x60] sm:$0xf]
        %v6492 = vld [vmem:[#allocation3 + $0x64] sm:$0xf]
        %v6493 = vld [vmem:[#allocation3 + $0x6c] sm:$0xf]
        %v6494 = vld [vmem:[#allocation3 + $0x70] sm:$0xf]
        %v6495 = vld [vmem:[#allocation3 + $0x78] sm:$0xf]
        %v6496 = vld [vmem:[#allocation3 + $0x7c] sm:$0xf]
        %v6497 = vld [vmem:[#allocation3 + $0x84] sm:$0xf]
        %v6498 = vld [vmem:[#allocation3 + $0x88] sm:$0xf]
        %v6499 = vld [vmem:[#allocation3 + $0x90] sm:$0xf]
        %v6500 = vld [vmem:[#allocation3 + $0x94] sm:$0xf]
        %v6501 = vld [vmem:[#allocation3 + $0x9c] sm:$0xf]
        %v6502 = vld [vmem:[#allocation3 + $0xa0] sm:$0xf]
        %v6503 = vld [vmem:[#allocation3 + $0xa8] sm:$0xf]
        %v6504 = vld [vmem:[#allocation3 + $0xac] sm:$0xf]
        %v6505 = vld [vmem:[#allocation3 + $0xb4] sm:$0xf]
        %v6506 = vld [vmem:[#allocation3 + $0xb8] sm:$0xf]
        %6507 = vst [vmem:[#allocation4] sm:$0xf] %v6475
        %6508 = vst [vmem:[#allocation4 + $0x24] sm:$0xf] %v6476
        %6509 = vst [vmem:[#allocation4 + $0x48] sm:$0xf] %v6477
        %6510 = vst [vmem:[#allocation4 + $0x6c] sm:$0xf] %v6478
        %6511 = vst [vmem:[#allocation4 + $0x90] sm:$0xf] %v6479
        %6512 = vst [vmem:[#allocation4 + $0xb4] sm:$0xf] %v6480
        %6513 = vst [vmem:[#allocation4 + $0xd8] sm:$0xf] %v6481
        %6514 = vst [vmem:[#allocation4 + $0xfc] sm:$0xf] %v6482
        %6515 = vst [vmem:[#allocation4 + $0x120] sm:$0xf] %v6483
        %6516 = vst [vmem:[#allocation4 + $0x144] sm:$0xf] %v6484
        %6517 = vst [vmem:[#allocation4 + $0x168] sm:$0xf] %v6485
        %6518 = vst [vmem:[#allocation4 + $0x18c] sm:$0xf] %v6486
        %6519 = vst [vmem:[#allocation4 + $0x1b0] sm:$0xf] %v6487
        %6520 = vst [vmem:[#allocation4 + $0x1d4] sm:$0xf] %v6488
        %6521 = vst [vmem:[#allocation4 + $0x1f8] sm:$0xf] %v6489
        %6522 = vst [vmem:[#allocation4 + $0x21c] sm:$0xf] %v6490
        %6523 = vst [vmem:[#allocation4 + $0x240] sm:$0xf] %v6491
        %6524 = vst [vmem:[#allocation4 + $0x264] sm:$0xf] %v6492
        %6525 = vst [vmem:[#allocation4 + $0x288] sm:$0xf] %v6493
        %6526 = vst [vmem:[#allocation4 + $0x2ac] sm:$0xf] %v6494
        %6527 = vst [vmem:[#allocation4 + $0x2d0] sm:$0xf] %v6495
        %6528 = vst [vmem:[#allocation4 + $0x2f4] sm:$0xf] %v6496
        %6529 = vst [vmem:[#allocation4 + $0x318] sm:$0xf] %v6497
        %6530 = vst [vmem:[#allocation4 + $0x33c] sm:$0xf] %v6498
        %6531 = vst [vmem:[#allocation4 + $0x360] sm:$0xf] %v6499
        %6532 = vst [vmem:[#allocation4 + $0x384] sm:$0xf] %v6500
        %6533 = vst [vmem:[#allocation4 + $0x3a8] sm:$0xf] %v6501
        %6534 = vst [vmem:[#allocation4 + $0x3cc] sm:$0xf] %v6502
        %6535 = vst [vmem:[#allocation4 + $0x3f0] sm:$0xf] %v6503
        %6536 = vst [vmem:[#allocation4 + $0x414] sm:$0xf] %v6504
        %6537 = vst [vmem:[#allocation4 + $0x438] sm:$0xf] %v6505
        %6538 = vst [vmem:[#allocation4 + $0x45c] sm:$0xf] %v6506
        %v6539 = vld [vmem:[#allocation3] sm:$0xf]
        %v6540 = vld [vmem:[#allocation3 + $0x4] sm:$0xf]
        %v6541 = vld [vmem:[#allocation3 + $0x8] sm:$0x1]
        %v6542 = vld [vmem:[#allocation3 + $0xc] sm:$0xf]
        %v6543 = vld [vmem:[#allocation3 + $0x10] sm:$0xf]
        %v6544 = vld [vmem:[#allocation3 + $0x14] sm:$0x1]
        %v6545 = vld [vmem:[#allocation3 + $0x18] sm:$0xf]
        %v6546 = vld [vmem:[#allocation3 + $0x1c] sm:$0xf]
        %v6547 = vld [vmem:[#allocation3 + $0x20] sm:$0x1]
        %v6548 = vld [vmem:[#allocation3 + $0x24] sm:$0xf]
        %v6549 = vld [vmem:[#allocation3 + $0x28] sm:$0xf]
        %v6550 = vld [vmem:[#allocation3 + $0x2c] sm:$0x1]
        %v6551 = vld [vmem:[#allocation3 + $0x30] sm:$0xf]
        %v6552 = vld [vmem:[#allocation3 + $0x34] sm:$0xf]
        %v6553 = vld [vmem:[#allocation3 + $0x38] sm:$0x1]
        %v6554 = vld [vmem:[#allocation3 + $0x3c] sm:$0xf]
        %v6555 = vld [vmem:[#allocation3 + $0x40] sm:$0xf]
        %v6556 = vld [vmem:[#allocation3 + $0x44] sm:$0x1]
        %v6557 = vld [vmem:[#allocation3 + $0x48] sm:$0xf]
        %v6558 = vld [vmem:[#allocation3 + $0x4c] sm:$0xf]
        %v6559 = vld [vmem:[#allocation3 + $0x50] sm:$0x1]
        %v6560 = vld [vmem:[#allocation3 + $0x54] sm:$0xf]
        %v6561 = vld [vmem:[#allocation3 + $0x58] sm:$0xf]
        %v6562 = vld [vmem:[#allocation3 + $0x5c] sm:$0x1]
        %v6563 = vld [vmem:[#allocation3 + $0x60] sm:$0xf]
        %v6564 = vld [vmem:[#allocation3 + $0x64] sm:$0xf]
        %v6565 = vld [vmem:[#allocation3 + $0x68] sm:$0x1]
        %v6566 = vld [vmem:[#allocation3 + $0x6c] sm:$0xf]
        %v6567 = vld [vmem:[#allocation3 + $0x70] sm:$0xf]
        %v6568 = vld [vmem:[#allocation3 + $0x74] sm:$0x1]
        %v6569 = vld [vmem:[#allocation3 + $0x78] sm:$0xf]
        %v6570 = vld [vmem:[#allocation3 + $0x7c] sm:$0xf]
        %v6571 = vld [vmem:[#allocation3 + $0x80] sm:$0x1]
        %v6572 = vld [vmem:[#allocation3 + $0x84] sm:$0xf]
        %v6573 = vld [vmem:[#allocation3 + $0x88] sm:$0xf]
        %v6574 = vld [vmem:[#allocation3 + $0x8c] sm:$0x1]
        %v6575 = vld [vmem:[#allocation3 + $0x90] sm:$0xf]
        %v6576 = vld [vmem:[#allocation3 + $0x94] sm:$0xf]
        %v6577 = vld [vmem:[#allocation3 + $0x98] sm:$0x1]
        %v6578 = vld [vmem:[#allocation3 + $0x9c] sm:$0xf]
        %v6579 = vld [vmem:[#allocation3 + $0xa0] sm:$0xf]
        %v6580 = vld [vmem:[#allocation3 + $0xa4] sm:$0x1]
        %v6581 = vld [vmem:[#allocation3 + $0xa8] sm:$0xf]
        %v6582 = vld [vmem:[#allocation3 + $0xac] sm:$0xf]
        %v6583 = vld [vmem:[#allocation3 + $0xb0] sm:$0x1]
        %v6584 = vld [vmem:[#allocation3 + $0xb4] sm:$0xf]
        %v6585 = vld [vmem:[#allocation3 + $0xb8] sm:$0xf]
        %v6586 = vld [vmem:[#allocation3 + $0xbc] sm:$0x1]
        %v6588 = vshrl.u32 %v6539, 16
        %v6590 = vrot.slane %v6588, 4
        %v6591 = vshll.u32 %v6539, 16
        %v6593 = vrot.slane %v6591, 5
        %v6594 = vor.u32 %v6590, %v6593
        %v6595 = vrot.slane %v6594, 4
        %v6597 = vshll.u32 %v6540, 16
        %v6599 = vrot.slane %v6597, 5
        %v6600 = vsel %vm1171, %v6595, %v6599
        %v6601 = vshrl.u32 %v6540, 16
        %v6603 = vrot.slane %v6601, 4
        %v6604 = vor.u32 %v6603, %v6599
        %v6605 = vrot.slane %v6604, 4
        %v6607 = vshll.u32 %v6541, 16
        %v6609 = vrot.slane %v6607, 5
        %v6610 = vsel %vm1171, %v6605, %v6609
        %v6612 = vshrl.u32 %v6542, 16
        %v6614 = vrot.slane %v6612, 4
        %v6615 = vshll.u32 %v6542, 16
        %v6617 = vrot.slane %v6615, 5
        %v6618 = vor.u32 %v6614, %v6617
        %v6619 = vrot.slane %v6618, 4
        %v6621 = vshll.u32 %v6543, 16
        %v6623 = vrot.slane %v6621, 5
        %v6624 = vsel %vm1171, %v6619, %v6623
        %v6625 = vshrl.u32 %v6543, 16
        %v6627 = vrot.slane %v6625, 4
        %v6628 = vor.u32 %v6627, %v6623
        %v6629 = vrot.slane %v6628, 4
        %v6631 = vshll.u32 %v6544, 16
        %v6633 = vrot.slane %v6631, 5
        %v6634 = vsel %vm1171, %v6629, %v6633
        %v6636 = vshrl.u32 %v6545, 16
        %v6638 = vrot.slane %v6636, 4
        %v6639 = vshll.u32 %v6545, 16
        %v6641 = vrot.slane %v6639, 5
        %v6642 = vor.u32 %v6638, %v6641
        %v6643 = vrot.slane %v6642, 4
        %v6645 = vshll.u32 %v6546, 16
        %v6647 = vrot.slane %v6645, 5
        %v6648 = vsel %vm1171, %v6643, %v6647
        %v6649 = vshrl.u32 %v6546, 16
        %v6651 = vrot.slane %v6649, 4
        %v6652 = vor.u32 %v6651, %v6647
        %v6653 = vrot.slane %v6652, 4
        %v6655 = vshll.u32 %v6547, 16
        %v6657 = vrot.slane %v6655, 5
        %v6658 = vsel %vm1171, %v6653, %v6657
        %v6660 = vshrl.u32 %v6548, 16
        %v6662 = vrot.slane %v6660, 4
        %v6663 = vshll.u32 %v6548, 16
        %v6665 = vrot.slane %v6663, 5
        %v6666 = vor.u32 %v6662, %v6665
        %v6667 = vrot.slane %v6666, 4
        %v6669 = vshll.u32 %v6549, 16
        %v6671 = vrot.slane %v6669, 5
        %v6672 = vsel %vm1171, %v6667, %v6671
        %v6673 = vshrl.u32 %v6549, 16
        %v6675 = vrot.slane %v6673, 4
        %v6676 = vor.u32 %v6675, %v6671
        %v6677 = vrot.slane %v6676, 4
        %v6679 = vshll.u32 %v6550, 16
        %v6681 = vrot.slane %v6679, 5
        %v6682 = vsel %vm1171, %v6677, %v6681
        %v6684 = vshrl.u32 %v6551, 16
        %v6686 = vrot.slane %v6684, 4
        %v6687 = vshll.u32 %v6551, 16
        %v6689 = vrot.slane %v6687, 5
        %v6690 = vor.u32 %v6686, %v6689
        %v6691 = vrot.slane %v6690, 4
        %v6693 = vshll.u32 %v6552, 16
        %v6695 = vrot.slane %v6693, 5
        %v6696 = vsel %vm1171, %v6691, %v6695
        %v6697 = vshrl.u32 %v6552, 16
        %v6699 = vrot.slane %v6697, 4
        %v6700 = vor.u32 %v6699, %v6695
        %v6701 = vrot.slane %v6700, 4
        %v6703 = vshll.u32 %v6553, 16
        %v6705 = vrot.slane %v6703, 5
        %v6706 = vsel %vm1171, %v6701, %v6705
        %v6708 = vshrl.u32 %v6554, 16
        %v6710 = vrot.slane %v6708, 4
        %v6711 = vshll.u32 %v6554, 16
        %v6713 = vrot.slane %v6711, 5
        %v6714 = vor.u32 %v6710, %v6713
        %v6715 = vrot.slane %v6714, 4
        %v6717 = vshll.u32 %v6555, 16
        %v6719 = vrot.slane %v6717, 5
        %v6720 = vsel %vm1171, %v6715, %v6719
        %v6721 = vshrl.u32 %v6555, 16
        %v6723 = vrot.slane %v6721, 4
        %v6724 = vor.u32 %v6723, %v6719
        %v6725 = vrot.slane %v6724, 4
        %v6727 = vshll.u32 %v6556, 16
        %v6729 = vrot.slane %v6727, 5
        %v6730 = vsel %vm1171, %v6725, %v6729
        %v6732 = vshrl.u32 %v6557, 16
        %v6734 = vrot.slane %v6732, 4
        %v6735 = vshll.u32 %v6557, 16
        %v6737 = vrot.slane %v6735, 5
        %v6738 = vor.u32 %v6734, %v6737
        %v6739 = vrot.slane %v6738, 4
        %v6741 = vshll.u32 %v6558, 16
        %v6743 = vrot.slane %v6741, 5
        %v6744 = vsel %vm1171, %v6739, %v6743
        %v6745 = vshrl.u32 %v6558, 16
        %v6747 = vrot.slane %v6745, 4
        %v6748 = vor.u32 %v6747, %v6743
        %v6749 = vrot.slane %v6748, 4
        %v6751 = vshll.u32 %v6559, 16
        %v6753 = vrot.slane %v6751, 5
        %v6754 = vsel %vm1171, %v6749, %v6753
        %v6756 = vshrl.u32 %v6560, 16
        %v6758 = vrot.slane %v6756, 4
        %v6759 = vshll.u32 %v6560, 16
        %v6761 = vrot.slane %v6759, 5
        %v6762 = vor.u32 %v6758, %v6761
        %v6763 = vrot.slane %v6762, 4
        %v6765 = vshll.u32 %v6561, 16
        %v6767 = vrot.slane %v6765, 5
        %v6768 = vsel %vm1171, %v6763, %v6767
        %v6769 = vshrl.u32 %v6561, 16
        %v6771 = vrot.slane %v6769, 4
        %v6772 = vor.u32 %v6771, %v6767
        %v6773 = vrot.slane %v6772, 4
        %v6775 = vshll.u32 %v6562, 16
        %v6777 = vrot.slane %v6775, 5
        %v6778 = vsel %vm1171, %v6773, %v6777
        %v6780 = vshrl.u32 %v6563, 16
        %v6782 = vrot.slane %v6780, 4
        %v6783 = vshll.u32 %v6563, 16
        %v6785 = vrot.slane %v6783, 5
        %v6786 = vor.u32 %v6782, %v6785
        %v6787 = vrot.slane %v6786, 4
        %v6789 = vshll.u32 %v6564, 16
        %v6791 = vrot.slane %v6789, 5
        %v6792 = vsel %vm1171, %v6787, %v6791
        %v6793 = vshrl.u32 %v6564, 16
        %v6795 = vrot.slane %v6793, 4
        %v6796 = vor.u32 %v6795, %v6791
        %v6797 = vrot.slane %v6796, 4
        %v6799 = vshll.u32 %v6565, 16
        %v6801 = vrot.slane %v6799, 5
        %v6802 = vsel %vm1171, %v6797, %v6801
        %v6804 = vshrl.u32 %v6566, 16
        %v6806 = vrot.slane %v6804, 4
        %v6807 = vshll.u32 %v6566, 16
        %v6809 = vrot.slane %v6807, 5
        %v6810 = vor.u32 %v6806, %v6809
        %v6811 = vrot.slane %v6810, 4
        %v6813 = vshll.u32 %v6567, 16
        %v6815 = vrot.slane %v6813, 5
        %v6816 = vsel %vm1171, %v6811, %v6815
        %v6817 = vshrl.u32 %v6567, 16
        %v6819 = vrot.slane %v6817, 4
        %v6820 = vor.u32 %v6819, %v6815
        %v6821 = vrot.slane %v6820, 4
        %v6823 = vshll.u32 %v6568, 16
        %v6825 = vrot.slane %v6823, 5
        %v6826 = vsel %vm1171, %v6821, %v6825
        %v6828 = vshrl.u32 %v6569, 16
        %v6830 = vrot.slane %v6828, 4
        %v6831 = vshll.u32 %v6569, 16
        %v6833 = vrot.slane %v6831, 5
        %v6834 = vor.u32 %v6830, %v6833
        %v6835 = vrot.slane %v6834, 4
        %v6837 = vshll.u32 %v6570, 16
        %v6839 = vrot.slane %v6837, 5
        %v6840 = vsel %vm1171, %v6835, %v6839
        %v6841 = vshrl.u32 %v6570, 16
        %v6843 = vrot.slane %v6841, 4
        %v6844 = vor.u32 %v6843, %v6839
        %v6845 = vrot.slane %v6844, 4
        %v6847 = vshll.u32 %v6571, 16
        %v6849 = vrot.slane %v6847, 5
        %v6850 = vsel %vm1171, %v6845, %v6849
        %v6852 = vshrl.u32 %v6572, 16
        %v6854 = vrot.slane %v6852, 4
        %v6855 = vshll.u32 %v6572, 16
        %v6857 = vrot.slane %v6855, 5
        %v6858 = vor.u32 %v6854, %v6857
        %v6859 = vrot.slane %v6858, 4
        %v6861 = vshll.u32 %v6573, 16
        %v6863 = vrot.slane %v6861, 5
        %v6864 = vsel %vm1171, %v6859, %v6863
        %v6865 = vshrl.u32 %v6573, 16
        %v6867 = vrot.slane %v6865, 4
        %v6868 = vor.u32 %v6867, %v6863
        %v6869 = vrot.slane %v6868, 4
        %v6871 = vshll.u32 %v6574, 16
        %v6873 = vrot.slane %v6871, 5
        %v6874 = vsel %vm1171, %v6869, %v6873
        %v6876 = vshrl.u32 %v6575, 16
        %v6878 = vrot.slane %v6876, 4
        %v6879 = vshll.u32 %v6575, 16
        %v6881 = vrot.slane %v6879, 5
        %v6882 = vor.u32 %v6878, %v6881
        %v6883 = vrot.slane %v6882, 4
        %v6885 = vshll.u32 %v6576, 16
        %v6887 = vrot.slane %v6885, 5
        %v6888 = vsel %vm1171, %v6883, %v6887
        %v6889 = vshrl.u32 %v6576, 16
        %v6891 = vrot.slane %v6889, 4
        %v6892 = vor.u32 %v6891, %v6887
        %v6893 = vrot.slane %v6892, 4
        %v6895 = vshll.u32 %v6577, 16
        %v6897 = vrot.slane %v6895, 5
        %v6898 = vsel %vm1171, %v6893, %v6897
        %v6900 = vshrl.u32 %v6578, 16
        %v6902 = vrot.slane %v6900, 4
        %v6903 = vshll.u32 %v6578, 16
        %v6905 = vrot.slane %v6903, 5
        %v6906 = vor.u32 %v6902, %v6905
        %v6907 = vrot.slane %v6906, 4
        %v6909 = vshll.u32 %v6579, 16
        %v6911 = vrot.slane %v6909, 5
        %v6912 = vsel %vm1171, %v6907, %v6911
        %v6913 = vshrl.u32 %v6579, 16
        %v6915 = vrot.slane %v6913, 4
        %v6916 = vor.u32 %v6915, %v6911
        %v6917 = vrot.slane %v6916, 4
        %v6919 = vshll.u32 %v6580, 16
        %v6921 = vrot.slane %v6919, 5
        %v6922 = vsel %vm1171, %v6917, %v6921
        %v6924 = vshrl.u32 %v6581, 16
        %v6926 = vrot.slane %v6924, 4
        %v6927 = vshll.u32 %v6581, 16
        %v6929 = vrot.slane %v6927, 5
        %v6930 = vor.u32 %v6926, %v6929
        %v6931 = vrot.slane %v6930, 4
        %v6933 = vshll.u32 %v6582, 16
        %v6935 = vrot.slane %v6933, 5
        %v6936 = vsel %vm1171, %v6931, %v6935
        %v6937 = vshrl.u32 %v6582, 16
        %v6939 = vrot.slane %v6937, 4
        %v6940 = vor.u32 %v6939, %v6935
        %v6941 = vrot.slane %v6940, 4
        %v6943 = vshll.u32 %v6583, 16
        %v6945 = vrot.slane %v6943, 5
        %v6946 = vsel %vm1171, %v6941, %v6945
        %v6948 = vshrl.u32 %v6584, 16
        %v6950 = vrot.slane %v6948, 4
        %v6951 = vshll.u32 %v6584, 16
        %v6953 = vrot.slane %v6951, 5
        %v6954 = vor.u32 %v6950, %v6953
        %v6955 = vrot.slane %v6954, 4
        %v6957 = vshll.u32 %v6585, 16
        %v6959 = vrot.slane %v6957, 5
        %v6960 = vsel %vm1171, %v6955, %v6959
        %v6961 = vshrl.u32 %v6585, 16
        %v6963 = vrot.slane %v6961, 4
        %v6964 = vor.u32 %v6963, %v6959
        %v6965 = vrot.slane %v6964, 4
        %v6967 = vshll.u32 %v6586, 16
        %v6969 = vrot.slane %v6967, 5
        %v6970 = vsel %vm1171, %v6965, %v6969
        %7003 = vst [vmem:[#allocation4 + $0x4] sm:$0xf] %v6600
        %7004 = vst [vmem:[#allocation4 + $0x28] sm:$0xf] %v6610
        %7005 = vst [vmem:[#allocation4 + $0x4c] sm:$0xf] %v6624
        %7006 = vst [vmem:[#allocation4 + $0x70] sm:$0xf] %v6634
        %7007 = vst [vmem:[#allocation4 + $0x94] sm:$0xf] %v6648
        %7008 = vst [vmem:[#allocation4 + $0xb8] sm:$0xf] %v6658
        %7009 = vst [vmem:[#allocation4 + $0xdc] sm:$0xf] %v6672
        %7010 = vst [vmem:[#allocation4 + $0x100] sm:$0xf] %v6682
        %7011 = vst [vmem:[#allocation4 + $0x124] sm:$0xf] %v6696
        %7012 = vst [vmem:[#allocation4 + $0x148] sm:$0xf] %v6706
        %7013 = vst [vmem:[#allocation4 + $0x16c] sm:$0xf] %v6720
        %7014 = vst [vmem:[#allocation4 + $0x190] sm:$0xf] %v6730
        %7015 = vst [vmem:[#allocation4 + $0x1b4] sm:$0xf] %v6744
        %7016 = vst [vmem:[#allocation4 + $0x1d8] sm:$0xf] %v6754
        %7017 = vst [vmem:[#allocation4 + $0x1fc] sm:$0xf] %v6768
        %7018 = vst [vmem:[#allocation4 + $0x220] sm:$0xf] %v6778
        %7019 = vst [vmem:[#allocation4 + $0x244] sm:$0xf] %v6792
        %7020 = vst [vmem:[#allocation4 + $0x268] sm:$0xf] %v6802
        %7021 = vst [vmem:[#allocation4 + $0x28c] sm:$0xf] %v6816
        %7022 = vst [vmem:[#allocation4 + $0x2b0] sm:$0xf] %v6826
        %7023 = vst [vmem:[#allocation4 + $0x2d4] sm:$0xf] %v6840
        %7024 = vst [vmem:[#allocation4 + $0x2f8] sm:$0xf] %v6850
        %7025 = vst [vmem:[#allocation4 + $0x31c] sm:$0xf] %v6864
        %7026 = vst [vmem:[#allocation4 + $0x340] sm:$0xf] %v6874
        %7027 = vst [vmem:[#allocation4 + $0x364] sm:$0xf] %v6888
        %7028 = vst [vmem:[#allocation4 + $0x388] sm:$0xf] %v6898
        %7029 = vst [vmem:[#allocation4 + $0x3ac] sm:$0xf] %v6912
        %7030 = vst [vmem:[#allocation4 + $0x3d0] sm:$0xf] %v6922
        %7031 = vst [vmem:[#allocation4 + $0x3f4] sm:$0xf] %v6936
        %7032 = vst [vmem:[#allocation4 + $0x418] sm:$0xf] %v6946
        %7033 = vst [vmem:[#allocation4 + $0x43c] sm:$0xf] %v6960
        %7034 = vst [vmem:[#allocation4 + $0x460] sm:$0xf] %v6970
        %v7035 = vld [vmem:[#allocation3] sm:$0xe]
        %v7036 = vld [vmem:[#allocation3 + $0x4] sm:$0xf]
        %v7037 = vld [vmem:[#allocation3 + $0x8] sm:$0x1]
        %v7038 = vld [vmem:[#allocation3 + $0xc] sm:$0xe]
        %v7039 = vld [vmem:[#allocation3 + $0x10] sm:$0xf]
        %v7040 = vld [vmem:[#allocation3 + $0x14] sm:$0x1]
        %v7041 = vld [vmem:[#allocation3 + $0x18] sm:$0xe]
        %v7042 = vld [vmem:[#allocation3 + $0x1c] sm:$0xf]
        %v7043 = vld [vmem:[#allocation3 + $0x20] sm:$0x1]
        %v7044 = vld [vmem:[#allocation3 + $0x24] sm:$0xe]
        %v7045 = vld [vmem:[#allocation3 + $0x28] sm:$0xf]
        %v7046 = vld [vmem:[#allocation3 + $0x2c] sm:$0x1]
        %v7047 = vld [vmem:[#allocation3 + $0x30] sm:$0xe]
        %v7048 = vld [vmem:[#allocation3 + $0x34] sm:$0xf]
        %v7049 = vld [vmem:[#allocation3 + $0x38] sm:$0x1]
        %v7050 = vld [vmem:[#allocation3 + $0x3c] sm:$0xe]
        %v7051 = vld [vmem:[#allocation3 + $0x40] sm:$0xf]
        %v7052 = vld [vmem:[#allocation3 + $0x44] sm:$0x1]
        %v7053 = vld [vmem:[#allocation3 + $0x48] sm:$0xe]
        %v7054 = vld [vmem:[#allocation3 + $0x4c] sm:$0xf]
        %v7055 = vld [vmem:[#allocation3 + $0x50] sm:$0x1]
        %v7056 = vld [vmem:[#allocation3 + $0x54] sm:$0xe]
        %v7057 = vld [vmem:[#allocation3 + $0x58] sm:$0xf]
        %v7058 = vld [vmem:[#allocation3 + $0x5c] sm:$0x1]
        %v7059 = vld [vmem:[#allocation3 + $0x60] sm:$0xe]
        %v7060 = vld [vmem:[#allocation3 + $0x64] sm:$0xf]
        %v7061 = vld [vmem:[#allocation3 + $0x68] sm:$0x1]
        %v7062 = vld [vmem:[#allocation3 + $0x6c] sm:$0xe]
        %v7063 = vld [vmem:[#allocation3 + $0x70] sm:$0xf]
        %v7064 = vld [vmem:[#allocation3 + $0x74] sm:$0x1]
        %v7065 = vld [vmem:[#allocation3 + $0x78] sm:$0xe]
        %v7066 = vld [vmem:[#allocation3 + $0x7c] sm:$0xf]
        %v7067 = vld [vmem:[#allocation3 + $0x80] sm:$0x1]
        %v7068 = vld [vmem:[#allocation3 + $0x84] sm:$0xe]
        %v7069 = vld [vmem:[#allocation3 + $0x88] sm:$0xf]
        %v7070 = vld [vmem:[#allocation3 + $0x8c] sm:$0x1]
        %v7071 = vld [vmem:[#allocation3 + $0x90] sm:$0xe]
        %v7072 = vld [vmem:[#allocation3 + $0x94] sm:$0xf]
        %v7073 = vld [vmem:[#allocation3 + $0x98] sm:$0x1]
        %v7074 = vld [vmem:[#allocation3 + $0x9c] sm:$0xe]
        %v7075 = vld [vmem:[#allocation3 + $0xa0] sm:$0xf]
        %v7076 = vld [vmem:[#allocation3 + $0xa4] sm:$0x1]
        %v7077 = vld [vmem:[#allocation3 + $0xa8] sm:$0xe]
        %v7078 = vld [vmem:[#allocation3 + $0xac] sm:$0xf]
        %v7079 = vld [vmem:[#allocation3 + $0xb0] sm:$0x1]
        %v7080 = vld [vmem:[#allocation3 + $0xb4] sm:$0xe]
        %v7081 = vld [vmem:[#allocation3 + $0xb8] sm:$0xf]
        %v7082 = vld [vmem:[#allocation3 + $0xbc] sm:$0x1]
        %v7131 = vrot.slane %v7035, 5
        %v7132 = vrot.slane %v7131, 4
        %v7133 = vrot.slane %v7036, 5
        %v7134 = vsel %vm1718, %v7132, %v7133
        %v7135 = vrot.slane %v7133, 4
        %v7136 = vrot.slane %v7037, 5
        %v7137 = vsel %vm1718, %v7135, %v7136
        %v7138 = vrot.slane %v7038, 5
        %v7139 = vrot.slane %v7138, 4
        %v7140 = vrot.slane %v7039, 5
        %v7141 = vsel %vm1718, %v7139, %v7140
        %v7142 = vrot.slane %v7140, 4
        %v7143 = vrot.slane %v7040, 5
        %v7144 = vsel %vm1718, %v7142, %v7143
        %v7145 = vrot.slane %v7041, 5
        %v7146 = vrot.slane %v7145, 4
        %v7147 = vrot.slane %v7042, 5
        %v7148 = vsel %vm1718, %v7146, %v7147
        %v7149 = vrot.slane %v7147, 4
        %v7150 = vrot.slane %v7043, 5
        %v7151 = vsel %vm1718, %v7149, %v7150
        %v7152 = vrot.slane %v7044, 5
        %v7153 = vrot.slane %v7152, 4
        %v7154 = vrot.slane %v7045, 5
        %v7155 = vsel %vm1718, %v7153, %v7154
        %v7156 = vrot.slane %v7154, 4
        %v7157 = vrot.slane %v7046, 5
        %v7158 = vsel %vm1718, %v7156, %v7157
        %v7159 = vrot.slane %v7047, 5
        %v7160 = vrot.slane %v7159, 4
        %v7161 = vrot.slane %v7048, 5
        %v7162 = vsel %vm1718, %v7160, %v7161
        %v7163 = vrot.slane %v7161, 4
        %v7164 = vrot.slane %v7049, 5
        %v7165 = vsel %vm1718, %v7163, %v7164
        %v7166 = vrot.slane %v7050, 5
        %v7167 = vrot.slane %v7166, 4
        %v7168 = vrot.slane %v7051, 5
        %v7169 = vsel %vm1718, %v7167, %v7168
        %v7170 = vrot.slane %v7168, 4
        %v7171 = vrot.slane %v7052, 5
        %v7172 = vsel %vm1718, %v7170, %v7171
        %v7173 = vrot.slane %v7053, 5
        %v7174 = vrot.slane %v7173, 4
        %v7175 = vrot.slane %v7054, 5
        %v7176 = vsel %vm1718, %v7174, %v7175
        %v7177 = vrot.slane %v7175, 4
        %v7178 = vrot.slane %v7055, 5
        %v7179 = vsel %vm1718, %v7177, %v7178
        %v7180 = vrot.slane %v7056, 5
        %v7181 = vrot.slane %v7180, 4
        %v7182 = vrot.slane %v7057, 5
        %v7183 = vsel %vm1718, %v7181, %v7182
        %v7184 = vrot.slane %v7182, 4
        %v7185 = vrot.slane %v7058, 5
        %v7186 = vsel %vm1718, %v7184, %v7185
        %v7187 = vrot.slane %v7059, 5
        %v7188 = vrot.slane %v7187, 4
        %v7189 = vrot.slane %v7060, 5
        %v7190 = vsel %vm1718, %v7188, %v7189
        %v7191 = vrot.slane %v7189, 4
        %v7192 = vrot.slane %v7061, 5
        %v7193 = vsel %vm1718, %v7191, %v7192
        %v7194 = vrot.slane %v7062, 5
        %v7195 = vrot.slane %v7194, 4
        %v7196 = vrot.slane %v7063, 5
        %v7197 = vsel %vm1718, %v7195, %v7196
        %v7198 = vrot.slane %v7196, 4
        %v7199 = vrot.slane %v7064, 5
        %v7200 = vsel %vm1718, %v7198, %v7199
        %v7201 = vrot.slane %v7065, 5
        %v7202 = vrot.slane %v7201, 4
        %v7203 = vrot.slane %v7066, 5
        %v7204 = vsel %vm1718, %v7202, %v7203
        %v7205 = vrot.slane %v7203, 4
        %v7206 = vrot.slane %v7067, 5
        %v7207 = vsel %vm1718, %v7205, %v7206
        %v7208 = vrot.slane %v7068, 5
        %v7209 = vrot.slane %v7208, 4
        %v7210 = vrot.slane %v7069, 5
        %v7211 = vsel %vm1718, %v7209, %v7210
        %v7212 = vrot.slane %v7210, 4
        %v7213 = vrot.slane %v7070, 5
        %v7214 = vsel %vm1718, %v7212, %v7213
        %v7215 = vrot.slane %v7071, 5
        %v7216 = vrot.slane %v7215, 4
        %v7217 = vrot.slane %v7072, 5
        %v7218 = vsel %vm1718, %v7216, %v7217
        %v7219 = vrot.slane %v7217, 4
        %v7220 = vrot.slane %v7073, 5
        %v7221 = vsel %vm1718, %v7219, %v7220
        %v7222 = vrot.slane %v7074, 5
        %v7223 = vrot.slane %v7222, 4
        %v7224 = vrot.slane %v7075, 5
        %v7225 = vsel %vm1718, %v7223, %v7224
        %v7226 = vrot.slane %v7224, 4
        %v7227 = vrot.slane %v7076, 5
        %v7228 = vsel %vm1718, %v7226, %v7227
        %v7229 = vrot.slane %v7077, 5
        %v7230 = vrot.slane %v7229, 4
        %v7231 = vrot.slane %v7078, 5
        %v7232 = vsel %vm1718, %v7230, %v7231
        %v7233 = vrot.slane %v7231, 4
        %v7234 = vrot.slane %v7079, 5
        %v7235 = vsel %vm1718, %v7233, %v7234
        %v7236 = vrot.slane %v7080, 5
        %v7237 = vrot.slane %v7236, 4
        %v7238 = vrot.slane %v7081, 5
        %v7239 = vsel %vm1718, %v7237, %v7238
        %v7240 = vrot.slane %v7238, 4
        %v7241 = vrot.slane %v7082, 5
        %v7242 = vsel %vm1718, %v7240, %v7241
        %7275 = vst [vmem:[#allocation4 + $0x8] sm:$0xf] %v7134
        %7276 = vst [vmem:[#allocation4 + $0x2c] sm:$0xf] %v7137
        %7277 = vst [vmem:[#allocation4 + $0x50] sm:$0xf] %v7141
        %7278 = vst [vmem:[#allocation4 + $0x74] sm:$0xf] %v7144
        %7279 = vst [vmem:[#allocation4 + $0x98] sm:$0xf] %v7148
        %7280 = vst [vmem:[#allocation4 + $0xbc] sm:$0xf] %v7151
        %7281 = vst [vmem:[#allocation4 + $0xe0] sm:$0xf] %v7155
        %7282 = vst [vmem:[#allocation4 + $0x104] sm:$0xf] %v7158
        %7283 = vst [vmem:[#allocation4 + $0x128] sm:$0xf] %v7162
        %7284 = vst [vmem:[#allocation4 + $0x14c] sm:$0xf] %v7165
        %7285 = vst [vmem:[#allocation4 + $0x170] sm:$0xf] %v7169
        %7286 = vst [vmem:[#allocation4 + $0x194] sm:$0xf] %v7172
        %7287 = vst [vmem:[#allocation4 + $0x1b8] sm:$0xf] %v7176
        %7288 = vst [vmem:[#allocation4 + $0x1dc] sm:$0xf] %v7179
        %7289 = vst [vmem:[#allocation4 + $0x200] sm:$0xf] %v7183
        %7290 = vst [vmem:[#allocation4 + $0x224] sm:$0xf] %v7186
        %7291 = vst [vmem:[#allocation4 + $0x248] sm:$0xf] %v7190
        %7292 = vst [vmem:[#allocation4 + $0x26c] sm:$0xf] %v7193
        %7293 = vst [vmem:[#allocation4 + $0x290] sm:$0xf] %v7197
        %7294 = vst [vmem:[#allocation4 + $0x2b4] sm:$0xf] %v7200
        %7295 = vst [vmem:[#allocation4 + $0x2d8] sm:$0xf] %v7204
        %7296 = vst [vmem:[#allocation4 + $0x2fc] sm:$0xf] %v7207
        %7297 = vst [vmem:[#allocation4 + $0x320] sm:$0xf] %v7211
        %7298 = vst [vmem:[#allocation4 + $0x344] sm:$0xf] %v7214
        %7299 = vst [vmem:[#allocation4 + $0x368] sm:$0xf] %v7218
        %7300 = vst [vmem:[#allocation4 + $0x38c] sm:$0xf] %v7221
        %7301 = vst [vmem:[#allocation4 + $0x3b0] sm:$0xf] %v7225
        %7302 = vst [vmem:[#allocation4 + $0x3d4] sm:$0xf] %v7228
        %7303 = vst [vmem:[#allocation4 + $0x3f8] sm:$0xf] %v7232
        %7304 = vst [vmem:[#allocation4 + $0x41c] sm:$0xf] %v7235
        %7305 = vst [vmem:[#allocation4 + $0x440] sm:$0xf] %v7239
        %7306 = vst [vmem:[#allocation4 + $0x464] sm:$0xf] %v7242
        %v7307 = vld [vmem:[%s492] sm:$0xf]
        %v7308 = vld [vmem:[%s492 + $0x4] sm:$0xf]
        %v7309 = vld [vmem:[%s492 + $0xc] sm:$0xf]
        %v7310 = vld [vmem:[%s492 + $0x10] sm:$0xf]
        %v7311 = vld [vmem:[%s492 + $0x18] sm:$0xf]
        %v7312 = vld [vmem:[%s492 + $0x1c] sm:$0xf]
        %v7313 = vld [vmem:[%s492 + $0x24] sm:$0xf]
        %v7314 = vld [vmem:[%s492 + $0x28] sm:$0xf]
        %v7315 = vld [vmem:[%s492 + $0x30] sm:$0xf]
        %v7316 = vld [vmem:[%s492 + $0x34] sm:$0xf]
        %v7317 = vld [vmem:[%s492 + $0x3c] sm:$0xf]
        %v7318 = vld [vmem:[%s492 + $0x40] sm:$0xf]
        %v7319 = vld [vmem:[%s492 + $0x48] sm:$0xf]
        %v7320 = vld [vmem:[%s492 + $0x4c] sm:$0xf]
        %v7321 = vld [vmem:[%s492 + $0x54] sm:$0xf]
        %v7322 = vld [vmem:[%s492 + $0x58] sm:$0xf]
        %v7323 = vld [vmem:[%s492 + $0x60] sm:$0xf]
        %v7324 = vld [vmem:[%s492 + $0x64] sm:$0xf]
        %v7325 = vld [vmem:[%s492 + $0x6c] sm:$0xf]
        %v7326 = vld [vmem:[%s492 + $0x70] sm:$0xf]
        %v7327 = vld [vmem:[%s492 + $0x78] sm:$0xf]
        %v7328 = vld [vmem:[%s492 + $0x7c] sm:$0xf]
        %v7329 = vld [vmem:[%s492 + $0x84] sm:$0xf]
        %v7330 = vld [vmem:[%s492 + $0x88] sm:$0xf]
        %v7331 = vld [vmem:[%s492 + $0x90] sm:$0xf]
        %v7332 = vld [vmem:[%s492 + $0x94] sm:$0xf]
        %v7333 = vld [vmem:[%s492 + $0x9c] sm:$0xf]
        %v7334 = vld [vmem:[%s492 + $0xa0] sm:$0xf]
        %v7335 = vld [vmem:[%s492 + $0xa8] sm:$0xf]
        %v7336 = vld [vmem:[%s492 + $0xac] sm:$0xf]
        %v7337 = vld [vmem:[%s492 + $0xb4] sm:$0xf]
        %v7338 = vld [vmem:[%s492 + $0xb8] sm:$0xf]
        %7339 = vst [vmem:[#allocation4 + $0xc] sm:$0xf] %v7307
        %7340 = vst [vmem:[#allocation4 + $0x30] sm:$0xf] %v7308
        %7341 = vst [vmem:[#allocation4 + $0x54] sm:$0xf] %v7309
        %7342 = vst [vmem:[#allocation4 + $0x78] sm:$0xf] %v7310
        %7343 = vst [vmem:[#allocation4 + $0x9c] sm:$0xf] %v7311
        %7344 = vst [vmem:[#allocation4 + $0xc0] sm:$0xf] %v7312
        %7345 = vst [vmem:[#allocation4 + $0xe4] sm:$0xf] %v7313
        %7346 = vst [vmem:[#allocation4 + $0x108] sm:$0xf] %v7314
        %7347 = vst [vmem:[#allocation4 + $0x12c] sm:$0xf] %v7315
        %7348 = vst [vmem:[#allocation4 + $0x150] sm:$0xf] %v7316
        %7349 = vst [vmem:[#allocation4 + $0x174] sm:$0xf] %v7317
        %7350 = vst [vmem:[#allocation4 + $0x198] sm:$0xf] %v7318
        %7351 = vst [vmem:[#allocation4 + $0x1bc] sm:$0xf] %v7319
        %7352 = vst [vmem:[#allocation4 + $0x1e0] sm:$0xf] %v7320
        %7353 = vst [vmem:[#allocation4 + $0x204] sm:$0xf] %v7321
        %7354 = vst [vmem:[#allocation4 + $0x228] sm:$0xf] %v7322
        %7355 = vst [vmem:[#allocation4 + $0x24c] sm:$0xf] %v7323
        %7356 = vst [vmem:[#allocation4 + $0x270] sm:$0xf] %v7324
        %7357 = vst [vmem:[#allocation4 + $0x294] sm:$0xf] %v7325
        %7358 = vst [vmem:[#allocation4 + $0x2b8] sm:$0xf] %v7326
        %7359 = vst [vmem:[#allocation4 + $0x2dc] sm:$0xf] %v7327
        %7360 = vst [vmem:[#allocation4 + $0x300] sm:$0xf] %v7328
        %7361 = vst [vmem:[#allocation4 + $0x324] sm:$0xf] %v7329
        %7362 = vst [vmem:[#allocation4 + $0x348] sm:$0xf] %v7330
        %7363 = vst [vmem:[#allocation4 + $0x36c] sm:$0xf] %v7331
        %7364 = vst [vmem:[#allocation4 + $0x390] sm:$0xf] %v7332
        %7365 = vst [vmem:[#allocation4 + $0x3b4] sm:$0xf] %v7333
        %7366 = vst [vmem:[#allocation4 + $0x3d8] sm:$0xf] %v7334
        %7367 = vst [vmem:[#allocation4 + $0x3fc] sm:$0xf] %v7335
        %7368 = vst [vmem:[#allocation4 + $0x420] sm:$0xf] %v7336
        %7369 = vst [vmem:[#allocation4 + $0x444] sm:$0xf] %v7337
        %7370 = vst [vmem:[#allocation4 + $0x468] sm:$0xf] %v7338
        %v7371 = vld [vmem:[%s492] sm:$0xf]
        %v7372 = vld [vmem:[%s492 + $0x4] sm:$0xf]
        %v7373 = vld [vmem:[%s492 + $0x8] sm:$0x1]
        %v7374 = vld [vmem:[%s492 + $0xc] sm:$0xf]
        %v7375 = vld [vmem:[%s492 + $0x10] sm:$0xf]
        %v7376 = vld [vmem:[%s492 + $0x14] sm:$0x1]
        %v7377 = vld [vmem:[%s492 + $0x18] sm:$0xf]
        %v7378 = vld [vmem:[%s492 + $0x1c] sm:$0xf]
        %v7379 = vld [vmem:[%s492 + $0x20] sm:$0x1]
        %v7380 = vld [vmem:[%s492 + $0x24] sm:$0xf]
        %v7381 = vld [vmem:[%s492 + $0x28] sm:$0xf]
        %v7382 = vld [vmem:[%s492 + $0x2c] sm:$0x1]
        %v7383 = vld [vmem:[%s492 + $0x30] sm:$0xf]
        %v7384 = vld [vmem:[%s492 + $0x34] sm:$0xf]
        %v7385 = vld [vmem:[%s492 + $0x38] sm:$0x1]
        %v7386 = vld [vmem:[%s492 + $0x3c] sm:$0xf]
        %v7387 = vld [vmem:[%s492 + $0x40] sm:$0xf]
        %v7388 = vld [vmem:[%s492 + $0x44] sm:$0x1]
        %v7389 = vld [vmem:[%s492 + $0x48] sm:$0xf]
        %v7390 = vld [vmem:[%s492 + $0x4c] sm:$0xf]
        %v7391 = vld [vmem:[%s492 + $0x50] sm:$0x1]
        %v7392 = vld [vmem:[%s492 + $0x54] sm:$0xf]
        %v7393 = vld [vmem:[%s492 + $0x58] sm:$0xf]
        %v7394 = vld [vmem:[%s492 + $0x5c] sm:$0x1]
        %v7395 = vld [vmem:[%s492 + $0x60] sm:$0xf]
        %v7396 = vld [vmem:[%s492 + $0x64] sm:$0xf]
        %v7397 = vld [vmem:[%s492 + $0x68] sm:$0x1]
        %v7398 = vld [vmem:[%s492 + $0x6c] sm:$0xf]
        %v7399 = vld [vmem:[%s492 + $0x70] sm:$0xf]
        %v7400 = vld [vmem:[%s492 + $0x74] sm:$0x1]
        %v7401 = vld [vmem:[%s492 + $0x78] sm:$0xf]
        %v7402 = vld [vmem:[%s492 + $0x7c] sm:$0xf]
        %v7403 = vld [vmem:[%s492 + $0x80] sm:$0x1]
        %v7404 = vld [vmem:[%s492 + $0x84] sm:$0xf]
        %v7405 = vld [vmem:[%s492 + $0x88] sm:$0xf]
        %v7406 = vld [vmem:[%s492 + $0x8c] sm:$0x1]
        %v7407 = vld [vmem:[%s492 + $0x90] sm:$0xf]
        %v7408 = vld [vmem:[%s492 + $0x94] sm:$0xf]
        %v7409 = vld [vmem:[%s492 + $0x98] sm:$0x1]
        %v7410 = vld [vmem:[%s492 + $0x9c] sm:$0xf]
        %v7411 = vld [vmem:[%s492 + $0xa0] sm:$0xf]
        %v7412 = vld [vmem:[%s492 + $0xa4] sm:$0x1]
        %v7413 = vld [vmem:[%s492 + $0xa8] sm:$0xf]
        %v7414 = vld [vmem:[%s492 + $0xac] sm:$0xf]
        %v7415 = vld [vmem:[%s492 + $0xb0] sm:$0x1]
        %v7416 = vld [vmem:[%s492 + $0xb4] sm:$0xf]
        %v7417 = vld [vmem:[%s492 + $0xb8] sm:$0xf]
        %v7418 = vld [vmem:[%s492 + $0xbc] sm:$0x1]
        %v7420 = vshrl.u32 %v7371, 16
        %v7422 = vrot.slane %v7420, 4
        %v7423 = vshll.u32 %v7371, 16
        %v7425 = vrot.slane %v7423, 5
        %v7426 = vor.u32 %v7422, %v7425
        %v7427 = vrot.slane %v7426, 4
        %v7429 = vshll.u32 %v7372, 16
        %v7431 = vrot.slane %v7429, 5
        %v7432 = vsel %vm1171, %v7427, %v7431
        %v7433 = vshrl.u32 %v7372, 16
        %v7435 = vrot.slane %v7433, 4
        %v7436 = vor.u32 %v7435, %v7431
        %v7437 = vrot.slane %v7436, 4
        %v7439 = vshll.u32 %v7373, 16
        %v7441 = vrot.slane %v7439, 5
        %v7442 = vsel %vm1171, %v7437, %v7441
        %v7444 = vshrl.u32 %v7374, 16
        %v7446 = vrot.slane %v7444, 4
        %v7447 = vshll.u32 %v7374, 16
        %v7449 = vrot.slane %v7447, 5
        %v7450 = vor.u32 %v7446, %v7449
        %v7451 = vrot.slane %v7450, 4
        %v7453 = vshll.u32 %v7375, 16
        %v7455 = vrot.slane %v7453, 5
        %v7456 = vsel %vm1171, %v7451, %v7455
        %v7457 = vshrl.u32 %v7375, 16
        %v7459 = vrot.slane %v7457, 4
        %v7460 = vor.u32 %v7459, %v7455
        %v7461 = vrot.slane %v7460, 4
        %v7463 = vshll.u32 %v7376, 16
        %v7465 = vrot.slane %v7463, 5
        %v7466 = vsel %vm1171, %v7461, %v7465
        %v7468 = vshrl.u32 %v7377, 16
        %v7470 = vrot.slane %v7468, 4
        %v7471 = vshll.u32 %v7377, 16
        %v7473 = vrot.slane %v7471, 5
        %v7474 = vor.u32 %v7470, %v7473
        %v7475 = vrot.slane %v7474, 4
        %v7477 = vshll.u32 %v7378, 16
        %v7479 = vrot.slane %v7477, 5
        %v7480 = vsel %vm1171, %v7475, %v7479
        %v7481 = vshrl.u32 %v7378, 16
        %v7483 = vrot.slane %v7481, 4
        %v7484 = vor.u32 %v7483, %v7479
        %v7485 = vrot.slane %v7484, 4
        %v7487 = vshll.u32 %v7379, 16
        %v7489 = vrot.slane %v7487, 5
        %v7490 = vsel %vm1171, %v7485, %v7489
        %v7492 = vshrl.u32 %v7380, 16
        %v7494 = vrot.slane %v7492, 4
        %v7495 = vshll.u32 %v7380, 16
        %v7497 = vrot.slane %v7495, 5
        %v7498 = vor.u32 %v7494, %v7497
        %v7499 = vrot.slane %v7498, 4
        %v7501 = vshll.u32 %v7381, 16
        %v7503 = vrot.slane %v7501, 5
        %v7504 = vsel %vm1171, %v7499, %v7503
        %v7505 = vshrl.u32 %v7381, 16
        %v7507 = vrot.slane %v7505, 4
        %v7508 = vor.u32 %v7507, %v7503
        %v7509 = vrot.slane %v7508, 4
        %v7511 = vshll.u32 %v7382, 16
        %v7513 = vrot.slane %v7511, 5
        %v7514 = vsel %vm1171, %v7509, %v7513
        %v7516 = vshrl.u32 %v7383, 16
        %v7518 = vrot.slane %v7516, 4
        %v7519 = vshll.u32 %v7383, 16
        %v7521 = vrot.slane %v7519, 5
        %v7522 = vor.u32 %v7518, %v7521
        %v7523 = vrot.slane %v7522, 4
        %v7525 = vshll.u32 %v7384, 16
        %v7527 = vrot.slane %v7525, 5
        %v7528 = vsel %vm1171, %v7523, %v7527
        %v7529 = vshrl.u32 %v7384, 16
        %v7531 = vrot.slane %v7529, 4
        %v7532 = vor.u32 %v7531, %v7527
        %v7533 = vrot.slane %v7532, 4
        %v7535 = vshll.u32 %v7385, 16
        %v7537 = vrot.slane %v7535, 5
        %v7538 = vsel %vm1171, %v7533, %v7537
        %v7540 = vshrl.u32 %v7386, 16
        %v7542 = vrot.slane %v7540, 4
        %v7543 = vshll.u32 %v7386, 16
        %v7545 = vrot.slane %v7543, 5
        %v7546 = vor.u32 %v7542, %v7545
        %v7547 = vrot.slane %v7546, 4
        %v7549 = vshll.u32 %v7387, 16
        %v7551 = vrot.slane %v7549, 5
        %v7552 = vsel %vm1171, %v7547, %v7551
        %v7553 = vshrl.u32 %v7387, 16
        %v7555 = vrot.slane %v7553, 4
        %v7556 = vor.u32 %v7555, %v7551
        %v7557 = vrot.slane %v7556, 4
        %v7559 = vshll.u32 %v7388, 16
        %v7561 = vrot.slane %v7559, 5
        %v7562 = vsel %vm1171, %v7557, %v7561
        %v7564 = vshrl.u32 %v7389, 16
        %v7566 = vrot.slane %v7564, 4
        %v7567 = vshll.u32 %v7389, 16
        %v7569 = vrot.slane %v7567, 5
        %v7570 = vor.u32 %v7566, %v7569
        %v7571 = vrot.slane %v7570, 4
        %v7573 = vshll.u32 %v7390, 16
        %v7575 = vrot.slane %v7573, 5
        %v7576 = vsel %vm1171, %v7571, %v7575
        %v7577 = vshrl.u32 %v7390, 16
        %v7579 = vrot.slane %v7577, 4
        %v7580 = vor.u32 %v7579, %v7575
        %v7581 = vrot.slane %v7580, 4
        %v7583 = vshll.u32 %v7391, 16
        %v7585 = vrot.slane %v7583, 5
        %v7586 = vsel %vm1171, %v7581, %v7585
        %v7588 = vshrl.u32 %v7392, 16
        %v7590 = vrot.slane %v7588, 4
        %v7591 = vshll.u32 %v7392, 16
        %v7593 = vrot.slane %v7591, 5
        %v7594 = vor.u32 %v7590, %v7593
        %v7595 = vrot.slane %v7594, 4
        %v7597 = vshll.u32 %v7393, 16
        %v7599 = vrot.slane %v7597, 5
        %v7600 = vsel %vm1171, %v7595, %v7599
        %v7601 = vshrl.u32 %v7393, 16
        %v7603 = vrot.slane %v7601, 4
        %v7604 = vor.u32 %v7603, %v7599
        %v7605 = vrot.slane %v7604, 4
        %v7607 = vshll.u32 %v7394, 16
        %v7609 = vrot.slane %v7607, 5
        %v7610 = vsel %vm1171, %v7605, %v7609
        %v7612 = vshrl.u32 %v7395, 16
        %v7614 = vrot.slane %v7612, 4
        %v7615 = vshll.u32 %v7395, 16
        %v7617 = vrot.slane %v7615, 5
        %v7618 = vor.u32 %v7614, %v7617
        %v7619 = vrot.slane %v7618, 4
        %v7621 = vshll.u32 %v7396, 16
        %v7623 = vrot.slane %v7621, 5
        %v7624 = vsel %vm1171, %v7619, %v7623
        %v7625 = vshrl.u32 %v7396, 16
        %v7627 = vrot.slane %v7625, 4
        %v7628 = vor.u32 %v7627, %v7623
        %v7629 = vrot.slane %v7628, 4
        %v7631 = vshll.u32 %v7397, 16
        %v7633 = vrot.slane %v7631, 5
        %v7634 = vsel %vm1171, %v7629, %v7633
        %v7636 = vshrl.u32 %v7398, 16
        %v7638 = vrot.slane %v7636, 4
        %v7639 = vshll.u32 %v7398, 16
        %v7641 = vrot.slane %v7639, 5
        %v7642 = vor.u32 %v7638, %v7641
        %v7643 = vrot.slane %v7642, 4
        %v7645 = vshll.u32 %v7399, 16
        %v7647 = vrot.slane %v7645, 5
        %v7648 = vsel %vm1171, %v7643, %v7647
        %v7649 = vshrl.u32 %v7399, 16
        %v7651 = vrot.slane %v7649, 4
        %v7652 = vor.u32 %v7651, %v7647
        %v7653 = vrot.slane %v7652, 4
        %v7655 = vshll.u32 %v7400, 16
        %v7657 = vrot.slane %v7655, 5
        %v7658 = vsel %vm1171, %v7653, %v7657
        %v7660 = vshrl.u32 %v7401, 16
        %v7662 = vrot.slane %v7660, 4
        %v7663 = vshll.u32 %v7401, 16
        %v7665 = vrot.slane %v7663, 5
        %v7666 = vor.u32 %v7662, %v7665
        %v7667 = vrot.slane %v7666, 4
        %v7669 = vshll.u32 %v7402, 16
        %v7671 = vrot.slane %v7669, 5
        %v7672 = vsel %vm1171, %v7667, %v7671
        %v7673 = vshrl.u32 %v7402, 16
        %v7675 = vrot.slane %v7673, 4
        %v7676 = vor.u32 %v7675, %v7671
        %v7677 = vrot.slane %v7676, 4
        %v7679 = vshll.u32 %v7403, 16
        %v7681 = vrot.slane %v7679, 5
        %v7682 = vsel %vm1171, %v7677, %v7681
        %v7684 = vshrl.u32 %v7404, 16
        %v7686 = vrot.slane %v7684, 4
        %v7687 = vshll.u32 %v7404, 16
        %v7689 = vrot.slane %v7687, 5
        %v7690 = vor.u32 %v7686, %v7689
        %v7691 = vrot.slane %v7690, 4
        %v7693 = vshll.u32 %v7405, 16
        %v7695 = vrot.slane %v7693, 5
        %v7696 = vsel %vm1171, %v7691, %v7695
        %v7697 = vshrl.u32 %v7405, 16
        %v7699 = vrot.slane %v7697, 4
        %v7700 = vor.u32 %v7699, %v7695
        %v7701 = vrot.slane %v7700, 4
        %v7703 = vshll.u32 %v7406, 16
        %v7705 = vrot.slane %v7703, 5
        %v7706 = vsel %vm1171, %v7701, %v7705
        %v7708 = vshrl.u32 %v7407, 16
        %v7710 = vrot.slane %v7708, 4
        %v7711 = vshll.u32 %v7407, 16
        %v7713 = vrot.slane %v7711, 5
        %v7714 = vor.u32 %v7710, %v7713
        %v7715 = vrot.slane %v7714, 4
        %v7717 = vshll.u32 %v7408, 16
        %v7719 = vrot.slane %v7717, 5
        %v7720 = vsel %vm1171, %v7715, %v7719
        %v7721 = vshrl.u32 %v7408, 16
        %v7723 = vrot.slane %v7721, 4
        %v7724 = vor.u32 %v7723, %v7719
        %v7725 = vrot.slane %v7724, 4
        %v7727 = vshll.u32 %v7409, 16
        %v7729 = vrot.slane %v7727, 5
        %v7730 = vsel %vm1171, %v7725, %v7729
        %v7732 = vshrl.u32 %v7410, 16
        %v7734 = vrot.slane %v7732, 4
        %v7735 = vshll.u32 %v7410, 16
        %v7737 = vrot.slane %v7735, 5
        %v7738 = vor.u32 %v7734, %v7737
        %v7739 = vrot.slane %v7738, 4
        %v7741 = vshll.u32 %v7411, 16
        %v7743 = vrot.slane %v7741, 5
        %v7744 = vsel %vm1171, %v7739, %v7743
        %v7745 = vshrl.u32 %v7411, 16
        %v7747 = vrot.slane %v7745, 4
        %v7748 = vor.u32 %v7747, %v7743
        %v7749 = vrot.slane %v7748, 4
        %v7751 = vshll.u32 %v7412, 16
        %v7753 = vrot.slane %v7751, 5
        %v7754 = vsel %vm1171, %v7749, %v7753
        %v7756 = vshrl.u32 %v7413, 16
        %v7758 = vrot.slane %v7756, 4
        %v7759 = vshll.u32 %v7413, 16
        %v7761 = vrot.slane %v7759, 5
        %v7762 = vor.u32 %v7758, %v7761
        %v7763 = vrot.slane %v7762, 4
        %v7765 = vshll.u32 %v7414, 16
        %v7767 = vrot.slane %v7765, 5
        %v7768 = vsel %vm1171, %v7763, %v7767
        %v7769 = vshrl.u32 %v7414, 16
        %v7771 = vrot.slane %v7769, 4
        %v7772 = vor.u32 %v7771, %v7767
        %v7773 = vrot.slane %v7772, 4
        %v7775 = vshll.u32 %v7415, 16
        %v7777 = vrot.slane %v7775, 5
        %v7778 = vsel %vm1171, %v7773, %v7777
        %v7780 = vshrl.u32 %v7416, 16
        %v7782 = vrot.slane %v7780, 4
        %v7783 = vshll.u32 %v7416, 16
        %v7785 = vrot.slane %v7783, 5
        %v7786 = vor.u32 %v7782, %v7785
        %v7787 = vrot.slane %v7786, 4
        %v7789 = vshll.u32 %v7417, 16
        %v7791 = vrot.slane %v7789, 5
        %v7792 = vsel %vm1171, %v7787, %v7791
        %v7793 = vshrl.u32 %v7417, 16
        %v7795 = vrot.slane %v7793, 4
        %v7796 = vor.u32 %v7795, %v7791
        %v7797 = vrot.slane %v7796, 4
        %v7799 = vshll.u32 %v7418, 16
        %v7801 = vrot.slane %v7799, 5
        %v7802 = vsel %vm1171, %v7797, %v7801
        %7835 = vst [vmem:[#allocation4 + $0x10] sm:$0xf] %v7432
        %7836 = vst [vmem:[#allocation4 + $0x34] sm:$0xf] %v7442
        %7837 = vst [vmem:[#allocation4 + $0x58] sm:$0xf] %v7456
        %7838 = vst [vmem:[#allocation4 + $0x7c] sm:$0xf] %v7466
        %7839 = vst [vmem:[#allocation4 + $0xa0] sm:$0xf] %v7480
        %7840 = vst [vmem:[#allocation4 + $0xc4] sm:$0xf] %v7490
        %7841 = vst [vmem:[#allocation4 + $0xe8] sm:$0xf] %v7504
        %7842 = vst [vmem:[#allocation4 + $0x10c] sm:$0xf] %v7514
        %7843 = vst [vmem:[#allocation4 + $0x130] sm:$0xf] %v7528
        %7844 = vst [vmem:[#allocation4 + $0x154] sm:$0xf] %v7538
        %7845 = vst [vmem:[#allocation4 + $0x178] sm:$0xf] %v7552
        %7846 = vst [vmem:[#allocation4 + $0x19c] sm:$0xf] %v7562
        %7847 = vst [vmem:[#allocation4 + $0x1c0] sm:$0xf] %v7576
        %7848 = vst [vmem:[#allocation4 + $0x1e4] sm:$0xf] %v7586
        %7849 = vst [vmem:[#allocation4 + $0x208] sm:$0xf] %v7600
        %7850 = vst [vmem:[#allocation4 + $0x22c] sm:$0xf] %v7610
        %7851 = vst [vmem:[#allocation4 + $0x250] sm:$0xf] %v7624
        %7852 = vst [vmem:[#allocation4 + $0x274] sm:$0xf] %v7634
        %7853 = vst [vmem:[#allocation4 + $0x298] sm:$0xf] %v7648
        %7854 = vst [vmem:[#allocation4 + $0x2bc] sm:$0xf] %v7658
        %7855 = vst [vmem:[#allocation4 + $0x2e0] sm:$0xf] %v7672
        %7856 = vst [vmem:[#allocation4 + $0x304] sm:$0xf] %v7682
        %7857 = vst [vmem:[#allocation4 + $0x328] sm:$0xf] %v7696
        %7858 = vst [vmem:[#allocation4 + $0x34c] sm:$0xf] %v7706
        %7859 = vst [vmem:[#allocation4 + $0x370] sm:$0xf] %v7720
        %7860 = vst [vmem:[#allocation4 + $0x394] sm:$0xf] %v7730
        %7861 = vst [vmem:[#allocation4 + $0x3b8] sm:$0xf] %v7744
        %7862 = vst [vmem:[#allocation4 + $0x3dc] sm:$0xf] %v7754
        %7863 = vst [vmem:[#allocation4 + $0x400] sm:$0xf] %v7768
        %7864 = vst [vmem:[#allocation4 + $0x424] sm:$0xf] %v7778
        %7865 = vst [vmem:[#allocation4 + $0x448] sm:$0xf] %v7792
        %7866 = vst [vmem:[#allocation4 + $0x46c] sm:$0xf] %v7802
        %v7867 = vld [vmem:[%s492] sm:$0xe]
        %v7868 = vld [vmem:[%s492 + $0x4] sm:$0xf]
        %v7869 = vld [vmem:[%s492 + $0x8] sm:$0x1]
        %v7870 = vld [vmem:[%s492 + $0xc] sm:$0xe]
        %v7871 = vld [vmem:[%s492 + $0x10] sm:$0xf]
        %v7872 = vld [vmem:[%s492 + $0x14] sm:$0x1]
        %v7873 = vld [vmem:[%s492 + $0x18] sm:$0xe]
        %v7874 = vld [vmem:[%s492 + $0x1c] sm:$0xf]
        %v7875 = vld [vmem:[%s492 + $0x20] sm:$0x1]
        %v7876 = vld [vmem:[%s492 + $0x24] sm:$0xe]
        %v7877 = vld [vmem:[%s492 + $0x28] sm:$0xf]
        %v7878 = vld [vmem:[%s492 + $0x2c] sm:$0x1]
        %v7879 = vld [vmem:[%s492 + $0x30] sm:$0xe]
        %v7880 = vld [vmem:[%s492 + $0x34] sm:$0xf]
        %v7881 = vld [vmem:[%s492 + $0x38] sm:$0x1]
        %v7882 = vld [vmem:[%s492 + $0x3c] sm:$0xe]
        %v7883 = vld [vmem:[%s492 + $0x40] sm:$0xf]
        %v7884 = vld [vmem:[%s492 + $0x44] sm:$0x1]
        %v7885 = vld [vmem:[%s492 + $0x48] sm:$0xe]
        %v7886 = vld [vmem:[%s492 + $0x4c] sm:$0xf]
        %v7887 = vld [vmem:[%s492 + $0x50] sm:$0x1]
        %v7888 = vld [vmem:[%s492 + $0x54] sm:$0xe]
        %v7889 = vld [vmem:[%s492 + $0x58] sm:$0xf]
        %v7890 = vld [vmem:[%s492 + $0x5c] sm:$0x1]
        %v7891 = vld [vmem:[%s492 + $0x60] sm:$0xe]
        %v7892 = vld [vmem:[%s492 + $0x64] sm:$0xf]
        %v7893 = vld [vmem:[%s492 + $0x68] sm:$0x1]
        %v7894 = vld [vmem:[%s492 + $0x6c] sm:$0xe]
        %v7895 = vld [vmem:[%s492 + $0x70] sm:$0xf]
        %v7896 = vld [vmem:[%s492 + $0x74] sm:$0x1]
        %v7897 = vld [vmem:[%s492 + $0x78] sm:$0xe]
        %v7898 = vld [vmem:[%s492 + $0x7c] sm:$0xf]
        %v7899 = vld [vmem:[%s492 + $0x80] sm:$0x1]
        %v7900 = vld [vmem:[%s492 + $0x84] sm:$0xe]
        %v7901 = vld [vmem:[%s492 + $0x88] sm:$0xf]
        %v7902 = vld [vmem:[%s492 + $0x8c] sm:$0x1]
        %v7903 = vld [vmem:[%s492 + $0x90] sm:$0xe]
        %v7904 = vld [vmem:[%s492 + $0x94] sm:$0xf]
        %v7905 = vld [vmem:[%s492 + $0x98] sm:$0x1]
        %v7906 = vld [vmem:[%s492 + $0x9c] sm:$0xe]
        %v7907 = vld [vmem:[%s492 + $0xa0] sm:$0xf]
        %v7908 = vld [vmem:[%s492 + $0xa4] sm:$0x1]
        %v7909 = vld [vmem:[%s492 + $0xa8] sm:$0xe]
        %v7910 = vld [vmem:[%s492 + $0xac] sm:$0xf]
        %v7911 = vld [vmem:[%s492 + $0xb0] sm:$0x1]
        %v7912 = vld [vmem:[%s492 + $0xb4] sm:$0xe]
        %v7913 = vld [vmem:[%s492 + $0xb8] sm:$0xf]
        %v7914 = vld [vmem:[%s492 + $0xbc] sm:$0x1]
        %v7963 = vrot.slane %v7867, 5
        %v7964 = vrot.slane %v7963, 4
        %v7965 = vrot.slane %v7868, 5
        %v7966 = vsel %vm1718, %v7964, %v7965
        %v7967 = vrot.slane %v7965, 4
        %v7968 = vrot.slane %v7869, 5
        %v7969 = vsel %vm1718, %v7967, %v7968
        %v7970 = vrot.slane %v7870, 5
        %v7971 = vrot.slane %v7970, 4
        %v7972 = vrot.slane %v7871, 5
        %v7973 = vsel %vm1718, %v7971, %v7972
        %v7974 = vrot.slane %v7972, 4
        %v7975 = vrot.slane %v7872, 5
        %v7976 = vsel %vm1718, %v7974, %v7975
        %v7977 = vrot.slane %v7873, 5
        %v7978 = vrot.slane %v7977, 4
        %v7979 = vrot.slane %v7874, 5
        %v7980 = vsel %vm1718, %v7978, %v7979
        %v7981 = vrot.slane %v7979, 4
        %v7982 = vrot.slane %v7875, 5
        %v7983 = vsel %vm1718, %v7981, %v7982
        %v7984 = vrot.slane %v7876, 5
        %v7985 = vrot.slane %v7984, 4
        %v7986 = vrot.slane %v7877, 5
        %v7987 = vsel %vm1718, %v7985, %v7986
        %v7988 = vrot.slane %v7986, 4
        %v7989 = vrot.slane %v7878, 5
        %v7990 = vsel %vm1718, %v7988, %v7989
        %v7991 = vrot.slane %v7879, 5
        %v7992 = vrot.slane %v7991, 4
        %v7993 = vrot.slane %v7880, 5
        %v7994 = vsel %vm1718, %v7992, %v7993
        %v7995 = vrot.slane %v7993, 4
        %v7996 = vrot.slane %v7881, 5
        %v7997 = vsel %vm1718, %v7995, %v7996
        %v7998 = vrot.slane %v7882, 5
        %v7999 = vrot.slane %v7998, 4
        %v8000 = vrot.slane %v7883, 5
        %v8001 = vsel %vm1718, %v7999, %v8000
        %v8002 = vrot.slane %v8000, 4
        %v8003 = vrot.slane %v7884, 5
        %v8004 = vsel %vm1718, %v8002, %v8003
        %v8005 = vrot.slane %v7885, 5
        %v8006 = vrot.slane %v8005, 4
        %v8007 = vrot.slane %v7886, 5
        %v8008 = vsel %vm1718, %v8006, %v8007
        %v8009 = vrot.slane %v8007, 4
        %v8010 = vrot.slane %v7887, 5
        %v8011 = vsel %vm1718, %v8009, %v8010
        %v8012 = vrot.slane %v7888, 5
        %v8013 = vrot.slane %v8012, 4
        %v8014 = vrot.slane %v7889, 5
        %v8015 = vsel %vm1718, %v8013, %v8014
        %v8016 = vrot.slane %v8014, 4
        %v8017 = vrot.slane %v7890, 5
        %v8018 = vsel %vm1718, %v8016, %v8017
        %v8019 = vrot.slane %v7891, 5
        %v8020 = vrot.slane %v8019, 4
        %v8021 = vrot.slane %v7892, 5
        %v8022 = vsel %vm1718, %v8020, %v8021
        %v8023 = vrot.slane %v8021, 4
        %v8024 = vrot.slane %v7893, 5
        %v8025 = vsel %vm1718, %v8023, %v8024
        %v8026 = vrot.slane %v7894, 5
        %v8027 = vrot.slane %v8026, 4
        %v8028 = vrot.slane %v7895, 5
        %v8029 = vsel %vm1718, %v8027, %v8028
        %v8030 = vrot.slane %v8028, 4
        %v8031 = vrot.slane %v7896, 5
        %v8032 = vsel %vm1718, %v8030, %v8031
        %v8033 = vrot.slane %v7897, 5
        %v8034 = vrot.slane %v8033, 4
        %v8035 = vrot.slane %v7898, 5
        %v8036 = vsel %vm1718, %v8034, %v8035
        %v8037 = vrot.slane %v8035, 4
        %v8038 = vrot.slane %v7899, 5
        %v8039 = vsel %vm1718, %v8037, %v8038
        %v8040 = vrot.slane %v7900, 5
        %v8041 = vrot.slane %v8040, 4
        %v8042 = vrot.slane %v7901, 5
        %v8043 = vsel %vm1718, %v8041, %v8042
        %v8044 = vrot.slane %v8042, 4
        %v8045 = vrot.slane %v7902, 5
        %v8046 = vsel %vm1718, %v8044, %v8045
        %v8047 = vrot.slane %v7903, 5
        %v8048 = vrot.slane %v8047, 4
        %v8049 = vrot.slane %v7904, 5
        %v8050 = vsel %vm1718, %v8048, %v8049
        %v8051 = vrot.slane %v8049, 4
        %v8052 = vrot.slane %v7905, 5
        %v8053 = vsel %vm1718, %v8051, %v8052
        %v8054 = vrot.slane %v7906, 5
        %v8055 = vrot.slane %v8054, 4
        %v8056 = vrot.slane %v7907, 5
        %v8057 = vsel %vm1718, %v8055, %v8056
        %v8058 = vrot.slane %v8056, 4
        %v8059 = vrot.slane %v7908, 5
        %v8060 = vsel %vm1718, %v8058, %v8059
        %v8061 = vrot.slane %v7909, 5
        %v8062 = vrot.slane %v8061, 4
        %v8063 = vrot.slane %v7910, 5
        %v8064 = vsel %vm1718, %v8062, %v8063
        %v8065 = vrot.slane %v8063, 4
        %v8066 = vrot.slane %v7911, 5
        %v8067 = vsel %vm1718, %v8065, %v8066
        %v8068 = vrot.slane %v7912, 5
        %v8069 = vrot.slane %v8068, 4
        %v8070 = vrot.slane %v7913, 5
        %v8071 = vsel %vm1718, %v8069, %v8070
        %v8072 = vrot.slane %v8070, 4
        %v8073 = vrot.slane %v7914, 5
        %v8074 = vsel %vm1718, %v8072, %v8073
        %8107 = vst [vmem:[#allocation4 + $0x14] sm:$0xf] %v7966
        %8108 = vst [vmem:[#allocation4 + $0x38] sm:$0xf] %v7969
        %8109 = vst [vmem:[#allocation4 + $0x5c] sm:$0xf] %v7973
        %8110 = vst [vmem:[#allocation4 + $0x80] sm:$0xf] %v7976
        %8111 = vst [vmem:[#allocation4 + $0xa4] sm:$0xf] %v7980
        %8112 = vst [vmem:[#allocation4 + $0xc8] sm:$0xf] %v7983
        %8113 = vst [vmem:[#allocation4 + $0xec] sm:$0xf] %v7987
        %8114 = vst [vmem:[#allocation4 + $0x110] sm:$0xf] %v7990
        %8115 = vst [vmem:[#allocation4 + $0x134] sm:$0xf] %v7994
        %8116 = vst [vmem:[#allocation4 + $0x158] sm:$0xf] %v7997
        %8117 = vst [vmem:[#allocation4 + $0x17c] sm:$0xf] %v8001
        %8118 = vst [vmem:[#allocation4 + $0x1a0] sm:$0xf] %v8004
        %8119 = vst [vmem:[#allocation4 + $0x1c4] sm:$0xf] %v8008
        %8120 = vst [vmem:[#allocation4 + $0x1e8] sm:$0xf] %v8011
        %8121 = vst [vmem:[#allocation4 + $0x20c] sm:$0xf] %v8015
        %8122 = vst [vmem:[#allocation4 + $0x230] sm:$0xf] %v8018
        %8123 = vst [vmem:[#allocation4 + $0x254] sm:$0xf] %v8022
        %8124 = vst [vmem:[#allocation4 + $0x278] sm:$0xf] %v8025
        %8125 = vst [vmem:[#allocation4 + $0x29c] sm:$0xf] %v8029
        %8126 = vst [vmem:[#allocation4 + $0x2c0] sm:$0xf] %v8032
        %8127 = vst [vmem:[#allocation4 + $0x2e4] sm:$0xf] %v8036
        %8128 = vst [vmem:[#allocation4 + $0x308] sm:$0xf] %v8039
        %8129 = vst [vmem:[#allocation4 + $0x32c] sm:$0xf] %v8043
        %8130 = vst [vmem:[#allocation4 + $0x350] sm:$0xf] %v8046
        %8131 = vst [vmem:[#allocation4 + $0x374] sm:$0xf] %v8050
        %8132 = vst [vmem:[#allocation4 + $0x398] sm:$0xf] %v8053
        %8133 = vst [vmem:[#allocation4 + $0x3bc] sm:$0xf] %v8057
        %8134 = vst [vmem:[#allocation4 + $0x3e0] sm:$0xf] %v8060
        %8135 = vst [vmem:[#allocation4 + $0x404] sm:$0xf] %v8064
        %8136 = vst [vmem:[#allocation4 + $0x428] sm:$0xf] %v8067
        %8137 = vst [vmem:[#allocation4 + $0x44c] sm:$0xf] %v8071
        %8138 = vst [vmem:[#allocation4 + $0x470] sm:$0xf] %v8074
        %s8139 = scalar_lea.vmem [#allocation3], 24
        %v8140 = vld [vmem:[%s8139] sm:$0xf]
        %v8141 = vld [vmem:[%s8139 + $0x4] sm:$0xf]
        %v8142 = vld [vmem:[%s8139 + $0xc] sm:$0xf]
        %v8143 = vld [vmem:[%s8139 + $0x10] sm:$0xf]
        %v8144 = vld [vmem:[%s8139 + $0x18] sm:$0xf]
        %v8145 = vld [vmem:[%s8139 + $0x1c] sm:$0xf]
        %v8146 = vld [vmem:[%s8139 + $0x24] sm:$0xf]
        %v8147 = vld [vmem:[%s8139 + $0x28] sm:$0xf]
        %v8148 = vld [vmem:[%s8139 + $0x30] sm:$0xf]
        %v8149 = vld [vmem:[%s8139 + $0x34] sm:$0xf]
        %v8150 = vld [vmem:[%s8139 + $0x3c] sm:$0xf]
        %v8151 = vld [vmem:[%s8139 + $0x40] sm:$0xf]
        %v8152 = vld [vmem:[%s8139 + $0x48] sm:$0xf]
        %v8153 = vld [vmem:[%s8139 + $0x4c] sm:$0xf]
        %v8154 = vld [vmem:[%s8139 + $0x54] sm:$0xf]
        %v8155 = vld [vmem:[%s8139 + $0x58] sm:$0xf]
        %v8156 = vld [vmem:[%s8139 + $0x60] sm:$0xf]
        %v8157 = vld [vmem:[%s8139 + $0x64] sm:$0xf]
        %v8158 = vld [vmem:[%s8139 + $0x6c] sm:$0xf]
        %v8159 = vld [vmem:[%s8139 + $0x70] sm:$0xf]
        %v8160 = vld [vmem:[%s8139 + $0x78] sm:$0xf]
        %v8161 = vld [vmem:[%s8139 + $0x7c] sm:$0xf]
        %v8162 = vld [vmem:[%s8139 + $0x84] sm:$0xf]
        %v8163 = vld [vmem:[%s8139 + $0x88] sm:$0xf]
        %v8164 = vld [vmem:[%s8139 + $0x90] sm:$0xf]
        %v8165 = vld [vmem:[%s8139 + $0x94] sm:$0xf]
        %v8166 = vld [vmem:[%s8139 + $0x9c] sm:$0xf]
        %v8167 = vld [vmem:[%s8139 + $0xa0] sm:$0xf]
        %v8168 = vld [vmem:[%s8139 + $0xa8] sm:$0xf]
        %v8169 = vld [vmem:[%s8139 + $0xac] sm:$0xf]
        %v8170 = vld [vmem:[%s8139 + $0xb4] sm:$0xf]
        %v8171 = vld [vmem:[%s8139 + $0xb8] sm:$0xf]
        %8172 = vst [vmem:[#allocation4 + $0x18] sm:$0xf] %v8140
        %8173 = vst [vmem:[#allocation4 + $0x3c] sm:$0xf] %v8141
        %8174 = vst [vmem:[#allocation4 + $0x60] sm:$0xf] %v8142
        %8175 = vst [vmem:[#allocation4 + $0x84] sm:$0xf] %v8143
        %8176 = vst [vmem:[#allocation4 + $0xa8] sm:$0xf] %v8144
        %8177 = vst [vmem:[#allocation4 + $0xcc] sm:$0xf] %v8145
        %8178 = vst [vmem:[#allocation4 + $0xf0] sm:$0xf] %v8146
        %8179 = vst [vmem:[#allocation4 + $0x114] sm:$0xf] %v8147
        %8180 = vst [vmem:[#allocation4 + $0x138] sm:$0xf] %v8148
        %8181 = vst [vmem:[#allocation4 + $0x15c] sm:$0xf] %v8149
        %8182 = vst [vmem:[#allocation4 + $0x180] sm:$0xf] %v8150
        %8183 = vst [vmem:[#allocation4 + $0x1a4] sm:$0xf] %v8151
        %8184 = vst [vmem:[#allocation4 + $0x1c8] sm:$0xf] %v8152
        %8185 = vst [vmem:[#allocation4 + $0x1ec] sm:$0xf] %v8153
        %8186 = vst [vmem:[#allocation4 + $0x210] sm:$0xf] %v8154
        %8187 = vst [vmem:[#allocation4 + $0x234] sm:$0xf] %v8155
        %8188 = vst [vmem:[#allocation4 + $0x258] sm:$0xf] %v8156
        %8189 = vst [vmem:[#allocation4 + $0x27c] sm:$0xf] %v8157
        %8190 = vst [vmem:[#allocation4 + $0x2a0] sm:$0xf] %v8158
        %8191 = vst [vmem:[#allocation4 + $0x2c4] sm:$0xf] %v8159
        %8192 = vst [vmem:[#allocation4 + $0x2e8] sm:$0xf] %v8160
        %8193 = vst [vmem:[#allocation4 + $0x30c] sm:$0xf] %v8161
        %8194 = vst [vmem:[#allocation4 + $0x330] sm:$0xf] %v8162
        %8195 = vst [vmem:[#allocation4 + $0x354] sm:$0xf] %v8163
        %8196 = vst [vmem:[#allocation4 + $0x378] sm:$0xf] %v8164
        %8197 = vst [vmem:[#allocation4 + $0x39c] sm:$0xf] %v8165
        %8198 = vst [vmem:[#allocation4 + $0x3c0] sm:$0xf] %v8166
        %8199 = vst [vmem:[#allocation4 + $0x3e4] sm:$0xf] %v8167
        %8200 = vst [vmem:[#allocation4 + $0x408] sm:$0xf] %v8168
        %8201 = vst [vmem:[#allocation4 + $0x42c] sm:$0xf] %v8169
        %8202 = vst [vmem:[#allocation4 + $0x450] sm:$0xf] %v8170
        %8203 = vst [vmem:[#allocation4 + $0x474] sm:$0xf] %v8171
        %v8204 = vld [vmem:[%s8139] sm:$0xf]
        %v8205 = vld [vmem:[%s8139 + $0x4] sm:$0xf]
        %v8206 = vld [vmem:[%s8139 + $0x8] sm:$0x1]
        %v8207 = vld [vmem:[%s8139 + $0xc] sm:$0xf]
        %v8208 = vld [vmem:[%s8139 + $0x10] sm:$0xf]
        %v8209 = vld [vmem:[%s8139 + $0x14] sm:$0x1]
        %v8210 = vld [vmem:[%s8139 + $0x18] sm:$0xf]
        %v8211 = vld [vmem:[%s8139 + $0x1c] sm:$0xf]
        %v8212 = vld [vmem:[%s8139 + $0x20] sm:$0x1]
        %v8213 = vld [vmem:[%s8139 + $0x24] sm:$0xf]
        %v8214 = vld [vmem:[%s8139 + $0x28] sm:$0xf]
        %v8215 = vld [vmem:[%s8139 + $0x2c] sm:$0x1]
        %v8216 = vld [vmem:[%s8139 + $0x30] sm:$0xf]
        %v8217 = vld [vmem:[%s8139 + $0x34] sm:$0xf]
        %v8218 = vld [vmem:[%s8139 + $0x38] sm:$0x1]
        %v8219 = vld [vmem:[%s8139 + $0x3c] sm:$0xf]
        %v8220 = vld [vmem:[%s8139 + $0x40] sm:$0xf]
        %v8221 = vld [vmem:[%s8139 + $0x44] sm:$0x1]
        %v8222 = vld [vmem:[%s8139 + $0x48] sm:$0xf]
        %v8223 = vld [vmem:[%s8139 + $0x4c] sm:$0xf]
        %v8224 = vld [vmem:[%s8139 + $0x50] sm:$0x1]
        %v8225 = vld [vmem:[%s8139 + $0x54] sm:$0xf]
        %v8226 = vld [vmem:[%s8139 + $0x58] sm:$0xf]
        %v8227 = vld [vmem:[%s8139 + $0x5c] sm:$0x1]
        %v8228 = vld [vmem:[%s8139 + $0x60] sm:$0xf]
        %v8229 = vld [vmem:[%s8139 + $0x64] sm:$0xf]
        %v8230 = vld [vmem:[%s8139 + $0x68] sm:$0x1]
        %v8231 = vld [vmem:[%s8139 + $0x6c] sm:$0xf]
        %v8232 = vld [vmem:[%s8139 + $0x70] sm:$0xf]
        %v8233 = vld [vmem:[%s8139 + $0x74] sm:$0x1]
        %v8234 = vld [vmem:[%s8139 + $0x78] sm:$0xf]
        %v8235 = vld [vmem:[%s8139 + $0x7c] sm:$0xf]
        %v8236 = vld [vmem:[%s8139 + $0x80] sm:$0x1]
        %v8237 = vld [vmem:[%s8139 + $0x84] sm:$0xf]
        %v8238 = vld [vmem:[%s8139 + $0x88] sm:$0xf]
        %v8239 = vld [vmem:[%s8139 + $0x8c] sm:$0x1]
        %v8240 = vld [vmem:[%s8139 + $0x90] sm:$0xf]
        %v8241 = vld [vmem:[%s8139 + $0x94] sm:$0xf]
        %v8242 = vld [vmem:[%s8139 + $0x98] sm:$0x1]
        %v8243 = vld [vmem:[%s8139 + $0x9c] sm:$0xf]
        %v8244 = vld [vmem:[%s8139 + $0xa0] sm:$0xf]
        %v8245 = vld [vmem:[%s8139 + $0xa4] sm:$0x1]
        %v8246 = vld [vmem:[%s8139 + $0xa8] sm:$0xf]
        %v8247 = vld [vmem:[%s8139 + $0xac] sm:$0xf]
        %v8248 = vld [vmem:[%s8139 + $0xb0] sm:$0x1]
        %v8249 = vld [vmem:[%s8139 + $0xb4] sm:$0xf]
        %v8250 = vld [vmem:[%s8139 + $0xb8] sm:$0xf]
        %v8251 = vld [vmem:[%s8139 + $0xbc] sm:$0x1]
        %v8253 = vshrl.u32 %v8204, 16
        %v8255 = vrot.slane %v8253, 4
        %v8256 = vshll.u32 %v8204, 16
        %v8258 = vrot.slane %v8256, 5
        %v8259 = vor.u32 %v8255, %v8258
        %v8260 = vrot.slane %v8259, 4
        %v8262 = vshll.u32 %v8205, 16
        %v8264 = vrot.slane %v8262, 5
        %v8265 = vsel %vm1171, %v8260, %v8264
        %v8266 = vshrl.u32 %v8205, 16
        %v8268 = vrot.slane %v8266, 4
        %v8269 = vor.u32 %v8268, %v8264
        %v8270 = vrot.slane %v8269, 4
        %v8272 = vshll.u32 %v8206, 16
        %v8274 = vrot.slane %v8272, 5
        %v8275 = vsel %vm1171, %v8270, %v8274
        %v8277 = vshrl.u32 %v8207, 16
        %v8279 = vrot.slane %v8277, 4
        %v8280 = vshll.u32 %v8207, 16
        %v8282 = vrot.slane %v8280, 5
        %v8283 = vor.u32 %v8279, %v8282
        %v8284 = vrot.slane %v8283, 4
        %v8286 = vshll.u32 %v8208, 16
        %v8288 = vrot.slane %v8286, 5
        %v8289 = vsel %vm1171, %v8284, %v8288
        %v8290 = vshrl.u32 %v8208, 16
        %v8292 = vrot.slane %v8290, 4
        %v8293 = vor.u32 %v8292, %v8288
        %v8294 = vrot.slane %v8293, 4
        %v8296 = vshll.u32 %v8209, 16
        %v8298 = vrot.slane %v8296, 5
        %v8299 = vsel %vm1171, %v8294, %v8298
        %v8301 = vshrl.u32 %v8210, 16
        %v8303 = vrot.slane %v8301, 4
        %v8304 = vshll.u32 %v8210, 16
        %v8306 = vrot.slane %v8304, 5
        %v8307 = vor.u32 %v8303, %v8306
        %v8308 = vrot.slane %v8307, 4
        %v8310 = vshll.u32 %v8211, 16
        %v8312 = vrot.slane %v8310, 5
        %v8313 = vsel %vm1171, %v8308, %v8312
        %v8314 = vshrl.u32 %v8211, 16
        %v8316 = vrot.slane %v8314, 4
        %v8317 = vor.u32 %v8316, %v8312
        %v8318 = vrot.slane %v8317, 4
        %v8320 = vshll.u32 %v8212, 16
        %v8322 = vrot.slane %v8320, 5
        %v8323 = vsel %vm1171, %v8318, %v8322
        %v8325 = vshrl.u32 %v8213, 16
        %v8327 = vrot.slane %v8325, 4
        %v8328 = vshll.u32 %v8213, 16
        %v8330 = vrot.slane %v8328, 5
        %v8331 = vor.u32 %v8327, %v8330
        %v8332 = vrot.slane %v8331, 4
        %v8334 = vshll.u32 %v8214, 16
        %v8336 = vrot.slane %v8334, 5
        %v8337 = vsel %vm1171, %v8332, %v8336
        %v8338 = vshrl.u32 %v8214, 16
        %v8340 = vrot.slane %v8338, 4
        %v8341 = vor.u32 %v8340, %v8336
        %v8342 = vrot.slane %v8341, 4
        %v8344 = vshll.u32 %v8215, 16
        %v8346 = vrot.slane %v8344, 5
        %v8347 = vsel %vm1171, %v8342, %v8346
        %v8349 = vshrl.u32 %v8216, 16
        %v8351 = vrot.slane %v8349, 4
        %v8352 = vshll.u32 %v8216, 16
        %v8354 = vrot.slane %v8352, 5
        %v8355 = vor.u32 %v8351, %v8354
        %v8356 = vrot.slane %v8355, 4
        %v8358 = vshll.u32 %v8217, 16
        %v8360 = vrot.slane %v8358, 5
        %v8361 = vsel %vm1171, %v8356, %v8360
        %v8362 = vshrl.u32 %v8217, 16
        %v8364 = vrot.slane %v8362, 4
        %v8365 = vor.u32 %v8364, %v8360
        %v8366 = vrot.slane %v8365, 4
        %v8368 = vshll.u32 %v8218, 16
        %v8370 = vrot.slane %v8368, 5
        %v8371 = vsel %vm1171, %v8366, %v8370
        %v8373 = vshrl.u32 %v8219, 16
        %v8375 = vrot.slane %v8373, 4
        %v8376 = vshll.u32 %v8219, 16
        %v8378 = vrot.slane %v8376, 5
        %v8379 = vor.u32 %v8375, %v8378
        %v8380 = vrot.slane %v8379, 4
        %v8382 = vshll.u32 %v8220, 16
        %v8384 = vrot.slane %v8382, 5
        %v8385 = vsel %vm1171, %v8380, %v8384
        %v8386 = vshrl.u32 %v8220, 16
        %v8388 = vrot.slane %v8386, 4
        %v8389 = vor.u32 %v8388, %v8384
        %v8390 = vrot.slane %v8389, 4
        %v8392 = vshll.u32 %v8221, 16
        %v8394 = vrot.slane %v8392, 5
        %v8395 = vsel %vm1171, %v8390, %v8394
        %v8397 = vshrl.u32 %v8222, 16
        %v8399 = vrot.slane %v8397, 4
        %v8400 = vshll.u32 %v8222, 16
        %v8402 = vrot.slane %v8400, 5
        %v8403 = vor.u32 %v8399, %v8402
        %v8404 = vrot.slane %v8403, 4
        %v8406 = vshll.u32 %v8223, 16
        %v8408 = vrot.slane %v8406, 5
        %v8409 = vsel %vm1171, %v8404, %v8408
        %v8410 = vshrl.u32 %v8223, 16
        %v8412 = vrot.slane %v8410, 4
        %v8413 = vor.u32 %v8412, %v8408
        %v8414 = vrot.slane %v8413, 4
        %v8416 = vshll.u32 %v8224, 16
        %v8418 = vrot.slane %v8416, 5
        %v8419 = vsel %vm1171, %v8414, %v8418
        %v8421 = vshrl.u32 %v8225, 16
        %v8423 = vrot.slane %v8421, 4
        %v8424 = vshll.u32 %v8225, 16
        %v8426 = vrot.slane %v8424, 5
        %v8427 = vor.u32 %v8423, %v8426
        %v8428 = vrot.slane %v8427, 4
        %v8430 = vshll.u32 %v8226, 16
        %v8432 = vrot.slane %v8430, 5
        %v8433 = vsel %vm1171, %v8428, %v8432
        %v8434 = vshrl.u32 %v8226, 16
        %v8436 = vrot.slane %v8434, 4
        %v8437 = vor.u32 %v8436, %v8432
        %v8438 = vrot.slane %v8437, 4
        %v8440 = vshll.u32 %v8227, 16
        %v8442 = vrot.slane %v8440, 5
        %v8443 = vsel %vm1171, %v8438, %v8442
        %v8445 = vshrl.u32 %v8228, 16
        %v8447 = vrot.slane %v8445, 4
        %v8448 = vshll.u32 %v8228, 16
        %v8450 = vrot.slane %v8448, 5
        %v8451 = vor.u32 %v8447, %v8450
        %v8452 = vrot.slane %v8451, 4
        %v8454 = vshll.u32 %v8229, 16
        %v8456 = vrot.slane %v8454, 5
        %v8457 = vsel %vm1171, %v8452, %v8456
        %v8458 = vshrl.u32 %v8229, 16
        %v8460 = vrot.slane %v8458, 4
        %v8461 = vor.u32 %v8460, %v8456
        %v8462 = vrot.slane %v8461, 4
        %v8464 = vshll.u32 %v8230, 16
        %v8466 = vrot.slane %v8464, 5
        %v8467 = vsel %vm1171, %v8462, %v8466
        %v8469 = vshrl.u32 %v8231, 16
        %v8471 = vrot.slane %v8469, 4
        %v8472 = vshll.u32 %v8231, 16
        %v8474 = vrot.slane %v8472, 5
        %v8475 = vor.u32 %v8471, %v8474
        %v8476 = vrot.slane %v8475, 4
        %v8478 = vshll.u32 %v8232, 16
        %v8480 = vrot.slane %v8478, 5
        %v8481 = vsel %vm1171, %v8476, %v8480
        %v8482 = vshrl.u32 %v8232, 16
        %v8484 = vrot.slane %v8482, 4
        %v8485 = vor.u32 %v8484, %v8480
        %v8486 = vrot.slane %v8485, 4
        %v8488 = vshll.u32 %v8233, 16
        %v8490 = vrot.slane %v8488, 5
        %v8491 = vsel %vm1171, %v8486, %v8490
        %v8493 = vshrl.u32 %v8234, 16
        %v8495 = vrot.slane %v8493, 4
        %v8496 = vshll.u32 %v8234, 16
        %v8498 = vrot.slane %v8496, 5
        %v8499 = vor.u32 %v8495, %v8498
        %v8500 = vrot.slane %v8499, 4
        %v8502 = vshll.u32 %v8235, 16
        %v8504 = vrot.slane %v8502, 5
        %v8505 = vsel %vm1171, %v8500, %v8504
        %v8506 = vshrl.u32 %v8235, 16
        %v8508 = vrot.slane %v8506, 4
        %v8509 = vor.u32 %v8508, %v8504
        %v8510 = vrot.slane %v8509, 4
        %v8512 = vshll.u32 %v8236, 16
        %v8514 = vrot.slane %v8512, 5
        %v8515 = vsel %vm1171, %v8510, %v8514
        %v8517 = vshrl.u32 %v8237, 16
        %v8519 = vrot.slane %v8517, 4
        %v8520 = vshll.u32 %v8237, 16
        %v8522 = vrot.slane %v8520, 5
        %v8523 = vor.u32 %v8519, %v8522
        %v8524 = vrot.slane %v8523, 4
        %v8526 = vshll.u32 %v8238, 16
        %v8528 = vrot.slane %v8526, 5
        %v8529 = vsel %vm1171, %v8524, %v8528
        %v8530 = vshrl.u32 %v8238, 16
        %v8532 = vrot.slane %v8530, 4
        %v8533 = vor.u32 %v8532, %v8528
        %v8534 = vrot.slane %v8533, 4
        %v8536 = vshll.u32 %v8239, 16
        %v8538 = vrot.slane %v8536, 5
        %v8539 = vsel %vm1171, %v8534, %v8538
        %v8541 = vshrl.u32 %v8240, 16
        %v8543 = vrot.slane %v8541, 4
        %v8544 = vshll.u32 %v8240, 16
        %v8546 = vrot.slane %v8544, 5
        %v8547 = vor.u32 %v8543, %v8546
        %v8548 = vrot.slane %v8547, 4
        %v8550 = vshll.u32 %v8241, 16
        %v8552 = vrot.slane %v8550, 5
        %v8553 = vsel %vm1171, %v8548, %v8552
        %v8554 = vshrl.u32 %v8241, 16
        %v8556 = vrot.slane %v8554, 4
        %v8557 = vor.u32 %v8556, %v8552
        %v8558 = vrot.slane %v8557, 4
        %v8560 = vshll.u32 %v8242, 16
        %v8562 = vrot.slane %v8560, 5
        %v8563 = vsel %vm1171, %v8558, %v8562
        %v8565 = vshrl.u32 %v8243, 16
        %v8567 = vrot.slane %v8565, 4
        %v8568 = vshll.u32 %v8243, 16
        %v8570 = vrot.slane %v8568, 5
        %v8571 = vor.u32 %v8567, %v8570
        %v8572 = vrot.slane %v8571, 4
        %v8574 = vshll.u32 %v8244, 16
        %v8576 = vrot.slane %v8574, 5
        %v8577 = vsel %vm1171, %v8572, %v8576
        %v8578 = vshrl.u32 %v8244, 16
        %v8580 = vrot.slane %v8578, 4
        %v8581 = vor.u32 %v8580, %v8576
        %v8582 = vrot.slane %v8581, 4
        %v8584 = vshll.u32 %v8245, 16
        %v8586 = vrot.slane %v8584, 5
        %v8587 = vsel %vm1171, %v8582, %v8586
        %v8589 = vshrl.u32 %v8246, 16
        %v8591 = vrot.slane %v8589, 4
        %v8592 = vshll.u32 %v8246, 16
        %v8594 = vrot.slane %v8592, 5
        %v8595 = vor.u32 %v8591, %v8594
        %v8596 = vrot.slane %v8595, 4
        %v8598 = vshll.u32 %v8247, 16
        %v8600 = vrot.slane %v8598, 5
        %v8601 = vsel %vm1171, %v8596, %v8600
        %v8602 = vshrl.u32 %v8247, 16
        %v8604 = vrot.slane %v8602, 4
        %v8605 = vor.u32 %v8604, %v8600
        %v8606 = vrot.slane %v8605, 4
        %v8608 = vshll.u32 %v8248, 16
        %v8610 = vrot.slane %v8608, 5
        %v8611 = vsel %vm1171, %v8606, %v8610
        %v8613 = vshrl.u32 %v8249, 16
        %v8615 = vrot.slane %v8613, 4
        %v8616 = vshll.u32 %v8249, 16
        %v8618 = vrot.slane %v8616, 5
        %v8619 = vor.u32 %v8615, %v8618
        %v8620 = vrot.slane %v8619, 4
        %v8622 = vshll.u32 %v8250, 16
        %v8624 = vrot.slane %v8622, 5
        %v8625 = vsel %vm1171, %v8620, %v8624
        %v8626 = vshrl.u32 %v8250, 16
        %v8628 = vrot.slane %v8626, 4
        %v8629 = vor.u32 %v8628, %v8624
        %v8630 = vrot.slane %v8629, 4
        %v8632 = vshll.u32 %v8251, 16
        %v8634 = vrot.slane %v8632, 5
        %v8635 = vsel %vm1171, %v8630, %v8634
        %8668 = vst [vmem:[#allocation4 + $0x1c] sm:$0xf] %v8265
        %8669 = vst [vmem:[#allocation4 + $0x40] sm:$0xf] %v8275
        %8670 = vst [vmem:[#allocation4 + $0x64] sm:$0xf] %v8289
        %8671 = vst [vmem:[#allocation4 + $0x88] sm:$0xf] %v8299
        %8672 = vst [vmem:[#allocation4 + $0xac] sm:$0xf] %v8313
        %8673 = vst [vmem:[#allocation4 + $0xd0] sm:$0xf] %v8323
        %8674 = vst [vmem:[#allocation4 + $0xf4] sm:$0xf] %v8337
        %8675 = vst [vmem:[#allocation4 + $0x118] sm:$0xf] %v8347
        %8676 = vst [vmem:[#allocation4 + $0x13c] sm:$0xf] %v8361
        %8677 = vst [vmem:[#allocation4 + $0x160] sm:$0xf] %v8371
        %8678 = vst [vmem:[#allocation4 + $0x184] sm:$0xf] %v8385
        %8679 = vst [vmem:[#allocation4 + $0x1a8] sm:$0xf] %v8395
        %8680 = vst [vmem:[#allocation4 + $0x1cc] sm:$0xf] %v8409
        %8681 = vst [vmem:[#allocation4 + $0x1f0] sm:$0xf] %v8419
        %8682 = vst [vmem:[#allocation4 + $0x214] sm:$0xf] %v8433
        %8683 = vst [vmem:[#allocation4 + $0x238] sm:$0xf] %v8443
        %8684 = vst [vmem:[#allocation4 + $0x25c] sm:$0xf] %v8457
        %8685 = vst [vmem:[#allocation4 + $0x280] sm:$0xf] %v8467
        %8686 = vst [vmem:[#allocation4 + $0x2a4] sm:$0xf] %v8481
        %8687 = vst [vmem:[#allocation4 + $0x2c8] sm:$0xf] %v8491
        %8688 = vst [vmem:[#allocation4 + $0x2ec] sm:$0xf] %v8505
        %8689 = vst [vmem:[#allocation4 + $0x310] sm:$0xf] %v8515
        %8690 = vst [vmem:[#allocation4 + $0x334] sm:$0xf] %v8529
        %8691 = vst [vmem:[#allocation4 + $0x358] sm:$0xf] %v8539
        %8692 = vst [vmem:[#allocation4 + $0x37c] sm:$0xf] %v8553
        %8693 = vst [vmem:[#allocation4 + $0x3a0] sm:$0xf] %v8563
        %8694 = vst [vmem:[#allocation4 + $0x3c4] sm:$0xf] %v8577
        %8695 = vst [vmem:[#allocation4 + $0x3e8] sm:$0xf] %v8587
        %8696 = vst [vmem:[#allocation4 + $0x40c] sm:$0xf] %v8601
        %8697 = vst [vmem:[#allocation4 + $0x430] sm:$0xf] %v8611
        %8698 = vst [vmem:[#allocation4 + $0x454] sm:$0xf] %v8625
        %8699 = vst [vmem:[#allocation4 + $0x478] sm:$0xf] %v8635
        %v8700 = vld [vmem:[%s8139] sm:$0xe]
        %v8701 = vld [vmem:[%s8139 + $0x4] sm:$0xf]
        %v8702 = vld [vmem:[%s8139 + $0x8] sm:$0x1]
        %v8703 = vld [vmem:[%s8139 + $0xc] sm:$0xe]
        %v8704 = vld [vmem:[%s8139 + $0x10] sm:$0xf]
        %v8705 = vld [vmem:[%s8139 + $0x14] sm:$0x1]
        %v8706 = vld [vmem:[%s8139 + $0x18] sm:$0xe]
        %v8707 = vld [vmem:[%s8139 + $0x1c] sm:$0xf]
        %v8708 = vld [vmem:[%s8139 + $0x20] sm:$0x1]
        %v8709 = vld [vmem:[%s8139 + $0x24] sm:$0xe]
        %v8710 = vld [vmem:[%s8139 + $0x28] sm:$0xf]
        %v8711 = vld [vmem:[%s8139 + $0x2c] sm:$0x1]
        %v8712 = vld [vmem:[%s8139 + $0x30] sm:$0xe]
        %v8713 = vld [vmem:[%s8139 + $0x34] sm:$0xf]
        %v8714 = vld [vmem:[%s8139 + $0x38] sm:$0x1]
        %v8715 = vld [vmem:[%s8139 + $0x3c] sm:$0xe]
        %v8716 = vld [vmem:[%s8139 + $0x40] sm:$0xf]
        %v8717 = vld [vmem:[%s8139 + $0x44] sm:$0x1]
        %v8718 = vld [vmem:[%s8139 + $0x48] sm:$0xe]
        %v8719 = vld [vmem:[%s8139 + $0x4c] sm:$0xf]
        %v8720 = vld [vmem:[%s8139 + $0x50] sm:$0x1]
        %v8721 = vld [vmem:[%s8139 + $0x54] sm:$0xe]
        %v8722 = vld [vmem:[%s8139 + $0x58] sm:$0xf]
        %v8723 = vld [vmem:[%s8139 + $0x5c] sm:$0x1]
        %v8724 = vld [vmem:[%s8139 + $0x60] sm:$0xe]
        %v8725 = vld [vmem:[%s8139 + $0x64] sm:$0xf]
        %v8726 = vld [vmem:[%s8139 + $0x68] sm:$0x1]
        %v8727 = vld [vmem:[%s8139 + $0x6c] sm:$0xe]
        %v8728 = vld [vmem:[%s8139 + $0x70] sm:$0xf]
        %v8729 = vld [vmem:[%s8139 + $0x74] sm:$0x1]
        %v8730 = vld [vmem:[%s8139 + $0x78] sm:$0xe]
        %v8731 = vld [vmem:[%s8139 + $0x7c] sm:$0xf]
        %v8732 = vld [vmem:[%s8139 + $0x80] sm:$0x1]
        %v8733 = vld [vmem:[%s8139 + $0x84] sm:$0xe]
        %v8734 = vld [vmem:[%s8139 + $0x88] sm:$0xf]
        %v8735 = vld [vmem:[%s8139 + $0x8c] sm:$0x1]
        %v8736 = vld [vmem:[%s8139 + $0x90] sm:$0xe]
        %v8737 = vld [vmem:[%s8139 + $0x94] sm:$0xf]
        %v8738 = vld [vmem:[%s8139 + $0x98] sm:$0x1]
        %v8739 = vld [vmem:[%s8139 + $0x9c] sm:$0xe]
        %v8740 = vld [vmem:[%s8139 + $0xa0] sm:$0xf]
        %v8741 = vld [vmem:[%s8139 + $0xa4] sm:$0x1]
        %v8742 = vld [vmem:[%s8139 + $0xa8] sm:$0xe]
        %v8743 = vld [vmem:[%s8139 + $0xac] sm:$0xf]
        %v8744 = vld [vmem:[%s8139 + $0xb0] sm:$0x1]
        %v8745 = vld [vmem:[%s8139 + $0xb4] sm:$0xe]
        %v8746 = vld [vmem:[%s8139 + $0xb8] sm:$0xf]
        %v8747 = vld [vmem:[%s8139 + $0xbc] sm:$0x1]
        %v8796 = vrot.slane %v8700, 5
        %v8797 = vrot.slane %v8796, 4
        %v8798 = vrot.slane %v8701, 5
        %v8799 = vsel %vm1718, %v8797, %v8798
        %v8800 = vrot.slane %v8798, 4
        %v8801 = vrot.slane %v8702, 5
        %v8802 = vsel %vm1718, %v8800, %v8801
        %v8803 = vrot.slane %v8703, 5
        %v8804 = vrot.slane %v8803, 4
        %v8805 = vrot.slane %v8704, 5
        %v8806 = vsel %vm1718, %v8804, %v8805
        %v8807 = vrot.slane %v8805, 4
        %v8808 = vrot.slane %v8705, 5
        %v8809 = vsel %vm1718, %v8807, %v8808
        %v8810 = vrot.slane %v8706, 5
        %v8811 = vrot.slane %v8810, 4
        %v8812 = vrot.slane %v8707, 5
        %v8813 = vsel %vm1718, %v8811, %v8812
        %v8814 = vrot.slane %v8812, 4
        %v8815 = vrot.slane %v8708, 5
        %v8816 = vsel %vm1718, %v8814, %v8815
        %v8817 = vrot.slane %v8709, 5
        %v8818 = vrot.slane %v8817, 4
        %v8819 = vrot.slane %v8710, 5
        %v8820 = vsel %vm1718, %v8818, %v8819
        %v8821 = vrot.slane %v8819, 4
        %v8822 = vrot.slane %v8711, 5
        %v8823 = vsel %vm1718, %v8821, %v8822
        %v8824 = vrot.slane %v8712, 5
        %v8825 = vrot.slane %v8824, 4
        %v8826 = vrot.slane %v8713, 5
        %v8827 = vsel %vm1718, %v8825, %v8826
        %v8828 = vrot.slane %v8826, 4
        %v8829 = vrot.slane %v8714, 5
        %v8830 = vsel %vm1718, %v8828, %v8829
        %v8831 = vrot.slane %v8715, 5
        %v8832 = vrot.slane %v8831, 4
        %v8833 = vrot.slane %v8716, 5
        %v8834 = vsel %vm1718, %v8832, %v8833
        %v8835 = vrot.slane %v8833, 4
        %v8836 = vrot.slane %v8717, 5
        %v8837 = vsel %vm1718, %v8835, %v8836
        %v8838 = vrot.slane %v8718, 5
        %v8839 = vrot.slane %v8838, 4
        %v8840 = vrot.slane %v8719, 5
        %v8841 = vsel %vm1718, %v8839, %v8840
        %v8842 = vrot.slane %v8840, 4
        %v8843 = vrot.slane %v8720, 5
        %v8844 = vsel %vm1718, %v8842, %v8843
        %v8845 = vrot.slane %v8721, 5
        %v8846 = vrot.slane %v8845, 4
        %v8847 = vrot.slane %v8722, 5
        %v8848 = vsel %vm1718, %v8846, %v8847
        %v8849 = vrot.slane %v8847, 4
        %v8850 = vrot.slane %v8723, 5
        %v8851 = vsel %vm1718, %v8849, %v8850
        %v8852 = vrot.slane %v8724, 5
        %v8853 = vrot.slane %v8852, 4
        %v8854 = vrot.slane %v8725, 5
        %v8855 = vsel %vm1718, %v8853, %v8854
        %v8856 = vrot.slane %v8854, 4
        %v8857 = vrot.slane %v8726, 5
        %v8858 = vsel %vm1718, %v8856, %v8857
        %v8859 = vrot.slane %v8727, 5
        %v8860 = vrot.slane %v8859, 4
        %v8861 = vrot.slane %v8728, 5
        %v8862 = vsel %vm1718, %v8860, %v8861
        %v8863 = vrot.slane %v8861, 4
        %v8864 = vrot.slane %v8729, 5
        %v8865 = vsel %vm1718, %v8863, %v8864
        %v8866 = vrot.slane %v8730, 5
        %v8867 = vrot.slane %v8866, 4
        %v8868 = vrot.slane %v8731, 5
        %v8869 = vsel %vm1718, %v8867, %v8868
        %v8870 = vrot.slane %v8868, 4
        %v8871 = vrot.slane %v8732, 5
        %v8872 = vsel %vm1718, %v8870, %v8871
        %v8873 = vrot.slane %v8733, 5
        %v8874 = vrot.slane %v8873, 4
        %v8875 = vrot.slane %v8734, 5
        %v8876 = vsel %vm1718, %v8874, %v8875
        %v8877 = vrot.slane %v8875, 4
        %v8878 = vrot.slane %v8735, 5
        %v8879 = vsel %vm1718, %v8877, %v8878
        %v8880 = vrot.slane %v8736, 5
        %v8881 = vrot.slane %v8880, 4
        %v8882 = vrot.slane %v8737, 5
        %v8883 = vsel %vm1718, %v8881, %v8882
        %v8884 = vrot.slane %v8882, 4
        %v8885 = vrot.slane %v8738, 5
        %v8886 = vsel %vm1718, %v8884, %v8885
        %v8887 = vrot.slane %v8739, 5
        %v8888 = vrot.slane %v8887, 4
        %v8889 = vrot.slane %v8740, 5
        %v8890 = vsel %vm1718, %v8888, %v8889
        %v8891 = vrot.slane %v8889, 4
        %v8892 = vrot.slane %v8741, 5
        %v8893 = vsel %vm1718, %v8891, %v8892
        %v8894 = vrot.slane %v8742, 5
        %v8895 = vrot.slane %v8894, 4
        %v8896 = vrot.slane %v8743, 5
        %v8897 = vsel %vm1718, %v8895, %v8896
        %v8898 = vrot.slane %v8896, 4
        %v8899 = vrot.slane %v8744, 5
        %v8900 = vsel %vm1718, %v8898, %v8899
        %v8901 = vrot.slane %v8745, 5
        %v8902 = vrot.slane %v8901, 4
        %v8903 = vrot.slane %v8746, 5
        %v8904 = vsel %vm1718, %v8902, %v8903
        %v8905 = vrot.slane %v8903, 4
        %v8906 = vrot.slane %v8747, 5
        %v8907 = vsel %vm1718, %v8905, %v8906
        %8940 = vst [vmem:[#allocation4 + $0x20] sm:$0xf] %v8799
        %8941 = vst [vmem:[#allocation4 + $0x44] sm:$0xf] %v8802
        %8942 = vst [vmem:[#allocation4 + $0x68] sm:$0xf] %v8806
        %8943 = vst [vmem:[#allocation4 + $0x8c] sm:$0xf] %v8809
        %8944 = vst [vmem:[#allocation4 + $0xb0] sm:$0xf] %v8813
        %8945 = vst [vmem:[#allocation4 + $0xd4] sm:$0xf] %v8816
        %8946 = vst [vmem:[#allocation4 + $0xf8] sm:$0xf] %v8820
        %8947 = vst [vmem:[#allocation4 + $0x11c] sm:$0xf] %v8823
        %8948 = vst [vmem:[#allocation4 + $0x140] sm:$0xf] %v8827
        %8949 = vst [vmem:[#allocation4 + $0x164] sm:$0xf] %v8830
        %8950 = vst [vmem:[#allocation4 + $0x188] sm:$0xf] %v8834
        %8951 = vst [vmem:[#allocation4 + $0x1ac] sm:$0xf] %v8837
        %8952 = vst [vmem:[#allocation4 + $0x1d0] sm:$0xf] %v8841
        %8953 = vst [vmem:[#allocation4 + $0x1f4] sm:$0xf] %v8844
        %8954 = vst [vmem:[#allocation4 + $0x218] sm:$0xf] %v8848
        %8955 = vst [vmem:[#allocation4 + $0x23c] sm:$0xf] %v8851
        %8956 = vst [vmem:[#allocation4 + $0x260] sm:$0xf] %v8855
        %8957 = vst [vmem:[#allocation4 + $0x284] sm:$0xf] %v8858
        %8958 = vst [vmem:[#allocation4 + $0x2a8] sm:$0xf] %v8862
        %8959 = vst [vmem:[#allocation4 + $0x2cc] sm:$0xf] %v8865
        %8960 = vst [vmem:[#allocation4 + $0x2f0] sm:$0xf] %v8869
        %8961 = vst [vmem:[#allocation4 + $0x314] sm:$0xf] %v8872
        %8962 = vst [vmem:[#allocation4 + $0x338] sm:$0xf] %v8876
        %8963 = vst [vmem:[#allocation4 + $0x35c] sm:$0xf] %v8879
        %8964 = vst [vmem:[#allocation4 + $0x380] sm:$0xf] %v8883
        %8965 = vst [vmem:[#allocation4 + $0x3a4] sm:$0xf] %v8886
        %8966 = vst [vmem:[#allocation4 + $0x3c8] sm:$0xf] %v8890
        %8967 = vst [vmem:[#allocation4 + $0x3ec] sm:$0xf] %v8893
        %8968 = vst [vmem:[#allocation4 + $0x410] sm:$0xf] %v8897
        %8969 = vst [vmem:[#allocation4 + $0x434] sm:$0xf] %v8900
        %8970 = vst [vmem:[#allocation4 + $0x458] sm:$0xf] %v8904
        %8971 = vst [vmem:[#allocation4 + $0x47c] sm:$0xf] %v8907
        %v8972 = vld [vmem:[#allocation4] sm:$0xff]
        %v8973 = vld [vmem:[#allocation4 + $0x8] sm:$0xff]
        %v8974 = vld [vmem:[#allocation4 + $0x10] sm:$0xff]
        %v8975 = vld [vmem:[#allocation4 + $0x18] sm:$0xff]
        %v8976 = vld [vmem:[#allocation4 + $0x20] sm:$0xf]
        %v8977 = vld [vmem:[#allocation4 + $0x24] sm:$0xff]
        %v8978 = vld [vmem:[#allocation4 + $0x2c] sm:$0xff]
        %v8979 = vld [vmem:[#allocation4 + $0x34] sm:$0xff]
        %v8980 = vld [vmem:[#allocation4 + $0x3c] sm:$0xff]
        %v8981 = vld [vmem:[#allocation4 + $0x44] sm:$0xf]
        %v8982 = vld [vmem:[#allocation4 + $0x48] sm:$0xff]
        %v8983 = vld [vmem:[#allocation4 + $0x50] sm:$0xff]
        %v8984 = vld [vmem:[#allocation4 + $0x58] sm:$0xff]
        %v8985 = vld [vmem:[#allocation4 + $0x60] sm:$0xff]
        %v8986 = vld [vmem:[#allocation4 + $0x68] sm:$0xf]
        %v8987 = vld [vmem:[#allocation4 + $0x6c] sm:$0xff]
        %v8988 = vld [vmem:[#allocation4 + $0x74] sm:$0xff]
        %v8989 = vld [vmem:[#allocation4 + $0x7c] sm:$0xff]
        %v8990 = vld [vmem:[#allocation4 + $0x84] sm:$0xff]
        %v8991 = vld [vmem:[#allocation4 + $0x8c] sm:$0xf]
        %v8992 = vld [vmem:[#allocation4 + $0x90] sm:$0xff]
        %v8993 = vld [vmem:[#allocation4 + $0x98] sm:$0xff]
        %v8994 = vld [vmem:[#allocation4 + $0xa0] sm:$0xff]
        %v8995 = vld [vmem:[#allocation4 + $0xa8] sm:$0xff]
        %v8996 = vld [vmem:[#allocation4 + $0xb0] sm:$0xf]
        %v8997 = vld [vmem:[#allocation4 + $0xb4] sm:$0xff]
        %v8998 = vld [vmem:[#allocation4 + $0xbc] sm:$0xff]
        %v8999 = vld [vmem:[#allocation4 + $0xc4] sm:$0xff]
        %v9000 = vld [vmem:[#allocation4 + $0xcc] sm:$0xff]
        %v9001 = vld [vmem:[#allocation4 + $0xd4] sm:$0xf]
        %v9002 = vld [vmem:[#allocation4 + $0xd8] sm:$0xff]
        %v9003 = vld [vmem:[#allocation4 + $0xe0] sm:$0xff]
        %v9004 = vld [vmem:[#allocation4 + $0xe8] sm:$0xff]
        %v9005 = vld [vmem:[#allocation4 + $0xf0] sm:$0xff]
        %v9006 = vld [vmem:[#allocation4 + $0xf8] sm:$0xf]
        %v9007 = vld [vmem:[#allocation4 + $0xfc] sm:$0xff]
        %v9008 = vld [vmem:[#allocation4 + $0x104] sm:$0xff]
        %v9009 = vld [vmem:[#allocation4 + $0x10c] sm:$0xff]
        %v9010 = vld [vmem:[#allocation4 + $0x114] sm:$0xff]
        %v9011 = vld [vmem:[#allocation4 + $0x11c] sm:$0xf]
        %v9012 = vld [vmem:[#allocation4 + $0x120] sm:$0xff]
        %v9013 = vld [vmem:[#allocation4 + $0x128] sm:$0xff]
        %v9014 = vld [vmem:[#allocation4 + $0x130] sm:$0xff]
        %v9015 = vld [vmem:[#allocation4 + $0x138] sm:$0xff]
        %v9016 = vld [vmem:[#allocation4 + $0x140] sm:$0xf]
        %v9017 = vld [vmem:[#allocation4 + $0x144] sm:$0xff]
        %v9018 = vld [vmem:[#allocation4 + $0x14c] sm:$0xff]
        %v9019 = vld [vmem:[#allocation4 + $0x154] sm:$0xff]
        %v9020 = vld [vmem:[#allocation4 + $0x15c] sm:$0xff]
        %v9021 = vld [vmem:[#allocation4 + $0x164] sm:$0xf]
        %v9022 = vld [vmem:[#allocation4 + $0x168] sm:$0xff]
        %v9023 = vld [vmem:[#allocation4 + $0x170] sm:$0xff]
        %v9024 = vld [vmem:[#allocation4 + $0x178] sm:$0xff]
        %v9025 = vld [vmem:[#allocation4 + $0x180] sm:$0xff]
        %v9026 = vld [vmem:[#allocation4 + $0x188] sm:$0xf]
        %v9027 = vld [vmem:[#allocation4 + $0x18c] sm:$0xff]
        %v9028 = vld [vmem:[#allocation4 + $0x194] sm:$0xff]
        %v9029 = vld [vmem:[#allocation4 + $0x19c] sm:$0xff]
        %v9030 = vld [vmem:[#allocation4 + $0x1a4] sm:$0xff]
        %v9031 = vld [vmem:[#allocation4 + $0x1ac] sm:$0xf]
        %v9032 = vld [vmem:[#allocation4 + $0x1b0] sm:$0xff]
        %v9033 = vld [vmem:[#allocation4 + $0x1b8] sm:$0xff]
        %v9034 = vld [vmem:[#allocation4 + $0x1c0] sm:$0xff]
        %v9035 = vld [vmem:[#allocation4 + $0x1c8] sm:$0xff]
        %v9036 = vld [vmem:[#allocation4 + $0x1d0] sm:$0xf]
        %v9037 = vld [vmem:[#allocation4 + $0x1d4] sm:$0xff]
        %v9038 = vld [vmem:[#allocation4 + $0x1dc] sm:$0xff]
        %v9039 = vld [vmem:[#allocation4 + $0x1e4] sm:$0xff]
        %v9040 = vld [vmem:[#allocation4 + $0x1ec] sm:$0xff]
        %v9041 = vld [vmem:[#allocation4 + $0x1f4] sm:$0xf]
        %v9042 = vld [vmem:[#allocation4 + $0x1f8] sm:$0xff]
        %v9043 = vld [vmem:[#allocation4 + $0x200] sm:$0xff]
        %v9044 = vld [vmem:[#allocation4 + $0x208] sm:$0xff]
        %v9045 = vld [vmem:[#allocation4 + $0x210] sm:$0xff]
        %v9046 = vld [vmem:[#allocation4 + $0x218] sm:$0xf]
        %v9047 = vld [vmem:[#allocation4 + $0x21c] sm:$0xff]
        %v9048 = vld [vmem:[#allocation4 + $0x224] sm:$0xff]
        %v9049 = vld [vmem:[#allocation4 + $0x22c] sm:$0xff]
        %v9050 = vld [vmem:[#allocation4 + $0x234] sm:$0xff]
        %v9051 = vld [vmem:[#allocation4 + $0x23c] sm:$0xf]
        %v9052 = vld [vmem:[#allocation4 + $0x240] sm:$0xff]
        %v9053 = vld [vmem:[#allocation4 + $0x248] sm:$0xff]
        %v9054 = vld [vmem:[#allocation4 + $0x250] sm:$0xff]
        %v9055 = vld [vmem:[#allocation4 + $0x258] sm:$0xff]
        %v9056 = vld [vmem:[#allocation4 + $0x260] sm:$0xf]
        %v9057 = vld [vmem:[#allocation4 + $0x264] sm:$0xff]
        %v9058 = vld [vmem:[#allocation4 + $0x26c] sm:$0xff]
        %v9059 = vld [vmem:[#allocation4 + $0x274] sm:$0xff]
        %v9060 = vld [vmem:[#allocation4 + $0x27c] sm:$0xff]
        %v9061 = vld [vmem:[#allocation4 + $0x284] sm:$0xf]
        %v9062 = vld [vmem:[#allocation4 + $0x288] sm:$0xff]
        %v9063 = vld [vmem:[#allocation4 + $0x290] sm:$0xff]
        %v9064 = vld [vmem:[#allocation4 + $0x298] sm:$0xff]
        %v9065 = vld [vmem:[#allocation4 + $0x2a0] sm:$0xff]
        %v9066 = vld [vmem:[#allocation4 + $0x2a8] sm:$0xf]
        %v9067 = vld [vmem:[#allocation4 + $0x2ac] sm:$0xff]
        %v9068 = vld [vmem:[#allocation4 + $0x2b4] sm:$0xff]
        %v9069 = vld [vmem:[#allocation4 + $0x2bc] sm:$0xff]
        %v9070 = vld [vmem:[#allocation4 + $0x2c4] sm:$0xff]
        %v9071 = vld [vmem:[#allocation4 + $0x2cc] sm:$0xf]
        %v9072 = vld [vmem:[#allocation4 + $0x2d0] sm:$0xff]
        %v9073 = vld [vmem:[#allocation4 + $0x2d8] sm:$0xff]
        %v9074 = vld [vmem:[#allocation4 + $0x2e0] sm:$0xff]
        %v9075 = vld [vmem:[#allocation4 + $0x2e8] sm:$0xff]
        %v9076 = vld [vmem:[#allocation4 + $0x2f0] sm:$0xf]
        %v9077 = vld [vmem:[#allocation4 + $0x2f4] sm:$0xff]
        %v9078 = vld [vmem:[#allocation4 + $0x2fc] sm:$0xff]
        %v9079 = vld [vmem:[#allocation4 + $0x304] sm:$0xff]
        %v9080 = vld [vmem:[#allocation4 + $0x30c] sm:$0xff]
        %v9081 = vld [vmem:[#allocation4 + $0x314] sm:$0xf]
        %v9082 = vld [vmem:[#allocation4 + $0x318] sm:$0xff]
        %v9083 = vld [vmem:[#allocation4 + $0x320] sm:$0xff]
        %v9084 = vld [vmem:[#allocation4 + $0x328] sm:$0xff]
        %v9085 = vld [vmem:[#allocation4 + $0x330] sm:$0xff]
        %v9086 = vld [vmem:[#allocation4 + $0x338] sm:$0xf]
        %v9087 = vld [vmem:[#allocation4 + $0x33c] sm:$0xff]
        %v9088 = vld [vmem:[#allocation4 + $0x344] sm:$0xff]
        %v9089 = vld [vmem:[#allocation4 + $0x34c] sm:$0xff]
        %v9090 = vld [vmem:[#allocation4 + $0x354] sm:$0xff]
        %v9091 = vld [vmem:[#allocation4 + $0x35c] sm:$0xf]
        %v9092 = vld [vmem:[#allocation4 + $0x360] sm:$0xff]
        %v9093 = vld [vmem:[#allocation4 + $0x368] sm:$0xff]
        %v9094 = vld [vmem:[#allocation4 + $0x370] sm:$0xff]
        %v9095 = vld [vmem:[#allocation4 + $0x378] sm:$0xff]
        %v9096 = vld [vmem:[#allocation4 + $0x380] sm:$0xf]
        %v9097 = vld [vmem:[#allocation4 + $0x384] sm:$0xff]
        %v9098 = vld [vmem:[#allocation4 + $0x38c] sm:$0xff]
        %v9099 = vld [vmem:[#allocation4 + $0x394] sm:$0xff]
        %v9100 = vld [vmem:[#allocation4 + $0x39c] sm:$0xff]
        %v9101 = vld [vmem:[#allocation4 + $0x3a4] sm:$0xf]
        %v9102 = vld [vmem:[#allocation4 + $0x3a8] sm:$0xff]
        %v9103 = vld [vmem:[#allocation4 + $0x3b0] sm:$0xff]
        %v9104 = vld [vmem:[#allocation4 + $0x3b8] sm:$0xff]
        %v9105 = vld [vmem:[#allocation4 + $0x3c0] sm:$0xff]
        %v9106 = vld [vmem:[#allocation4 + $0x3c8] sm:$0xf]
        %v9107 = vld [vmem:[#allocation4 + $0x3cc] sm:$0xff]
        %v9108 = vld [vmem:[#allocation4 + $0x3d4] sm:$0xff]
        %v9109 = vld [vmem:[#allocation4 + $0x3dc] sm:$0xff]
        %v9110 = vld [vmem:[#allocation4 + $0x3e4] sm:$0xff]
        %v9111 = vld [vmem:[#allocation4 + $0x3ec] sm:$0xf]
        %v9112 = vld [vmem:[#allocation4 + $0x3f0] sm:$0xff]
        %v9113 = vld [vmem:[#allocation4 + $0x3f8] sm:$0xff]
        %v9114 = vld [vmem:[#allocation4 + $0x400] sm:$0xff]
        %v9115 = vld [vmem:[#allocation4 + $0x408] sm:$0xff]
        %v9116 = vld [vmem:[#allocation4 + $0x410] sm:$0xf]
        %v9117 = vld [vmem:[#allocation4 + $0x414] sm:$0xff]
        %v9118 = vld [vmem:[#allocation4 + $0x41c] sm:$0xff]
        %v9119 = vld [vmem:[#allocation4 + $0x424] sm:$0xff]
        %v9120 = vld [vmem:[#allocation4 + $0x42c] sm:$0xff]
        %v9121 = vld [vmem:[#allocation4 + $0x434] sm:$0xf]
        %v9122 = vld [vmem:[#allocation4 + $0x438] sm:$0xff]
        %v9123 = vld [vmem:[#allocation4 + $0x440] sm:$0xff]
        %v9124 = vld [vmem:[#allocation4 + $0x448] sm:$0xff]
        %v9125 = vld [vmem:[#allocation4 + $0x450] sm:$0xff]
        %v9126 = vld [vmem:[#allocation4 + $0x458] sm:$0xf]
        %v9127 = vld [vmem:[#allocation4 + $0x45c] sm:$0xff]
        %v9128 = vld [vmem:[#allocation4 + $0x464] sm:$0xff]
        %v9129 = vld [vmem:[#allocation4 + $0x46c] sm:$0xff]
        %v9130 = vld [vmem:[#allocation4 + $0x474] sm:$0xff]
        %v9131 = vld [vmem:[#allocation4 + $0x47c] sm:$0xf]
        %v9132 = vld [vmem:[%s4] sm:$0xf]
        %v9133 = vld [vmem:[%s4 + $0x4] sm:$0xf]
        %v9134 = vld [vmem:[%s4 + $0x8] sm:$0xf]
        %v9135 = vld [vmem:[%s4 + $0xc] sm:$0xf]
        %v9136 = vld [vmem:[%s4 + $0x10] sm:$0xf]
        %v9137 = vld [vmem:[%s4 + $0x14] sm:$0xf]
        %v9138 = vld [vmem:[%s4 + $0x18] sm:$0xf]
        %v9139 = vld [vmem:[%s4 + $0x1c] sm:$0xf]
        %v9140 = vld [vmem:[%s4 + $0x20] sm:$0xf]
        %v9141 = vld [vmem:[%s4 + $0x24] sm:$0xf]
        %v9142 = vld [vmem:[%s4 + $0x28] sm:$0xf]
        %v9143 = vld [vmem:[%s4 + $0x2c] sm:$0xf]
        %v9144 = vld [vmem:[%s4 + $0x30] sm:$0xf]
        %v9145 = vld [vmem:[%s4 + $0x34] sm:$0xf]
        %v9146 = vld [vmem:[%s4 + $0x38] sm:$0xf]
        %v9147 = vld [vmem:[%s4 + $0x3c] sm:$0xf]
        %v9148 = vld [vmem:[%s4 + $0x40] sm:$0xf]
        %v9149 = vld [vmem:[%s4 + $0x44] sm:$0xf]
        %v9150 = vld [vmem:[%s4 + $0x48] sm:$0xf]
        %v9151 = vld [vmem:[%s4 + $0x4c] sm:$0xf]
        %v9152 = vld [vmem:[%s4 + $0x50] sm:$0xf]
        %v9153 = vld [vmem:[%s4 + $0x54] sm:$0xf]
        %v9154 = vld [vmem:[%s4 + $0x58] sm:$0xf]
        %v9155 = vld [vmem:[%s4 + $0x5c] sm:$0xf]
        %v9156 = vld [vmem:[%s4 + $0x60] sm:$0xf]
        %v9157 = vld [vmem:[%s4 + $0x64] sm:$0xf]
        %v9158 = vld [vmem:[%s4 + $0x68] sm:$0xf]
        %v9159 = vld [vmem:[%s4 + $0x6c] sm:$0xf]
        %v9160 = vld [vmem:[%s4 + $0x70] sm:$0xf]
        %v9161 = vld [vmem:[%s4 + $0x74] sm:$0xf]
        %v9162 = vld [vmem:[%s4 + $0x78] sm:$0xf]
        %v9163 = vld [vmem:[%s4 + $0x7c] sm:$0xf]
        %v9164 = vld [vmem:[%s4 + $0x80] sm:$0xf]
        %v9165 = vld [vmem:[%s4 + $0x84] sm:$0xf]
        %v9166 = vld [vmem:[%s4 + $0x88] sm:$0xf]
        %v9167 = vld [vmem:[%s4 + $0x8c] sm:$0xf]
        %v9168 = vld [vmem:[%s4 + $0x90] sm:$0xf]
        %v9169 = vld [vmem:[%s4 + $0x94] sm:$0xf]
        %v9170 = vld [vmem:[%s4 + $0x98] sm:$0xf]
        %v9171 = vld [vmem:[%s4 + $0x9c] sm:$0xf]
        %v9172 = vld [vmem:[%s4 + $0xa0] sm:$0xf]
        %v9173 = vld [vmem:[%s4 + $0xa4] sm:$0xf]
        %v9174 = vld [vmem:[%s4 + $0xa8] sm:$0xf]
        %v9175 = vld [vmem:[%s4 + $0xac] sm:$0xf]
        %v9176 = vld [vmem:[%s4 + $0xb0] sm:$0xf]
        %v9177 = vld [vmem:[%s4 + $0xb4] sm:$0xf]
        %v9178 = vld [vmem:[%s4 + $0xb8] sm:$0xf]
        %v9179 = vld [vmem:[%s4 + $0xbc] sm:$0xf]
        %v9180 = vld [vmem:[%s4 + $0xc0] sm:$0xf]
        %v9181 = vld [vmem:[%s4 + $0xc4] sm:$0xf]
        %v9182 = vld [vmem:[%s4 + $0xc8] sm:$0xf]
        %v9183 = vld [vmem:[%s4 + $0xcc] sm:$0xf]
        %v9184 = vld [vmem:[%s4 + $0xd0] sm:$0xf]
        %v9185 = vld [vmem:[%s4 + $0xd4] sm:$0xf]
        %v9186 = vld [vmem:[%s4 + $0xd8] sm:$0xf]
        %v9187 = vld [vmem:[%s4 + $0xdc] sm:$0xf]
        %v9188 = vld [vmem:[%s4 + $0xe0] sm:$0xf]
        %v9189 = vld [vmem:[%s4 + $0xe4] sm:$0xf]
        %v9190 = vld [vmem:[%s4 + $0xe8] sm:$0xf]
        %v9191 = vld [vmem:[%s4 + $0xec] sm:$0xf]
        %v9192 = vld [vmem:[%s4 + $0xf0] sm:$0xf]
        %v9193 = vld [vmem:[%s4 + $0xf4] sm:$0xf]
        %v9194 = vld [vmem:[%s4 + $0xf8] sm:$0xf]
        %v9195 = vld [vmem:[%s4 + $0xfc] sm:$0xf]
        %v9196 = vld [vmem:[%s4 + $0x100] sm:$0xf]
        %v9197 = vld [vmem:[%s4 + $0x104] sm:$0xf]
        %v9198 = vld [vmem:[%s4 + $0x108] sm:$0xf]
        %v9199 = vld [vmem:[%s4 + $0x10c] sm:$0xf]
        %v9200 = vld [vmem:[%s4 + $0x110] sm:$0xf]
        %v9201 = vld [vmem:[%s4 + $0x114] sm:$0xf]
        %v9202 = vld [vmem:[%s4 + $0x118] sm:$0xf]
        %v9203 = vld [vmem:[%s4 + $0x11c] sm:$0xf]
        %v9204 = vld [vmem:[%s4 + $0x120] sm:$0xf]
        %v9205 = vld [vmem:[%s4 + $0x124] sm:$0xf]
        %v9206 = vld [vmem:[%s4 + $0x128] sm:$0xf]
        %v9207 = vld [vmem:[%s4 + $0x12c] sm:$0xf]
        %v9208 = vld [vmem:[%s4 + $0x130] sm:$0xf]
        %v9209 = vld [vmem:[%s4 + $0x134] sm:$0xf]
        %v9210 = vld [vmem:[%s4 + $0x138] sm:$0xf]
        %v9211 = vld [vmem:[%s4 + $0x13c] sm:$0xf]
        %v9212 = vld [vmem:[%s4 + $0x140] sm:$0xf]
        %v9213 = vld [vmem:[%s4 + $0x144] sm:$0xf]
        %v9214 = vld [vmem:[%s4 + $0x148] sm:$0xf]
        %v9215 = vld [vmem:[%s4 + $0x14c] sm:$0xf]
        %v9216 = vld [vmem:[%s4 + $0x150] sm:$0xf]
        %v9217 = vld [vmem:[%s4 + $0x154] sm:$0xf]
        %v9218 = vld [vmem:[%s4 + $0x158] sm:$0xf]
        %v9219 = vld [vmem:[%s4 + $0x15c] sm:$0xf]
        %v9220 = vld [vmem:[%s4 + $0x160] sm:$0xf]
        %v9221 = vld [vmem:[%s4 + $0x164] sm:$0xf]
        %v9222 = vld [vmem:[%s4 + $0x168] sm:$0xf]
        %v9223 = vld [vmem:[%s4 + $0x16c] sm:$0xf]
        %v9224 = vld [vmem:[%s4 + $0x170] sm:$0xf]
        %v9225 = vld [vmem:[%s4 + $0x174] sm:$0xf]
        %v9226 = vld [vmem:[%s4 + $0x178] sm:$0xf]
        %v9227 = vld [vmem:[%s4 + $0x17c] sm:$0xf]
        %v9228 = vld [vmem:[%s4 + $0x180] sm:$0xf]
        %v9229 = vld [vmem:[%s4 + $0x184] sm:$0xf]
        %v9230 = vld [vmem:[%s4 + $0x188] sm:$0xf]
        %v9231 = vld [vmem:[%s4 + $0x18c] sm:$0xf]
        %v9232 = vld [vmem:[%s4 + $0x190] sm:$0xf]
        %v9233 = vld [vmem:[%s4 + $0x194] sm:$0xf]
        %v9234 = vld [vmem:[%s4 + $0x198] sm:$0xf]
        %v9235 = vld [vmem:[%s4 + $0x19c] sm:$0xf]
        %v9236 = vld [vmem:[%s4 + $0x1a0] sm:$0xf]
        %v9237 = vld [vmem:[%s4 + $0x1a4] sm:$0xf]
        %v9238 = vld [vmem:[%s4 + $0x1a8] sm:$0xf]
        %v9239 = vld [vmem:[%s4 + $0x1ac] sm:$0xf]
        %v9240 = vld [vmem:[%s4 + $0x1b0] sm:$0xf]
        %v9241 = vld [vmem:[%s4 + $0x1b4] sm:$0xf]
        %v9242 = vld [vmem:[%s4 + $0x1b8] sm:$0xf]
        %v9243 = vld [vmem:[%s4 + $0x1bc] sm:$0xf]
        %v9244 = vld [vmem:[%s4 + $0x1c0] sm:$0xf]
        %v9245 = vld [vmem:[%s4 + $0x1c4] sm:$0xf]
        %v9246 = vld [vmem:[%s4 + $0x1c8] sm:$0xf]
        %v9247 = vld [vmem:[%s4 + $0x1cc] sm:$0xf]
        %v9248 = vld [vmem:[%s4 + $0x1d0] sm:$0xf]
        %v9249 = vld [vmem:[%s4 + $0x1d4] sm:$0xf]
        %v9250 = vld [vmem:[%s4 + $0x1d8] sm:$0xf]
        %v9251 = vld [vmem:[%s4 + $0x1dc] sm:$0xf]
        %v9252 = vld [vmem:[%s4 + $0x1e0] sm:$0xf]
        %v9253 = vld [vmem:[%s4 + $0x1e4] sm:$0xf]
        %v9254 = vld [vmem:[%s4 + $0x1e8] sm:$0xf]
        %v9255 = vld [vmem:[%s4 + $0x1ec] sm:$0xf]
        %v9256 = vld [vmem:[%s4 + $0x1f0] sm:$0xf]
        %v9257 = vld [vmem:[%s4 + $0x1f4] sm:$0xf]
        %v9258 = vld [vmem:[%s4 + $0x1f8] sm:$0xf]
        %v9259 = vld [vmem:[%s4 + $0x1fc] sm:$0xf]
        %v9260 = vld [vmem:[%s4 + $0x200] sm:$0xf]
        %v9261 = vld [vmem:[%s4 + $0x204] sm:$0xf]
        %v9262 = vld [vmem:[%s4 + $0x208] sm:$0xf]
        %v9263 = vld [vmem:[%s4 + $0x20c] sm:$0xf]
        %v9264 = vld [vmem:[%s4 + $0x210] sm:$0xf]
        %v9265 = vld [vmem:[%s4 + $0x214] sm:$0xf]
        %v9266 = vld [vmem:[%s4 + $0x218] sm:$0xf]
        %v9267 = vld [vmem:[%s4 + $0x21c] sm:$0xf]
        %v9268 = vld [vmem:[%s4 + $0x220] sm:$0xf]
        %v9269 = vld [vmem:[%s4 + $0x224] sm:$0xf]
        %v9270 = vld [vmem:[%s4 + $0x228] sm:$0xf]
        %v9271 = vld [vmem:[%s4 + $0x22c] sm:$0xf]
        %v9272 = vld [vmem:[%s4 + $0x230] sm:$0xf]
        %v9273 = vld [vmem:[%s4 + $0x234] sm:$0xf]
        %v9274 = vld [vmem:[%s4 + $0x238] sm:$0xf]
        %v9275 = vld [vmem:[%s4 + $0x23c] sm:$0xf]
        %v9436 = vunpack.c.l.b16 %v8972
        %v9437 = vunpack.c.h.b16 %v8972
        %v9438 = vunpack.c.l.b16 %v8973
        %v9439 = vunpack.c.h.b16 %v8973
        %v9440 = vunpack.c.l.b16 %v8974
        %v9441 = vunpack.c.h.b16 %v8974
        %v9442 = vunpack.c.l.b16 %v8975
        %v9443 = vunpack.c.h.b16 %v8975
        %v9444 = vunpack.c.l.b16 %v8976
        %v9445 = vunpack.c.l.b16 %v8977
        %v9446 = vunpack.c.h.b16 %v8977
        %v9447 = vunpack.c.l.b16 %v8978
        %v9448 = vunpack.c.h.b16 %v8978
        %v9449 = vunpack.c.l.b16 %v8979
        %v9450 = vunpack.c.h.b16 %v8979
        %v9451 = vunpack.c.l.b16 %v8980
        %v9452 = vunpack.c.h.b16 %v8980
        %v9453 = vunpack.c.l.b16 %v8981
        %v9454 = vunpack.c.l.b16 %v8982
        %v9455 = vunpack.c.h.b16 %v8982
        %v9456 = vunpack.c.l.b16 %v8983
        %v9457 = vunpack.c.h.b16 %v8983
        %v9458 = vunpack.c.l.b16 %v8984
        %v9459 = vunpack.c.h.b16 %v8984
        %v9460 = vunpack.c.l.b16 %v8985
        %v9461 = vunpack.c.h.b16 %v8985
        %v9462 = vunpack.c.l.b16 %v8986
        %v9463 = vunpack.c.l.b16 %v8987
        %v9464 = vunpack.c.h.b16 %v8987
        %v9465 = vunpack.c.l.b16 %v8988
        %v9466 = vunpack.c.h.b16 %v8988
        %v9467 = vunpack.c.l.b16 %v8989
        %v9468 = vunpack.c.h.b16 %v8989
        %v9469 = vunpack.c.l.b16 %v8990
        %v9470 = vunpack.c.h.b16 %v8990
        %v9471 = vunpack.c.l.b16 %v8991
        %v9472 = vunpack.c.l.b16 %v8992
        %v9473 = vunpack.c.h.b16 %v8992
        %v9474 = vunpack.c.l.b16 %v8993
        %v9475 = vunpack.c.h.b16 %v8993
        %v9476 = vunpack.c.l.b16 %v8994
        %v9477 = vunpack.c.h.b16 %v8994
        %v9478 = vunpack.c.l.b16 %v8995
        %v9479 = vunpack.c.h.b16 %v8995
        %v9480 = vunpack.c.l.b16 %v8996
        %v9481 = vunpack.c.l.b16 %v8997
        %v9482 = vunpack.c.h.b16 %v8997
        %v9483 = vunpack.c.l.b16 %v8998
        %v9484 = vunpack.c.h.b16 %v8998
        %v9485 = vunpack.c.l.b16 %v8999
        %v9486 = vunpack.c.h.b16 %v8999
        %v9487 = vunpack.c.l.b16 %v9000
        %v9488 = vunpack.c.h.b16 %v9000
        %v9489 = vunpack.c.l.b16 %v9001
        %v9490 = vunpack.c.l.b16 %v9002
        %v9491 = vunpack.c.h.b16 %v9002
        %v9492 = vunpack.c.l.b16 %v9003
        %v9493 = vunpack.c.h.b16 %v9003
        %v9494 = vunpack.c.l.b16 %v9004
        %v9495 = vunpack.c.h.b16 %v9004
        %v9496 = vunpack.c.l.b16 %v9005
        %v9497 = vunpack.c.h.b16 %v9005
        %v9498 = vunpack.c.l.b16 %v9006
        %v9499 = vunpack.c.l.b16 %v9007
        %v9500 = vunpack.c.h.b16 %v9007
        %v9501 = vunpack.c.l.b16 %v9008
        %v9502 = vunpack.c.h.b16 %v9008
        %v9503 = vunpack.c.l.b16 %v9009
        %v9504 = vunpack.c.h.b16 %v9009
        %v9505 = vunpack.c.l.b16 %v9010
        %v9506 = vunpack.c.h.b16 %v9010
        %v9507 = vunpack.c.l.b16 %v9011
        %v9508 = vunpack.c.l.b16 %v9012
        %v9509 = vunpack.c.h.b16 %v9012
        %v9510 = vunpack.c.l.b16 %v9013
        %v9511 = vunpack.c.h.b16 %v9013
        %v9512 = vunpack.c.l.b16 %v9014
        %v9513 = vunpack.c.h.b16 %v9014
        %v9514 = vunpack.c.l.b16 %v9015
        %v9515 = vunpack.c.h.b16 %v9015
        %v9516 = vunpack.c.l.b16 %v9016
        %v9517 = vunpack.c.l.b16 %v9017
        %v9518 = vunpack.c.h.b16 %v9017
        %v9519 = vunpack.c.l.b16 %v9018
        %v9520 = vunpack.c.h.b16 %v9018
        %v9521 = vunpack.c.l.b16 %v9019
        %v9522 = vunpack.c.h.b16 %v9019
        %v9523 = vunpack.c.l.b16 %v9020
        %v9524 = vunpack.c.h.b16 %v9020
        %v9525 = vunpack.c.l.b16 %v9021
        %v9526 = vunpack.c.l.b16 %v9022
        %v9527 = vunpack.c.h.b16 %v9022
        %v9528 = vunpack.c.l.b16 %v9023
        %v9529 = vunpack.c.h.b16 %v9023
        %v9530 = vunpack.c.l.b16 %v9024
        %v9531 = vunpack.c.h.b16 %v9024
        %v9532 = vunpack.c.l.b16 %v9025
        %v9533 = vunpack.c.h.b16 %v9025
        %v9534 = vunpack.c.l.b16 %v9026
        %v9535 = vunpack.c.l.b16 %v9027
        %v9536 = vunpack.c.h.b16 %v9027
        %v9537 = vunpack.c.l.b16 %v9028
        %v9538 = vunpack.c.h.b16 %v9028
        %v9539 = vunpack.c.l.b16 %v9029
        %v9540 = vunpack.c.h.b16 %v9029
        %v9541 = vunpack.c.l.b16 %v9030
        %v9542 = vunpack.c.h.b16 %v9030
        %v9543 = vunpack.c.l.b16 %v9031
        %v9544 = vunpack.c.l.b16 %v9032
        %v9545 = vunpack.c.h.b16 %v9032
        %v9546 = vunpack.c.l.b16 %v9033
        %v9547 = vunpack.c.h.b16 %v9033
        %v9548 = vunpack.c.l.b16 %v9034
        %v9549 = vunpack.c.h.b16 %v9034
        %v9550 = vunpack.c.l.b16 %v9035
        %v9551 = vunpack.c.h.b16 %v9035
        %v9552 = vunpack.c.l.b16 %v9036
        %v9553 = vunpack.c.l.b16 %v9037
        %v9554 = vunpack.c.h.b16 %v9037
        %v9555 = vunpack.c.l.b16 %v9038
        %v9556 = vunpack.c.h.b16 %v9038
        %v9557 = vunpack.c.l.b16 %v9039
        %v9558 = vunpack.c.h.b16 %v9039
        %v9559 = vunpack.c.l.b16 %v9040
        %v9560 = vunpack.c.h.b16 %v9040
        %v9561 = vunpack.c.l.b16 %v9041
        %v9562 = vunpack.c.l.b16 %v9042
        %v9563 = vunpack.c.h.b16 %v9042
        %v9564 = vunpack.c.l.b16 %v9043
        %v9565 = vunpack.c.h.b16 %v9043
        %v9566 = vunpack.c.l.b16 %v9044
        %v9567 = vunpack.c.h.b16 %v9044
        %v9568 = vunpack.c.l.b16 %v9045
        %v9569 = vunpack.c.h.b16 %v9045
        %v9570 = vunpack.c.l.b16 %v9046
        %v9571 = vunpack.c.l.b16 %v9047
        %v9572 = vunpack.c.h.b16 %v9047
        %v9573 = vunpack.c.l.b16 %v9048
        %v9574 = vunpack.c.h.b16 %v9048
        %v9575 = vunpack.c.l.b16 %v9049
        %v9576 = vunpack.c.h.b16 %v9049
        %v9577 = vunpack.c.l.b16 %v9050
        %v9578 = vunpack.c.h.b16 %v9050
        %v9579 = vunpack.c.l.b16 %v9051
        %v9580 = vunpack.c.l.b16 %v9052
        %v9581 = vunpack.c.h.b16 %v9052
        %v9582 = vunpack.c.l.b16 %v9053
        %v9583 = vunpack.c.h.b16 %v9053
        %v9584 = vunpack.c.l.b16 %v9054
        %v9585 = vunpack.c.h.b16 %v9054
        %v9586 = vunpack.c.l.b16 %v9055
        %v9587 = vunpack.c.h.b16 %v9055
        %v9588 = vunpack.c.l.b16 %v9056
        %v9589 = vunpack.c.l.b16 %v9057
        %v9590 = vunpack.c.h.b16 %v9057
        %v9591 = vunpack.c.l.b16 %v9058
        %v9592 = vunpack.c.h.b16 %v9058
        %v9593 = vunpack.c.l.b16 %v9059
        %v9594 = vunpack.c.h.b16 %v9059
        %v9595 = vunpack.c.l.b16 %v9060
        %v9596 = vunpack.c.h.b16 %v9060
        %v9597 = vunpack.c.l.b16 %v9061
        %v9598 = vunpack.c.l.b16 %v9062
        %v9599 = vunpack.c.h.b16 %v9062
        %v9600 = vunpack.c.l.b16 %v9063
        %v9601 = vunpack.c.h.b16 %v9063
        %v9602 = vunpack.c.l.b16 %v9064
        %v9603 = vunpack.c.h.b16 %v9064
        %v9604 = vunpack.c.l.b16 %v9065
        %v9605 = vunpack.c.h.b16 %v9065
        %v9606 = vunpack.c.l.b16 %v9066
        %v9607 = vunpack.c.l.b16 %v9067
        %v9608 = vunpack.c.h.b16 %v9067
        %v9609 = vunpack.c.l.b16 %v9068
        %v9610 = vunpack.c.h.b16 %v9068
        %v9611 = vunpack.c.l.b16 %v9069
        %v9612 = vunpack.c.h.b16 %v9069
        %v9613 = vunpack.c.l.b16 %v9070
        %v9614 = vunpack.c.h.b16 %v9070
        %v9615 = vunpack.c.l.b16 %v9071
        %v9616 = vunpack.c.l.b16 %v9072
        %v9617 = vunpack.c.h.b16 %v9072
        %v9618 = vunpack.c.l.b16 %v9073
        %v9619 = vunpack.c.h.b16 %v9073
        %v9620 = vunpack.c.l.b16 %v9074
        %v9621 = vunpack.c.h.b16 %v9074
        %v9622 = vunpack.c.l.b16 %v9075
        %v9623 = vunpack.c.h.b16 %v9075
        %v9624 = vunpack.c.l.b16 %v9076
        %v9625 = vunpack.c.l.b16 %v9077
        %v9626 = vunpack.c.h.b16 %v9077
        %v9627 = vunpack.c.l.b16 %v9078
        %v9628 = vunpack.c.h.b16 %v9078
        %v9629 = vunpack.c.l.b16 %v9079
        %v9630 = vunpack.c.h.b16 %v9079
        %v9631 = vunpack.c.l.b16 %v9080
        %v9632 = vunpack.c.h.b16 %v9080
        %v9633 = vunpack.c.l.b16 %v9081
        %v9634 = vunpack.c.l.b16 %v9082
        %v9635 = vunpack.c.h.b16 %v9082
        %v9636 = vunpack.c.l.b16 %v9083
        %v9637 = vunpack.c.h.b16 %v9083
        %v9638 = vunpack.c.l.b16 %v9084
        %v9639 = vunpack.c.h.b16 %v9084
        %v9640 = vunpack.c.l.b16 %v9085
        %v9641 = vunpack.c.h.b16 %v9085
        %v9642 = vunpack.c.l.b16 %v9086
        %v9643 = vunpack.c.l.b16 %v9087
        %v9644 = vunpack.c.h.b16 %v9087
        %v9645 = vunpack.c.l.b16 %v9088
        %v9646 = vunpack.c.h.b16 %v9088
        %v9647 = vunpack.c.l.b16 %v9089
        %v9648 = vunpack.c.h.b16 %v9089
        %v9649 = vunpack.c.l.b16 %v9090
        %v9650 = vunpack.c.h.b16 %v9090
        %v9651 = vunpack.c.l.b16 %v9091
        %v9652 = vunpack.c.l.b16 %v9092
        %v9653 = vunpack.c.h.b16 %v9092
        %v9654 = vunpack.c.l.b16 %v9093
        %v9655 = vunpack.c.h.b16 %v9093
        %v9656 = vunpack.c.l.b16 %v9094
        %v9657 = vunpack.c.h.b16 %v9094
        %v9658 = vunpack.c.l.b16 %v9095
        %v9659 = vunpack.c.h.b16 %v9095
        %v9660 = vunpack.c.l.b16 %v9096
        %v9661 = vunpack.c.l.b16 %v9097
        %v9662 = vunpack.c.h.b16 %v9097
        %v9663 = vunpack.c.l.b16 %v9098
        %v9664 = vunpack.c.h.b16 %v9098
        %v9665 = vunpack.c.l.b16 %v9099
        %v9666 = vunpack.c.h.b16 %v9099
        %v9667 = vunpack.c.l.b16 %v9100
        %v9668 = vunpack.c.h.b16 %v9100
        %v9669 = vunpack.c.l.b16 %v9101
        %v9670 = vunpack.c.l.b16 %v9102
        %v9671 = vunpack.c.h.b16 %v9102
        %v9672 = vunpack.c.l.b16 %v9103
        %v9673 = vunpack.c.h.b16 %v9103
        %v9674 = vunpack.c.l.b16 %v9104
        %v9675 = vunpack.c.h.b16 %v9104
        %v9676 = vunpack.c.l.b16 %v9105
        %v9677 = vunpack.c.h.b16 %v9105
        %v9678 = vunpack.c.l.b16 %v9106
        %v9679 = vunpack.c.l.b16 %v9107
        %v9680 = vunpack.c.h.b16 %v9107
        %v9681 = vunpack.c.l.b16 %v9108
        %v9682 = vunpack.c.h.b16 %v9108
        %v9683 = vunpack.c.l.b16 %v9109
        %v9684 = vunpack.c.h.b16 %v9109
        %v9685 = vunpack.c.l.b16 %v9110
        %v9686 = vunpack.c.h.b16 %v9110
        %v9687 = vunpack.c.l.b16 %v9111
        %v9688 = vunpack.c.l.b16 %v9112
        %v9689 = vunpack.c.h.b16 %v9112
        %v9690 = vunpack.c.l.b16 %v9113
        %v9691 = vunpack.c.h.b16 %v9113
        %v9692 = vunpack.c.l.b16 %v9114
        %v9693 = vunpack.c.h.b16 %v9114
        %v9694 = vunpack.c.l.b16 %v9115
        %v9695 = vunpack.c.h.b16 %v9115
        %v9696 = vunpack.c.l.b16 %v9116
        %v9697 = vunpack.c.l.b16 %v9117
        %v9698 = vunpack.c.h.b16 %v9117
        %v9699 = vunpack.c.l.b16 %v9118
        %v9700 = vunpack.c.h.b16 %v9118
        %v9701 = vunpack.c.l.b16 %v9119
        %v9702 = vunpack.c.h.b16 %v9119
        %v9703 = vunpack.c.l.b16 %v9120
        %v9704 = vunpack.c.h.b16 %v9120
        %v9705 = vunpack.c.l.b16 %v9121
        %v9706 = vunpack.c.l.b16 %v9122
        %v9707 = vunpack.c.h.b16 %v9122
        %v9708 = vunpack.c.l.b16 %v9123
        %v9709 = vunpack.c.h.b16 %v9123
        %v9710 = vunpack.c.l.b16 %v9124
        %v9711 = vunpack.c.h.b16 %v9124
        %v9712 = vunpack.c.l.b16 %v9125
        %v9713 = vunpack.c.h.b16 %v9125
        %v9714 = vunpack.c.l.b16 %v9126
        %v9715 = vunpack.c.l.b16 %v9127
        %v9716 = vunpack.c.h.b16 %v9127
        %v9717 = vunpack.c.l.b16 %v9128
        %v9718 = vunpack.c.h.b16 %v9128
        %v9719 = vunpack.c.l.b16 %v9129
        %v9720 = vunpack.c.h.b16 %v9129
        %v9721 = vunpack.c.l.b16 %v9130
        %v9722 = vunpack.c.h.b16 %v9130
        %v9723 = vunpack.c.l.b16 %v9131
        %v9724 = vpack.c.b16 %v9445, %v9436
        %v9725 = vpack.c.b16 %v9446, %v9437
        %v9726 = vpack.c.b16 %v9447, %v9438
        %v9727 = vpack.c.b16 %v9448, %v9439
        %v9728 = vpack.c.b16 %v9449, %v9440
        %v9729 = vpack.c.b16 %v9450, %v9441
        %v9730 = vpack.c.b16 %v9451, %v9442
        %v9731 = vpack.c.b16 %v9452, %v9443
        %v9732 = vpack.c.b16 %v9453, %v9444
        %v9733 = vpack.c.b16 %v9463, %v9454
        %v9734 = vpack.c.b16 %v9464, %v9455
        %v9735 = vpack.c.b16 %v9465, %v9456
        %v9736 = vpack.c.b16 %v9466, %v9457
        %v9737 = vpack.c.b16 %v9467, %v9458
        %v9738 = vpack.c.b16 %v9468, %v9459
        %v9739 = vpack.c.b16 %v9469, %v9460
        %v9740 = vpack.c.b16 %v9470, %v9461
        %v9741 = vpack.c.b16 %v9471, %v9462
        %v9742 = vpack.c.b16 %v9481, %v9472
        %v9743 = vpack.c.b16 %v9482, %v9473
        %v9744 = vpack.c.b16 %v9483, %v9474
        %v9745 = vpack.c.b16 %v9484, %v9475
        %v9746 = vpack.c.b16 %v9485, %v9476
        %v9747 = vpack.c.b16 %v9486, %v9477
        %v9748 = vpack.c.b16 %v9487, %v9478
        %v9749 = vpack.c.b16 %v9488, %v9479
        %v9750 = vpack.c.b16 %v9489, %v9480
        %v9751 = vpack.c.b16 %v9499, %v9490
        %v9752 = vpack.c.b16 %v9500, %v9491
        %v9753 = vpack.c.b16 %v9501, %v9492
        %v9754 = vpack.c.b16 %v9502, %v9493
        %v9755 = vpack.c.b16 %v9503, %v9494
        %v9756 = vpack.c.b16 %v9504, %v9495
        %v9757 = vpack.c.b16 %v9505, %v9496
        %v9758 = vpack.c.b16 %v9506, %v9497
        %v9759 = vpack.c.b16 %v9507, %v9498
        %v9760 = vpack.c.b16 %v9517, %v9508
        %v9761 = vpack.c.b16 %v9518, %v9509
        %v9762 = vpack.c.b16 %v9519, %v9510
        %v9763 = vpack.c.b16 %v9520, %v9511
        %v9764 = vpack.c.b16 %v9521, %v9512
        %v9765 = vpack.c.b16 %v9522, %v9513
        %v9766 = vpack.c.b16 %v9523, %v9514
        %v9767 = vpack.c.b16 %v9524, %v9515
        %v9768 = vpack.c.b16 %v9525, %v9516
        %v9769 = vpack.c.b16 %v9535, %v9526
        %v9770 = vpack.c.b16 %v9536, %v9527
        %v9771 = vpack.c.b16 %v9537, %v9528
        %v9772 = vpack.c.b16 %v9538, %v9529
        %v9773 = vpack.c.b16 %v9539, %v9530
        %v9774 = vpack.c.b16 %v9540, %v9531
        %v9775 = vpack.c.b16 %v9541, %v9532
        %v9776 = vpack.c.b16 %v9542, %v9533
        %v9777 = vpack.c.b16 %v9543, %v9534
        %v9778 = vpack.c.b16 %v9553, %v9544
        %v9779 = vpack.c.b16 %v9554, %v9545
        %v9780 = vpack.c.b16 %v9555, %v9546
        %v9781 = vpack.c.b16 %v9556, %v9547
        %v9782 = vpack.c.b16 %v9557, %v9548
        %v9783 = vpack.c.b16 %v9558, %v9549
        %v9784 = vpack.c.b16 %v9559, %v9550
        %v9785 = vpack.c.b16 %v9560, %v9551
        %v9786 = vpack.c.b16 %v9561, %v9552
        %v9787 = vpack.c.b16 %v9571, %v9562
        %v9788 = vpack.c.b16 %v9572, %v9563
        %v9789 = vpack.c.b16 %v9573, %v9564
        %v9790 = vpack.c.b16 %v9574, %v9565
        %v9791 = vpack.c.b16 %v9575, %v9566
        %v9792 = vpack.c.b16 %v9576, %v9567
        %v9793 = vpack.c.b16 %v9577, %v9568
        %v9794 = vpack.c.b16 %v9578, %v9569
        %v9795 = vpack.c.b16 %v9579, %v9570
        %v9796 = vpack.c.b16 %v9589, %v9580
        %v9797 = vpack.c.b16 %v9590, %v9581
        %v9798 = vpack.c.b16 %v9591, %v9582
        %v9799 = vpack.c.b16 %v9592, %v9583
        %v9800 = vpack.c.b16 %v9593, %v9584
        %v9801 = vpack.c.b16 %v9594, %v9585
        %v9802 = vpack.c.b16 %v9595, %v9586
        %v9803 = vpack.c.b16 %v9596, %v9587
        %v9804 = vpack.c.b16 %v9597, %v9588
        %v9805 = vpack.c.b16 %v9607, %v9598
        %v9806 = vpack.c.b16 %v9608, %v9599
        %v9807 = vpack.c.b16 %v9609, %v9600
        %v9808 = vpack.c.b16 %v9610, %v9601
        %v9809 = vpack.c.b16 %v9611, %v9602
        %v9810 = vpack.c.b16 %v9612, %v9603
        %v9811 = vpack.c.b16 %v9613, %v9604
        %v9812 = vpack.c.b16 %v9614, %v9605
        %v9813 = vpack.c.b16 %v9615, %v9606
        %v9814 = vpack.c.b16 %v9625, %v9616
        %v9815 = vpack.c.b16 %v9626, %v9617
        %v9816 = vpack.c.b16 %v9627, %v9618
        %v9817 = vpack.c.b16 %v9628, %v9619
        %v9818 = vpack.c.b16 %v9629, %v9620
        %v9819 = vpack.c.b16 %v9630, %v9621
        %v9820 = vpack.c.b16 %v9631, %v9622
        %v9821 = vpack.c.b16 %v9632, %v9623
        %v9822 = vpack.c.b16 %v9633, %v9624
        %v9823 = vpack.c.b16 %v9643, %v9634
        %v9824 = vpack.c.b16 %v9644, %v9635
        %v9825 = vpack.c.b16 %v9645, %v9636
        %v9826 = vpack.c.b16 %v9646, %v9637
        %v9827 = vpack.c.b16 %v9647, %v9638
        %v9828 = vpack.c.b16 %v9648, %v9639
        %v9829 = vpack.c.b16 %v9649, %v9640
        %v9830 = vpack.c.b16 %v9650, %v9641
        %v9831 = vpack.c.b16 %v9651, %v9642
        %v9832 = vpack.c.b16 %v9661, %v9652
        %v9833 = vpack.c.b16 %v9662, %v9653
        %v9834 = vpack.c.b16 %v9663, %v9654
        %v9835 = vpack.c.b16 %v9664, %v9655
        %v9836 = vpack.c.b16 %v9665, %v9656
        %v9837 = vpack.c.b16 %v9666, %v9657
        %v9838 = vpack.c.b16 %v9667, %v9658
        %v9839 = vpack.c.b16 %v9668, %v9659
        %v9840 = vpack.c.b16 %v9669, %v9660
        %v9841 = vpack.c.b16 %v9679, %v9670
        %v9842 = vpack.c.b16 %v9680, %v9671
        %v9843 = vpack.c.b16 %v9681, %v9672
        %v9844 = vpack.c.b16 %v9682, %v9673
        %v9845 = vpack.c.b16 %v9683, %v9674
        %v9846 = vpack.c.b16 %v9684, %v9675
        %v9847 = vpack.c.b16 %v9685, %v9676
        %v9848 = vpack.c.b16 %v9686, %v9677
        %v9849 = vpack.c.b16 %v9687, %v9678
        %v9850 = vpack.c.b16 %v9697, %v9688
        %v9851 = vpack.c.b16 %v9698, %v9689
        %v9852 = vpack.c.b16 %v9699, %v9690
        %v9853 = vpack.c.b16 %v9700, %v9691
        %v9854 = vpack.c.b16 %v9701, %v9692
        %v9855 = vpack.c.b16 %v9702, %v9693
        %v9856 = vpack.c.b16 %v9703, %v9694
        %v9857 = vpack.c.b16 %v9704, %v9695
        %v9858 = vpack.c.b16 %v9705, %v9696
        %v9859 = vpack.c.b16 %v9715, %v9706
        %v9860 = vpack.c.b16 %v9716, %v9707
        %v9861 = vpack.c.b16 %v9717, %v9708
        %v9862 = vpack.c.b16 %v9718, %v9709
        %v9863 = vpack.c.b16 %v9719, %v9710
        %v9864 = vpack.c.b16 %v9720, %v9711
        %v9865 = vpack.c.b16 %v9721, %v9712
        %v9866 = vpack.c.b16 %v9722, %v9713
        %v9867 = vpack.c.b16 %v9723, %v9714
        %v10156 = vunpack.c.l.b16 %v9132
        %v10157 = vunpack.c.l.b16 %v9133
        %v10158 = vunpack.c.l.b16 %v9134
        %v10159 = vunpack.c.l.b16 %v9135
        %v10160 = vunpack.c.l.b16 %v9136
        %v10161 = vunpack.c.l.b16 %v9137
        %v10162 = vunpack.c.l.b16 %v9138
        %v10163 = vunpack.c.l.b16 %v9139
        %v10164 = vunpack.c.l.b16 %v9140
        %v10165 = vunpack.c.l.b16 %v9141
        %v10166 = vunpack.c.l.b16 %v9142
        %v10167 = vunpack.c.l.b16 %v9143
        %v10168 = vunpack.c.l.b16 %v9144
        %v10169 = vunpack.c.l.b16 %v9145
        %v10170 = vunpack.c.l.b16 %v9146
        %v10171 = vunpack.c.l.b16 %v9147
        %v10172 = vunpack.c.l.b16 %v9148
        %v10173 = vunpack.c.l.b16 %v9149
        %v10174 = vunpack.c.l.b16 %v9150
        %v10175 = vunpack.c.l.b16 %v9151
        %v10176 = vunpack.c.l.b16 %v9152
        %v10177 = vunpack.c.l.b16 %v9153
        %v10178 = vunpack.c.l.b16 %v9154
        %v10179 = vunpack.c.l.b16 %v9155
        %v10180 = vunpack.c.l.b16 %v9156
        %v10181 = vunpack.c.l.b16 %v9157
        %v10182 = vunpack.c.l.b16 %v9158
        %v10183 = vunpack.c.l.b16 %v9159
        %v10184 = vunpack.c.l.b16 %v9160
        %v10185 = vunpack.c.l.b16 %v9161
        %v10186 = vunpack.c.l.b16 %v9162
        %v10187 = vunpack.c.l.b16 %v9163
        %v10188 = vunpack.c.l.b16 %v9164
        %v10189 = vunpack.c.l.b16 %v9165
        %v10190 = vunpack.c.l.b16 %v9166
        %v10191 = vunpack.c.l.b16 %v9167
        %v10192 = vunpack.c.l.b16 %v9168
        %v10193 = vunpack.c.l.b16 %v9169
        %v10194 = vunpack.c.l.b16 %v9170
        %v10195 = vunpack.c.l.b16 %v9171
        %v10196 = vunpack.c.l.b16 %v9172
        %v10197 = vunpack.c.l.b16 %v9173
        %v10198 = vunpack.c.l.b16 %v9174
        %v10199 = vunpack.c.l.b16 %v9175
        %v10200 = vunpack.c.l.b16 %v9176
        %v10201 = vunpack.c.l.b16 %v9177
        %v10202 = vunpack.c.l.b16 %v9178
        %v10203 = vunpack.c.l.b16 %v9179
        %v10204 = vunpack.c.l.b16 %v9180
        %v10205 = vunpack.c.l.b16 %v9181
        %v10206 = vunpack.c.l.b16 %v9182
        %v10207 = vunpack.c.l.b16 %v9183
        %v10208 = vunpack.c.l.b16 %v9184
        %v10209 = vunpack.c.l.b16 %v9185
        %v10210 = vunpack.c.l.b16 %v9186
        %v10211 = vunpack.c.l.b16 %v9187
        %v10212 = vunpack.c.l.b16 %v9188
        %v10213 = vunpack.c.l.b16 %v9189
        %v10214 = vunpack.c.l.b16 %v9190
        %v10215 = vunpack.c.l.b16 %v9191
        %v10216 = vunpack.c.l.b16 %v9192
        %v10217 = vunpack.c.l.b16 %v9193
        %v10218 = vunpack.c.l.b16 %v9194
        %v10219 = vunpack.c.l.b16 %v9195
        %v10220 = vunpack.c.l.b16 %v9196
        %v10221 = vunpack.c.l.b16 %v9197
        %v10222 = vunpack.c.l.b16 %v9198
        %v10223 = vunpack.c.l.b16 %v9199
        %v10224 = vunpack.c.l.b16 %v9200
        %v10225 = vunpack.c.l.b16 %v9201
        %v10226 = vunpack.c.l.b16 %v9202
        %v10227 = vunpack.c.l.b16 %v9203
        %v10228 = vunpack.c.l.b16 %v9204
        %v10229 = vunpack.c.l.b16 %v9205
        %v10230 = vunpack.c.l.b16 %v9206
        %v10231 = vunpack.c.l.b16 %v9207
        %v10232 = vunpack.c.l.b16 %v9208
        %v10233 = vunpack.c.l.b16 %v9209
        %v10234 = vunpack.c.l.b16 %v9210
        %v10235 = vunpack.c.l.b16 %v9211
        %v10236 = vunpack.c.l.b16 %v9212
        %v10237 = vunpack.c.l.b16 %v9213
        %v10238 = vunpack.c.l.b16 %v9214
        %v10239 = vunpack.c.l.b16 %v9215
        %v10240 = vunpack.c.l.b16 %v9216
        %v10241 = vunpack.c.l.b16 %v9217
        %v10242 = vunpack.c.l.b16 %v9218
        %v10243 = vunpack.c.l.b16 %v9219
        %v10244 = vunpack.c.l.b16 %v9220
        %v10245 = vunpack.c.l.b16 %v9221
        %v10246 = vunpack.c.l.b16 %v9222
        %v10247 = vunpack.c.l.b16 %v9223
        %v10248 = vunpack.c.l.b16 %v9224
        %v10249 = vunpack.c.l.b16 %v9225
        %v10250 = vunpack.c.l.b16 %v9226
        %v10251 = vunpack.c.l.b16 %v9227
        %v10252 = vunpack.c.l.b16 %v9228
        %v10253 = vunpack.c.l.b16 %v9229
        %v10254 = vunpack.c.l.b16 %v9230
        %v10255 = vunpack.c.l.b16 %v9231
        %v10256 = vunpack.c.l.b16 %v9232
        %v10257 = vunpack.c.l.b16 %v9233
        %v10258 = vunpack.c.l.b16 %v9234
        %v10259 = vunpack.c.l.b16 %v9235
        %v10260 = vunpack.c.l.b16 %v9236
        %v10261 = vunpack.c.l.b16 %v9237
        %v10262 = vunpack.c.l.b16 %v9238
        %v10263 = vunpack.c.l.b16 %v9239
        %v10264 = vunpack.c.l.b16 %v9240
        %v10265 = vunpack.c.l.b16 %v9241
        %v10266 = vunpack.c.l.b16 %v9242
        %v10267 = vunpack.c.l.b16 %v9243
        %v10268 = vunpack.c.l.b16 %v9244
        %v10269 = vunpack.c.l.b16 %v9245
        %v10270 = vunpack.c.l.b16 %v9246
        %v10271 = vunpack.c.l.b16 %v9247
        %v10272 = vunpack.c.l.b16 %v9248
        %v10273 = vunpack.c.l.b16 %v9249
        %v10274 = vunpack.c.l.b16 %v9250
        %v10275 = vunpack.c.l.b16 %v9251
        %v10276 = vunpack.c.l.b16 %v9252
        %v10277 = vunpack.c.l.b16 %v9253
        %v10278 = vunpack.c.l.b16 %v9254
        %v10279 = vunpack.c.l.b16 %v9255
        %v10280 = vunpack.c.l.b16 %v9256
        %v10281 = vunpack.c.l.b16 %v9257
        %v10282 = vunpack.c.l.b16 %v9258
        %v10283 = vunpack.c.l.b16 %v9259
        %v10284 = vunpack.c.l.b16 %v9260
        %v10285 = vunpack.c.l.b16 %v9261
        %v10286 = vunpack.c.l.b16 %v9262
        %v10287 = vunpack.c.l.b16 %v9263
        %v10288 = vunpack.c.l.b16 %v9264
        %v10289 = vunpack.c.l.b16 %v9265
        %v10290 = vunpack.c.l.b16 %v9266
        %v10291 = vunpack.c.l.b16 %v9267
        %v10292 = vunpack.c.l.b16 %v9268
        %v10293 = vunpack.c.l.b16 %v9269
        %v10294 = vunpack.c.l.b16 %v9270
        %v10295 = vunpack.c.l.b16 %v9271
        %v10296 = vunpack.c.l.b16 %v9272
        %v10297 = vunpack.c.l.b16 %v9273
        %v10298 = vunpack.c.l.b16 %v9274
        %v10299 = vunpack.c.l.b16 %v9275
        %v10300 = vpack.c.b16 %v10157, %v10156
        %v10301 = vpack.c.b16 %v10159, %v10158
        %v10302 = vpack.c.b16 %v10161, %v10160
        %v10303 = vpack.c.b16 %v10163, %v10162
        %v10304 = vpack.c.b16 %v10165, %v10164
        %v10305 = vpack.c.b16 %v10167, %v10166
        %v10306 = vpack.c.b16 %v10169, %v10168
        %v10307 = vpack.c.b16 %v10171, %v10170
        %v10308 = vpack.c.b16 %v10173, %v10172
        %v10309 = vpack.c.b16 %v10175, %v10174
        %v10310 = vpack.c.b16 %v10177, %v10176
        %v10311 = vpack.c.b16 %v10179, %v10178
        %v10312 = vpack.c.b16 %v10181, %v10180
        %v10313 = vpack.c.b16 %v10183, %v10182
        %v10314 = vpack.c.b16 %v10185, %v10184
        %v10315 = vpack.c.b16 %v10187, %v10186
        %v10316 = vpack.c.b16 %v10189, %v10188
        %v10317 = vpack.c.b16 %v10191, %v10190
        %v10318 = vpack.c.b16 %v10193, %v10192
        %v10319 = vpack.c.b16 %v10195, %v10194
        %v10320 = vpack.c.b16 %v10197, %v10196
        %v10321 = vpack.c.b16 %v10199, %v10198
        %v10322 = vpack.c.b16 %v10201, %v10200
        %v10323 = vpack.c.b16 %v10203, %v10202
        %v10324 = vpack.c.b16 %v10205, %v10204
        %v10325 = vpack.c.b16 %v10207, %v10206
        %v10326 = vpack.c.b16 %v10209, %v10208
        %v10327 = vpack.c.b16 %v10211, %v10210
        %v10328 = vpack.c.b16 %v10213, %v10212
        %v10329 = vpack.c.b16 %v10215, %v10214
        %v10330 = vpack.c.b16 %v10217, %v10216
        %v10331 = vpack.c.b16 %v10219, %v10218
        %v10332 = vpack.c.b16 %v10221, %v10220
        %v10333 = vpack.c.b16 %v10223, %v10222
        %v10334 = vpack.c.b16 %v10225, %v10224
        %v10335 = vpack.c.b16 %v10227, %v10226
        %v10336 = vpack.c.b16 %v10229, %v10228
        %v10337 = vpack.c.b16 %v10231, %v10230
        %v10338 = vpack.c.b16 %v10233, %v10232
        %v10339 = vpack.c.b16 %v10235, %v10234
        %v10340 = vpack.c.b16 %v10237, %v10236
        %v10341 = vpack.c.b16 %v10239, %v10238
        %v10342 = vpack.c.b16 %v10241, %v10240
        %v10343 = vpack.c.b16 %v10243, %v10242
        %v10344 = vpack.c.b16 %v10245, %v10244
        %v10345 = vpack.c.b16 %v10247, %v10246
        %v10346 = vpack.c.b16 %v10249, %v10248
        %v10347 = vpack.c.b16 %v10251, %v10250
        %v10348 = vpack.c.b16 %v10253, %v10252
        %v10349 = vpack.c.b16 %v10255, %v10254
        %v10350 = vpack.c.b16 %v10257, %v10256
        %v10351 = vpack.c.b16 %v10259, %v10258
        %v10352 = vpack.c.b16 %v10261, %v10260
        %v10353 = vpack.c.b16 %v10263, %v10262
        %v10354 = vpack.c.b16 %v10265, %v10264
        %v10355 = vpack.c.b16 %v10267, %v10266
        %v10356 = vpack.c.b16 %v10269, %v10268
        %v10357 = vpack.c.b16 %v10271, %v10270
        %v10358 = vpack.c.b16 %v10273, %v10272
        %v10359 = vpack.c.b16 %v10275, %v10274
        %v10360 = vpack.c.b16 %v10277, %v10276
        %v10361 = vpack.c.b16 %v10279, %v10278
        %v10362 = vpack.c.b16 %v10281, %v10280
        %v10363 = vpack.c.b16 %v10283, %v10282
        %v10364 = vpack.c.b16 %v10285, %v10284
        %v10365 = vpack.c.b16 %v10287, %v10286
        %v10366 = vpack.c.b16 %v10289, %v10288
        %v10367 = vpack.c.b16 %v10291, %v10290
        %v10368 = vpack.c.b16 %v10293, %v10292
        %v10369 = vpack.c.b16 %v10295, %v10294
        %v10370 = vpack.c.b16 %v10297, %v10296
        %v10371 = vpack.c.b16 %v10299, %v10298
        %10444 = vmatprep.subr.bf16.mxu0 0
        %10445 = vmatpush1.bf16.msra.mxu0 %v10307
        %10446 = vmatprep.subr.bf16.mxu0 0
        %10447 = vmatpush1.bf16.msra.mxu0 %v10306
        %10448 = vmatprep.subr.bf16.mxu0 0
        %10449 = vmatpush1.bf16.msra.mxu0 %v10305
        %10450 = vmatprep.subr.bf16.mxu0 0
        %10451 = vmatpush1.bf16.msra.mxu0 %v10304
        %10452 = vmatprep.subr.bf16.mxu0 0
        %10453 = vmatpush1.bf16.msra.mxu0 %v10303
        %10454 = vmatprep.subr.bf16.mxu0 0
        %10455 = vmatpush1.bf16.msra.mxu0 %v10302
        %10456 = vmatprep.subr.bf16.mxu0 0
        %10457 = vmatpush1.bf16.msra.mxu0 %v10301
        %10458 = vmatprep.subr.bf16.mxu0 0
        %10459 = vmatpush1.bf16.msra.mxu0 %v10300
        %10460 = vmatprep.subr.bf16.mxu0 0
        %10461 = vmatpush2.bf16.msra.mxu0 %v10315
        %10462 = vmatprep.subr.bf16.mxu0 0
        %10463 = vmatpush2.bf16.msra.mxu0 %v10314
        %10464 = vmatprep.subr.bf16.mxu0 0
        %10465 = vmatpush2.bf16.msra.mxu0 %v10313
        %10466 = vmatprep.subr.bf16.mxu0 0
        %10467 = vmatpush2.bf16.msra.mxu0 %v10312
        %10468 = vmatprep.subr.bf16.mxu0 0
        %10469 = vmatpush2.bf16.msra.mxu0 %v10311
        %10470 = vmatprep.subr.bf16.mxu0 0
        %10471 = vmatpush2.bf16.msra.mxu0 %v10310
        %10472 = vmatprep.subr.bf16.mxu0 0
        %10473 = vmatpush2.bf16.msra.mxu0 %v10309
        %10474 = vmatprep.subr.bf16.mxu0 0
        %10475 = vmatpush2.bf16.msra.mxu0 %v10308
        %10476 = vmatprep.mubr.bf16.mxu0 %v9725
        %10477 = vmatmul.mubr.bf16.gmra.mxu0 %v9724
        %v10478 = vpop.f32.mrf.mxu0
        %v10479 = vadd.f32 0.0, %v10478
        %v10480 = vpop.f32.mrf.mxu0
        %v10481 = vpop.f32.mrf.mxu0
        %v10482 = vadd.f32 0.0, %v10481
        %v10483 = vpop.f32.mrf.mxu0
        %10484 = vmatprep.mubr.bf16.mxu0 %v9734
        %10485 = vmatmul.mubr.bf16.gmra.mxu0 %v9733
        %v10486 = vpop.f32.mrf.mxu0
        %v10487 = vadd.f32 0.0, %v10486
        %v10488 = vpop.f32.mrf.mxu0
        %v10489 = vpop.f32.mrf.mxu0
        %v10490 = vadd.f32 0.0, %v10489
        %v10491 = vpop.f32.mrf.mxu0
        %10492 = vmatprep.mubr.bf16.mxu0 %v9743
        %10493 = vmatmul.mubr.bf16.gmra.mxu0 %v9742
        %v10494 = vpop.f32.mrf.mxu0
        %v10495 = vadd.f32 0.0, %v10494
        %v10496 = vpop.f32.mrf.mxu0
        %v10497 = vpop.f32.mrf.mxu0
        %v10498 = vadd.f32 0.0, %v10497
        %v10499 = vpop.f32.mrf.mxu0
        %10500 = vmatprep.mubr.bf16.mxu0 %v9752
        %10501 = vmatmul.mubr.bf16.gmra.mxu0 %v9751
        %v10502 = vpop.f32.mrf.mxu0
        %v10503 = vadd.f32 0.0, %v10502
        %v10504 = vpop.f32.mrf.mxu0
        %v10505 = vpop.f32.mrf.mxu0
        %v10506 = vadd.f32 0.0, %v10505
        %v10507 = vpop.f32.mrf.mxu0
        %10508 = vmatprep.mubr.bf16.mxu0 %v9761
        %10509 = vmatmul.mubr.bf16.gmra.mxu0 %v9760
        %v10510 = vpop.f32.mrf.mxu0
        %v10511 = vadd.f32 0.0, %v10510
        %v10512 = vpop.f32.mrf.mxu0
        %v10513 = vpop.f32.mrf.mxu0
        %v10514 = vadd.f32 0.0, %v10513
        %v10515 = vpop.f32.mrf.mxu0
        %10516 = vmatprep.mubr.bf16.mxu0 %v9770
        %10517 = vmatmul.mubr.bf16.gmra.mxu0 %v9769
        %v10518 = vpop.f32.mrf.mxu0
        %v10519 = vadd.f32 0.0, %v10518
        %v10520 = vpop.f32.mrf.mxu0
        %v10521 = vpop.f32.mrf.mxu0
        %v10522 = vadd.f32 0.0, %v10521
        %v10523 = vpop.f32.mrf.mxu0
        %10524 = vmatprep.mubr.bf16.mxu0 %v9779
        %10525 = vmatmul.mubr.bf16.gmra.mxu0 %v9778
        %v10526 = vpop.f32.mrf.mxu0
        %v10527 = vadd.f32 0.0, %v10526
        %v10528 = vpop.f32.mrf.mxu0
        %v10529 = vpop.f32.mrf.mxu0
        %v10530 = vadd.f32 0.0, %v10529
        %v10531 = vpop.f32.mrf.mxu0
        %10532 = vmatprep.mubr.bf16.mxu0 %v9788
        %10533 = vmatmul.mubr.bf16.gmra.mxu0 %v9787
        %v10534 = vpop.f32.mrf.mxu0
        %v10535 = vadd.f32 0.0, %v10534
        %v10536 = vpop.f32.mrf.mxu0
        %v10537 = vpop.f32.mrf.mxu0
        %v10538 = vadd.f32 0.0, %v10537
        %v10539 = vpop.f32.mrf.mxu0
        %10540 = vmatprep.mubr.bf16.mxu0 %v9797
        %10541 = vmatmul.mubr.bf16.gmra.mxu0 %v9796
        %v10542 = vpop.f32.mrf.mxu0
        %v10543 = vadd.f32 0.0, %v10542
        %v10544 = vpop.f32.mrf.mxu0
        %v10545 = vpop.f32.mrf.mxu0
        %v10546 = vadd.f32 0.0, %v10545
        %v10547 = vpop.f32.mrf.mxu0
        %10548 = vmatprep.mubr.bf16.mxu0 %v9806
        %10549 = vmatmul.mubr.bf16.gmra.mxu0 %v9805
        %v10550 = vpop.f32.mrf.mxu0
        %v10551 = vadd.f32 0.0, %v10550
        %v10552 = vpop.f32.mrf.mxu0
        %v10553 = vpop.f32.mrf.mxu0
        %v10554 = vadd.f32 0.0, %v10553
        %v10555 = vpop.f32.mrf.mxu0
        %10556 = vmatprep.mubr.bf16.mxu0 %v9815
        %10557 = vmatmul.mubr.bf16.gmra.mxu0 %v9814
        %v10558 = vpop.f32.mrf.mxu0
        %v10559 = vadd.f32 0.0, %v10558
        %v10560 = vpop.f32.mrf.mxu0
        %v10561 = vpop.f32.mrf.mxu0
        %v10562 = vadd.f32 0.0, %v10561
        %v10563 = vpop.f32.mrf.mxu0
        %10564 = vmatprep.mubr.bf16.mxu0 %v9824
        %10565 = vmatmul.mubr.bf16.gmra.mxu0 %v9823
        %v10566 = vpop.f32.mrf.mxu0
        %v10567 = vadd.f32 0.0, %v10566
        %v10568 = vpop.f32.mrf.mxu0
        %v10569 = vpop.f32.mrf.mxu0
        %v10570 = vadd.f32 0.0, %v10569
        %v10571 = vpop.f32.mrf.mxu0
        %10572 = vmatprep.mubr.bf16.mxu0 %v9833
        %10573 = vmatmul.mubr.bf16.gmra.mxu0 %v9832
        %v10574 = vpop.f32.mrf.mxu0
        %v10575 = vadd.f32 0.0, %v10574
        %v10576 = vpop.f32.mrf.mxu0
        %v10577 = vpop.f32.mrf.mxu0
        %v10578 = vadd.f32 0.0, %v10577
        %v10579 = vpop.f32.mrf.mxu0
        %10580 = vmatprep.mubr.bf16.mxu0 %v9842
        %10581 = vmatmul.mubr.bf16.gmra.mxu0 %v9841
        %v10582 = vpop.f32.mrf.mxu0
        %v10583 = vadd.f32 0.0, %v10582
        %v10584 = vpop.f32.mrf.mxu0
        %v10585 = vpop.f32.mrf.mxu0
        %v10586 = vadd.f32 0.0, %v10585
        %v10587 = vpop.f32.mrf.mxu0
        %10588 = vmatprep.mubr.bf16.mxu0 %v9851
        %10589 = vmatmul.mubr.bf16.gmra.mxu0 %v9850
        %v10590 = vpop.f32.mrf.mxu0
        %v10591 = vadd.f32 0.0, %v10590
        %v10592 = vpop.f32.mrf.mxu0
        %v10593 = vpop.f32.mrf.mxu0
        %v10594 = vadd.f32 0.0, %v10593
        %v10595 = vpop.f32.mrf.mxu0
        %10596 = vmatprep.mubr.bf16.mxu0 %v9860
        %10597 = vmatmul.mubr.bf16.gmra.mxu0 %v9859
        %v10598 = vpop.f32.mrf.mxu0
        %v10599 = vadd.f32 0.0, %v10598
        %v10600 = vpop.f32.mrf.mxu0
        %v10601 = vpop.f32.mrf.mxu0
        %v10602 = vadd.f32 0.0, %v10601
        %v10603 = vpop.f32.mrf.mxu0
        %10604 = vdwg.mxu0
        %10605 = vmatprep.subr.bf16.mxu0 0
        %10606 = vmatpush1.bf16.msra.mxu0 %v10323
        %10607 = vmatprep.subr.bf16.mxu0 0
        %10608 = vmatpush1.bf16.msra.mxu0 %v10322
        %10609 = vmatprep.subr.bf16.mxu0 0
        %10610 = vmatpush1.bf16.msra.mxu0 %v10321
        %10611 = vmatprep.subr.bf16.mxu0 0
        %10612 = vmatpush1.bf16.msra.mxu0 %v10320
        %10613 = vmatprep.subr.bf16.mxu0 0
        %10614 = vmatpush1.bf16.msra.mxu0 %v10319
        %10615 = vmatprep.subr.bf16.mxu0 0
        %10616 = vmatpush1.bf16.msra.mxu0 %v10318
        %10617 = vmatprep.subr.bf16.mxu0 0
        %10618 = vmatpush1.bf16.msra.mxu0 %v10317
        %10619 = vmatprep.subr.bf16.mxu0 0
        %10620 = vmatpush1.bf16.msra.mxu0 %v10316
        %10621 = vmatprep.subr.bf16.mxu0 0
        %10622 = vmatpush2.bf16.msra.mxu0 %v10331
        %10623 = vmatprep.subr.bf16.mxu0 0
        %10624 = vmatpush2.bf16.msra.mxu0 %v10330
        %10625 = vmatprep.subr.bf16.mxu0 0
        %10626 = vmatpush2.bf16.msra.mxu0 %v10329
        %10627 = vmatprep.subr.bf16.mxu0 0
        %10628 = vmatpush2.bf16.msra.mxu0 %v10328
        %10629 = vmatprep.subr.bf16.mxu0 0
        %10630 = vmatpush2.bf16.msra.mxu0 %v10327
        %10631 = vmatprep.subr.bf16.mxu0 0
        %10632 = vmatpush2.bf16.msra.mxu0 %v10326
        %10633 = vmatprep.subr.bf16.mxu0 0
        %10634 = vmatpush2.bf16.msra.mxu0 %v10325
        %10635 = vmatprep.subr.bf16.mxu0 0
        %10636 = vmatpush2.bf16.msra.mxu0 %v10324
        %10637 = vmatprep.mubr.bf16.mxu0 %v9727
        %10638 = vmatmul.mubr.bf16.gmra.mxu0 %v9726
        %v10639 = vpop.f32.mrf.mxu0
        %v10640 = vadd.f32 %v10479, %v10639
        %v10641 = vpop.f32.mrf.mxu0
        %v10642 = vpop.f32.mrf.mxu0
        %v10643 = vadd.f32 %v10482, %v10642
        %v10644 = vpop.f32.mrf.mxu0
        %10645 = vmatprep.mubr.bf16.mxu0 %v9736
        %10646 = vmatmul.mubr.bf16.gmra.mxu0 %v9735
        %v10647 = vpop.f32.mrf.mxu0
        %v10648 = vadd.f32 %v10487, %v10647
        %v10649 = vpop.f32.mrf.mxu0
        %v10650 = vpop.f32.mrf.mxu0
        %v10651 = vadd.f32 %v10490, %v10650
        %v10652 = vpop.f32.mrf.mxu0
        %10653 = vmatprep.mubr.bf16.mxu0 %v9745
        %10654 = vmatmul.mubr.bf16.gmra.mxu0 %v9744
        %v10655 = vpop.f32.mrf.mxu0
        %v10656 = vadd.f32 %v10495, %v10655
        %v10657 = vpop.f32.mrf.mxu0
        %v10658 = vpop.f32.mrf.mxu0
        %v10659 = vadd.f32 %v10498, %v10658
        %v10660 = vpop.f32.mrf.mxu0
        %10661 = vmatprep.mubr.bf16.mxu0 %v9754
        %10662 = vmatmul.mubr.bf16.gmra.mxu0 %v9753
        %v10663 = vpop.f32.mrf.mxu0
        %v10664 = vadd.f32 %v10503, %v10663
        %v10665 = vpop.f32.mrf.mxu0
        %v10666 = vpop.f32.mrf.mxu0
        %v10667 = vadd.f32 %v10506, %v10666
        %v10668 = vpop.f32.mrf.mxu0
        %10669 = vmatprep.mubr.bf16.mxu0 %v9763
        %10670 = vmatmul.mubr.bf16.gmra.mxu0 %v9762
        %v10671 = vpop.f32.mrf.mxu0
        %v10672 = vadd.f32 %v10511, %v10671
        %v10673 = vpop.f32.mrf.mxu0
        %v10674 = vpop.f32.mrf.mxu0
        %v10675 = vadd.f32 %v10514, %v10674
        %v10676 = vpop.f32.mrf.mxu0
        %10677 = vmatprep.mubr.bf16.mxu0 %v9772
        %10678 = vmatmul.mubr.bf16.gmra.mxu0 %v9771
        %v10679 = vpop.f32.mrf.mxu0
        %v10680 = vadd.f32 %v10519, %v10679
        %v10681 = vpop.f32.mrf.mxu0
        %v10682 = vpop.f32.mrf.mxu0
        %v10683 = vadd.f32 %v10522, %v10682
        %v10684 = vpop.f32.mrf.mxu0
        %10685 = vmatprep.mubr.bf16.mxu0 %v9781
        %10686 = vmatmul.mubr.bf16.gmra.mxu0 %v9780
        %v10687 = vpop.f32.mrf.mxu0
        %v10688 = vadd.f32 %v10527, %v10687
        %v10689 = vpop.f32.mrf.mxu0
        %v10690 = vpop.f32.mrf.mxu0
        %v10691 = vadd.f32 %v10530, %v10690
        %v10692 = vpop.f32.mrf.mxu0
        %10693 = vmatprep.mubr.bf16.mxu0 %v9790
        %10694 = vmatmul.mubr.bf16.gmra.mxu0 %v9789
        %v10695 = vpop.f32.mrf.mxu0
        %v10696 = vadd.f32 %v10535, %v10695
        %v10697 = vpop.f32.mrf.mxu0
        %v10698 = vpop.f32.mrf.mxu0
        %v10699 = vadd.f32 %v10538, %v10698
        %v10700 = vpop.f32.mrf.mxu0
        %10701 = vmatprep.mubr.bf16.mxu0 %v9799
        %10702 = vmatmul.mubr.bf16.gmra.mxu0 %v9798
        %v10703 = vpop.f32.mrf.mxu0
        %v10704 = vadd.f32 %v10543, %v10703
        %v10705 = vpop.f32.mrf.mxu0
        %v10706 = vpop.f32.mrf.mxu0
        %v10707 = vadd.f32 %v10546, %v10706
        %v10708 = vpop.f32.mrf.mxu0
        %10709 = vmatprep.mubr.bf16.mxu0 %v9808
        %10710 = vmatmul.mubr.bf16.gmra.mxu0 %v9807
        %v10711 = vpop.f32.mrf.mxu0
        %v10712 = vadd.f32 %v10551, %v10711
        %v10713 = vpop.f32.mrf.mxu0
        %v10714 = vpop.f32.mrf.mxu0
        %v10715 = vadd.f32 %v10554, %v10714
        %v10716 = vpop.f32.mrf.mxu0
        %10717 = vmatprep.mubr.bf16.mxu0 %v9817
        %10718 = vmatmul.mubr.bf16.gmra.mxu0 %v9816
        %v10719 = vpop.f32.mrf.mxu0
        %v10720 = vadd.f32 %v10559, %v10719
        %v10721 = vpop.f32.mrf.mxu0
        %v10722 = vpop.f32.mrf.mxu0
        %v10723 = vadd.f32 %v10562, %v10722
        %v10724 = vpop.f32.mrf.mxu0
        %10725 = vmatprep.mubr.bf16.mxu0 %v9826
        %10726 = vmatmul.mubr.bf16.gmra.mxu0 %v9825
        %v10727 = vpop.f32.mrf.mxu0
        %v10728 = vadd.f32 %v10567, %v10727
        %v10729 = vpop.f32.mrf.mxu0
        %v10730 = vpop.f32.mrf.mxu0
        %v10731 = vadd.f32 %v10570, %v10730
        %v10732 = vpop.f32.mrf.mxu0
        %10733 = vmatprep.mubr.bf16.mxu0 %v9835
        %10734 = vmatmul.mubr.bf16.gmra.mxu0 %v9834
        %v10735 = vpop.f32.mrf.mxu0
        %v10736 = vadd.f32 %v10575, %v10735
        %v10737 = vpop.f32.mrf.mxu0
        %v10738 = vpop.f32.mrf.mxu0
        %v10739 = vadd.f32 %v10578, %v10738
        %v10740 = vpop.f32.mrf.mxu0
        %10741 = vmatprep.mubr.bf16.mxu0 %v9844
        %10742 = vmatmul.mubr.bf16.gmra.mxu0 %v9843
        %v10743 = vpop.f32.mrf.mxu0
        %v10744 = vadd.f32 %v10583, %v10743
        %v10745 = vpop.f32.mrf.mxu0
        %v10746 = vpop.f32.mrf.mxu0
        %v10747 = vadd.f32 %v10586, %v10746
        %v10748 = vpop.f32.mrf.mxu0
        %10749 = vmatprep.mubr.bf16.mxu0 %v9853
        %10750 = vmatmul.mubr.bf16.gmra.mxu0 %v9852
        %v10751 = vpop.f32.mrf.mxu0
        %v10752 = vadd.f32 %v10591, %v10751
        %v10753 = vpop.f32.mrf.mxu0
        %v10754 = vpop.f32.mrf.mxu0
        %v10755 = vadd.f32 %v10594, %v10754
        %v10756 = vpop.f32.mrf.mxu0
        %10757 = vmatprep.mubr.bf16.mxu0 %v9862
        %10758 = vmatmul.mubr.bf16.gmra.mxu0 %v9861
        %v10759 = vpop.f32.mrf.mxu0
        %v10760 = vadd.f32 %v10599, %v10759
        %v10761 = vpop.f32.mrf.mxu0
        %v10762 = vpop.f32.mrf.mxu0
        %v10763 = vadd.f32 %v10602, %v10762
        %v10764 = vpop.f32.mrf.mxu0
        %10765 = vdwg.mxu0
        %10766 = vmatprep.subr.bf16.mxu0 0
        %10767 = vmatpush1.bf16.msra.mxu0 %v10339
        %10768 = vmatprep.subr.bf16.mxu0 0
        %10769 = vmatpush1.bf16.msra.mxu0 %v10338
        %10770 = vmatprep.subr.bf16.mxu0 0
        %10771 = vmatpush1.bf16.msra.mxu0 %v10337
        %10772 = vmatprep.subr.bf16.mxu0 0
        %10773 = vmatpush1.bf16.msra.mxu0 %v10336
        %10774 = vmatprep.subr.bf16.mxu0 0
        %10775 = vmatpush1.bf16.msra.mxu0 %v10335
        %10776 = vmatprep.subr.bf16.mxu0 0
        %10777 = vmatpush1.bf16.msra.mxu0 %v10334
        %10778 = vmatprep.subr.bf16.mxu0 0
        %10779 = vmatpush1.bf16.msra.mxu0 %v10333
        %10780 = vmatprep.subr.bf16.mxu0 0
        %10781 = vmatpush1.bf16.msra.mxu0 %v10332
        %10782 = vmatprep.subr.bf16.mxu0 0
        %10783 = vmatpush2.bf16.msra.mxu0 %v10347
        %10784 = vmatprep.subr.bf16.mxu0 0
        %10785 = vmatpush2.bf16.msra.mxu0 %v10346
        %10786 = vmatprep.subr.bf16.mxu0 0
        %10787 = vmatpush2.bf16.msra.mxu0 %v10345
        %10788 = vmatprep.subr.bf16.mxu0 0
        %10789 = vmatpush2.bf16.msra.mxu0 %v10344
        %10790 = vmatprep.subr.bf16.mxu0 0
        %10791 = vmatpush2.bf16.msra.mxu0 %v10343
        %10792 = vmatprep.subr.bf16.mxu0 0
        %10793 = vmatpush2.bf16.msra.mxu0 %v10342
        %10794 = vmatprep.subr.bf16.mxu0 0
        %10795 = vmatpush2.bf16.msra.mxu0 %v10341
        %10796 = vmatprep.subr.bf16.mxu0 0
        %10797 = vmatpush2.bf16.msra.mxu0 %v10340
        %10798 = vmatprep.mubr.bf16.mxu0 %v9729
        %10799 = vmatmul.mubr.bf16.gmra.mxu0 %v9728
        %v10800 = vpop.f32.mrf.mxu0
        %v10801 = vadd.f32 %v10640, %v10800
        %v10802 = vpop.f32.mrf.mxu0
        %v10803 = vpop.f32.mrf.mxu0
        %v10804 = vadd.f32 %v10643, %v10803
        %v10805 = vpop.f32.mrf.mxu0
        %10806 = vmatprep.mubr.bf16.mxu0 %v9738
        %10807 = vmatmul.mubr.bf16.gmra.mxu0 %v9737
        %v10808 = vpop.f32.mrf.mxu0
        %v10809 = vadd.f32 %v10648, %v10808
        %v10810 = vpop.f32.mrf.mxu0
        %v10811 = vpop.f32.mrf.mxu0
        %v10812 = vadd.f32 %v10651, %v10811
        %v10813 = vpop.f32.mrf.mxu0
        %10814 = vmatprep.mubr.bf16.mxu0 %v9747
        %10815 = vmatmul.mubr.bf16.gmra.mxu0 %v9746
        %v10816 = vpop.f32.mrf.mxu0
        %v10817 = vadd.f32 %v10656, %v10816
        %v10818 = vpop.f32.mrf.mxu0
        %v10819 = vpop.f32.mrf.mxu0
        %v10820 = vadd.f32 %v10659, %v10819
        %v10821 = vpop.f32.mrf.mxu0
        %10822 = vmatprep.mubr.bf16.mxu0 %v9756
        %10823 = vmatmul.mubr.bf16.gmra.mxu0 %v9755
        %v10824 = vpop.f32.mrf.mxu0
        %v10825 = vadd.f32 %v10664, %v10824
        %v10826 = vpop.f32.mrf.mxu0
        %v10827 = vpop.f32.mrf.mxu0
        %v10828 = vadd.f32 %v10667, %v10827
        %v10829 = vpop.f32.mrf.mxu0
        %10830 = vmatprep.mubr.bf16.mxu0 %v9765
        %10831 = vmatmul.mubr.bf16.gmra.mxu0 %v9764
        %v10832 = vpop.f32.mrf.mxu0
        %v10833 = vadd.f32 %v10672, %v10832
        %v10834 = vpop.f32.mrf.mxu0
        %v10835 = vpop.f32.mrf.mxu0
        %v10836 = vadd.f32 %v10675, %v10835
        %v10837 = vpop.f32.mrf.mxu0
        %10838 = vmatprep.mubr.bf16.mxu0 %v9774
        %10839 = vmatmul.mubr.bf16.gmra.mxu0 %v9773
        %v10840 = vpop.f32.mrf.mxu0
        %v10841 = vadd.f32 %v10680, %v10840
        %v10842 = vpop.f32.mrf.mxu0
        %v10843 = vpop.f32.mrf.mxu0
        %v10844 = vadd.f32 %v10683, %v10843
        %v10845 = vpop.f32.mrf.mxu0
        %10846 = vmatprep.mubr.bf16.mxu0 %v9783
        %10847 = vmatmul.mubr.bf16.gmra.mxu0 %v9782
        %v10848 = vpop.f32.mrf.mxu0
        %v10849 = vadd.f32 %v10688, %v10848
        %v10850 = vpop.f32.mrf.mxu0
        %v10851 = vpop.f32.mrf.mxu0
        %v10852 = vadd.f32 %v10691, %v10851
        %v10853 = vpop.f32.mrf.mxu0
        %10854 = vmatprep.mubr.bf16.mxu0 %v9792
        %10855 = vmatmul.mubr.bf16.gmra.mxu0 %v9791
        %v10856 = vpop.f32.mrf.mxu0
        %v10857 = vadd.f32 %v10696, %v10856
        %v10858 = vpop.f32.mrf.mxu0
        %v10859 = vpop.f32.mrf.mxu0
        %v10860 = vadd.f32 %v10699, %v10859
        %v10861 = vpop.f32.mrf.mxu0
        %10862 = vmatprep.mubr.bf16.mxu0 %v9801
        %10863 = vmatmul.mubr.bf16.gmra.mxu0 %v9800
        %v10864 = vpop.f32.mrf.mxu0
        %v10865 = vadd.f32 %v10704, %v10864
        %v10866 = vpop.f32.mrf.mxu0
        %v10867 = vpop.f32.mrf.mxu0
        %v10868 = vadd.f32 %v10707, %v10867
        %v10869 = vpop.f32.mrf.mxu0
        %10870 = vmatprep.mubr.bf16.mxu0 %v9810
        %10871 = vmatmul.mubr.bf16.gmra.mxu0 %v9809
        %v10872 = vpop.f32.mrf.mxu0
        %v10873 = vadd.f32 %v10712, %v10872
        %v10874 = vpop.f32.mrf.mxu0
        %v10875 = vpop.f32.mrf.mxu0
        %v10876 = vadd.f32 %v10715, %v10875
        %v10877 = vpop.f32.mrf.mxu0
        %10878 = vmatprep.mubr.bf16.mxu0 %v9819
        %10879 = vmatmul.mubr.bf16.gmra.mxu0 %v9818
        %v10880 = vpop.f32.mrf.mxu0
        %v10881 = vadd.f32 %v10720, %v10880
        %v10882 = vpop.f32.mrf.mxu0
        %v10883 = vpop.f32.mrf.mxu0
        %v10884 = vadd.f32 %v10723, %v10883
        %v10885 = vpop.f32.mrf.mxu0
        %10886 = vmatprep.mubr.bf16.mxu0 %v9828
        %10887 = vmatmul.mubr.bf16.gmra.mxu0 %v9827
        %v10888 = vpop.f32.mrf.mxu0
        %v10889 = vadd.f32 %v10728, %v10888
        %v10890 = vpop.f32.mrf.mxu0
        %v10891 = vpop.f32.mrf.mxu0
        %v10892 = vadd.f32 %v10731, %v10891
        %v10893 = vpop.f32.mrf.mxu0
        %10894 = vmatprep.mubr.bf16.mxu0 %v9837
        %10895 = vmatmul.mubr.bf16.gmra.mxu0 %v9836
        %v10896 = vpop.f32.mrf.mxu0
        %v10897 = vadd.f32 %v10736, %v10896
        %v10898 = vpop.f32.mrf.mxu0
        %v10899 = vpop.f32.mrf.mxu0
        %v10900 = vadd.f32 %v10739, %v10899
        %v10901 = vpop.f32.mrf.mxu0
        %10902 = vmatprep.mubr.bf16.mxu0 %v9846
        %10903 = vmatmul.mubr.bf16.gmra.mxu0 %v9845
        %v10904 = vpop.f32.mrf.mxu0
        %v10905 = vadd.f32 %v10744, %v10904
        %v10906 = vpop.f32.mrf.mxu0
        %v10907 = vpop.f32.mrf.mxu0
        %v10908 = vadd.f32 %v10747, %v10907
        %v10909 = vpop.f32.mrf.mxu0
        %10910 = vmatprep.mubr.bf16.mxu0 %v9855
        %10911 = vmatmul.mubr.bf16.gmra.mxu0 %v9854
        %v10912 = vpop.f32.mrf.mxu0
        %v10913 = vadd.f32 %v10752, %v10912
        %v10914 = vpop.f32.mrf.mxu0
        %v10915 = vpop.f32.mrf.mxu0
        %v10916 = vadd.f32 %v10755, %v10915
        %v10917 = vpop.f32.mrf.mxu0
        %10918 = vmatprep.mubr.bf16.mxu0 %v9864
        %10919 = vmatmul.mubr.bf16.gmra.mxu0 %v9863
        %v10920 = vpop.f32.mrf.mxu0
        %v10921 = vadd.f32 %v10760, %v10920
        %v10922 = vpop.f32.mrf.mxu0
        %v10923 = vpop.f32.mrf.mxu0
        %v10924 = vadd.f32 %v10763, %v10923
        %v10925 = vpop.f32.mrf.mxu0
        %10926 = vdwg.mxu0
        %10927 = vmatprep.subr.bf16.mxu0 0
        %10928 = vmatpush1.bf16.msra.mxu0 %v10355
        %10929 = vmatprep.subr.bf16.mxu0 0
        %10930 = vmatpush1.bf16.msra.mxu0 %v10354
        %10931 = vmatprep.subr.bf16.mxu0 0
        %10932 = vmatpush1.bf16.msra.mxu0 %v10353
        %10933 = vmatprep.subr.bf16.mxu0 0
        %10934 = vmatpush1.bf16.msra.mxu0 %v10352
        %10935 = vmatprep.subr.bf16.mxu0 0
        %10936 = vmatpush1.bf16.msra.mxu0 %v10351
        %10937 = vmatprep.subr.bf16.mxu0 0
        %10938 = vmatpush1.bf16.msra.mxu0 %v10350
        %10939 = vmatprep.subr.bf16.mxu0 0
        %10940 = vmatpush1.bf16.msra.mxu0 %v10349
        %10941 = vmatprep.subr.bf16.mxu0 0
        %10942 = vmatpush1.bf16.msra.mxu0 %v10348
        %10943 = vmatprep.subr.bf16.mxu0 0
        %10944 = vmatpush2.bf16.msra.mxu0 %v10363
        %10945 = vmatprep.subr.bf16.mxu0 0
        %10946 = vmatpush2.bf16.msra.mxu0 %v10362
        %10947 = vmatprep.subr.bf16.mxu0 0
        %10948 = vmatpush2.bf16.msra.mxu0 %v10361
        %10949 = vmatprep.subr.bf16.mxu0 0
        %10950 = vmatpush2.bf16.msra.mxu0 %v10360
        %10951 = vmatprep.subr.bf16.mxu0 0
        %10952 = vmatpush2.bf16.msra.mxu0 %v10359
        %10953 = vmatprep.subr.bf16.mxu0 0
        %10954 = vmatpush2.bf16.msra.mxu0 %v10358
        %10955 = vmatprep.subr.bf16.mxu0 0
        %10956 = vmatpush2.bf16.msra.mxu0 %v10357
        %10957 = vmatprep.subr.bf16.mxu0 0
        %10958 = vmatpush2.bf16.msra.mxu0 %v10356
        %10959 = vmatprep.mubr.bf16.mxu0 %v9731
        %10960 = vmatmul.mubr.bf16.gmra.mxu0 %v9730
        %v10961 = vpop.f32.mrf.mxu0
        %v10962 = vadd.f32 %v10801, %v10961
        %v10963 = vpop.f32.mrf.mxu0
        %v10964 = vpop.f32.mrf.mxu0
        %v10965 = vadd.f32 %v10804, %v10964
        %v10966 = vpop.f32.mrf.mxu0
        %10967 = vmatprep.mubr.bf16.mxu0 %v9740
        %10968 = vmatmul.mubr.bf16.gmra.mxu0 %v9739
        %v10969 = vpop.f32.mrf.mxu0
        %v10970 = vadd.f32 %v10809, %v10969
        %v10971 = vpop.f32.mrf.mxu0
        %v10972 = vpop.f32.mrf.mxu0
        %v10973 = vadd.f32 %v10812, %v10972
        %v10974 = vpop.f32.mrf.mxu0
        %10975 = vmatprep.mubr.bf16.mxu0 %v9749
        %10976 = vmatmul.mubr.bf16.gmra.mxu0 %v9748
        %v10977 = vpop.f32.mrf.mxu0
        %v10978 = vadd.f32 %v10817, %v10977
        %v10979 = vpop.f32.mrf.mxu0
        %v10980 = vpop.f32.mrf.mxu0
        %v10981 = vadd.f32 %v10820, %v10980
        %v10982 = vpop.f32.mrf.mxu0
        %10983 = vmatprep.mubr.bf16.mxu0 %v9758
        %10984 = vmatmul.mubr.bf16.gmra.mxu0 %v9757
        %v10985 = vpop.f32.mrf.mxu0
        %v10986 = vadd.f32 %v10825, %v10985
        %v10987 = vpop.f32.mrf.mxu0
        %v10988 = vpop.f32.mrf.mxu0
        %v10989 = vadd.f32 %v10828, %v10988
        %v10990 = vpop.f32.mrf.mxu0
        %10991 = vmatprep.mubr.bf16.mxu0 %v9767
        %10992 = vmatmul.mubr.bf16.gmra.mxu0 %v9766
        %v10993 = vpop.f32.mrf.mxu0
        %v10994 = vadd.f32 %v10833, %v10993
        %v10995 = vpop.f32.mrf.mxu0
        %v10996 = vpop.f32.mrf.mxu0
        %v10997 = vadd.f32 %v10836, %v10996
        %v10998 = vpop.f32.mrf.mxu0
        %10999 = vmatprep.mubr.bf16.mxu0 %v9776
        %11000 = vmatmul.mubr.bf16.gmra.mxu0 %v9775
        %v11001 = vpop.f32.mrf.mxu0
        %v11002 = vadd.f32 %v10841, %v11001
        %v11003 = vpop.f32.mrf.mxu0
        %v11004 = vpop.f32.mrf.mxu0
        %v11005 = vadd.f32 %v10844, %v11004
        %v11006 = vpop.f32.mrf.mxu0
        %11007 = vmatprep.mubr.bf16.mxu0 %v9785
        %11008 = vmatmul.mubr.bf16.gmra.mxu0 %v9784
        %v11009 = vpop.f32.mrf.mxu0
        %v11010 = vadd.f32 %v10849, %v11009
        %v11011 = vpop.f32.mrf.mxu0
        %v11012 = vpop.f32.mrf.mxu0
        %v11013 = vadd.f32 %v10852, %v11012
        %v11014 = vpop.f32.mrf.mxu0
        %11015 = vmatprep.mubr.bf16.mxu0 %v9794
        %11016 = vmatmul.mubr.bf16.gmra.mxu0 %v9793
        %v11017 = vpop.f32.mrf.mxu0
        %v11018 = vadd.f32 %v10857, %v11017
        %v11019 = vpop.f32.mrf.mxu0
        %v11020 = vpop.f32.mrf.mxu0
        %v11021 = vadd.f32 %v10860, %v11020
        %v11022 = vpop.f32.mrf.mxu0
        %11023 = vmatprep.mubr.bf16.mxu0 %v9803
        %11024 = vmatmul.mubr.bf16.gmra.mxu0 %v9802
        %v11025 = vpop.f32.mrf.mxu0
        %v11026 = vadd.f32 %v10865, %v11025
        %v11027 = vpop.f32.mrf.mxu0
        %v11028 = vpop.f32.mrf.mxu0
        %v11029 = vadd.f32 %v10868, %v11028
        %v11030 = vpop.f32.mrf.mxu0
        %11031 = vmatprep.mubr.bf16.mxu0 %v9812
        %11032 = vmatmul.mubr.bf16.gmra.mxu0 %v9811
        %v11033 = vpop.f32.mrf.mxu0
        %v11034 = vadd.f32 %v10873, %v11033
        %v11035 = vpop.f32.mrf.mxu0
        %v11036 = vpop.f32.mrf.mxu0
        %v11037 = vadd.f32 %v10876, %v11036
        %v11038 = vpop.f32.mrf.mxu0
        %11039 = vmatprep.mubr.bf16.mxu0 %v9821
        %11040 = vmatmul.mubr.bf16.gmra.mxu0 %v9820
        %v11041 = vpop.f32.mrf.mxu0
        %v11042 = vadd.f32 %v10881, %v11041
        %v11043 = vpop.f32.mrf.mxu0
        %v11044 = vpop.f32.mrf.mxu0
        %v11045 = vadd.f32 %v10884, %v11044
        %v11046 = vpop.f32.mrf.mxu0
        %11047 = vmatprep.mubr.bf16.mxu0 %v9830
        %11048 = vmatmul.mubr.bf16.gmra.mxu0 %v9829
        %v11049 = vpop.f32.mrf.mxu0
        %v11050 = vadd.f32 %v10889, %v11049
        %v11051 = vpop.f32.mrf.mxu0
        %v11052 = vpop.f32.mrf.mxu0
        %v11053 = vadd.f32 %v10892, %v11052
        %v11054 = vpop.f32.mrf.mxu0
        %11055 = vmatprep.mubr.bf16.mxu0 %v9839
        %11056 = vmatmul.mubr.bf16.gmra.mxu0 %v9838
        %v11057 = vpop.f32.mrf.mxu0
        %v11058 = vadd.f32 %v10897, %v11057
        %v11059 = vpop.f32.mrf.mxu0
        %v11060 = vpop.f32.mrf.mxu0
        %v11061 = vadd.f32 %v10900, %v11060
        %v11062 = vpop.f32.mrf.mxu0
        %11063 = vmatprep.mubr.bf16.mxu0 %v9848
        %11064 = vmatmul.mubr.bf16.gmra.mxu0 %v9847
        %v11065 = vpop.f32.mrf.mxu0
        %v11066 = vadd.f32 %v10905, %v11065
        %v11067 = vpop.f32.mrf.mxu0
        %v11068 = vpop.f32.mrf.mxu0
        %v11069 = vadd.f32 %v10908, %v11068
        %v11070 = vpop.f32.mrf.mxu0
        %11071 = vmatprep.mubr.bf16.mxu0 %v9857
        %11072 = vmatmul.mubr.bf16.gmra.mxu0 %v9856
        %v11073 = vpop.f32.mrf.mxu0
        %v11074 = vadd.f32 %v10913, %v11073
        %v11075 = vpop.f32.mrf.mxu0
        %v11076 = vpop.f32.mrf.mxu0
        %v11077 = vadd.f32 %v10916, %v11076
        %v11078 = vpop.f32.mrf.mxu0
        %11079 = vmatprep.mubr.bf16.mxu0 %v9866
        %11080 = vmatmul.mubr.bf16.gmra.mxu0 %v9865
        %v11081 = vpop.f32.mrf.mxu0
        %v11082 = vadd.f32 %v10921, %v11081
        %v11083 = vpop.f32.mrf.mxu0
        %v11084 = vpop.f32.mrf.mxu0
        %v11085 = vadd.f32 %v10924, %v11084
        %v11086 = vpop.f32.mrf.mxu0
        %11087 = vdwg.mxu0
        %11088 = vmatprep.subr.bf16.mxu0 0
        %11089 = vmatpush1.bf16.msra.mxu0 %v10371
        %11090 = vmatprep.subr.bf16.mxu0 0
        %11091 = vmatpush1.bf16.msra.mxu0 %v10370
        %11092 = vmatprep.subr.bf16.mxu0 0
        %11093 = vmatpush1.bf16.msra.mxu0 %v10369
        %11094 = vmatprep.subr.bf16.mxu0 0
        %11095 = vmatpush1.bf16.msra.mxu0 %v10368
        %11096 = vmatprep.subr.bf16.mxu0 0
        %11097 = vmatpush1.bf16.msra.mxu0 %v10367
        %11098 = vmatprep.subr.bf16.mxu0 0
        %11099 = vmatpush1.bf16.msra.mxu0 %v10366
        %11100 = vmatprep.subr.bf16.mxu0 0
        %11101 = vmatpush1.bf16.msra.mxu0 %v10365
        %11102 = vmatprep.subr.bf16.mxu0 0
        %11103 = vmatpush1.bf16.msra.mxu0 %v10364
        %11104 = vmatprep.subr.bf16.mxu0 0
        %11105 = vmatpush2.bf16.msra.mxu0 0
        %11106 = vmatprep.subr.bf16.mxu0 0
        %11107 = vmatpush2.bf16.msra.mxu0 0
        %11108 = vmatprep.subr.bf16.mxu0 0
        %11109 = vmatpush2.bf16.msra.mxu0 0
        %11110 = vmatprep.subr.bf16.mxu0 0
        %11111 = vmatpush2.bf16.msra.mxu0 0
        %11112 = vmatprep.subr.bf16.mxu0 0
        %11113 = vmatpush2.bf16.msra.mxu0 0
        %11114 = vmatprep.subr.bf16.mxu0 0
        %11115 = vmatpush2.bf16.msra.mxu0 0
        %11116 = vmatprep.subr.bf16.mxu0 0
        %11117 = vmatpush2.bf16.msra.mxu0 0
        %11118 = vmatprep.subr.bf16.mxu0 0
        %11119 = vmatpush2.bf16.msra.mxu0 0
        %11120 = vmatprep.mubr.bf16.mxu0 0
        %11121 = vmatmul.mubr.bf16.gmra.mxu0 %v9732
        %v11122 = vpop.f32.mrf.mxu0
        %v11123 = vadd.f32 %v10962, %v11122
        %v11124 = vpop.f32.mrf.mxu0
        %v11125 = vpop.f32.mrf.mxu0
        %v11126 = vadd.f32 %v10965, %v11125
        %v11127 = vpop.f32.mrf.mxu0
        %11128 = vmatprep.mubr.bf16.mxu0 0
        %11129 = vmatmul.mubr.bf16.gmra.mxu0 %v9741
        %v11130 = vpop.f32.mrf.mxu0
        %v11131 = vadd.f32 %v10970, %v11130
        %v11132 = vpop.f32.mrf.mxu0
        %v11133 = vpop.f32.mrf.mxu0
        %v11134 = vadd.f32 %v10973, %v11133
        %v11135 = vpop.f32.mrf.mxu0
        %11136 = vmatprep.mubr.bf16.mxu0 0
        %11137 = vmatmul.mubr.bf16.gmra.mxu0 %v9750
        %v11138 = vpop.f32.mrf.mxu0
        %v11139 = vadd.f32 %v10978, %v11138
        %v11140 = vpop.f32.mrf.mxu0
        %v11141 = vpop.f32.mrf.mxu0
        %v11142 = vadd.f32 %v10981, %v11141
        %v11143 = vpop.f32.mrf.mxu0
        %11144 = vmatprep.mubr.bf16.mxu0 0
        %11145 = vmatmul.mubr.bf16.gmra.mxu0 %v9759
        %v11146 = vpop.f32.mrf.mxu0
        %v11147 = vadd.f32 %v10986, %v11146
        %v11148 = vpop.f32.mrf.mxu0
        %v11149 = vpop.f32.mrf.mxu0
        %v11150 = vadd.f32 %v10989, %v11149
        %v11151 = vpop.f32.mrf.mxu0
        %11152 = vmatprep.mubr.bf16.mxu0 0
        %11153 = vmatmul.mubr.bf16.gmra.mxu0 %v9768
        %v11154 = vpop.f32.mrf.mxu0
        %v11155 = vadd.f32 %v10994, %v11154
        %v11156 = vpop.f32.mrf.mxu0
        %v11157 = vpop.f32.mrf.mxu0
        %v11158 = vadd.f32 %v10997, %v11157
        %v11159 = vpop.f32.mrf.mxu0
        %11160 = vmatprep.mubr.bf16.mxu0 0
        %11161 = vmatmul.mubr.bf16.gmra.mxu0 %v9777
        %v11162 = vpop.f32.mrf.mxu0
        %v11163 = vadd.f32 %v11002, %v11162
        %v11164 = vpop.f32.mrf.mxu0
        %v11165 = vpop.f32.mrf.mxu0
        %v11166 = vadd.f32 %v11005, %v11165
        %v11167 = vpop.f32.mrf.mxu0
        %11168 = vmatprep.mubr.bf16.mxu0 0
        %11169 = vmatmul.mubr.bf16.gmra.mxu0 %v9786
        %v11170 = vpop.f32.mrf.mxu0
        %v11171 = vadd.f32 %v11010, %v11170
        %v11172 = vpop.f32.mrf.mxu0
        %v11173 = vpop.f32.mrf.mxu0
        %v11174 = vadd.f32 %v11013, %v11173
        %v11175 = vpop.f32.mrf.mxu0
        %11176 = vmatprep.mubr.bf16.mxu0 0
        %11177 = vmatmul.mubr.bf16.gmra.mxu0 %v9795
        %v11178 = vpop.f32.mrf.mxu0
        %v11179 = vadd.f32 %v11018, %v11178
        %v11180 = vpop.f32.mrf.mxu0
        %v11181 = vpop.f32.mrf.mxu0
        %v11182 = vadd.f32 %v11021, %v11181
        %v11183 = vpop.f32.mrf.mxu0
        %11184 = vmatprep.mubr.bf16.mxu0 0
        %11185 = vmatmul.mubr.bf16.gmra.mxu0 %v9804
        %v11186 = vpop.f32.mrf.mxu0
        %v11187 = vadd.f32 %v11026, %v11186
        %v11188 = vpop.f32.mrf.mxu0
        %v11189 = vpop.f32.mrf.mxu0
        %v11190 = vadd.f32 %v11029, %v11189
        %v11191 = vpop.f32.mrf.mxu0
        %11192 = vmatprep.mubr.bf16.mxu0 0
        %11193 = vmatmul.mubr.bf16.gmra.mxu0 %v9813
        %v11194 = vpop.f32.mrf.mxu0
        %v11195 = vadd.f32 %v11034, %v11194
        %v11196 = vpop.f32.mrf.mxu0
        %v11197 = vpop.f32.mrf.mxu0
        %v11198 = vadd.f32 %v11037, %v11197
        %v11199 = vpop.f32.mrf.mxu0
        %11200 = vmatprep.mubr.bf16.mxu0 0
        %11201 = vmatmul.mubr.bf16.gmra.mxu0 %v9822
        %v11202 = vpop.f32.mrf.mxu0
        %v11203 = vadd.f32 %v11042, %v11202
        %v11204 = vpop.f32.mrf.mxu0
        %v11205 = vpop.f32.mrf.mxu0
        %v11206 = vadd.f32 %v11045, %v11205
        %v11207 = vpop.f32.mrf.mxu0
        %11208 = vmatprep.mubr.bf16.mxu0 0
        %11209 = vmatmul.mubr.bf16.gmra.mxu0 %v9831
        %v11210 = vpop.f32.mrf.mxu0
        %v11211 = vadd.f32 %v11050, %v11210
        %v11212 = vpop.f32.mrf.mxu0
        %v11213 = vpop.f32.mrf.mxu0
        %v11214 = vadd.f32 %v11053, %v11213
        %v11215 = vpop.f32.mrf.mxu0
        %11216 = vmatprep.mubr.bf16.mxu0 0
        %11217 = vmatmul.mubr.bf16.gmra.mxu0 %v9840
        %v11218 = vpop.f32.mrf.mxu0
        %v11219 = vadd.f32 %v11058, %v11218
        %v11220 = vpop.f32.mrf.mxu0
        %v11221 = vpop.f32.mrf.mxu0
        %v11222 = vadd.f32 %v11061, %v11221
        %v11223 = vpop.f32.mrf.mxu0
        %11224 = vmatprep.mubr.bf16.mxu0 0
        %11225 = vmatmul.mubr.bf16.gmra.mxu0 %v9849
        %v11226 = vpop.f32.mrf.mxu0
        %v11227 = vadd.f32 %v11066, %v11226
        %v11228 = vpop.f32.mrf.mxu0
        %v11229 = vpop.f32.mrf.mxu0
        %v11230 = vadd.f32 %v11069, %v11229
        %v11231 = vpop.f32.mrf.mxu0
        %11232 = vmatprep.mubr.bf16.mxu0 0
        %11233 = vmatmul.mubr.bf16.gmra.mxu0 %v9858
        %v11234 = vpop.f32.mrf.mxu0
        %v11235 = vadd.f32 %v11074, %v11234
        %v11236 = vpop.f32.mrf.mxu0
        %v11237 = vpop.f32.mrf.mxu0
        %v11238 = vadd.f32 %v11077, %v11237
        %v11239 = vpop.f32.mrf.mxu0
        %11240 = vmatprep.mubr.bf16.mxu0 0
        %11241 = vmatmul.mubr.bf16.gmra.mxu0 %v9867
        %v11242 = vpop.f32.mrf.mxu0
        %v11243 = vadd.f32 %v11082, %v11242
        %v11244 = vpop.f32.mrf.mxu0
        %v11245 = vpop.f32.mrf.mxu0
        %v11246 = vadd.f32 %v11085, %v11245
        %v11247 = vpop.f32.mrf.mxu0
        %11248 = vdwg.mxu0
        %v11249 = vld [vmem:[%s5] sm:$0x1]
        %v11251 = vlaneseq
        %v11252 = vshrl.u32 %v11251, 7
        %v11253 = vsub.s32 0, %v11252
        %v11254 = vrot.slane %v11249, %v11253
        %v11256 = vmul.f32 %v11123, %v11254
        %v11257 = vmul.f32 %v11126, %v11254
        %v11258 = vmul.f32 %v11131, %v11254
        %v11259 = vmul.f32 %v11134, %v11254
        %v11260 = vmul.f32 %v11139, %v11254
        %v11261 = vmul.f32 %v11142, %v11254
        %v11262 = vmul.f32 %v11147, %v11254
        %v11263 = vmul.f32 %v11150, %v11254
        %v11264 = vmul.f32 %v11155, %v11254
        %v11265 = vmul.f32 %v11158, %v11254
        %v11266 = vmul.f32 %v11163, %v11254
        %v11267 = vmul.f32 %v11166, %v11254
        %v11268 = vmul.f32 %v11171, %v11254
        %v11269 = vmul.f32 %v11174, %v11254
        %v11270 = vmul.f32 %v11179, %v11254
        %v11271 = vmul.f32 %v11182, %v11254
        %v11272 = vmul.f32 %v11187, %v11254
        %v11273 = vmul.f32 %v11190, %v11254
        %v11274 = vmul.f32 %v11195, %v11254
        %v11275 = vmul.f32 %v11198, %v11254
        %v11276 = vmul.f32 %v11203, %v11254
        %v11277 = vmul.f32 %v11206, %v11254
        %v11278 = vmul.f32 %v11211, %v11254
        %v11279 = vmul.f32 %v11214, %v11254
        %v11280 = vmul.f32 %v11219, %v11254
        %v11281 = vmul.f32 %v11222, %v11254
        %v11282 = vmul.f32 %v11227, %v11254
        %v11283 = vmul.f32 %v11230, %v11254
        %v11284 = vmul.f32 %v11235, %v11254
        %v11285 = vmul.f32 %v11238, %v11254
        %v11286 = vmul.f32 %v11243, %v11254
        %v11287 = vmul.f32 %v11246, %v11254
        %v11288 = vld [vmem:[%s6] sm:$0x1]
        %v11290 = vlaneseq
        %v11291 = vshrl.u32 %v11290, 7
        %v11292 = vsub.s32 0, %v11291
        %v11293 = vrot.slane %v11288, %v11292
        %v11295 = vadd.f32 %v11256, %v11293
        %v11296 = vadd.f32 %v11257, %v11293
        %v11297 = vadd.f32 %v11258, %v11293
        %v11298 = vadd.f32 %v11259, %v11293
        %v11299 = vadd.f32 %v11260, %v11293
        %v11300 = vadd.f32 %v11261, %v11293
        %v11301 = vadd.f32 %v11262, %v11293
        %v11302 = vadd.f32 %v11263, %v11293
        %v11303 = vadd.f32 %v11264, %v11293
        %v11304 = vadd.f32 %v11265, %v11293
        %v11305 = vadd.f32 %v11266, %v11293
        %v11306 = vadd.f32 %v11267, %v11293
        %v11307 = vadd.f32 %v11268, %v11293
        %v11308 = vadd.f32 %v11269, %v11293
        %v11309 = vadd.f32 %v11270, %v11293
        %v11310 = vadd.f32 %v11271, %v11293
        %v11311 = vadd.f32 %v11272, %v11293
        %v11312 = vadd.f32 %v11273, %v11293
        %v11313 = vadd.f32 %v11274, %v11293
        %v11314 = vadd.f32 %v11275, %v11293
        %v11315 = vadd.f32 %v11276, %v11293
        %v11316 = vadd.f32 %v11277, %v11293
        %v11317 = vadd.f32 %v11278, %v11293
        %v11318 = vadd.f32 %v11279, %v11293
        %v11319 = vadd.f32 %v11280, %v11293
        %v11320 = vadd.f32 %v11281, %v11293
        %v11321 = vadd.f32 %v11282, %v11293
        %v11322 = vadd.f32 %v11283, %v11293
        %v11323 = vadd.f32 %v11284, %v11293
        %v11324 = vadd.f32 %v11285, %v11293
        %v11325 = vadd.f32 %v11286, %v11293
        %v11326 = vadd.f32 %v11287, %v11293
        %v11327 = vld [vmem:[%s7] sm:$0xf]
        %v11328 = vld [vmem:[%s7 + $0x4] sm:$0xf]
        %v11329 = vld [vmem:[%s7 + $0x8] sm:$0xf]
        %v11330 = vld [vmem:[%s7 + $0xc] sm:$0xf]
        %v11331 = vld [vmem:[%s7 + $0x10] sm:$0xf]
        %v11332 = vld [vmem:[%s7 + $0x14] sm:$0xf]
        %v11333 = vld [vmem:[%s7 + $0x18] sm:$0xf]
        %v11334 = vld [vmem:[%s7 + $0x1c] sm:$0xf]
        %v11335 = vld [vmem:[%s7 + $0x20] sm:$0xf]
        %v11336 = vld [vmem:[%s7 + $0x24] sm:$0xf]
        %v11337 = vld [vmem:[%s7 + $0x28] sm:$0xf]
        %v11338 = vld [vmem:[%s7 + $0x2c] sm:$0xf]
        %v11339 = vld [vmem:[%s7 + $0x30] sm:$0xf]
        %v11340 = vld [vmem:[%s7 + $0x34] sm:$0xf]
        %v11341 = vld [vmem:[%s7 + $0x38] sm:$0xf]
        %v11342 = vld [vmem:[%s7 + $0x3c] sm:$0xf]
        %v11375 = vunpack.c.l.b16 %v589
        %v11376 = vunpack.c.l.b16 %v590
        %v11377 = vunpack.c.l.b16 %v591
        %v11378 = vunpack.c.l.b16 %v592
        %v11379 = vunpack.c.l.b16 %v593
        %v11380 = vunpack.c.l.b16 %v594
        %v11381 = vunpack.c.l.b16 %v595
        %v11382 = vunpack.c.l.b16 %v596
        %v11383 = vunpack.c.l.b16 %v597
        %v11384 = vunpack.c.l.b16 %v598
        %v11385 = vunpack.c.l.b16 %v599
        %v11386 = vunpack.c.l.b16 %v600
        %v11387 = vunpack.c.l.b16 %v601
        %v11388 = vunpack.c.l.b16 %v602
        %v11389 = vunpack.c.l.b16 %v603
        %v11390 = vunpack.c.l.b16 %v604
        %v11391 = vunpack.c.l.b16 %v605
        %v11392 = vunpack.c.l.b16 %v606
        %v11393 = vunpack.c.l.b16 %v607
        %v11394 = vunpack.c.l.b16 %v608
        %v11395 = vunpack.c.l.b16 %v609
        %v11396 = vunpack.c.l.b16 %v610
        %v11397 = vunpack.c.l.b16 %v611
        %v11398 = vunpack.c.l.b16 %v612
        %v11399 = vunpack.c.l.b16 %v613
        %v11400 = vunpack.c.l.b16 %v614
        %v11401 = vunpack.c.l.b16 %v615
        %v11402 = vunpack.c.l.b16 %v616
        %v11403 = vunpack.c.l.b16 %v617
        %v11404 = vunpack.c.l.b16 %v618
        %v11405 = vunpack.c.l.b16 %v619
        %v11406 = vunpack.c.l.b16 %v620
        %v11407 = vpack.c.b16 %v11376, %v11375
        %v11408 = vpack.c.b16 %v11378, %v11377
        %v11409 = vpack.c.b16 %v11380, %v11379
        %v11410 = vpack.c.b16 %v11382, %v11381
        %v11411 = vpack.c.b16 %v11384, %v11383
        %v11412 = vpack.c.b16 %v11386, %v11385
        %v11413 = vpack.c.b16 %v11388, %v11387
        %v11414 = vpack.c.b16 %v11390, %v11389
        %v11415 = vpack.c.b16 %v11392, %v11391
        %v11416 = vpack.c.b16 %v11394, %v11393
        %v11417 = vpack.c.b16 %v11396, %v11395
        %v11418 = vpack.c.b16 %v11398, %v11397
        %v11419 = vpack.c.b16 %v11400, %v11399
        %v11420 = vpack.c.b16 %v11402, %v11401
        %v11421 = vpack.c.b16 %v11404, %v11403
        %v11422 = vpack.c.b16 %v11406, %v11405
        %v11455 = vunpack.c.l.b16 %v11327
        %v11456 = vunpack.c.l.b16 %v11328
        %v11457 = vunpack.c.l.b16 %v11329
        %v11458 = vunpack.c.l.b16 %v11330
        %v11459 = vunpack.c.l.b16 %v11331
        %v11460 = vunpack.c.l.b16 %v11332
        %v11461 = vunpack.c.l.b16 %v11333
        %v11462 = vunpack.c.l.b16 %v11334
        %v11463 = vunpack.c.l.b16 %v11335
        %v11464 = vunpack.c.l.b16 %v11336
        %v11465 = vunpack.c.l.b16 %v11337
        %v11466 = vunpack.c.l.b16 %v11338
        %v11467 = vunpack.c.l.b16 %v11339
        %v11468 = vunpack.c.l.b16 %v11340
        %v11469 = vunpack.c.l.b16 %v11341
        %v11470 = vunpack.c.l.b16 %v11342
        %v11471 = vpack.c.b16 %v11456, %v11455
        %v11472 = vpack.c.b16 %v11458, %v11457
        %v11473 = vpack.c.b16 %v11460, %v11459
        %v11474 = vpack.c.b16 %v11462, %v11461
        %v11475 = vpack.c.b16 %v11464, %v11463
        %v11476 = vpack.c.b16 %v11466, %v11465
        %v11477 = vpack.c.b16 %v11468, %v11467
        %v11478 = vpack.c.b16 %v11470, %v11469
        %11487 = vmatprep.subr.bf16.mxu0 0
        %11488 = vmatpush1.bf16.msra.mxu0 %v11478
        %11489 = vmatprep.subr.bf16.mxu0 0
        %11490 = vmatpush1.bf16.msra.mxu0 %v11477
        %11491 = vmatprep.subr.bf16.mxu0 0
        %11492 = vmatpush1.bf16.msra.mxu0 %v11476
        %11493 = vmatprep.subr.bf16.mxu0 0
        %11494 = vmatpush1.bf16.msra.mxu0 %v11475
        %11495 = vmatprep.subr.bf16.mxu0 0
        %11496 = vmatpush1.bf16.msra.mxu0 %v11474
        %11497 = vmatprep.subr.bf16.mxu0 0
        %11498 = vmatpush1.bf16.msra.mxu0 %v11473
        %11499 = vmatprep.subr.bf16.mxu0 0
        %11500 = vmatpush1.bf16.msra.mxu0 %v11472
        %11501 = vmatprep.subr.bf16.mxu0 0
        %11502 = vmatpush1.bf16.msra.mxu0 %v11471
        %11503 = vmatprep.subr.bf16.mxu0 0
        %11504 = vmatpush2.bf16.msra.mxu0 0
        %11505 = vmatprep.subr.bf16.mxu0 0
        %11506 = vmatpush2.bf16.msra.mxu0 0
        %11507 = vmatprep.subr.bf16.mxu0 0
        %11508 = vmatpush2.bf16.msra.mxu0 0
        %11509 = vmatprep.subr.bf16.mxu0 0
        %11510 = vmatpush2.bf16.msra.mxu0 0
        %11511 = vmatprep.subr.bf16.mxu0 0
        %11512 = vmatpush2.bf16.msra.mxu0 0
        %11513 = vmatprep.subr.bf16.mxu0 0
        %11514 = vmatpush2.bf16.msra.mxu0 0
        %11515 = vmatprep.subr.bf16.mxu0 0
        %11516 = vmatpush2.bf16.msra.mxu0 0
        %11517 = vmatprep.subr.bf16.mxu0 0
        %11518 = vmatpush2.bf16.msra.mxu0 0
        %11519 = vmatprep.mubr.bf16.mxu0 0
        %11520 = vmatmul.mubr.bf16.gmra.mxu0 %v11407
        %v11521 = vpop.f32.mrf.mxu0
        %v11522 = vadd.f32 0.0, %v11521
        %v11523 = vpop.f32.mrf.mxu0
        %v11524 = vpop.f32.mrf.mxu0
        %v11525 = vadd.f32 0.0, %v11524
        %v11526 = vpop.f32.mrf.mxu0
        %11527 = vmatprep.mubr.bf16.mxu0 0
        %11528 = vmatmul.mubr.bf16.gmra.mxu0 %v11408
        %v11529 = vpop.f32.mrf.mxu0
        %v11530 = vadd.f32 0.0, %v11529
        %v11531 = vpop.f32.mrf.mxu0
        %v11532 = vpop.f32.mrf.mxu0
        %v11533 = vadd.f32 0.0, %v11532
        %v11534 = vpop.f32.mrf.mxu0
        %11535 = vmatprep.mubr.bf16.mxu0 0
        %11536 = vmatmul.mubr.bf16.gmra.mxu0 %v11409
        %v11537 = vpop.f32.mrf.mxu0
        %v11538 = vadd.f32 0.0, %v11537
        %v11539 = vpop.f32.mrf.mxu0
        %v11540 = vpop.f32.mrf.mxu0
        %v11541 = vadd.f32 0.0, %v11540
        %v11542 = vpop.f32.mrf.mxu0
        %11543 = vmatprep.mubr.bf16.mxu0 0
        %11544 = vmatmul.mubr.bf16.gmra.mxu0 %v11410
        %v11545 = vpop.f32.mrf.mxu0
        %v11546 = vadd.f32 0.0, %v11545
        %v11547 = vpop.f32.mrf.mxu0
        %v11548 = vpop.f32.mrf.mxu0
        %v11549 = vadd.f32 0.0, %v11548
        %v11550 = vpop.f32.mrf.mxu0
        %11551 = vmatprep.mubr.bf16.mxu0 0
        %11552 = vmatmul.mubr.bf16.gmra.mxu0 %v11411
        %v11553 = vpop.f32.mrf.mxu0
        %v11554 = vadd.f32 0.0, %v11553
        %v11555 = vpop.f32.mrf.mxu0
        %v11556 = vpop.f32.mrf.mxu0
        %v11557 = vadd.f32 0.0, %v11556
        %v11558 = vpop.f32.mrf.mxu0
        %11559 = vmatprep.mubr.bf16.mxu0 0
        %11560 = vmatmul.mubr.bf16.gmra.mxu0 %v11412
        %v11561 = vpop.f32.mrf.mxu0
        %v11562 = vadd.f32 0.0, %v11561
        %v11563 = vpop.f32.mrf.mxu0
        %v11564 = vpop.f32.mrf.mxu0
        %v11565 = vadd.f32 0.0, %v11564
        %v11566 = vpop.f32.mrf.mxu0
        %11567 = vmatprep.mubr.bf16.mxu0 0
        %11568 = vmatmul.mubr.bf16.gmra.mxu0 %v11413
        %v11569 = vpop.f32.mrf.mxu0
        %v11570 = vadd.f32 0.0, %v11569
        %v11571 = vpop.f32.mrf.mxu0
        %v11572 = vpop.f32.mrf.mxu0
        %v11573 = vadd.f32 0.0, %v11572
        %v11574 = vpop.f32.mrf.mxu0
        %11575 = vmatprep.mubr.bf16.mxu0 0
        %11576 = vmatmul.mubr.bf16.gmra.mxu0 %v11414
        %v11577 = vpop.f32.mrf.mxu0
        %v11578 = vadd.f32 0.0, %v11577
        %v11579 = vpop.f32.mrf.mxu0
        %v11580 = vpop.f32.mrf.mxu0
        %v11581 = vadd.f32 0.0, %v11580
        %v11582 = vpop.f32.mrf.mxu0
        %11583 = vmatprep.mubr.bf16.mxu0 0
        %11584 = vmatmul.mubr.bf16.gmra.mxu0 %v11415
        %v11585 = vpop.f32.mrf.mxu0
        %v11586 = vadd.f32 0.0, %v11585
        %v11587 = vpop.f32.mrf.mxu0
        %v11588 = vpop.f32.mrf.mxu0
        %v11589 = vadd.f32 0.0, %v11588
        %v11590 = vpop.f32.mrf.mxu0
        %11591 = vmatprep.mubr.bf16.mxu0 0
        %11592 = vmatmul.mubr.bf16.gmra.mxu0 %v11416
        %v11593 = vpop.f32.mrf.mxu0
        %v11594 = vadd.f32 0.0, %v11593
        %v11595 = vpop.f32.mrf.mxu0
        %v11596 = vpop.f32.mrf.mxu0
        %v11597 = vadd.f32 0.0, %v11596
        %v11598 = vpop.f32.mrf.mxu0
        %11599 = vmatprep.mubr.bf16.mxu0 0
        %11600 = vmatmul.mubr.bf16.gmra.mxu0 %v11417
        %v11601 = vpop.f32.mrf.mxu0
        %v11602 = vadd.f32 0.0, %v11601
        %v11603 = vpop.f32.mrf.mxu0
        %v11604 = vpop.f32.mrf.mxu0
        %v11605 = vadd.f32 0.0, %v11604
        %v11606 = vpop.f32.mrf.mxu0
        %11607 = vmatprep.mubr.bf16.mxu0 0
        %11608 = vmatmul.mubr.bf16.gmra.mxu0 %v11418
        %v11609 = vpop.f32.mrf.mxu0
        %v11610 = vadd.f32 0.0, %v11609
        %v11611 = vpop.f32.mrf.mxu0
        %v11612 = vpop.f32.mrf.mxu0
        %v11613 = vadd.f32 0.0, %v11612
        %v11614 = vpop.f32.mrf.mxu0
        %11615 = vmatprep.mubr.bf16.mxu0 0
        %11616 = vmatmul.mubr.bf16.gmra.mxu0 %v11419
        %v11617 = vpop.f32.mrf.mxu0
        %v11618 = vadd.f32 0.0, %v11617
        %v11619 = vpop.f32.mrf.mxu0
        %v11620 = vpop.f32.mrf.mxu0
        %v11621 = vadd.f32 0.0, %v11620
        %v11622 = vpop.f32.mrf.mxu0
        %11623 = vmatprep.mubr.bf16.mxu0 0
        %11624 = vmatmul.mubr.bf16.gmra.mxu0 %v11420
        %v11625 = vpop.f32.mrf.mxu0
        %v11626 = vadd.f32 0.0, %v11625
        %v11627 = vpop.f32.mrf.mxu0
        %v11628 = vpop.f32.mrf.mxu0
        %v11629 = vadd.f32 0.0, %v11628
        %v11630 = vpop.f32.mrf.mxu0
        %11631 = vmatprep.mubr.bf16.mxu0 0
        %11632 = vmatmul.mubr.bf16.gmra.mxu0 %v11421
        %v11633 = vpop.f32.mrf.mxu0
        %v11634 = vadd.f32 0.0, %v11633
        %v11635 = vpop.f32.mrf.mxu0
        %v11636 = vpop.f32.mrf.mxu0
        %v11637 = vadd.f32 0.0, %v11636
        %v11638 = vpop.f32.mrf.mxu0
        %11639 = vmatprep.mubr.bf16.mxu0 0
        %11640 = vmatmul.mubr.bf16.gmra.mxu0 %v11422
        %v11641 = vpop.f32.mrf.mxu0
        %v11642 = vadd.f32 0.0, %v11641
        %v11643 = vpop.f32.mrf.mxu0
        %v11644 = vpop.f32.mrf.mxu0
        %v11645 = vadd.f32 0.0, %v11644
        %v11646 = vpop.f32.mrf.mxu0
        %11647 = vdwg.mxu0
        %v11648 = vld [vmem:[%s8] sm:$0x1]
        %v11650 = vlaneseq
        %v11651 = vshrl.u32 %v11650, 7
        %v11652 = vsub.s32 0, %v11651
        %v11653 = vrot.slane %v11648, %v11652
        %v11655 = vmul.f32 %v11522, %v11653
        %v11656 = vmul.f32 %v11525, %v11653
        %v11657 = vmul.f32 %v11530, %v11653
        %v11658 = vmul.f32 %v11533, %v11653
        %v11659 = vmul.f32 %v11538, %v11653
        %v11660 = vmul.f32 %v11541, %v11653
        %v11661 = vmul.f32 %v11546, %v11653
        %v11662 = vmul.f32 %v11549, %v11653
        %v11663 = vmul.f32 %v11554, %v11653
        %v11664 = vmul.f32 %v11557, %v11653
        %v11665 = vmul.f32 %v11562, %v11653
        %v11666 = vmul.f32 %v11565, %v11653
        %v11667 = vmul.f32 %v11570, %v11653
        %v11668 = vmul.f32 %v11573, %v11653
        %v11669 = vmul.f32 %v11578, %v11653
        %v11670 = vmul.f32 %v11581, %v11653
        %v11671 = vmul.f32 %v11586, %v11653
        %v11672 = vmul.f32 %v11589, %v11653
        %v11673 = vmul.f32 %v11594, %v11653
        %v11674 = vmul.f32 %v11597, %v11653
        %v11675 = vmul.f32 %v11602, %v11653
        %v11676 = vmul.f32 %v11605, %v11653
        %v11677 = vmul.f32 %v11610, %v11653
        %v11678 = vmul.f32 %v11613, %v11653
        %v11679 = vmul.f32 %v11618, %v11653
        %v11680 = vmul.f32 %v11621, %v11653
        %v11681 = vmul.f32 %v11626, %v11653
        %v11682 = vmul.f32 %v11629, %v11653
        %v11683 = vmul.f32 %v11634, %v11653
        %v11684 = vmul.f32 %v11637, %v11653
        %v11685 = vmul.f32 %v11642, %v11653
        %v11686 = vmul.f32 %v11645, %v11653
        %v11687 = vld [vmem:[%s9] sm:$0x1]
        %v11689 = vlaneseq
        %v11690 = vshrl.u32 %v11689, 7
        %v11691 = vsub.s32 0, %v11690
        %v11692 = vrot.slane %v11687, %v11691
        %v11694 = vadd.f32 %v11655, %v11692
        %v11695 = vadd.f32 %v11656, %v11692
        %v11696 = vadd.f32 %v11657, %v11692
        %v11697 = vadd.f32 %v11658, %v11692
        %v11698 = vadd.f32 %v11659, %v11692
        %v11699 = vadd.f32 %v11660, %v11692
        %v11700 = vadd.f32 %v11661, %v11692
        %v11701 = vadd.f32 %v11662, %v11692
        %v11702 = vadd.f32 %v11663, %v11692
        %v11703 = vadd.f32 %v11664, %v11692
        %v11704 = vadd.f32 %v11665, %v11692
        %v11705 = vadd.f32 %v11666, %v11692
        %v11706 = vadd.f32 %v11667, %v11692
        %v11707 = vadd.f32 %v11668, %v11692
        %v11708 = vadd.f32 %v11669, %v11692
        %v11709 = vadd.f32 %v11670, %v11692
        %v11710 = vadd.f32 %v11671, %v11692
        %v11711 = vadd.f32 %v11672, %v11692
        %v11712 = vadd.f32 %v11673, %v11692
        %v11713 = vadd.f32 %v11674, %v11692
        %v11714 = vadd.f32 %v11675, %v11692
        %v11715 = vadd.f32 %v11676, %v11692
        %v11716 = vadd.f32 %v11677, %v11692
        %v11717 = vadd.f32 %v11678, %v11692
        %v11718 = vadd.f32 %v11679, %v11692
        %v11719 = vadd.f32 %v11680, %v11692
        %v11720 = vadd.f32 %v11681, %v11692
        %v11721 = vadd.f32 %v11682, %v11692
        %v11722 = vadd.f32 %v11683, %v11692
        %v11723 = vadd.f32 %v11684, %v11692
        %v11724 = vadd.f32 %v11685, %v11692
        %v11725 = vadd.f32 %v11686, %v11692
        %v11726 = vadd.f32 %v11295, %v11694
        %v11727 = vadd.f32 %v11296, %v11695
        %v11728 = vadd.f32 %v11297, %v11696
        %v11729 = vadd.f32 %v11298, %v11697
        %v11730 = vadd.f32 %v11299, %v11698
        %v11731 = vadd.f32 %v11300, %v11699
        %v11732 = vadd.f32 %v11301, %v11700
        %v11733 = vadd.f32 %v11302, %v11701
        %v11734 = vadd.f32 %v11303, %v11702
        %v11735 = vadd.f32 %v11304, %v11703
        %v11736 = vadd.f32 %v11305, %v11704
        %v11737 = vadd.f32 %v11306, %v11705
        %v11738 = vadd.f32 %v11307, %v11706
        %v11739 = vadd.f32 %v11308, %v11707
        %v11740 = vadd.f32 %v11309, %v11708
        %v11741 = vadd.f32 %v11310, %v11709
        %v11742 = vadd.f32 %v11311, %v11710
        %v11743 = vadd.f32 %v11312, %v11711
        %v11744 = vadd.f32 %v11313, %v11712
        %v11745 = vadd.f32 %v11314, %v11713
        %v11746 = vadd.f32 %v11315, %v11714
        %v11747 = vadd.f32 %v11316, %v11715
        %v11748 = vadd.f32 %v11317, %v11716
        %v11749 = vadd.f32 %v11318, %v11717
        %v11750 = vadd.f32 %v11319, %v11718
        %v11751 = vadd.f32 %v11320, %v11719
        %v11752 = vadd.f32 %v11321, %v11720
        %v11753 = vadd.f32 %v11322, %v11721
        %v11754 = vadd.f32 %v11323, %v11722
        %v11755 = vadd.f32 %v11324, %v11723
        %v11756 = vadd.f32 %v11325, %v11724
        %v11757 = vadd.f32 %v11326, %v11725
        %v11758 = vmax.f32 %v11726, 0.0
        %v11759 = vmax.f32 %v11727, 0.0
        %v11760 = vmax.f32 %v11728, 0.0
        %v11761 = vmax.f32 %v11729, 0.0
        %v11762 = vmax.f32 %v11730, 0.0
        %v11763 = vmax.f32 %v11731, 0.0
        %v11764 = vmax.f32 %v11732, 0.0
        %v11765 = vmax.f32 %v11733, 0.0
        %v11766 = vmax.f32 %v11734, 0.0
        %v11767 = vmax.f32 %v11735, 0.0
        %v11768 = vmax.f32 %v11736, 0.0
        %v11769 = vmax.f32 %v11737, 0.0
        %v11770 = vmax.f32 %v11738, 0.0
        %v11771 = vmax.f32 %v11739, 0.0
        %v11772 = vmax.f32 %v11740, 0.0
        %v11773 = vmax.f32 %v11741, 0.0
        %v11774 = vmax.f32 %v11742, 0.0
        %v11775 = vmax.f32 %v11743, 0.0
        %v11776 = vmax.f32 %v11744, 0.0
        %v11777 = vmax.f32 %v11745, 0.0
        %v11778 = vmax.f32 %v11746, 0.0
        %v11779 = vmax.f32 %v11747, 0.0
        %v11780 = vmax.f32 %v11748, 0.0
        %v11781 = vmax.f32 %v11749, 0.0
        %v11782 = vmax.f32 %v11750, 0.0
        %v11783 = vmax.f32 %v11751, 0.0
        %v11784 = vmax.f32 %v11752, 0.0
        %v11785 = vmax.f32 %v11753, 0.0
        %v11786 = vmax.f32 %v11754, 0.0
        %v11787 = vmax.f32 %v11755, 0.0
        %v11788 = vmax.f32 %v11756, 0.0
        %v11789 = vmax.f32 %v11757, 0.0
        %11790 = vst [vmem:[%s374] sm:$0xff] %v11758
        %11791 = vst [vmem:[%s374 + $0x8] sm:$0xff] %v11759
        %11792 = vst [vmem:[%s374 + $0x10] sm:$0xff] %v11760
        %11793 = vst [vmem:[%s374 + $0x18] sm:$0xff] %v11761
        %11794 = vst [vmem:[%s374 + $0x20] sm:$0xff] %v11762
        %11795 = vst [vmem:[%s374 + $0x28] sm:$0xff] %v11763
        %11796 = vst [vmem:[%s374 + $0x30] sm:$0xff] %v11764
        %11797 = vst [vmem:[%s374 + $0x38] sm:$0xff] %v11765
        %11798 = vst [vmem:[%s374 + $0x40] sm:$0xff] %v11766
        %11799 = vst [vmem:[%s374 + $0x48] sm:$0xff] %v11767
        %11800 = vst [vmem:[%s374 + $0x50] sm:$0xff] %v11768
        %11801 = vst [vmem:[%s374 + $0x58] sm:$0xff] %v11769
        %11802 = vst [vmem:[%s374 + $0x60] sm:$0xff] %v11770
        %11803 = vst [vmem:[%s374 + $0x68] sm:$0xff] %v11771
        %11804 = vst [vmem:[%s374 + $0x70] sm:$0xff] %v11772
        %11805 = vst [vmem:[%s374 + $0x78] sm:$0xff] %v11773
        %11806 = vst [vmem:[%s374 + $0x80] sm:$0xff] %v11774
        %11807 = vst [vmem:[%s374 + $0x88] sm:$0xff] %v11775
        %11808 = vst [vmem:[%s374 + $0x90] sm:$0xff] %v11776
        %11809 = vst [vmem:[%s374 + $0x98] sm:$0xff] %v11777
        %11810 = vst [vmem:[%s374 + $0xa0] sm:$0xff] %v11778
        %11811 = vst [vmem:[%s374 + $0xa8] sm:$0xff] %v11779
        %11812 = vst [vmem:[%s374 + $0xb0] sm:$0xff] %v11780
        %11813 = vst [vmem:[%s374 + $0xb8] sm:$0xff] %v11781
        %11814 = vst [vmem:[%s374 + $0xc0] sm:$0xff] %v11782
        %11815 = vst [vmem:[%s374 + $0xc8] sm:$0xff] %v11783
        %11816 = vst [vmem:[%s374 + $0xd0] sm:$0xff] %v11784
        %11817 = vst [vmem:[%s374 + $0xd8] sm:$0xff] %v11785
        %11818 = vst [vmem:[%s374 + $0xe0] sm:$0xff] %v11786
        %11819 = vst [vmem:[%s374 + $0xe8] sm:$0xff] %v11787
        %11820 = vst [vmem:[%s374 + $0xf0] sm:$0xff] %v11788
        %11821 = vst [vmem:[%s374 + $0xf8] sm:$0xff] %v11789
        %p11822 = scmp.lt.s32.totalorder %s22, 1
        %s11823 = scalar_select %p11822, %s22, 1
        %s11824 = smul.addr %s11823, 32
        %s11825 = smul.addr %s11824, 8
        %s11826 = scalar_lea.vmem %s10, %s11825
        // Predicated region
        $region65: #{_lambda_.1} parent=59 // pred_check
          %p11827 = pneg %p255
        $region66: #{_lambda_.1} parent=59 // pred_check_branch
          %11829 = sbr.rel (%p11827) target = $region68
        $region67: #{_lambda_.1} parent=59 // pred_region
          _
        $region68: #{_lambda_.1} parent=59 // pred_fallthru
          _
      $region60: #{_lambda_.1} parent=5 // pred_fallthru
        _
      %p11830 = scmp.le.s32.totalorder 2, %s17
      // Predicated region
      $region69: #{_lambda_.1} parent=5 // pred_check
        %p11831 = pneg %p11830
      $region70: #{_lambda_.1} parent=5 // pred_check_branch
        %11833 = sbr.rel (%p11831) target = $region72
      $region71: #{_lambda_.1} parent=5 // pred_region
        %s11834 = ssub.s32 %s17, 2
        // Predicated region
        $region73: #{_lambda_.1} parent=71 // pred_check
          %p11835 = pneg %p261
        $region74: #{_lambda_.1} parent=71 // pred_check_branch
          %11837 = sbr.rel (%p11835) target = $region76
        $region75: #{_lambda_.1} parent=71 // pred_region
          %p11838 = scmp.lt.s32.totalorder %s23, 1
          %s11839 = scalar_select %p11838, %s23, 1
          %s11840 = smul.addr %s11839, 32
          %s11841 = smul.addr %s11840, 8
          %s11842 = scalar_lea.vmem %s10, %s11841
        $region76: #{_lambda_.1} parent=71 // pred_fallthru
          _
      $region72: #{_lambda_.1} parent=5 // pred_fallthru
        _
    $region6: #{_lambda_.1} parent=1 // loop_footer
      %s21 = sadd.s32 1, %s17
    $region7: #{_lambda_.1} parent=1 // loop_footer_branch
      %16 = sbr.rel target = $region3
    $region8: #{_lambda_.1} parent=1 // loop_exit
      _
    %11843 = vsyncpa [#allocation6], 1
    %s11844 = scalar_lea.sflag [#allocation6], 1
    %11845 = vsyncpa %s11844, 1

</llo_original>
